<compile_context>
chip_gen: v6e
topology: v6e:2x2x1
jax: 0.10.0
libtpu: 0.0.40
codegen_flags: <defaults>
</compile_context>

<pallas_src>
import numpy as np
import jax
import jax.numpy as jnp
from jax.experimental import pallas as pl
from jax.experimental.pallas import tpu as pltpu

D = 6
W = 128
INPUT_CH = 4
OUTPUT_CH = 3
FIRST_OMEGA = 30.0
HIDDEN_OMEGA = 1.0

_TWO_PI = 6.283185307179586
_INV_TWO_PI = 0.15915494309189535
_PI = 3.141592653589793
_HALF_PI = 1.5707963267948966
# Degree-7 odd minimax coefficients for sin on [-pi/2, pi/2] (Cephes-style).
_S3 = -1.6666654611e-1
_S5 = 8.3321608736e-3
_S7 = -1.9515295891e-4


def _fast_sin(x):
    """sin(x): one 2*pi fold + reflection + degree-7 odd polynomial.

    Max abs error ~1e-4 for the argument range used here (|x| <~ 50).
    Pure VPU mul/add/floor/select work -- much cheaper than the libm-style
    sin expansion, and sin is the saturating slot of this kernel.
    """
    n = jnp.floor(x * _INV_TWO_PI + 0.5)
    r = x - n * _TWO_PI                                   # r in ~[-pi, pi]
    y = jnp.where(r > _HALF_PI, _PI - r,
                  jnp.where(r < -_HALF_PI, -_PI - r, r))  # y in [-pi/2, pi/2]
    s = y * y
    return y * (1.0 + s * (_S3 + s * (_S5 + s * _S7)))


def siren_vel_kernel(xt_ref, w0t_ref, b0_ref, wht_ref, bh_ref, wft_ref, bf_ref,
                     ot_ref):
    # Features-major (transposed) layout: the point dimension is the lane axis,
    # so every block here is lane-dense.
    #   xt : (INPUT_CH, tm) f32          ot : (OUTPUT_CH, tm) f32
    #   w0t: (W, INPUT_CH) f32  (omega_0=30 folded in), b0: (W, 1) f32 (folded)
    #   wht: (D-1, W, W) bf16   (per-layer transposed), bh: (D-1, W, 1) f32
    #   wft: (OUTPUT_CH, W) f32, bf: (OUTPUT_CH, 1) f32

    # First SineLayer (omega folded into params; sin argument ~ +/-45, keep f32).
    h = jnp.dot(w0t_ref[...], xt_ref[...],
                preferred_element_type=jnp.float32) + b0_ref[...]
    h = _fast_sin(h)

    # Hidden SineLayers (omega_0 = 1.0), unrolled.  bf16 operands on the MXU,
    # f32 accumulate; activation math stays f32 (keeps error inside tolerance,
    # and v5e has no bf16 VPU).
    for i in range(D - 1):
        h = jnp.dot(wht_ref[i], h.astype(jnp.bfloat16),
                    preferred_element_type=jnp.float32) + bh_ref[i]
        h = _fast_sin(h)

    # Final plain Linear: W -> OUTPUT_CH (tiny, f32).  Output block is
    # lane-dense (3, tm): unmasked dense stores.
    out = jnp.dot(wft_ref[...], h, preferred_element_type=jnp.float32) + bf_ref[...]
    ot_ref[...] = out.astype(ot_ref.dtype)


def _cdiv(a, b):
    return -(-a // b)


def _round_up(n, m):
    return _cdiv(n, m) * m


def _choose_tiling(n, tm_max):
    """Pick (tile_rows, padded_n, num_tiles) from N.

    - tile count rounded up to even when >1 so the grid splits evenly across
      v7x's two TensorCores (harmless elsewhere);
    - tile size derived from N so padding waste is bounded (<128 rows/tile),
      instead of padding N up to a fixed large multiple.
    """
    ntiles = _cdiv(n, tm_max)
    if ntiles > 1 and ntiles % 2:
        ntiles += 1
    tm_eff = _round_up(_cdiv(n, ntiles), 128)   # lane dim must be 128-multiple
    return tm_eff, ntiles * tm_eff, ntiles


def siren_vel_forward(x, params, *, tm=4096, vmem_limit_bytes=32 << 20):
    """x: (N, INPUT_CH) float32, any N.  Returns (N, OUTPUT_CH) float32."""
    N, in_ch = x.shape
    assert in_ch == INPUT_CH
    w0, b0, wh, bh, wf, bf = params

    # One-time param massaging (outside the kernel):
    #  * fold first_omega_0 = 30 into (w0, b0) -> hot loop is just sin(Wx + b)
    #  * transpose everything into features-major layout
    #  * hidden weights in bf16 for the MXU; all biases stay f32
    w0t = (w0 * FIRST_OMEGA).astype(jnp.float32).T        # (W, INPUT_CH)
    b0c = (b0 * FIRST_OMEGA).astype(jnp.float32).T        # (W, 1)
    wht = jnp.swapaxes(wh, 1, 2).astype(jnp.bfloat16)     # (D-1, W, W)
    bhc = jnp.swapaxes(bh, 1, 2).astype(jnp.float32)      # (D-1, W, 1)
    wft = wf.astype(jnp.float32).T                        # (OUTPUT_CH, W)
    bfc = bf.astype(jnp.float32).T                        # (OUTPUT_CH, 1)

    tm_eff, n_pad, ntiles = _choose_tiling(N, tm)

    xt = x.T                                              # (INPUT_CH, N), lane-dense
    if n_pad != N:
        xt = jnp.pad(xt, ((0, 0), (0, n_pad - N)))

    out_t = pl.pallas_call(
        siren_vel_kernel,
        out_shape=jax.ShapeDtypeStruct((OUTPUT_CH, n_pad), jnp.float32),
        grid_spec=pltpu.PrefetchScalarGridSpec(
            num_scalar_prefetch=0,
            grid=(ntiles,),
            in_specs=[
                pl.BlockSpec((INPUT_CH, tm_eff), lambda i: (0, i)),   # x tile
                pl.BlockSpec((W, INPUT_CH), lambda i: (0, 0)),        # w0^T (folded)
                pl.BlockSpec((W, 1), lambda i: (0, 0)),               # b0 (folded)
                pl.BlockSpec((D - 1, W, W), lambda i: (0, 0, 0)),     # hidden W^T bf16
                pl.BlockSpec((D - 1, W, 1), lambda i: (0, 0, 0)),     # hidden b f32
                pl.BlockSpec((OUTPUT_CH, W), lambda i: (0, 0)),       # final W^T
                pl.BlockSpec((OUTPUT_CH, 1), lambda i: (0, 0)),       # final b
            ],
            out_specs=pl.BlockSpec((OUTPUT_CH, tm_eff), lambda i: (0, i)),
        ),
        compiler_params=pltpu.CompilerParams(
            dimension_semantics=("parallel",),
            vmem_limit_bytes=vmem_limit_bytes),
    )(xt, w0t, b0c, wht, bhc, wft, bfc)

    return out_t[:, :N].T


def init_params(key):
    """Deterministic init matching the SineLayer init distributions."""
    ks = jax.random.split(key, 2 * (D + 1))
    # First layer: Linear(INPUT_CH, W), weight uniform(-1/in, 1/in)
    w0 = jax.random.uniform(ks[0], (INPUT_CH, W), jnp.float32,
                            -1.0 / INPUT_CH, 1.0 / INPUT_CH)
    b0 = jax.random.uniform(ks[1], (1, W), jnp.float32,
                            -1.0 / np.sqrt(INPUT_CH), 1.0 / np.sqrt(INPUT_CH))
    # Hidden layers: Linear(W, W), weight uniform(+-sqrt(6/W)/omega)
    lim = np.sqrt(6.0 / W) / HIDDEN_OMEGA
    wh, bh = [], []
    for i in range(D - 1):
        wh.append(jax.random.uniform(ks[2 + 2 * i], (W, W), jnp.float32, -lim, lim))
        bh.append(jax.random.uniform(ks[3 + 2 * i], (1, W), jnp.float32,
                                     -1.0 / np.sqrt(W), 1.0 / np.sqrt(W)))
    wh = jnp.stack(wh, 0)            # (D-1, W, W)
    bh = jnp.stack(bh, 0)            # (D-1, 1, W)
    # Final Linear: default PyTorch Linear init (uniform +-1/sqrt(W))
    wf = jax.random.uniform(ks[-2], (W, OUTPUT_CH), jnp.float32,
                            -1.0 / np.sqrt(W), 1.0 / np.sqrt(W))
    bf = jax.random.uniform(ks[-1], (1, OUTPUT_CH), jnp.float32,
                            -1.0 / np.sqrt(W), 1.0 / np.sqrt(W))
    return w0, b0, wh, bh, wf, bf


def siren_vel_reference(x, params):
    """Pure-JAX f32 reference mirroring the PyTorch forward (stacked SineLayers)."""
    w0, b0, wh, bh, wf, bf = params
    h = jnp.sin(FIRST_OMEGA * (x @ w0 + b0))
    for i in range(D - 1):
        h = jnp.sin(HIDDEN_OMEGA * (h @ wh[i] + bh[i]))
    return h @ wf + bf


if __name__ == "__main__":
    key = jax.random.PRNGKey(0)
    kx, kp = jax.random.split(key)

    N = 1000                                 # small, non-multiple: exercises padding
    x = jax.random.uniform(kx, (N, INPUT_CH), jnp.float32, -1.0, 1.0)
    params = init_params(kp)

    # tm=512 -> 2 tiles of 512 rows (even grid for v7x's two TensorCores).
    out = siren_vel_forward(x, params, tm=512)
    out = jax.block_until_ready(out)

    ref = siren_vel_reference(x, params)
    # Looser tolerance: hidden matmuls run in bf16 and sin is a ~1e-4 polynomial.
    np.testing.assert_allclose(np.asarray(out), np.asarray(ref),
                               rtol=2e-2, atol=2e-2)

    assert out.shape == (N, OUTPUT_CH)
    print("KERNEL_OK")
</pallas_src>

<mosaic_0001>
module attributes {stable_mosaic.version = 11 : i64} {
  func.func @siren_vel_kernel(%arg0: i32, %arg1: memref<4x512xf32, #tpu.memory_space<vmem>>, %arg2: memref<128x4xf32, #tpu.memory_space<vmem>>, %arg3: memref<128x1xf32, #tpu.memory_space<vmem>>, %arg4: memref<5x128x128xbf16, #tpu.memory_space<vmem>>, %arg5: memref<5x128x1xf32, #tpu.memory_space<vmem>>, %arg6: memref<3x128xf32, #tpu.memory_space<vmem>>, %arg7: memref<3x1xf32, #tpu.memory_space<vmem>>, %arg8: memref<3x512xf32, #tpu.memory_space<vmem>>) attributes {dimension_semantics = [#tpu.dimension_semantics<parallel>], iteration_bounds = array<i64: 2>, scalar_prefetch = 0 : i64, scratch_operands = 0 : i64, tpu.core_type = #tpu.core_type<tc>, window_params = [{transform_indices = @transform_0, window_bounds = array<i64: 4, 512>}, {pipeline_mode = #tpu.pipeline_mode<synchronous>, transform_indices = @transform_1, window_bounds = array<i64: 128, 4>}, {pipeline_mode = #tpu.pipeline_mode<synchronous>, transform_indices = @transform_2, window_bounds = array<i64: 128, 1>}, {pipeline_mode = #tpu.pipeline_mode<synchronous>, transform_indices = @transform_3, window_bounds = array<i64: 5, 128, 128>}, {pipeline_mode = #tpu.pipeline_mode<synchronous>, transform_indices = @transform_4, window_bounds = array<i64: 5, 128, 1>}, {pipeline_mode = #tpu.pipeline_mode<synchronous>, transform_indices = @transform_5, window_bounds = array<i64: 3, 128>}, {pipeline_mode = #tpu.pipeline_mode<synchronous>, transform_indices = @transform_6, window_bounds = array<i64: 3, 1>}, {transform_indices = @transform_7, window_bounds = array<i64: 3, 512>}]} {
    %c0 = arith.constant 0 : index
    %c0_0 = arith.constant 0 : index
    %0 = vector.load %arg2[%c0, %c0_0] : memref<128x4xf32, #tpu.memory_space<vmem>>, vector<128x4xf32>
    %c0_1 = arith.constant 0 : index
    %c0_2 = arith.constant 0 : index
    %1 = vector.load %arg1[%c0_1, %c0_2] : memref<4x512xf32, #tpu.memory_space<vmem>>, vector<4x512xf32>
    %cst = arith.constant dense<0.000000e+00> : vector<128x512xf32>
    %2 = tpu.matmul %0, %1, %cst {dimension_numbers = #tpu.dot_dimension_numbers<[1], [0], [0], [1], [0, 0, 1, 1], [], []>} : vector<128x4xf32>, vector<4x512xf32>, vector<128x512xf32> -> vector<128x512xf32>
    %c0_3 = arith.constant 0 : index
    %c0_4 = arith.constant 0 : index
    %3 = vector.load %arg3[%c0_3, %c0_4] : memref<128x1xf32, #tpu.memory_space<vmem>>, vector<128x1xf32>
    %4 = vector.broadcast %3 : vector<128x1xf32> to vector<128x512xf32>
    %5 = arith.addf %2, %4 : vector<128x512xf32>
    %cst_5 = arith.constant 0.159154937 : f32
    %6 = vector.broadcast %cst_5 : f32 to vector<128x512xf32>
    %7 = arith.mulf %5, %6 : vector<128x512xf32>
    %cst_6 = arith.constant 5.000000e-01 : f32
    %8 = vector.broadcast %cst_6 : f32 to vector<128x512xf32>
    %9 = arith.addf %7, %8 : vector<128x512xf32>
    %10 = math.floor %9 : vector<128x512xf32>
    %cst_7 = arith.constant 6.28318548 : f32
    %11 = vector.broadcast %cst_7 : f32 to vector<128x512xf32>
    %12 = arith.mulf %10, %11 : vector<128x512xf32>
    %13 = arith.subf %5, %12 : vector<128x512xf32>
    %cst_8 = arith.constant 1.57079637 : f32
    %14 = vector.broadcast %cst_8 : f32 to vector<128x512xf32>
    %15 = arith.cmpf ogt, %13, %14 : vector<128x512xf32>
    %cst_9 = arith.constant 3.14159274 : f32
    %16 = vector.broadcast %cst_9 : f32 to vector<128x512xf32>
    %17 = arith.subf %16, %13 : vector<128x512xf32>
    %cst_10 = arith.constant -1.57079637 : f32
    %18 = vector.broadcast %cst_10 : f32 to vector<128x512xf32>
    %19 = arith.cmpf olt, %13, %18 : vector<128x512xf32>
    %cst_11 = arith.constant -3.14159274 : f32
    %20 = vector.broadcast %cst_11 : f32 to vector<128x512xf32>
    %21 = arith.subf %20, %13 : vector<128x512xf32>
    %22 = arith.select %19, %21, %13 : vector<128x512xi1>, vector<128x512xf32>
    %23 = arith.select %15, %17, %22 : vector<128x512xi1>, vector<128x512xf32>
    %24 = arith.mulf %23, %23 : vector<128x512xf32>
    %cst_12 = arith.constant -1.95152956E-4 : f32
    %25 = vector.broadcast %cst_12 : f32 to vector<128x512xf32>
    %26 = arith.mulf %24, %25 : vector<128x512xf32>
    %cst_13 = arith.constant 0.00833216123 : f32
    %27 = vector.broadcast %cst_13 : f32 to vector<128x512xf32>
    %28 = arith.addf %27, %26 : vector<128x512xf32>
    %29 = arith.mulf %24, %28 : vector<128x512xf32>
    %cst_14 = arith.constant -0.166666552 : f32
    %30 = vector.broadcast %cst_14 : f32 to vector<128x512xf32>
    %31 = arith.addf %30, %29 : vector<128x512xf32>
    %32 = arith.mulf %24, %31 : vector<128x512xf32>
    %cst_15 = arith.constant 1.000000e+00 : f32
    %33 = vector.broadcast %cst_15 : f32 to vector<128x512xf32>
    %34 = arith.addf %33, %32 : vector<128x512xf32>
    %35 = arith.mulf %23, %34 : vector<128x512xf32>
    %c0_16 = arith.constant 0 : index
    %c0_17 = arith.constant 0 : index
    %c0_18 = arith.constant 0 : index
    %36 = vector.load %arg4[%c0_16, %c0_17, %c0_18] : memref<5x128x128xbf16, #tpu.memory_space<vmem>>, vector<1x128x128xbf16>
    %37 = vector.shape_cast %36 : vector<1x128x128xbf16> to vector<128x128xbf16>
    %38 = arith.truncf %35 : vector<128x512xf32> to vector<128x512xbf16>
    %cst_19 = arith.constant dense<0.000000e+00> : vector<128x512xf32>
    %39 = tpu.matmul %37, %38, %cst_19 {dimension_numbers = #tpu.dot_dimension_numbers<[1], [0], [0], [1], [0, 0, 1, 1], [], []>} : vector<128x128xbf16>, vector<128x512xbf16>, vector<128x512xf32> -> vector<128x512xf32>
    %c0_20 = arith.constant 0 : index
    %c0_21 = arith.constant 0 : index
    %c0_22 = arith.constant 0 : index
    %40 = vector.load %arg5[%c0_20, %c0_21, %c0_22] : memref<5x128x1xf32, #tpu.memory_space<vmem>>, vector<1x128x1xf32>
    %41 = vector.shape_cast %40 : vector<1x128x1xf32> to vector<128x1xf32>
    %42 = vector.broadcast %41 : vector<128x1xf32> to vector<128x512xf32>
    %43 = arith.addf %39, %42 : vector<128x512xf32>
    %cst_23 = arith.constant 0.159154937 : f32
    %44 = vector.broadcast %cst_23 : f32 to vector<128x512xf32>
    %45 = arith.mulf %43, %44 : vector<128x512xf32>
    %cst_24 = arith.constant 5.000000e-01 : f32
    %46 = vector.broadcast %cst_24 : f32 to vector<128x512xf32>
    %47 = arith.addf %45, %46 : vector<128x512xf32>
    %48 = math.floor %47 : vector<128x512xf32>
    %cst_25 = arith.constant 6.28318548 : f32
    %49 = vector.broadcast %cst_25 : f32 to vector<128x512xf32>
    %50 = arith.mulf %48, %49 : vector<128x512xf32>
    %51 = arith.subf %43, %50 : vector<128x512xf32>
    %cst_26 = arith.constant 1.57079637 : f32
    %52 = vector.broadcast %cst_26 : f32 to vector<128x512xf32>
    %53 = arith.cmpf ogt, %51, %52 : vector<128x512xf32>
    %cst_27 = arith.constant 3.14159274 : f32
    %54 = vector.broadcast %cst_27 : f32 to vector<128x512xf32>
    %55 = arith.subf %54, %51 : vector<128x512xf32>
    %cst_28 = arith.constant -1.57079637 : f32
    %56 = vector.broadcast %cst_28 : f32 to vector<128x512xf32>
    %57 = arith.cmpf olt, %51, %56 : vector<128x512xf32>
    %cst_29 = arith.constant -3.14159274 : f32
    %58 = vector.broadcast %cst_29 : f32 to vector<128x512xf32>
    %59 = arith.subf %58, %51 : vector<128x512xf32>
    %60 = arith.select %57, %59, %51 : vector<128x512xi1>, vector<128x512xf32>
    %61 = arith.select %53, %55, %60 : vector<128x512xi1>, vector<128x512xf32>
    %62 = arith.mulf %61, %61 : vector<128x512xf32>
    %cst_30 = arith.constant -1.95152956E-4 : f32
    %63 = vector.broadcast %cst_30 : f32 to vector<128x512xf32>
    %64 = arith.mulf %62, %63 : vector<128x512xf32>
    %cst_31 = arith.constant 0.00833216123 : f32
    %65 = vector.broadcast %cst_31 : f32 to vector<128x512xf32>
    %66 = arith.addf %65, %64 : vector<128x512xf32>
    %67 = arith.mulf %62, %66 : vector<128x512xf32>
    %cst_32 = arith.constant -0.166666552 : f32
    %68 = vector.broadcast %cst_32 : f32 to vector<128x512xf32>
    %69 = arith.addf %68, %67 : vector<128x512xf32>
    %70 = arith.mulf %62, %69 : vector<128x512xf32>
    %cst_33 = arith.constant 1.000000e+00 : f32
    %71 = vector.broadcast %cst_33 : f32 to vector<128x512xf32>
    %72 = arith.addf %71, %70 : vector<128x512xf32>
    %73 = arith.mulf %61, %72 : vector<128x512xf32>
    %c1 = arith.constant 1 : index
    %c0_34 = arith.constant 0 : index
    %c0_35 = arith.constant 0 : index
    %74 = vector.load %arg4[%c1, %c0_34, %c0_35] : memref<5x128x128xbf16, #tpu.memory_space<vmem>>, vector<1x128x128xbf16>
    %75 = vector.shape_cast %74 : vector<1x128x128xbf16> to vector<128x128xbf16>
    %76 = arith.truncf %73 : vector<128x512xf32> to vector<128x512xbf16>
    %cst_36 = arith.constant dense<0.000000e+00> : vector<128x512xf32>
    %77 = tpu.matmul %75, %76, %cst_36 {dimension_numbers = #tpu.dot_dimension_numbers<[1], [0], [0], [1], [0, 0, 1, 1], [], []>} : vector<128x128xbf16>, vector<128x512xbf16>, vector<128x512xf32> -> vector<128x512xf32>
    %c1_37 = arith.constant 1 : index
    %c0_38 = arith.constant 0 : index
    %c0_39 = arith.constant 0 : index
    %78 = vector.load %arg5[%c1_37, %c0_38, %c0_39] : memref<5x128x1xf32, #tpu.memory_space<vmem>>, vector<1x128x1xf32>
    %79 = vector.shape_cast %78 : vector<1x128x1xf32> to vector<128x1xf32>
    %80 = vector.broadcast %79 : vector<128x1xf32> to vector<128x512xf32>
    %81 = arith.addf %77, %80 : vector<128x512xf32>
    %cst_40 = arith.constant 0.159154937 : f32
    %82 = vector.broadcast %cst_40 : f32 to vector<128x512xf32>
    %83 = arith.mulf %81, %82 : vector<128x512xf32>
    %cst_41 = arith.constant 5.000000e-01 : f32
    %84 = vector.broadcast %cst_41 : f32 to vector<128x512xf32>
    %85 = arith.addf %83, %84 : vector<128x512xf32>
    %86 = math.floor %85 : vector<128x512xf32>
    %cst_42 = arith.constant 6.28318548 : f32
    %87 = vector.broadcast %cst_42 : f32 to vector<128x512xf32>
    %88 = arith.mulf %86, %87 : vector<128x512xf32>
    %89 = arith.subf %81, %88 : vector<128x512xf32>
    %cst_43 = arith.constant 1.57079637 : f32
    %90 = vector.broadcast %cst_43 : f32 to vector<128x512xf32>
    %91 = arith.cmpf ogt, %89, %90 : vector<128x512xf32>
    %cst_44 = arith.constant 3.14159274 : f32
    %92 = vector.broadcast %cst_44 : f32 to vector<128x512xf32>
    %93 = arith.subf %92, %89 : vector<128x512xf32>
    %cst_45 = arith.constant -1.57079637 : f32
    %94 = vector.broadcast %cst_45 : f32 to vector<128x512xf32>
    %95 = arith.cmpf olt, %89, %94 : vector<128x512xf32>
    %cst_46 = arith.constant -3.14159274 : f32
    %96 = vector.broadcast %cst_46 : f32 to vector<128x512xf32>
    %97 = arith.subf %96, %89 : vector<128x512xf32>
    %98 = arith.select %95, %97, %89 : vector<128x512xi1>, vector<128x512xf32>
    %99 = arith.select %91, %93, %98 : vector<128x512xi1>, vector<128x512xf32>
    %100 = arith.mulf %99, %99 : vector<128x512xf32>
    %cst_47 = arith.constant -1.95152956E-4 : f32
    %101 = vector.broadcast %cst_47 : f32 to vector<128x512xf32>
    %102 = arith.mulf %100, %101 : vector<128x512xf32>
    %cst_48 = arith.constant 0.00833216123 : f32
    %103 = vector.broadcast %cst_48 : f32 to vector<128x512xf32>
    %104 = arith.addf %103, %102 : vector<128x512xf32>
    %105 = arith.mulf %100, %104 : vector<128x512xf32>
    %cst_49 = arith.constant -0.166666552 : f32
    %106 = vector.broadcast %cst_49 : f32 to vector<128x512xf32>
    %107 = arith.addf %106, %105 : vector<128x512xf32>
    %108 = arith.mulf %100, %107 : vector<128x512xf32>
    %cst_50 = arith.constant 1.000000e+00 : f32
    %109 = vector.broadcast %cst_50 : f32 to vector<128x512xf32>
    %110 = arith.addf %109, %108 : vector<128x512xf32>
    %111 = arith.mulf %99, %110 : vector<128x512xf32>
    %c2 = arith.constant 2 : index
    %c0_51 = arith.constant 0 : index
    %c0_52 = arith.constant 0 : index
    %112 = vector.load %arg4[%c2, %c0_51, %c0_52] : memref<5x128x128xbf16, #tpu.memory_space<vmem>>, vector<1x128x128xbf16>
    %113 = vector.shape_cast %112 : vector<1x128x128xbf16> to vector<128x128xbf16>
    %114 = arith.truncf %111 : vector<128x512xf32> to vector<128x512xbf16>
    %cst_53 = arith.constant dense<0.000000e+00> : vector<128x512xf32>
    %115 = tpu.matmul %113, %114, %cst_53 {dimension_numbers = #tpu.dot_dimension_numbers<[1], [0], [0], [1], [0, 0, 1, 1], [], []>} : vector<128x128xbf16>, vector<128x512xbf16>, vector<128x512xf32> -> vector<128x512xf32>
    %c2_54 = arith.constant 2 : index
    %c0_55 = arith.constant 0 : index
    %c0_56 = arith.constant 0 : index
    %116 = vector.load %arg5[%c2_54, %c0_55, %c0_56] : memref<5x128x1xf32, #tpu.memory_space<vmem>>, vector<1x128x1xf32>
    %117 = vector.shape_cast %116 : vector<1x128x1xf32> to vector<128x1xf32>
    %118 = vector.broadcast %117 : vector<128x1xf32> to vector<128x512xf32>
    %119 = arith.addf %115, %118 : vector<128x512xf32>
    %cst_57 = arith.constant 0.159154937 : f32
    %120 = vector.broadcast %cst_57 : f32 to vector<128x512xf32>
    %121 = arith.mulf %119, %120 : vector<128x512xf32>
    %cst_58 = arith.constant 5.000000e-01 : f32
    %122 = vector.broadcast %cst_58 : f32 to vector<128x512xf32>
    %123 = arith.addf %121, %122 : vector<128x512xf32>
    %124 = math.floor %123 : vector<128x512xf32>
    %cst_59 = arith.constant 6.28318548 : f32
    %125 = vector.broadcast %cst_59 : f32 to vector<128x512xf32>
    %126 = arith.mulf %124, %125 : vector<128x512xf32>
    %127 = arith.subf %119, %126 : vector<128x512xf32>
    %cst_60 = arith.constant 1.57079637 : f32
    %128 = vector.broadcast %cst_60 : f32 to vector<128x512xf32>
    %129 = arith.cmpf ogt, %127, %128 : vector<128x512xf32>
    %cst_61 = arith.constant 3.14159274 : f32
    %130 = vector.broadcast %cst_61 : f32 to vector<128x512xf32>
    %131 = arith.subf %130, %127 : vector<128x512xf32>
    %cst_62 = arith.constant -1.57079637 : f32
    %132 = vector.broadcast %cst_62 : f32 to vector<128x512xf32>
    %133 = arith.cmpf olt, %127, %132 : vector<128x512xf32>
    %cst_63 = arith.constant -3.14159274 : f32
    %134 = vector.broadcast %cst_63 : f32 to vector<128x512xf32>
    %135 = arith.subf %134, %127 : vector<128x512xf32>
    %136 = arith.select %133, %135, %127 : vector<128x512xi1>, vector<128x512xf32>
    %137 = arith.select %129, %131, %136 : vector<128x512xi1>, vector<128x512xf32>
    %138 = arith.mulf %137, %137 : vector<128x512xf32>
    %cst_64 = arith.constant -1.95152956E-4 : f32
    %139 = vector.broadcast %cst_64 : f32 to vector<128x512xf32>
    %140 = arith.mulf %138, %139 : vector<128x512xf32>
    %cst_65 = arith.constant 0.00833216123 : f32
    %141 = vector.broadcast %cst_65 : f32 to vector<128x512xf32>
    %142 = arith.addf %141, %140 : vector<128x512xf32>
    %143 = arith.mulf %138, %142 : vector<128x512xf32>
    %cst_66 = arith.constant -0.166666552 : f32
    %144 = vector.broadcast %cst_66 : f32 to vector<128x512xf32>
    %145 = arith.addf %144, %143 : vector<128x512xf32>
    %146 = arith.mulf %138, %145 : vector<128x512xf32>
    %cst_67 = arith.constant 1.000000e+00 : f32
    %147 = vector.broadcast %cst_67 : f32 to vector<128x512xf32>
    %148 = arith.addf %147, %146 : vector<128x512xf32>
    %149 = arith.mulf %137, %148 : vector<128x512xf32>
    %c3 = arith.constant 3 : index
    %c0_68 = arith.constant 0 : index
    %c0_69 = arith.constant 0 : index
    %150 = vector.load %arg4[%c3, %c0_68, %c0_69] : memref<5x128x128xbf16, #tpu.memory_space<vmem>>, vector<1x128x128xbf16>
    %151 = vector.shape_cast %150 : vector<1x128x128xbf16> to vector<128x128xbf16>
    %152 = arith.truncf %149 : vector<128x512xf32> to vector<128x512xbf16>
    %cst_70 = arith.constant dense<0.000000e+00> : vector<128x512xf32>
    %153 = tpu.matmul %151, %152, %cst_70 {dimension_numbers = #tpu.dot_dimension_numbers<[1], [0], [0], [1], [0, 0, 1, 1], [], []>} : vector<128x128xbf16>, vector<128x512xbf16>, vector<128x512xf32> -> vector<128x512xf32>
    %c3_71 = arith.constant 3 : index
    %c0_72 = arith.constant 0 : index
    %c0_73 = arith.constant 0 : index
    %154 = vector.load %arg5[%c3_71, %c0_72, %c0_73] : memref<5x128x1xf32, #tpu.memory_space<vmem>>, vector<1x128x1xf32>
    %155 = vector.shape_cast %154 : vector<1x128x1xf32> to vector<128x1xf32>
    %156 = vector.broadcast %155 : vector<128x1xf32> to vector<128x512xf32>
    %157 = arith.addf %153, %156 : vector<128x512xf32>
    %cst_74 = arith.constant 0.159154937 : f32
    %158 = vector.broadcast %cst_74 : f32 to vector<128x512xf32>
    %159 = arith.mulf %157, %158 : vector<128x512xf32>
    %cst_75 = arith.constant 5.000000e-01 : f32
    %160 = vector.broadcast %cst_75 : f32 to vector<128x512xf32>
    %161 = arith.addf %159, %160 : vector<128x512xf32>
    %162 = math.floor %161 : vector<128x512xf32>
    %cst_76 = arith.constant 6.28318548 : f32
    %163 = vector.broadcast %cst_76 : f32 to vector<128x512xf32>
    %164 = arith.mulf %162, %163 : vector<128x512xf32>
    %165 = arith.subf %157, %164 : vector<128x512xf32>
    %cst_77 = arith.constant 1.57079637 : f32
    %166 = vector.broadcast %cst_77 : f32 to vector<128x512xf32>
    %167 = arith.cmpf ogt, %165, %166 : vector<128x512xf32>
    %cst_78 = arith.constant 3.14159274 : f32
    %168 = vector.broadcast %cst_78 : f32 to vector<128x512xf32>
    %169 = arith.subf %168, %165 : vector<128x512xf32>
    %cst_79 = arith.constant -1.57079637 : f32
    %170 = vector.broadcast %cst_79 : f32 to vector<128x512xf32>
    %171 = arith.cmpf olt, %165, %170 : vector<128x512xf32>
    %cst_80 = arith.constant -3.14159274 : f32
    %172 = vector.broadcast %cst_80 : f32 to vector<128x512xf32>
    %173 = arith.subf %172, %165 : vector<128x512xf32>
    %174 = arith.select %171, %173, %165 : vector<128x512xi1>, vector<128x512xf32>
    %175 = arith.select %167, %169, %174 : vector<128x512xi1>, vector<128x512xf32>
    %176 = arith.mulf %175, %175 : vector<128x512xf32>
    %cst_81 = arith.constant -1.95152956E-4 : f32
    %177 = vector.broadcast %cst_81 : f32 to vector<128x512xf32>
    %178 = arith.mulf %176, %177 : vector<128x512xf32>
    %cst_82 = arith.constant 0.00833216123 : f32
    %179 = vector.broadcast %cst_82 : f32 to vector<128x512xf32>
    %180 = arith.addf %179, %178 : vector<128x512xf32>
    %181 = arith.mulf %176, %180 : vector<128x512xf32>
    %cst_83 = arith.constant -0.166666552 : f32
    %182 = vector.broadcast %cst_83 : f32 to vector<128x512xf32>
    %183 = arith.addf %182, %181 : vector<128x512xf32>
    %184 = arith.mulf %176, %183 : vector<128x512xf32>
    %cst_84 = arith.constant 1.000000e+00 : f32
    %185 = vector.broadcast %cst_84 : f32 to vector<128x512xf32>
    %186 = arith.addf %185, %184 : vector<128x512xf32>
    %187 = arith.mulf %175, %186 : vector<128x512xf32>
    %c4 = arith.constant 4 : index
    %c0_85 = arith.constant 0 : index
    %c0_86 = arith.constant 0 : index
    %188 = vector.load %arg4[%c4, %c0_85, %c0_86] : memref<5x128x128xbf16, #tpu.memory_space<vmem>>, vector<1x128x128xbf16>
    %189 = vector.shape_cast %188 : vector<1x128x128xbf16> to vector<128x128xbf16>
    %190 = arith.truncf %187 : vector<128x512xf32> to vector<128x512xbf16>
    %cst_87 = arith.constant dense<0.000000e+00> : vector<128x512xf32>
    %191 = tpu.matmul %189, %190, %cst_87 {dimension_numbers = #tpu.dot_dimension_numbers<[1], [0], [0], [1], [0, 0, 1, 1], [], []>} : vector<128x128xbf16>, vector<128x512xbf16>, vector<128x512xf32> -> vector<128x512xf32>
    %c4_88 = arith.constant 4 : index
    %c0_89 = arith.constant 0 : index
    %c0_90 = arith.constant 0 : index
    %192 = vector.load %arg5[%c4_88, %c0_89, %c0_90] : memref<5x128x1xf32, #tpu.memory_space<vmem>>, vector<1x128x1xf32>
    %193 = vector.shape_cast %192 : vector<1x128x1xf32> to vector<128x1xf32>
    %194 = vector.broadcast %193 : vector<128x1xf32> to vector<128x512xf32>
    %195 = arith.addf %191, %194 : vector<128x512xf32>
    %cst_91 = arith.constant 0.159154937 : f32
    %196 = vector.broadcast %cst_91 : f32 to vector<128x512xf32>
    %197 = arith.mulf %195, %196 : vector<128x512xf32>
    %cst_92 = arith.constant 5.000000e-01 : f32
    %198 = vector.broadcast %cst_92 : f32 to vector<128x512xf32>
    %199 = arith.addf %197, %198 : vector<128x512xf32>
    %200 = math.floor %199 : vector<128x512xf32>
    %cst_93 = arith.constant 6.28318548 : f32
    %201 = vector.broadcast %cst_93 : f32 to vector<128x512xf32>
    %202 = arith.mulf %200, %201 : vector<128x512xf32>
    %203 = arith.subf %195, %202 : vector<128x512xf32>
    %cst_94 = arith.constant 1.57079637 : f32
    %204 = vector.broadcast %cst_94 : f32 to vector<128x512xf32>
    %205 = arith.cmpf ogt, %203, %204 : vector<128x512xf32>
    %cst_95 = arith.constant 3.14159274 : f32
    %206 = vector.broadcast %cst_95 : f32 to vector<128x512xf32>
    %207 = arith.subf %206, %203 : vector<128x512xf32>
    %cst_96 = arith.constant -1.57079637 : f32
    %208 = vector.broadcast %cst_96 : f32 to vector<128x512xf32>
    %209 = arith.cmpf olt, %203, %208 : vector<128x512xf32>
    %cst_97 = arith.constant -3.14159274 : f32
    %210 = vector.broadcast %cst_97 : f32 to vector<128x512xf32>
    %211 = arith.subf %210, %203 : vector<128x512xf32>
    %212 = arith.select %209, %211, %203 : vector<128x512xi1>, vector<128x512xf32>
    %213 = arith.select %205, %207, %212 : vector<128x512xi1>, vector<128x512xf32>
    %214 = arith.mulf %213, %213 : vector<128x512xf32>
    %cst_98 = arith.constant -1.95152956E-4 : f32
    %215 = vector.broadcast %cst_98 : f32 to vector<128x512xf32>
    %216 = arith.mulf %214, %215 : vector<128x512xf32>
    %cst_99 = arith.constant 0.00833216123 : f32
    %217 = vector.broadcast %cst_99 : f32 to vector<128x512xf32>
    %218 = arith.addf %217, %216 : vector<128x512xf32>
    %219 = arith.mulf %214, %218 : vector<128x512xf32>
    %cst_100 = arith.constant -0.166666552 : f32
    %220 = vector.broadcast %cst_100 : f32 to vector<128x512xf32>
    %221 = arith.addf %220, %219 : vector<128x512xf32>
    %222 = arith.mulf %214, %221 : vector<128x512xf32>
    %cst_101 = arith.constant 1.000000e+00 : f32
    %223 = vector.broadcast %cst_101 : f32 to vector<128x512xf32>
    %224 = arith.addf %223, %222 : vector<128x512xf32>
    %225 = arith.mulf %213, %224 : vector<128x512xf32>
    %c0_102 = arith.constant 0 : index
    %c0_103 = arith.constant 0 : index
    %226 = vector.load %arg6[%c0_102, %c0_103] : memref<3x128xf32, #tpu.memory_space<vmem>>, vector<3x128xf32>
    %cst_104 = arith.constant dense<0.000000e+00> : vector<3x512xf32>
    %227 = tpu.matmul %226, %225, %cst_104 {dimension_numbers = #tpu.dot_dimension_numbers<[1], [0], [0], [1], [0, 0, 1, 1], [], []>} : vector<3x128xf32>, vector<128x512xf32>, vector<3x512xf32> -> vector<3x512xf32>
    %c0_105 = arith.constant 0 : index
    %c0_106 = arith.constant 0 : index
    %228 = vector.load %arg7[%c0_105, %c0_106] : memref<3x1xf32, #tpu.memory_space<vmem>>, vector<3x1xf32>
    %229 = vector.broadcast %228 : vector<3x1xf32> to vector<3x512xf32>
    %230 = arith.addf %227, %229 : vector<3x512xf32>
    %c0_107 = arith.constant 0 : index
    %c0_108 = arith.constant 0 : index
    %231 = vector.load %arg8[%c0_107, %c0_108] : memref<3x512xf32, #tpu.memory_space<vmem>>, vector<3x512xf32>
    tpu.vector_store %arg8[%c0_107, %c0_108], %230 {strides = array<i32>} : memref<3x512xf32, #tpu.memory_space<vmem>>, vector<3x512xf32>,
    return
  }
  func.func @transform_0(%arg0: i32) -> (i32, i32) {
    %c0_i32 = arith.constant 0 : i32
    %c0_i32_0 = arith.constant 0 : i32
    return %c0_i32, %arg0 : i32, i32
  }
  func.func @transform_1(%arg0: i32) -> (i32, i32) {
    %c0_i32 = arith.constant 0 : i32
    %c0_i32_0 = arith.constant 0 : i32
    %c0_i32_1 = arith.constant 0 : i32
    return %c0_i32, %c0_i32_0 : i32, i32
  }
  func.func @transform_2(%arg0: i32) -> (i32, i32) {
    %c0_i32 = arith.constant 0 : i32
    %c0_i32_0 = arith.constant 0 : i32
    %c0_i32_1 = arith.constant 0 : i32
    return %c0_i32, %c0_i32_0 : i32, i32
  }
  func.func @transform_3(%arg0: i32) -> (i32, i32, i32) {
    %c0_i32 = arith.constant 0 : i32
    %c0_i32_0 = arith.constant 0 : i32
    %c0_i32_1 = arith.constant 0 : i32
    %c0_i32_2 = arith.constant 0 : i32
    return %c0_i32, %c0_i32_0, %c0_i32_1 : i32, i32, i32
  }
  func.func @transform_4(%arg0: i32) -> (i32, i32, i32) {
    %c0_i32 = arith.constant 0 : i32
    %c0_i32_0 = arith.constant 0 : i32
    %c0_i32_1 = arith.constant 0 : i32
    %c0_i32_2 = arith.constant 0 : i32
    return %c0_i32, %c0_i32_0, %c0_i32_1 : i32, i32, i32
  }
  func.func @transform_5(%arg0: i32) -> (i32, i32) {
    %c0_i32 = arith.constant 0 : i32
    %c0_i32_0 = arith.constant 0 : i32
    %c0_i32_1 = arith.constant 0 : i32
    return %c0_i32, %c0_i32_0 : i32, i32
  }
  func.func @transform_6(%arg0: i32) -> (i32, i32) {
    %c0_i32 = arith.constant 0 : i32
    %c0_i32_0 = arith.constant 0 : i32
    %c0_i32_1 = arith.constant 0 : i32
    return %c0_i32, %c0_i32_0 : i32, i32
  }
  func.func @transform_7(%arg0: i32) -> (i32, i32) {
    %c0_i32 = arith.constant 0 : i32
    %c0_i32_0 = arith.constant 0 : i32
    return %c0_i32, %arg0 : i32, i32
  }
}

</mosaic_0001>

<llo_original>
// kernel: tpu_custom_call.1
$region0: #{tpu_custom_call.1}
  #allocation0 [shape = 'u32[]', space=smem, size = 0x4, offset = 0x4, fixed_abs, tag = 'smem constant byte address 0x4 - core index']
  #allocation1 [shape = 'u32[144,128]{1,0:T(1,128)}', space=vmem, size = 0x12000, scoped, tag = 'internal scratch']
  %s0 = inlined_call_operand.vmem [shape: f32[4,1024], index: 0, kind: input, shape index: {}]
  %s1 = inlined_call_operand.vmem [shape: f32[128,4], index: 1, kind: input, shape index: {}]
  %s2 = inlined_call_operand.vmem [shape: f32[128,1], index: 2, kind: input, shape index: {}]
  %s3 = inlined_call_operand.vmem [shape: bf16[5,128,128], index: 3, kind: input, shape index: {}]
  %s4 = inlined_call_operand.vmem [shape: f32[5,128,1], index: 4, kind: input, shape index: {}]
  %s5 = inlined_call_operand.vmem [shape: f32[3,128], index: 5, kind: input, shape index: {}]
  %s6 = inlined_call_operand.vmem [shape: f32[3,1], index: 6, kind: input, shape index: {}]
  %s7 = inlined_call_operand.hbm [shape: f32[3,1024], index: 7, kind: output, shape index: {}]
  %s8 = sld [smem:[#allocation0]]
  $region61: #{tpu_custom_call.1} parent=0
    _
  %s10 = ssub.s32 1, %s8
  %s11 = scalar_select 0, %s10, %s8
  $region1: #{tpu_custom_call.1} parent=0
    #allocation2 [shape = 'u8[16384]{0}', space=vmem, size = 0x4000, scoped, tag = 'output window, operand 0']
    #allocation3 [shape = 's32[2]{0}', space=sflag, size = 0x8, scoped, tag = 'scoped memory for tpu_custom_call.1']
    %12 = vsyncpa [#allocation3], 0
    %s13 = scalar_lea.sflag [#allocation3], 1
    %14 = vsyncpa %s13, 0
    loop: start=0, step=1, limit=4
    $region2: #{tpu_custom_call.1} parent=1 // loop_pre_header
      _
    $region3: #{tpu_custom_call.1} parent=1 // loop_header
      %s16 = sphi 0, %s20
      %p17 = scmp.ge.s32.totalorder %s16, 4
      %s26 = sphi 0, %s28
      %s29 = sphi 0, %s26
      %s30 = sphi 0, %s29
      %s46 = sphi 0, %s30
      %s50 = sphi 0, %s50
      %s52 = sphi 0, %s50
      %s53 = sphi 0, %s52
      %s67 = sphi 0, %s53
      %s71 = sphi 0, %s71
      %s73 = sphi 0, %s71
      %s74 = sphi 0, %s73
      %s88 = sphi 0, %s74
      %s92 = sphi 0, %s92
      %s94 = sphi 0, %s92
      %s95 = sphi 0, %s94
      %s109 = sphi 0, %s95
      %s113 = sphi 0, %s113
      %s115 = sphi 0, %s113
      %s116 = sphi 0, %s115
      %s130 = sphi 0, %s116
      %s134 = sphi 0, %s134
      %s136 = sphi 0, %s134
      %s137 = sphi 0, %s136
      %s151 = sphi 0, %s137
      %s155 = sphi 0, %s155
      %s157 = sphi 0, %s155
      %s158 = sphi 0, %s157
      %s172 = sphi 0, %s158
      %s178 = sphi 0, %s180
      %s181 = sphi 0, %s178
      %s182 = sphi 0, %s181
      %s198 = sphi 0, %s182
    $region4: #{tpu_custom_call.1} parent=1 // loop_header_branch
      %19 = sbr.rel (%p17) target = $region8
    $region5: #{tpu_custom_call.1} parent=1 // loop_body
      %s21 = ssub.s32 %s16, 1
      %s22 = ssub.s32 %s16, 2
      %s23 = sadd.s32 %s16, 1
      %s24 = ssub.s32 %s16, %s23
      %p25 = scmp.eq.s32.totalorder %s24, 0
      %s27 = sadd.s32 %s26, 1
      %s28 = scalar_select %p25, %s26, %s27
      %p31 = pneg %p25
      %p32 = scmp.eq.s32.totalorder %s16, 1
      %p33 = por %p31, %p32
      %p34 = scmp.ne.s32.totalorder %s26, %s29
      %p35 = scmp.eq.s32.totalorder %s16, 0
      %p36 = por %p34, %p35
      %p37 = scmp.ne.s32.totalorder %s26, %s29
      %p38 = scmp.eq.s32.totalorder %s21, 1
      %p39 = por %p37, %p38
      %p40 = scmp.ne.s32.totalorder %s29, %s30
      %p41 = scmp.eq.s32.totalorder %s21, 0
      %p42 = por %p40, %p41
      %p43 = scmp.ne.s32.totalorder %s29, %s30
      %p44 = scmp.eq.s32.totalorder %s22, 1
      %p45 = por %p43, %p44
      %p47 = scmp.ne.s32.totalorder %s30, %s46
      %p48 = scmp.eq.s32.totalorder %s22, 0
      %p49 = por %p47, %p48
      %s51 = sadd.s32 %s50, 1
      %p54 = scmp.eq.s32.totalorder %s16, 1
      %p55 = scmp.ne.s32.totalorder %s50, %s52
      %p56 = scmp.eq.s32.totalorder %s16, 0
      %p57 = por %p55, %p56
      %p58 = scmp.ne.s32.totalorder %s50, %s52
      %p59 = scmp.eq.s32.totalorder %s21, 1
      %p60 = por %p58, %p59
      %p61 = scmp.ne.s32.totalorder %s52, %s53
      %p62 = scmp.eq.s32.totalorder %s21, 0
      %p63 = por %p61, %p62
      %p64 = scmp.ne.s32.totalorder %s52, %s53
      %p65 = scmp.eq.s32.totalorder %s22, 1
      %p66 = por %p64, %p65
      %p68 = scmp.ne.s32.totalorder %s53, %s67
      %p69 = scmp.eq.s32.totalorder %s22, 0
      %p70 = por %p68, %p69
      %s72 = sadd.s32 %s71, 1
      %p75 = scmp.eq.s32.totalorder %s16, 1
      %p76 = scmp.ne.s32.totalorder %s71, %s73
      %p77 = scmp.eq.s32.totalorder %s16, 0
      %p78 = por %p76, %p77
      %p79 = scmp.ne.s32.totalorder %s71, %s73
      %p80 = scmp.eq.s32.totalorder %s21, 1
      %p81 = por %p79, %p80
      %p82 = scmp.ne.s32.totalorder %s73, %s74
      %p83 = scmp.eq.s32.totalorder %s21, 0
      %p84 = por %p82, %p83
      %p85 = scmp.ne.s32.totalorder %s73, %s74
      %p86 = scmp.eq.s32.totalorder %s22, 1
      %p87 = por %p85, %p86
      %p89 = scmp.ne.s32.totalorder %s74, %s88
      %p90 = scmp.eq.s32.totalorder %s22, 0
      %p91 = por %p89, %p90
      %s93 = sadd.s32 %s92, 1
      %p96 = scmp.eq.s32.totalorder %s16, 1
      %p97 = scmp.ne.s32.totalorder %s92, %s94
      %p98 = scmp.eq.s32.totalorder %s16, 0
      %p99 = por %p97, %p98
      %p100 = scmp.ne.s32.totalorder %s92, %s94
      %p101 = scmp.eq.s32.totalorder %s21, 1
      %p102 = por %p100, %p101
      %p103 = scmp.ne.s32.totalorder %s94, %s95
      %p104 = scmp.eq.s32.totalorder %s21, 0
      %p105 = por %p103, %p104
      %p106 = scmp.ne.s32.totalorder %s94, %s95
      %p107 = scmp.eq.s32.totalorder %s22, 1
      %p108 = por %p106, %p107
      %p110 = scmp.ne.s32.totalorder %s95, %s109
      %p111 = scmp.eq.s32.totalorder %s22, 0
      %p112 = por %p110, %p111
      %s114 = sadd.s32 %s113, 1
      %p117 = scmp.eq.s32.totalorder %s16, 1
      %p118 = scmp.ne.s32.totalorder %s113, %s115
      %p119 = scmp.eq.s32.totalorder %s16, 0
      %p120 = por %p118, %p119
      %p121 = scmp.ne.s32.totalorder %s113, %s115
      %p122 = scmp.eq.s32.totalorder %s21, 1
      %p123 = por %p121, %p122
      %p124 = scmp.ne.s32.totalorder %s115, %s116
      %p125 = scmp.eq.s32.totalorder %s21, 0
      %p126 = por %p124, %p125
      %p127 = scmp.ne.s32.totalorder %s115, %s116
      %p128 = scmp.eq.s32.totalorder %s22, 1
      %p129 = por %p127, %p128
      %p131 = scmp.ne.s32.totalorder %s116, %s130
      %p132 = scmp.eq.s32.totalorder %s22, 0
      %p133 = por %p131, %p132
      %s135 = sadd.s32 %s134, 1
      %p138 = scmp.eq.s32.totalorder %s16, 1
      %p139 = scmp.ne.s32.totalorder %s134, %s136
      %p140 = scmp.eq.s32.totalorder %s16, 0
      %p141 = por %p139, %p140
      %p142 = scmp.ne.s32.totalorder %s134, %s136
      %p143 = scmp.eq.s32.totalorder %s21, 1
      %p144 = por %p142, %p143
      %p145 = scmp.ne.s32.totalorder %s136, %s137
      %p146 = scmp.eq.s32.totalorder %s21, 0
      %p147 = por %p145, %p146
      %p148 = scmp.ne.s32.totalorder %s136, %s137
      %p149 = scmp.eq.s32.totalorder %s22, 1
      %p150 = por %p148, %p149
      %p152 = scmp.ne.s32.totalorder %s137, %s151
      %p153 = scmp.eq.s32.totalorder %s22, 0
      %p154 = por %p152, %p153
      %s156 = sadd.s32 %s155, 1
      %p159 = scmp.eq.s32.totalorder %s16, 1
      %p160 = scmp.ne.s32.totalorder %s155, %s157
      %p161 = scmp.eq.s32.totalorder %s16, 0
      %p162 = por %p160, %p161
      %p163 = scmp.ne.s32.totalorder %s155, %s157
      %p164 = scmp.eq.s32.totalorder %s21, 1
      %p165 = por %p163, %p164
      %p166 = scmp.ne.s32.totalorder %s157, %s158
      %p167 = scmp.eq.s32.totalorder %s21, 0
      %p168 = por %p166, %p167
      %p169 = scmp.ne.s32.totalorder %s157, %s158
      %p170 = scmp.eq.s32.totalorder %s22, 1
      %p171 = por %p169, %p170
      %p173 = scmp.ne.s32.totalorder %s158, %s172
      %p174 = scmp.eq.s32.totalorder %s22, 0
      %p175 = por %p173, %p174
      %s176 = ssub.s32 %s16, %s23
      %p177 = scmp.eq.s32.totalorder %s176, 0
      %s179 = sadd.s32 %s178, 1
      %s180 = scalar_select %p177, %s178, %s179
      %p183 = pneg %p177
      %p184 = scmp.eq.s32.totalorder %s16, 1
      %p185 = por %p183, %p184
      %p186 = scmp.ne.s32.totalorder %s178, %s181
      %p187 = scmp.eq.s32.totalorder %s16, 0
      %p188 = por %p186, %p187
      %p189 = scmp.ne.s32.totalorder %s178, %s181
      %p190 = scmp.eq.s32.totalorder %s21, 1
      %p191 = por %p189, %p190
      %p192 = scmp.ne.s32.totalorder %s181, %s182
      %p193 = scmp.eq.s32.totalorder %s21, 0
      %p194 = por %p192, %p193
      %p195 = scmp.ne.s32.totalorder %s181, %s182
      %p196 = scmp.eq.s32.totalorder %s22, 1
      %p197 = por %p195, %p196
      %p199 = scmp.ne.s32.totalorder %s182, %s198
      %p200 = scmp.eq.s32.totalorder %s22, 0
      %p201 = por %p199, %p200
      %p202 = scmp.le.s32.totalorder 1, %s16
      %p203 = scmp.lt.s32.totalorder %s16, 3
      %p204 = pnand %p202, %p203
      %p205 = pneg %p204
      // Predicated region
      $region9: #{tpu_custom_call.1} parent=5 // pred_check
        _
      $region10: #{tpu_custom_call.1} parent=5 // pred_check_branch
        %207 = sbr.rel (%p204) target = $region12
      $region11: #{tpu_custom_call.1} parent=5 // pred_region
        %s208 = ssub.s32 %s16, 1
        // Predicated region
        $region13: #{tpu_custom_call.1} parent=11 // pred_check
          %p209 = pneg %p63
        $region14: #{tpu_custom_call.1} parent=11 // pred_check_branch
          %211 = sbr.rel (%p209) target = $region16
        $region15: #{tpu_custom_call.1} parent=11 // pred_region
          _
        $region16: #{tpu_custom_call.1} parent=11 // pred_fallthru
          _
        // Predicated region
        $region17: #{tpu_custom_call.1} parent=11 // pred_check
          %p212 = pneg %p84
        $region18: #{tpu_custom_call.1} parent=11 // pred_check_branch
          %214 = sbr.rel (%p212) target = $region20
        $region19: #{tpu_custom_call.1} parent=11 // pred_region
          _
        $region20: #{tpu_custom_call.1} parent=11 // pred_fallthru
          _
        // Predicated region
        $region21: #{tpu_custom_call.1} parent=11 // pred_check
          %p215 = pneg %p105
        $region22: #{tpu_custom_call.1} parent=11 // pred_check_branch
          %217 = sbr.rel (%p215) target = $region24
        $region23: #{tpu_custom_call.1} parent=11 // pred_region
          _
        $region24: #{tpu_custom_call.1} parent=11 // pred_fallthru
          _
        // Predicated region
        $region25: #{tpu_custom_call.1} parent=11 // pred_check
          %p218 = pneg %p126
        $region26: #{tpu_custom_call.1} parent=11 // pred_check_branch
          %220 = sbr.rel (%p218) target = $region28
        $region27: #{tpu_custom_call.1} parent=11 // pred_region
          _
        $region28: #{tpu_custom_call.1} parent=11 // pred_fallthru
          _
        // Predicated region
        $region29: #{tpu_custom_call.1} parent=11 // pred_check
          %p221 = pneg %p147
        $region30: #{tpu_custom_call.1} parent=11 // pred_check_branch
          %223 = sbr.rel (%p221) target = $region32
        $region31: #{tpu_custom_call.1} parent=11 // pred_region
          _
        $region32: #{tpu_custom_call.1} parent=11 // pred_fallthru
          _
        // Predicated region
        $region33: #{tpu_custom_call.1} parent=11 // pred_check
          %p224 = pneg %p168
        $region34: #{tpu_custom_call.1} parent=11 // pred_check_branch
          %226 = sbr.rel (%p224) target = $region36
        $region35: #{tpu_custom_call.1} parent=11 // pred_region
          _
        $region36: #{tpu_custom_call.1} parent=11 // pred_fallthru
          _
      $region12: #{tpu_custom_call.1} parent=5 // pred_fallthru
        _
      %p227 = scmp.lt.s32.totalorder %s16, 2
      // Predicated region
      $region37: #{tpu_custom_call.1} parent=5 // pred_check
        %p228 = pneg %p227
      $region38: #{tpu_custom_call.1} parent=5 // pred_check_branch
        %230 = sbr.rel (%p228) target = $region40
      $region39: #{tpu_custom_call.1} parent=5 // pred_region
        // Predicated region
        $region41: #{tpu_custom_call.1} parent=39 // pred_check
          %p231 = pneg %p36
        $region42: #{tpu_custom_call.1} parent=39 // pred_check_branch
          %233 = sbr.rel (%p231) target = $region44
        $region43: #{tpu_custom_call.1} parent=39 // pred_region
          %s234 = smul.u32 4, %s16
          %p235 = scmp.lt.s32.totalorder %s234, 7
          %s236 = scalar_select %p235, %s234, 7
          %s237 = smul.addr %s236, 4
          %s238 = scalar_lea.vmem %s0, %s237
          %s239 = smul.u32 4, %s16
        $region44: #{tpu_custom_call.1} parent=39 // pred_fallthru
          _
      $region40: #{tpu_custom_call.1} parent=5 // pred_fallthru
        _
      %p240 = scmp.le.s32.totalorder 1, %s16
      %p241 = scmp.lt.s32.totalorder %s16, 3
      %p242 = pnand %p240, %p241
      %p243 = pneg %p242
      // Predicated region
      $region45: #{tpu_custom_call.1} parent=5 // pred_check
        _
      $region46: #{tpu_custom_call.1} parent=5 // pred_check_branch
        %245 = sbr.rel (%p242) target = $region48
      $region47: #{tpu_custom_call.1} parent=5 // pred_region
        %s246 = ssub.s32 %s16, 1
        %s247 = smul.u32 4, %s21
        %p248 = scmp.lt.s32.totalorder %s247, 7
        %s249 = scalar_select %p248, %s247, 7
        %s250 = smul.addr %s249, 4
        %s251 = scalar_lea.vmem %s0, %s250
        %p252 = pneg %p42
        %p253 = pneg %p39
        %p254 = pneg %p63
        %p255 = pneg %p60
        %p256 = pneg %p84
        %p257 = pneg %p81
        %p258 = pneg %p105
        %p259 = pneg %p102
        %p260 = pneg %p126
        %p261 = pneg %p123
        %p262 = pneg %p147
        %p263 = pneg %p144
        %p264 = pneg %p168
        %p265 = pneg %p165
        %p266 = pneg %p194
        %p267 = pneg %p191
        %s268 = sand.u32 %s181, 1
        %s269 = scalar_lea.sflag [#allocation3], %s268
        %s270 = sand.u32 %s181, 1
        %s271 = smul.addr %s270, 16
        %s272 = scalar_lea.vmem [#allocation2], %s271
        %s273 = smul.u32 4, %s21
        %p274 = scmp.lt.s32.totalorder %s273, 7
        %s275 = scalar_select %p274, %s273, 7
        %s276 = smul.addr %s275, 4
        %s277 = scalar_lea.vmem %s0, %s276
        %s278 = smul.u32 4, %s21
        %s279 = smul.u32 4, %s21
        %v281 = vld [vmem:[%s1] sm:$0xff]
        %v282 = vld [vmem:[%s1 + $0x8] sm:$0xff]
        %v283 = vld [vmem:[%s1 + $0x10] sm:$0xff]
        %v284 = vld [vmem:[%s1 + $0x18] sm:$0xff]
        %v285 = vld [vmem:[%s1 + $0x20] sm:$0xff]
        %v286 = vld [vmem:[%s1 + $0x28] sm:$0xff]
        %v287 = vld [vmem:[%s1 + $0x30] sm:$0xff]
        %v288 = vld [vmem:[%s1 + $0x38] sm:$0xff]
        %v289 = vld [vmem:[%s1 + $0x40] sm:$0xff]
        %v290 = vld [vmem:[%s1 + $0x48] sm:$0xff]
        %v291 = vld [vmem:[%s1 + $0x50] sm:$0xff]
        %v292 = vld [vmem:[%s1 + $0x58] sm:$0xff]
        %v293 = vld [vmem:[%s1 + $0x60] sm:$0xff]
        %v294 = vld [vmem:[%s1 + $0x68] sm:$0xff]
        %v295 = vld [vmem:[%s1 + $0x70] sm:$0xff]
        %v296 = vld [vmem:[%s1 + $0x78] sm:$0xff]
        %v297 = vld [vmem:[%s277] sm:$0xff]
        %v298 = vld [vmem:[%s277 + $0x8] sm:$0xff]
        %v299 = vld [vmem:[%s2] sm:$0xff]
        %v300 = vld [vmem:[%s2 + $0x8] sm:$0xff]
        %v301 = vld [vmem:[%s2 + $0x10] sm:$0xff]
        %v302 = vld [vmem:[%s2 + $0x18] sm:$0xff]
        %v303 = vld [vmem:[%s2 + $0x20] sm:$0xff]
        %v304 = vld [vmem:[%s2 + $0x28] sm:$0xff]
        %v305 = vld [vmem:[%s2 + $0x30] sm:$0xff]
        %v306 = vld [vmem:[%s2 + $0x38] sm:$0xff]
        %v307 = vld [vmem:[%s2 + $0x40] sm:$0xff]
        %v308 = vld [vmem:[%s2 + $0x48] sm:$0xff]
        %v309 = vld [vmem:[%s2 + $0x50] sm:$0xff]
        %v310 = vld [vmem:[%s2 + $0x58] sm:$0xff]
        %v311 = vld [vmem:[%s2 + $0x60] sm:$0xff]
        %v312 = vld [vmem:[%s2 + $0x68] sm:$0xff]
        %v313 = vld [vmem:[%s2 + $0x70] sm:$0xff]
        %v314 = vld [vmem:[%s2 + $0x78] sm:$0xff]
        %316 = vset.pattern.permute.xlu0 0
        %317 = vperm.xlu0 %316, %v299
        %v318 = vpop.permute.xlu0 %317
        %321 = vset.pattern.permute.xlu0 0
        %322 = vperm.xlu0 %321, %v300
        %v323 = vpop.permute.xlu0 %322
        %326 = vset.pattern.permute.xlu0 0
        %327 = vperm.xlu0 %326, %v301
        %v328 = vpop.permute.xlu0 %327
        %331 = vset.pattern.permute.xlu0 0
        %332 = vperm.xlu0 %331, %v302
        %v333 = vpop.permute.xlu0 %332
        %336 = vset.pattern.permute.xlu0 0
        %337 = vperm.xlu0 %336, %v303
        %v338 = vpop.permute.xlu0 %337
        %341 = vset.pattern.permute.xlu0 0
        %342 = vperm.xlu0 %341, %v304
        %v343 = vpop.permute.xlu0 %342
        %346 = vset.pattern.permute.xlu0 0
        %347 = vperm.xlu0 %346, %v305
        %v348 = vpop.permute.xlu0 %347
        %351 = vset.pattern.permute.xlu0 0
        %352 = vperm.xlu0 %351, %v306
        %v353 = vpop.permute.xlu0 %352
        %356 = vset.pattern.permute.xlu0 0
        %357 = vperm.xlu0 %356, %v307
        %v358 = vpop.permute.xlu0 %357
        %361 = vset.pattern.permute.xlu0 0
        %362 = vperm.xlu0 %361, %v308
        %v363 = vpop.permute.xlu0 %362
        %366 = vset.pattern.permute.xlu0 0
        %367 = vperm.xlu0 %366, %v309
        %v368 = vpop.permute.xlu0 %367
        %371 = vset.pattern.permute.xlu0 0
        %372 = vperm.xlu0 %371, %v310
        %v373 = vpop.permute.xlu0 %372
        %376 = vset.pattern.permute.xlu0 0
        %377 = vperm.xlu0 %376, %v311
        %v378 = vpop.permute.xlu0 %377
        %381 = vset.pattern.permute.xlu0 0
        %382 = vperm.xlu0 %381, %v312
        %v383 = vpop.permute.xlu0 %382
        %386 = vset.pattern.permute.xlu0 0
        %387 = vperm.xlu0 %386, %v313
        %v388 = vpop.permute.xlu0 %387
        %391 = vset.pattern.permute.xlu0 0
        %392 = vperm.xlu0 %391, %v314
        %v393 = vpop.permute.xlu0 %392
        %v397 = vcombine.high %v297, %v297
        %v398 = vcombine.high %v298, %v298
        %vm399 = vcmask 31744
        %v401 = vsel %vm399, %v281, 0
        %v404 = vsel %vm399, %v282, 0
        %v407 = vsel %vm399, %v283, 0
        %v410 = vsel %vm399, %v284, 0
        %v413 = vsel %vm399, %v285, 0
        %v416 = vsel %vm399, %v286, 0
        %v419 = vsel %vm399, %v287, 0
        %v422 = vsel %vm399, %v288, 0
        %v425 = vsel %vm399, %v289, 0
        %v428 = vsel %vm399, %v290, 0
        %v431 = vsel %vm399, %v291, 0
        %v434 = vsel %vm399, %v292, 0
        %v437 = vsel %vm399, %v293, 0
        %v440 = vsel %vm399, %v294, 0
        %v443 = vsel %vm399, %v295, 0
        %v446 = vsel %vm399, %v296, 0
        %vm448 = vcmask 1043456
        %v449 = vsel %vm448, %v297, 0
        %v451 = vsel %vm448, %v397, 0
        %v453 = vsel %vm448, %v298, 0
        %v455 = vsel %vm448, %v398, 0
        %457 = vmatprep.subr.mxu0 0.0
        %458 = vmatpush1.msra.mxu0 0.0
        %459 = vmatprep.subr.mxu0 0.0
        %460 = vmatpush1.msra.mxu0 0.0
        %461 = vmatprep.subr.mxu0 0.0
        %462 = vmatpush1.msra.mxu0 0.0
        %463 = vmatprep.subr.mxu0 0.0
        %464 = vmatpush1.msra.mxu0 0.0
        %465 = vmatprep.subr.mxu0 0.0
        %466 = vmatpush1.msra.mxu0 0.0
        %467 = vmatprep.subr.mxu0 0.0
        %468 = vmatpush1.msra.mxu0 0.0
        %469 = vmatprep.subr.mxu0 0.0
        %470 = vmatpush1.msra.mxu0 0.0
        %471 = vmatprep.subr.mxu0 0.0
        %472 = vmatpush1.msra.mxu0 0.0
        %473 = vmatprep.subr.mxu0 0.0
        %474 = vmatpush1.msra.mxu0 0.0
        %475 = vmatprep.subr.mxu0 0.0
        %476 = vmatpush1.msra.mxu0 0.0
        %477 = vmatprep.subr.mxu0 0.0
        %478 = vmatpush1.msra.mxu0 0.0
        %479 = vmatprep.subr.mxu0 0.0
        %480 = vmatpush1.msra.mxu0 0.0
        %481 = vmatprep.subr.mxu0 0.0
        %482 = vmatpush1.msra.mxu0 0.0
        %483 = vmatprep.subr.mxu0 0.0
        %484 = vmatpush1.msra.mxu0 0.0
        %485 = vmatprep.subr.mxu0 0.0
        %486 = vmatpush1.msra.mxu0 0.0
        %487 = vmatprep.subr.mxu0 %v451
        %488 = vmatpush1.msra.mxu0 %v449
        %489 = vmatprep.subr.mxu0 0.0
        %490 = vmatpush2.msra.mxu0 0.0
        %491 = vmatprep.subr.mxu0 0.0
        %492 = vmatpush2.msra.mxu0 0.0
        %493 = vmatprep.subr.mxu0 0.0
        %494 = vmatpush2.msra.mxu0 0.0
        %495 = vmatprep.subr.mxu0 0.0
        %496 = vmatpush2.msra.mxu0 0.0
        %497 = vmatprep.subr.mxu0 0.0
        %498 = vmatpush2.msra.mxu0 0.0
        %499 = vmatprep.subr.mxu0 0.0
        %500 = vmatpush2.msra.mxu0 0.0
        %501 = vmatprep.subr.mxu0 0.0
        %502 = vmatpush2.msra.mxu0 0.0
        %503 = vmatprep.subr.mxu0 0.0
        %504 = vmatpush2.msra.mxu0 0.0
        %505 = vmatprep.subr.mxu0 0.0
        %506 = vmatpush2.msra.mxu0 0.0
        %507 = vmatprep.subr.mxu0 0.0
        %508 = vmatpush2.msra.mxu0 0.0
        %509 = vmatprep.subr.mxu0 0.0
        %510 = vmatpush2.msra.mxu0 0.0
        %511 = vmatprep.subr.mxu0 0.0
        %512 = vmatpush2.msra.mxu0 0.0
        %513 = vmatprep.subr.mxu0 0.0
        %514 = vmatpush2.msra.mxu0 0.0
        %515 = vmatprep.subr.mxu0 0.0
        %516 = vmatpush2.msra.mxu0 0.0
        %517 = vmatprep.subr.mxu0 0.0
        %518 = vmatpush2.msra.mxu0 0.0
        %519 = vmatprep.subr.mxu0 0.0
        %520 = vmatpush2.msra.mxu0 0.0
        %521 = vmatprep.mubr.f32.mxu0 0.0
        %522 = vmatmul.mubr.f32.gmra.mxu0 %v401
        %v523 = vpop.f32.mrf.mxu0
        %v524 = vadd.f32 %v318, %v523
        %v525 = vpop.f32.mrf.mxu0
        %v526 = vadd.f32 %v318, %v525
        %527 = vmatprep.mubr.f32.mxu0 0.0
        %528 = vmatmul.mubr.f32.gmra.mxu0 %v404
        %v529 = vpop.f32.mrf.mxu0
        %v530 = vadd.f32 %v323, %v529
        %v531 = vpop.f32.mrf.mxu0
        %v532 = vadd.f32 %v323, %v531
        %533 = vmatprep.mubr.f32.mxu0 0.0
        %534 = vmatmul.mubr.f32.gmra.mxu0 %v407
        %v535 = vpop.f32.mrf.mxu0
        %v536 = vadd.f32 %v328, %v535
        %v537 = vpop.f32.mrf.mxu0
        %v538 = vadd.f32 %v328, %v537
        %539 = vmatprep.mubr.f32.mxu0 0.0
        %540 = vmatmul.mubr.f32.gmra.mxu0 %v410
        %v541 = vpop.f32.mrf.mxu0
        %v542 = vadd.f32 %v333, %v541
        %v543 = vpop.f32.mrf.mxu0
        %v544 = vadd.f32 %v333, %v543
        %545 = vmatprep.mubr.f32.mxu0 0.0
        %546 = vmatmul.mubr.f32.gmra.mxu0 %v413
        %v547 = vpop.f32.mrf.mxu0
        %v548 = vadd.f32 %v338, %v547
        %v549 = vpop.f32.mrf.mxu0
        %v550 = vadd.f32 %v338, %v549
        %551 = vmatprep.mubr.f32.mxu0 0.0
        %552 = vmatmul.mubr.f32.gmra.mxu0 %v416
        %v553 = vpop.f32.mrf.mxu0
        %v554 = vadd.f32 %v343, %v553
        %v555 = vpop.f32.mrf.mxu0
        %v556 = vadd.f32 %v343, %v555
        %557 = vmatprep.mubr.f32.mxu0 0.0
        %558 = vmatmul.mubr.f32.gmra.mxu0 %v419
        %v559 = vpop.f32.mrf.mxu0
        %v560 = vadd.f32 %v348, %v559
        %v561 = vpop.f32.mrf.mxu0
        %v562 = vadd.f32 %v348, %v561
        %563 = vmatprep.mubr.f32.mxu0 0.0
        %564 = vmatmul.mubr.f32.gmra.mxu0 %v422
        %v565 = vpop.f32.mrf.mxu0
        %v566 = vadd.f32 %v353, %v565
        %v567 = vpop.f32.mrf.mxu0
        %v568 = vadd.f32 %v353, %v567
        %569 = vmatprep.mubr.f32.mxu0 0.0
        %570 = vmatmul.mubr.f32.gmra.mxu0 %v425
        %v571 = vpop.f32.mrf.mxu0
        %v572 = vadd.f32 %v358, %v571
        %v573 = vpop.f32.mrf.mxu0
        %v574 = vadd.f32 %v358, %v573
        %575 = vmatprep.mubr.f32.mxu0 0.0
        %576 = vmatmul.mubr.f32.gmra.mxu0 %v428
        %v577 = vpop.f32.mrf.mxu0
        %v578 = vadd.f32 %v363, %v577
        %v579 = vpop.f32.mrf.mxu0
        %v580 = vadd.f32 %v363, %v579
        %581 = vmatprep.mubr.f32.mxu0 0.0
        %582 = vmatmul.mubr.f32.gmra.mxu0 %v431
        %v583 = vpop.f32.mrf.mxu0
        %v584 = vadd.f32 %v368, %v583
        %v585 = vpop.f32.mrf.mxu0
        %v586 = vadd.f32 %v368, %v585
        %587 = vmatprep.mubr.f32.mxu0 0.0
        %588 = vmatmul.mubr.f32.gmra.mxu0 %v434
        %v589 = vpop.f32.mrf.mxu0
        %v590 = vadd.f32 %v373, %v589
        %v591 = vpop.f32.mrf.mxu0
        %v592 = vadd.f32 %v373, %v591
        %593 = vmatprep.mubr.f32.mxu0 0.0
        %594 = vmatmul.mubr.f32.gmra.mxu0 %v437
        %v595 = vpop.f32.mrf.mxu0
        %v596 = vadd.f32 %v378, %v595
        %v597 = vpop.f32.mrf.mxu0
        %v598 = vadd.f32 %v378, %v597
        %599 = vmatprep.mubr.f32.mxu0 0.0
        %600 = vmatmul.mubr.f32.gmra.mxu0 %v440
        %v601 = vpop.f32.mrf.mxu0
        %v602 = vadd.f32 %v383, %v601
        %v603 = vpop.f32.mrf.mxu0
        %v604 = vadd.f32 %v383, %v603
        %605 = vmatprep.mubr.f32.mxu0 0.0
        %606 = vmatmul.mubr.f32.gmra.mxu0 %v443
        %v607 = vpop.f32.mrf.mxu0
        %v608 = vadd.f32 %v388, %v607
        %v609 = vpop.f32.mrf.mxu0
        %v610 = vadd.f32 %v388, %v609
        %611 = vmatprep.mubr.f32.mxu0 0.0
        %612 = vmatmul.mubr.f32.gmra.mxu0 %v446
        %v613 = vpop.f32.mrf.mxu0
        %v614 = vadd.f32 %v393, %v613
        %v615 = vpop.f32.mrf.mxu0
        %v616 = vadd.f32 %v393, %v615
        %617 = vdwg.mxu0
        %618 = vmatprep.subr.mxu0 0.0
        %619 = vmatpush1.msra.mxu0 0.0
        %620 = vmatprep.subr.mxu0 0.0
        %621 = vmatpush1.msra.mxu0 0.0
        %622 = vmatprep.subr.mxu0 0.0
        %623 = vmatpush1.msra.mxu0 0.0
        %624 = vmatprep.subr.mxu0 0.0
        %625 = vmatpush1.msra.mxu0 0.0
        %626 = vmatprep.subr.mxu0 0.0
        %627 = vmatpush1.msra.mxu0 0.0
        %628 = vmatprep.subr.mxu0 0.0
        %629 = vmatpush1.msra.mxu0 0.0
        %630 = vmatprep.subr.mxu0 0.0
        %631 = vmatpush1.msra.mxu0 0.0
        %632 = vmatprep.subr.mxu0 0.0
        %633 = vmatpush1.msra.mxu0 0.0
        %634 = vmatprep.subr.mxu0 0.0
        %635 = vmatpush1.msra.mxu0 0.0
        %636 = vmatprep.subr.mxu0 0.0
        %637 = vmatpush1.msra.mxu0 0.0
        %638 = vmatprep.subr.mxu0 0.0
        %639 = vmatpush1.msra.mxu0 0.0
        %640 = vmatprep.subr.mxu0 0.0
        %641 = vmatpush1.msra.mxu0 0.0
        %642 = vmatprep.subr.mxu0 0.0
        %643 = vmatpush1.msra.mxu0 0.0
        %644 = vmatprep.subr.mxu0 0.0
        %645 = vmatpush1.msra.mxu0 0.0
        %646 = vmatprep.subr.mxu0 0.0
        %647 = vmatpush1.msra.mxu0 0.0
        %648 = vmatprep.subr.mxu0 %v455
        %649 = vmatpush1.msra.mxu0 %v453
        %650 = vmatprep.subr.mxu0 0.0
        %651 = vmatpush2.msra.mxu0 0.0
        %652 = vmatprep.subr.mxu0 0.0
        %653 = vmatpush2.msra.mxu0 0.0
        %654 = vmatprep.subr.mxu0 0.0
        %655 = vmatpush2.msra.mxu0 0.0
        %656 = vmatprep.subr.mxu0 0.0
        %657 = vmatpush2.msra.mxu0 0.0
        %658 = vmatprep.subr.mxu0 0.0
        %659 = vmatpush2.msra.mxu0 0.0
        %660 = vmatprep.subr.mxu0 0.0
        %661 = vmatpush2.msra.mxu0 0.0
        %662 = vmatprep.subr.mxu0 0.0
        %663 = vmatpush2.msra.mxu0 0.0
        %664 = vmatprep.subr.mxu0 0.0
        %665 = vmatpush2.msra.mxu0 0.0
        %666 = vmatprep.subr.mxu0 0.0
        %667 = vmatpush2.msra.mxu0 0.0
        %668 = vmatprep.subr.mxu0 0.0
        %669 = vmatpush2.msra.mxu0 0.0
        %670 = vmatprep.subr.mxu0 0.0
        %671 = vmatpush2.msra.mxu0 0.0
        %672 = vmatprep.subr.mxu0 0.0
        %673 = vmatpush2.msra.mxu0 0.0
        %674 = vmatprep.subr.mxu0 0.0
        %675 = vmatpush2.msra.mxu0 0.0
        %676 = vmatprep.subr.mxu0 0.0
        %677 = vmatpush2.msra.mxu0 0.0
        %678 = vmatprep.subr.mxu0 0.0
        %679 = vmatpush2.msra.mxu0 0.0
        %680 = vmatprep.subr.mxu0 0.0
        %681 = vmatpush2.msra.mxu0 0.0
        %682 = vmatprep.mubr.f32.mxu0 0.0
        %683 = vmatmul.mubr.f32.gmra.mxu0 %v401
        %v684 = vpop.f32.mrf.mxu0
        %v685 = vadd.f32 %v318, %v684
        %v686 = vpop.f32.mrf.mxu0
        %v687 = vadd.f32 %v318, %v686
        %688 = vmatprep.mubr.f32.mxu0 0.0
        %689 = vmatmul.mubr.f32.gmra.mxu0 %v404
        %v690 = vpop.f32.mrf.mxu0
        %v691 = vadd.f32 %v323, %v690
        %v692 = vpop.f32.mrf.mxu0
        %v693 = vadd.f32 %v323, %v692
        %694 = vmatprep.mubr.f32.mxu0 0.0
        %695 = vmatmul.mubr.f32.gmra.mxu0 %v407
        %v696 = vpop.f32.mrf.mxu0
        %v697 = vadd.f32 %v328, %v696
        %v698 = vpop.f32.mrf.mxu0
        %v699 = vadd.f32 %v328, %v698
        %700 = vmatprep.mubr.f32.mxu0 0.0
        %701 = vmatmul.mubr.f32.gmra.mxu0 %v410
        %v702 = vpop.f32.mrf.mxu0
        %v703 = vadd.f32 %v333, %v702
        %v704 = vpop.f32.mrf.mxu0
        %v705 = vadd.f32 %v333, %v704
        %706 = vmatprep.mubr.f32.mxu0 0.0
        %707 = vmatmul.mubr.f32.gmra.mxu0 %v413
        %v708 = vpop.f32.mrf.mxu0
        %v709 = vadd.f32 %v338, %v708
        %v710 = vpop.f32.mrf.mxu0
        %v711 = vadd.f32 %v338, %v710
        %712 = vmatprep.mubr.f32.mxu0 0.0
        %713 = vmatmul.mubr.f32.gmra.mxu0 %v416
        %v714 = vpop.f32.mrf.mxu0
        %v715 = vadd.f32 %v343, %v714
        %v716 = vpop.f32.mrf.mxu0
        %v717 = vadd.f32 %v343, %v716
        %718 = vmatprep.mubr.f32.mxu0 0.0
        %719 = vmatmul.mubr.f32.gmra.mxu0 %v419
        %v720 = vpop.f32.mrf.mxu0
        %v721 = vadd.f32 %v348, %v720
        %v722 = vpop.f32.mrf.mxu0
        %v723 = vadd.f32 %v348, %v722
        %724 = vmatprep.mubr.f32.mxu0 0.0
        %725 = vmatmul.mubr.f32.gmra.mxu0 %v422
        %v726 = vpop.f32.mrf.mxu0
        %v727 = vadd.f32 %v353, %v726
        %v728 = vpop.f32.mrf.mxu0
        %v729 = vadd.f32 %v353, %v728
        %730 = vmatprep.mubr.f32.mxu0 0.0
        %731 = vmatmul.mubr.f32.gmra.mxu0 %v425
        %v732 = vpop.f32.mrf.mxu0
        %v733 = vadd.f32 %v358, %v732
        %v734 = vpop.f32.mrf.mxu0
        %v735 = vadd.f32 %v358, %v734
        %736 = vmatprep.mubr.f32.mxu0 0.0
        %737 = vmatmul.mubr.f32.gmra.mxu0 %v428
        %v738 = vpop.f32.mrf.mxu0
        %v739 = vadd.f32 %v363, %v738
        %v740 = vpop.f32.mrf.mxu0
        %v741 = vadd.f32 %v363, %v740
        %742 = vmatprep.mubr.f32.mxu0 0.0
        %743 = vmatmul.mubr.f32.gmra.mxu0 %v431
        %v744 = vpop.f32.mrf.mxu0
        %v745 = vadd.f32 %v368, %v744
        %v746 = vpop.f32.mrf.mxu0
        %v747 = vadd.f32 %v368, %v746
        %748 = vmatprep.mubr.f32.mxu0 0.0
        %749 = vmatmul.mubr.f32.gmra.mxu0 %v434
        %v750 = vpop.f32.mrf.mxu0
        %v751 = vadd.f32 %v373, %v750
        %v752 = vpop.f32.mrf.mxu0
        %v753 = vadd.f32 %v373, %v752
        %754 = vmatprep.mubr.f32.mxu0 0.0
        %755 = vmatmul.mubr.f32.gmra.mxu0 %v437
        %v756 = vpop.f32.mrf.mxu0
        %v757 = vadd.f32 %v378, %v756
        %v758 = vpop.f32.mrf.mxu0
        %v759 = vadd.f32 %v378, %v758
        %760 = vmatprep.mubr.f32.mxu0 0.0
        %761 = vmatmul.mubr.f32.gmra.mxu0 %v440
        %v762 = vpop.f32.mrf.mxu0
        %v763 = vadd.f32 %v383, %v762
        %v764 = vpop.f32.mrf.mxu0
        %v765 = vadd.f32 %v383, %v764
        %766 = vmatprep.mubr.f32.mxu0 0.0
        %767 = vmatmul.mubr.f32.gmra.mxu0 %v443
        %v768 = vpop.f32.mrf.mxu0
        %v769 = vadd.f32 %v388, %v768
        %v770 = vpop.f32.mrf.mxu0
        %v771 = vadd.f32 %v388, %v770
        %772 = vmatprep.mubr.f32.mxu0 0.0
        %773 = vmatmul.mubr.f32.gmra.mxu0 %v446
        %v774 = vpop.f32.mrf.mxu0
        %v775 = vadd.f32 %v393, %v774
        %v776 = vpop.f32.mrf.mxu0
        %v777 = vadd.f32 %v393, %v776
        %778 = vdwg.mxu0
        %v779 = vmul.f32 %v524, 0.15915494
        %v780 = vmul.f32 %v526, 0.15915494
        %v781 = vmul.f32 %v685, 0.15915494
        %v782 = vmul.f32 %v687, 0.15915494
        %v783 = vmul.f32 %v530, 0.15915494
        %v784 = vmul.f32 %v532, 0.15915494
        %v785 = vmul.f32 %v691, 0.15915494
        %v786 = vmul.f32 %v693, 0.15915494
        %v787 = vmul.f32 %v536, 0.15915494
        %v788 = vmul.f32 %v538, 0.15915494
        %v789 = vmul.f32 %v697, 0.15915494
        %v790 = vmul.f32 %v699, 0.15915494
        %v791 = vmul.f32 %v542, 0.15915494
        %v792 = vmul.f32 %v544, 0.15915494
        %v793 = vmul.f32 %v703, 0.15915494
        %v794 = vmul.f32 %v705, 0.15915494
        %v795 = vmul.f32 %v548, 0.15915494
        %v796 = vmul.f32 %v550, 0.15915494
        %v797 = vmul.f32 %v709, 0.15915494
        %v798 = vmul.f32 %v711, 0.15915494
        %v799 = vmul.f32 %v554, 0.15915494
        %v800 = vmul.f32 %v556, 0.15915494
        %v801 = vmul.f32 %v715, 0.15915494
        %v802 = vmul.f32 %v717, 0.15915494
        %v803 = vmul.f32 %v560, 0.15915494
        %v804 = vmul.f32 %v562, 0.15915494
        %v805 = vmul.f32 %v721, 0.15915494
        %v806 = vmul.f32 %v723, 0.15915494
        %v807 = vmul.f32 %v566, 0.15915494
        %v808 = vmul.f32 %v568, 0.15915494
        %v809 = vmul.f32 %v727, 0.15915494
        %v810 = vmul.f32 %v729, 0.15915494
        %v811 = vmul.f32 %v572, 0.15915494
        %v812 = vmul.f32 %v574, 0.15915494
        %v813 = vmul.f32 %v733, 0.15915494
        %v814 = vmul.f32 %v735, 0.15915494
        %v815 = vmul.f32 %v578, 0.15915494
        %v816 = vmul.f32 %v580, 0.15915494
        %v817 = vmul.f32 %v739, 0.15915494
        %v818 = vmul.f32 %v741, 0.15915494
        %v819 = vmul.f32 %v584, 0.15915494
        %v820 = vmul.f32 %v586, 0.15915494
        %v821 = vmul.f32 %v745, 0.15915494
        %v822 = vmul.f32 %v747, 0.15915494
        %v823 = vmul.f32 %v590, 0.15915494
        %v824 = vmul.f32 %v592, 0.15915494
        %v825 = vmul.f32 %v751, 0.15915494
        %v826 = vmul.f32 %v753, 0.15915494
        %v827 = vmul.f32 %v596, 0.15915494
        %v828 = vmul.f32 %v598, 0.15915494
        %v829 = vmul.f32 %v757, 0.15915494
        %v830 = vmul.f32 %v759, 0.15915494
        %v831 = vmul.f32 %v602, 0.15915494
        %v832 = vmul.f32 %v604, 0.15915494
        %v833 = vmul.f32 %v763, 0.15915494
        %v834 = vmul.f32 %v765, 0.15915494
        %v835 = vmul.f32 %v608, 0.15915494
        %v836 = vmul.f32 %v610, 0.15915494
        %v837 = vmul.f32 %v769, 0.15915494
        %v838 = vmul.f32 %v771, 0.15915494
        %v839 = vmul.f32 %v614, 0.15915494
        %v840 = vmul.f32 %v616, 0.15915494
        %v841 = vmul.f32 %v775, 0.15915494
        %v842 = vmul.f32 %v777, 0.15915494
        %v843 = vadd.f32 %v779, 0.5
        %v844 = vadd.f32 %v780, 0.5
        %v845 = vadd.f32 %v781, 0.5
        %v846 = vadd.f32 %v782, 0.5
        %v847 = vadd.f32 %v783, 0.5
        %v848 = vadd.f32 %v784, 0.5
        %v849 = vadd.f32 %v785, 0.5
        %v850 = vadd.f32 %v786, 0.5
        %v851 = vadd.f32 %v787, 0.5
        %v852 = vadd.f32 %v788, 0.5
        %v853 = vadd.f32 %v789, 0.5
        %v854 = vadd.f32 %v790, 0.5
        %v855 = vadd.f32 %v791, 0.5
        %v856 = vadd.f32 %v792, 0.5
        %v857 = vadd.f32 %v793, 0.5
        %v858 = vadd.f32 %v794, 0.5
        %v859 = vadd.f32 %v795, 0.5
        %v860 = vadd.f32 %v796, 0.5
        %v861 = vadd.f32 %v797, 0.5
        %v862 = vadd.f32 %v798, 0.5
        %v863 = vadd.f32 %v799, 0.5
        %v864 = vadd.f32 %v800, 0.5
        %v865 = vadd.f32 %v801, 0.5
        %v866 = vadd.f32 %v802, 0.5
        %v867 = vadd.f32 %v803, 0.5
        %v868 = vadd.f32 %v804, 0.5
        %v869 = vadd.f32 %v805, 0.5
        %v870 = vadd.f32 %v806, 0.5
        %v871 = vadd.f32 %v807, 0.5
        %v872 = vadd.f32 %v808, 0.5
        %v873 = vadd.f32 %v809, 0.5
        %v874 = vadd.f32 %v810, 0.5
        %v875 = vadd.f32 %v811, 0.5
        %v876 = vadd.f32 %v812, 0.5
        %v877 = vadd.f32 %v813, 0.5
        %v878 = vadd.f32 %v814, 0.5
        %v879 = vadd.f32 %v815, 0.5
        %v880 = vadd.f32 %v816, 0.5
        %v881 = vadd.f32 %v817, 0.5
        %v882 = vadd.f32 %v818, 0.5
        %v883 = vadd.f32 %v819, 0.5
        %v884 = vadd.f32 %v820, 0.5
        %v885 = vadd.f32 %v821, 0.5
        %v886 = vadd.f32 %v822, 0.5
        %v887 = vadd.f32 %v823, 0.5
        %v888 = vadd.f32 %v824, 0.5
        %v889 = vadd.f32 %v825, 0.5
        %v890 = vadd.f32 %v826, 0.5
        %v891 = vadd.f32 %v827, 0.5
        %v892 = vadd.f32 %v828, 0.5
        %v893 = vadd.f32 %v829, 0.5
        %v894 = vadd.f32 %v830, 0.5
        %v895 = vadd.f32 %v831, 0.5
        %v896 = vadd.f32 %v832, 0.5
        %v897 = vadd.f32 %v833, 0.5
        %v898 = vadd.f32 %v834, 0.5
        %v899 = vadd.f32 %v835, 0.5
        %v900 = vadd.f32 %v836, 0.5
        %v901 = vadd.f32 %v837, 0.5
        %v902 = vadd.f32 %v838, 0.5
        %v903 = vadd.f32 %v839, 0.5
        %v904 = vadd.f32 %v840, 0.5
        %v905 = vadd.f32 %v841, 0.5
        %v906 = vadd.f32 %v842, 0.5
        %v907 = vfloor.f32 %v843
        %v908 = vfloor.f32 %v844
        %v909 = vfloor.f32 %v845
        %v910 = vfloor.f32 %v846
        %v911 = vfloor.f32 %v847
        %v912 = vfloor.f32 %v848
        %v913 = vfloor.f32 %v849
        %v914 = vfloor.f32 %v850
        %v915 = vfloor.f32 %v851
        %v916 = vfloor.f32 %v852
        %v917 = vfloor.f32 %v853
        %v918 = vfloor.f32 %v854
        %v919 = vfloor.f32 %v855
        %v920 = vfloor.f32 %v856
        %v921 = vfloor.f32 %v857
        %v922 = vfloor.f32 %v858
        %v923 = vfloor.f32 %v859
        %v924 = vfloor.f32 %v860
        %v925 = vfloor.f32 %v861
        %v926 = vfloor.f32 %v862
        %v927 = vfloor.f32 %v863
        %v928 = vfloor.f32 %v864
        %v929 = vfloor.f32 %v865
        %v930 = vfloor.f32 %v866
        %v931 = vfloor.f32 %v867
        %v932 = vfloor.f32 %v868
        %v933 = vfloor.f32 %v869
        %v934 = vfloor.f32 %v870
        %v935 = vfloor.f32 %v871
        %v936 = vfloor.f32 %v872
        %v937 = vfloor.f32 %v873
        %v938 = vfloor.f32 %v874
        %v939 = vfloor.f32 %v875
        %v940 = vfloor.f32 %v876
        %v941 = vfloor.f32 %v877
        %v942 = vfloor.f32 %v878
        %v943 = vfloor.f32 %v879
        %v944 = vfloor.f32 %v880
        %v945 = vfloor.f32 %v881
        %v946 = vfloor.f32 %v882
        %v947 = vfloor.f32 %v883
        %v948 = vfloor.f32 %v884
        %v949 = vfloor.f32 %v885
        %v950 = vfloor.f32 %v886
        %v951 = vfloor.f32 %v887
        %v952 = vfloor.f32 %v888
        %v953 = vfloor.f32 %v889
        %v954 = vfloor.f32 %v890
        %v955 = vfloor.f32 %v891
        %v956 = vfloor.f32 %v892
        %v957 = vfloor.f32 %v893
        %v958 = vfloor.f32 %v894
        %v959 = vfloor.f32 %v895
        %v960 = vfloor.f32 %v896
        %v961 = vfloor.f32 %v897
        %v962 = vfloor.f32 %v898
        %v963 = vfloor.f32 %v899
        %v964 = vfloor.f32 %v900
        %v965 = vfloor.f32 %v901
        %v966 = vfloor.f32 %v902
        %v967 = vfloor.f32 %v903
        %v968 = vfloor.f32 %v904
        %v969 = vfloor.f32 %v905
        %v970 = vfloor.f32 %v906
        %v971 = vmul.f32 %v907, 6.2831855
        %v972 = vmul.f32 %v908, 6.2831855
        %v973 = vmul.f32 %v909, 6.2831855
        %v974 = vmul.f32 %v910, 6.2831855
        %v975 = vmul.f32 %v911, 6.2831855
        %v976 = vmul.f32 %v912, 6.2831855
        %v977 = vmul.f32 %v913, 6.2831855
        %v978 = vmul.f32 %v914, 6.2831855
        %v979 = vmul.f32 %v915, 6.2831855
        %v980 = vmul.f32 %v916, 6.2831855
        %v981 = vmul.f32 %v917, 6.2831855
        %v982 = vmul.f32 %v918, 6.2831855
        %v983 = vmul.f32 %v919, 6.2831855
        %v984 = vmul.f32 %v920, 6.2831855
        %v985 = vmul.f32 %v921, 6.2831855
        %v986 = vmul.f32 %v922, 6.2831855
        %v987 = vmul.f32 %v923, 6.2831855
        %v988 = vmul.f32 %v924, 6.2831855
        %v989 = vmul.f32 %v925, 6.2831855
        %v990 = vmul.f32 %v926, 6.2831855
        %v991 = vmul.f32 %v927, 6.2831855
        %v992 = vmul.f32 %v928, 6.2831855
        %v993 = vmul.f32 %v929, 6.2831855
        %v994 = vmul.f32 %v930, 6.2831855
        %v995 = vmul.f32 %v931, 6.2831855
        %v996 = vmul.f32 %v932, 6.2831855
        %v997 = vmul.f32 %v933, 6.2831855
        %v998 = vmul.f32 %v934, 6.2831855
        %v999 = vmul.f32 %v935, 6.2831855
        %v1000 = vmul.f32 %v936, 6.2831855
        %v1001 = vmul.f32 %v937, 6.2831855
        %v1002 = vmul.f32 %v938, 6.2831855
        %v1003 = vmul.f32 %v939, 6.2831855
        %v1004 = vmul.f32 %v940, 6.2831855
        %v1005 = vmul.f32 %v941, 6.2831855
        %v1006 = vmul.f32 %v942, 6.2831855
        %v1007 = vmul.f32 %v943, 6.2831855
        %v1008 = vmul.f32 %v944, 6.2831855
        %v1009 = vmul.f32 %v945, 6.2831855
        %v1010 = vmul.f32 %v946, 6.2831855
        %v1011 = vmul.f32 %v947, 6.2831855
        %v1012 = vmul.f32 %v948, 6.2831855
        %v1013 = vmul.f32 %v949, 6.2831855
        %v1014 = vmul.f32 %v950, 6.2831855
        %v1015 = vmul.f32 %v951, 6.2831855
        %v1016 = vmul.f32 %v952, 6.2831855
        %v1017 = vmul.f32 %v953, 6.2831855
        %v1018 = vmul.f32 %v954, 6.2831855
        %v1019 = vmul.f32 %v955, 6.2831855
        %v1020 = vmul.f32 %v956, 6.2831855
        %v1021 = vmul.f32 %v957, 6.2831855
        %v1022 = vmul.f32 %v958, 6.2831855
        %v1023 = vmul.f32 %v959, 6.2831855
        %v1024 = vmul.f32 %v960, 6.2831855
        %v1025 = vmul.f32 %v961, 6.2831855
        %v1026 = vmul.f32 %v962, 6.2831855
        %v1027 = vmul.f32 %v963, 6.2831855
        %v1028 = vmul.f32 %v964, 6.2831855
        %v1029 = vmul.f32 %v965, 6.2831855
        %v1030 = vmul.f32 %v966, 6.2831855
        %v1031 = vmul.f32 %v967, 6.2831855
        %v1032 = vmul.f32 %v968, 6.2831855
        %v1033 = vmul.f32 %v969, 6.2831855
        %v1034 = vmul.f32 %v970, 6.2831855
        %v1035 = vsub.f32 %v524, %v971
        %v1036 = vsub.f32 %v526, %v972
        %v1037 = vsub.f32 %v685, %v973
        %v1038 = vsub.f32 %v687, %v974
        %v1039 = vsub.f32 %v530, %v975
        %v1040 = vsub.f32 %v532, %v976
        %v1041 = vsub.f32 %v691, %v977
        %v1042 = vsub.f32 %v693, %v978
        %v1043 = vsub.f32 %v536, %v979
        %v1044 = vsub.f32 %v538, %v980
        %v1045 = vsub.f32 %v697, %v981
        %v1046 = vsub.f32 %v699, %v982
        %v1047 = vsub.f32 %v542, %v983
        %v1048 = vsub.f32 %v544, %v984
        %v1049 = vsub.f32 %v703, %v985
        %v1050 = vsub.f32 %v705, %v986
        %v1051 = vsub.f32 %v548, %v987
        %v1052 = vsub.f32 %v550, %v988
        %v1053 = vsub.f32 %v709, %v989
        %v1054 = vsub.f32 %v711, %v990
        %v1055 = vsub.f32 %v554, %v991
        %v1056 = vsub.f32 %v556, %v992
        %v1057 = vsub.f32 %v715, %v993
        %v1058 = vsub.f32 %v717, %v994
        %v1059 = vsub.f32 %v560, %v995
        %v1060 = vsub.f32 %v562, %v996
        %v1061 = vsub.f32 %v721, %v997
        %v1062 = vsub.f32 %v723, %v998
        %v1063 = vsub.f32 %v566, %v999
        %v1064 = vsub.f32 %v568, %v1000
        %v1065 = vsub.f32 %v727, %v1001
        %v1066 = vsub.f32 %v729, %v1002
        %v1067 = vsub.f32 %v572, %v1003
        %v1068 = vsub.f32 %v574, %v1004
        %v1069 = vsub.f32 %v733, %v1005
        %v1070 = vsub.f32 %v735, %v1006
        %v1071 = vsub.f32 %v578, %v1007
        %v1072 = vsub.f32 %v580, %v1008
        %v1073 = vsub.f32 %v739, %v1009
        %v1074 = vsub.f32 %v741, %v1010
        %v1075 = vsub.f32 %v584, %v1011
        %v1076 = vsub.f32 %v586, %v1012
        %v1077 = vsub.f32 %v745, %v1013
        %v1078 = vsub.f32 %v747, %v1014
        %v1079 = vsub.f32 %v590, %v1015
        %v1080 = vsub.f32 %v592, %v1016
        %v1081 = vsub.f32 %v751, %v1017
        %v1082 = vsub.f32 %v753, %v1018
        %v1083 = vsub.f32 %v596, %v1019
        %v1084 = vsub.f32 %v598, %v1020
        %v1085 = vsub.f32 %v757, %v1021
        %v1086 = vsub.f32 %v759, %v1022
        %v1087 = vsub.f32 %v602, %v1023
        %v1088 = vsub.f32 %v604, %v1024
        %v1089 = vsub.f32 %v763, %v1025
        %v1090 = vsub.f32 %v765, %v1026
        %v1091 = vsub.f32 %v608, %v1027
        %v1092 = vsub.f32 %v610, %v1028
        %v1093 = vsub.f32 %v769, %v1029
        %v1094 = vsub.f32 %v771, %v1030
        %v1095 = vsub.f32 %v614, %v1031
        %v1096 = vsub.f32 %v616, %v1032
        %v1097 = vsub.f32 %v775, %v1033
        %v1098 = vsub.f32 %v777, %v1034
        %vm1099 = vcmp.gt.f32.partialorder %v1035, 1.5707964
        %vm1100 = vcmp.gt.f32.partialorder %v1036, 1.5707964
        %vm1101 = vcmp.gt.f32.partialorder %v1037, 1.5707964
        %vm1102 = vcmp.gt.f32.partialorder %v1038, 1.5707964
        %vm1103 = vcmp.gt.f32.partialorder %v1039, 1.5707964
        %vm1104 = vcmp.gt.f32.partialorder %v1040, 1.5707964
        %vm1105 = vcmp.gt.f32.partialorder %v1041, 1.5707964
        %vm1106 = vcmp.gt.f32.partialorder %v1042, 1.5707964
        %vm1107 = vcmp.gt.f32.partialorder %v1043, 1.5707964
        %vm1108 = vcmp.gt.f32.partialorder %v1044, 1.5707964
        %vm1109 = vcmp.gt.f32.partialorder %v1045, 1.5707964
        %vm1110 = vcmp.gt.f32.partialorder %v1046, 1.5707964
        %vm1111 = vcmp.gt.f32.partialorder %v1047, 1.5707964
        %vm1112 = vcmp.gt.f32.partialorder %v1048, 1.5707964
        %vm1113 = vcmp.gt.f32.partialorder %v1049, 1.5707964
        %vm1114 = vcmp.gt.f32.partialorder %v1050, 1.5707964
        %vm1115 = vcmp.gt.f32.partialorder %v1051, 1.5707964
        %vm1116 = vcmp.gt.f32.partialorder %v1052, 1.5707964
        %vm1117 = vcmp.gt.f32.partialorder %v1053, 1.5707964
        %vm1118 = vcmp.gt.f32.partialorder %v1054, 1.5707964
        %vm1119 = vcmp.gt.f32.partialorder %v1055, 1.5707964
        %vm1120 = vcmp.gt.f32.partialorder %v1056, 1.5707964
        %vm1121 = vcmp.gt.f32.partialorder %v1057, 1.5707964
        %vm1122 = vcmp.gt.f32.partialorder %v1058, 1.5707964
        %vm1123 = vcmp.gt.f32.partialorder %v1059, 1.5707964
        %vm1124 = vcmp.gt.f32.partialorder %v1060, 1.5707964
        %vm1125 = vcmp.gt.f32.partialorder %v1061, 1.5707964
        %vm1126 = vcmp.gt.f32.partialorder %v1062, 1.5707964
        %vm1127 = vcmp.gt.f32.partialorder %v1063, 1.5707964
        %vm1128 = vcmp.gt.f32.partialorder %v1064, 1.5707964
        %vm1129 = vcmp.gt.f32.partialorder %v1065, 1.5707964
        %vm1130 = vcmp.gt.f32.partialorder %v1066, 1.5707964
        %vm1131 = vcmp.gt.f32.partialorder %v1067, 1.5707964
        %vm1132 = vcmp.gt.f32.partialorder %v1068, 1.5707964
        %vm1133 = vcmp.gt.f32.partialorder %v1069, 1.5707964
        %vm1134 = vcmp.gt.f32.partialorder %v1070, 1.5707964
        %vm1135 = vcmp.gt.f32.partialorder %v1071, 1.5707964
        %vm1136 = vcmp.gt.f32.partialorder %v1072, 1.5707964
        %vm1137 = vcmp.gt.f32.partialorder %v1073, 1.5707964
        %vm1138 = vcmp.gt.f32.partialorder %v1074, 1.5707964
        %vm1139 = vcmp.gt.f32.partialorder %v1075, 1.5707964
        %vm1140 = vcmp.gt.f32.partialorder %v1076, 1.5707964
        %vm1141 = vcmp.gt.f32.partialorder %v1077, 1.5707964
        %vm1142 = vcmp.gt.f32.partialorder %v1078, 1.5707964
        %vm1143 = vcmp.gt.f32.partialorder %v1079, 1.5707964
        %vm1144 = vcmp.gt.f32.partialorder %v1080, 1.5707964
        %vm1145 = vcmp.gt.f32.partialorder %v1081, 1.5707964
        %vm1146 = vcmp.gt.f32.partialorder %v1082, 1.5707964
        %vm1147 = vcmp.gt.f32.partialorder %v1083, 1.5707964
        %vm1148 = vcmp.gt.f32.partialorder %v1084, 1.5707964
        %vm1149 = vcmp.gt.f32.partialorder %v1085, 1.5707964
        %vm1150 = vcmp.gt.f32.partialorder %v1086, 1.5707964
        %vm1151 = vcmp.gt.f32.partialorder %v1087, 1.5707964
        %vm1152 = vcmp.gt.f32.partialorder %v1088, 1.5707964
        %vm1153 = vcmp.gt.f32.partialorder %v1089, 1.5707964
        %vm1154 = vcmp.gt.f32.partialorder %v1090, 1.5707964
        %vm1155 = vcmp.gt.f32.partialorder %v1091, 1.5707964
        %vm1156 = vcmp.gt.f32.partialorder %v1092, 1.5707964
        %vm1157 = vcmp.gt.f32.partialorder %v1093, 1.5707964
        %vm1158 = vcmp.gt.f32.partialorder %v1094, 1.5707964
        %vm1159 = vcmp.gt.f32.partialorder %v1095, 1.5707964
        %vm1160 = vcmp.gt.f32.partialorder %v1096, 1.5707964
        %vm1161 = vcmp.gt.f32.partialorder %v1097, 1.5707964
        %vm1162 = vcmp.gt.f32.partialorder %v1098, 1.5707964
        %v1163 = vsub.f32 3.1415927, %v1035
        %v1164 = vsub.f32 3.1415927, %v1036
        %v1165 = vsub.f32 3.1415927, %v1037
        %v1166 = vsub.f32 3.1415927, %v1038
        %v1167 = vsub.f32 3.1415927, %v1039
        %v1168 = vsub.f32 3.1415927, %v1040
        %v1169 = vsub.f32 3.1415927, %v1041
        %v1170 = vsub.f32 3.1415927, %v1042
        %v1171 = vsub.f32 3.1415927, %v1043
        %v1172 = vsub.f32 3.1415927, %v1044
        %v1173 = vsub.f32 3.1415927, %v1045
        %v1174 = vsub.f32 3.1415927, %v1046
        %v1175 = vsub.f32 3.1415927, %v1047
        %v1176 = vsub.f32 3.1415927, %v1048
        %v1177 = vsub.f32 3.1415927, %v1049
        %v1178 = vsub.f32 3.1415927, %v1050
        %v1179 = vsub.f32 3.1415927, %v1051
        %v1180 = vsub.f32 3.1415927, %v1052
        %v1181 = vsub.f32 3.1415927, %v1053
        %v1182 = vsub.f32 3.1415927, %v1054
        %v1183 = vsub.f32 3.1415927, %v1055
        %v1184 = vsub.f32 3.1415927, %v1056
        %v1185 = vsub.f32 3.1415927, %v1057
        %v1186 = vsub.f32 3.1415927, %v1058
        %v1187 = vsub.f32 3.1415927, %v1059
        %v1188 = vsub.f32 3.1415927, %v1060
        %v1189 = vsub.f32 3.1415927, %v1061
        %v1190 = vsub.f32 3.1415927, %v1062
        %v1191 = vsub.f32 3.1415927, %v1063
        %v1192 = vsub.f32 3.1415927, %v1064
        %v1193 = vsub.f32 3.1415927, %v1065
        %v1194 = vsub.f32 3.1415927, %v1066
        %v1195 = vsub.f32 3.1415927, %v1067
        %v1196 = vsub.f32 3.1415927, %v1068
        %v1197 = vsub.f32 3.1415927, %v1069
        %v1198 = vsub.f32 3.1415927, %v1070
        %v1199 = vsub.f32 3.1415927, %v1071
        %v1200 = vsub.f32 3.1415927, %v1072
        %v1201 = vsub.f32 3.1415927, %v1073
        %v1202 = vsub.f32 3.1415927, %v1074
        %v1203 = vsub.f32 3.1415927, %v1075
        %v1204 = vsub.f32 3.1415927, %v1076
        %v1205 = vsub.f32 3.1415927, %v1077
        %v1206 = vsub.f32 3.1415927, %v1078
        %v1207 = vsub.f32 3.1415927, %v1079
        %v1208 = vsub.f32 3.1415927, %v1080
        %v1209 = vsub.f32 3.1415927, %v1081
        %v1210 = vsub.f32 3.1415927, %v1082
        %v1211 = vsub.f32 3.1415927, %v1083
        %v1212 = vsub.f32 3.1415927, %v1084
        %v1213 = vsub.f32 3.1415927, %v1085
        %v1214 = vsub.f32 3.1415927, %v1086
        %v1215 = vsub.f32 3.1415927, %v1087
        %v1216 = vsub.f32 3.1415927, %v1088
        %v1217 = vsub.f32 3.1415927, %v1089
        %v1218 = vsub.f32 3.1415927, %v1090
        %v1219 = vsub.f32 3.1415927, %v1091
        %v1220 = vsub.f32 3.1415927, %v1092
        %v1221 = vsub.f32 3.1415927, %v1093
        %v1222 = vsub.f32 3.1415927, %v1094
        %v1223 = vsub.f32 3.1415927, %v1095
        %v1224 = vsub.f32 3.1415927, %v1096
        %v1225 = vsub.f32 3.1415927, %v1097
        %v1226 = vsub.f32 3.1415927, %v1098
        %vm1227 = vcmp.lt.f32.partialorder %v1035, -1.5707964
        %vm1228 = vcmp.lt.f32.partialorder %v1036, -1.5707964
        %vm1229 = vcmp.lt.f32.partialorder %v1037, -1.5707964
        %vm1230 = vcmp.lt.f32.partialorder %v1038, -1.5707964
        %vm1231 = vcmp.lt.f32.partialorder %v1039, -1.5707964
        %vm1232 = vcmp.lt.f32.partialorder %v1040, -1.5707964
        %vm1233 = vcmp.lt.f32.partialorder %v1041, -1.5707964
        %vm1234 = vcmp.lt.f32.partialorder %v1042, -1.5707964
        %vm1235 = vcmp.lt.f32.partialorder %v1043, -1.5707964
        %vm1236 = vcmp.lt.f32.partialorder %v1044, -1.5707964
        %vm1237 = vcmp.lt.f32.partialorder %v1045, -1.5707964
        %vm1238 = vcmp.lt.f32.partialorder %v1046, -1.5707964
        %vm1239 = vcmp.lt.f32.partialorder %v1047, -1.5707964
        %vm1240 = vcmp.lt.f32.partialorder %v1048, -1.5707964
        %vm1241 = vcmp.lt.f32.partialorder %v1049, -1.5707964
        %vm1242 = vcmp.lt.f32.partialorder %v1050, -1.5707964
        %vm1243 = vcmp.lt.f32.partialorder %v1051, -1.5707964
        %vm1244 = vcmp.lt.f32.partialorder %v1052, -1.5707964
        %vm1245 = vcmp.lt.f32.partialorder %v1053, -1.5707964
        %vm1246 = vcmp.lt.f32.partialorder %v1054, -1.5707964
        %vm1247 = vcmp.lt.f32.partialorder %v1055, -1.5707964
        %vm1248 = vcmp.lt.f32.partialorder %v1056, -1.5707964
        %vm1249 = vcmp.lt.f32.partialorder %v1057, -1.5707964
        %vm1250 = vcmp.lt.f32.partialorder %v1058, -1.5707964
        %vm1251 = vcmp.lt.f32.partialorder %v1059, -1.5707964
        %vm1252 = vcmp.lt.f32.partialorder %v1060, -1.5707964
        %vm1253 = vcmp.lt.f32.partialorder %v1061, -1.5707964
        %vm1254 = vcmp.lt.f32.partialorder %v1062, -1.5707964
        %vm1255 = vcmp.lt.f32.partialorder %v1063, -1.5707964
        %vm1256 = vcmp.lt.f32.partialorder %v1064, -1.5707964
        %vm1257 = vcmp.lt.f32.partialorder %v1065, -1.5707964
        %vm1258 = vcmp.lt.f32.partialorder %v1066, -1.5707964
        %vm1259 = vcmp.lt.f32.partialorder %v1067, -1.5707964
        %vm1260 = vcmp.lt.f32.partialorder %v1068, -1.5707964
        %vm1261 = vcmp.lt.f32.partialorder %v1069, -1.5707964
        %vm1262 = vcmp.lt.f32.partialorder %v1070, -1.5707964
        %vm1263 = vcmp.lt.f32.partialorder %v1071, -1.5707964
        %vm1264 = vcmp.lt.f32.partialorder %v1072, -1.5707964
        %vm1265 = vcmp.lt.f32.partialorder %v1073, -1.5707964
        %vm1266 = vcmp.lt.f32.partialorder %v1074, -1.5707964
        %vm1267 = vcmp.lt.f32.partialorder %v1075, -1.5707964
        %vm1268 = vcmp.lt.f32.partialorder %v1076, -1.5707964
        %vm1269 = vcmp.lt.f32.partialorder %v1077, -1.5707964
        %vm1270 = vcmp.lt.f32.partialorder %v1078, -1.5707964
        %vm1271 = vcmp.lt.f32.partialorder %v1079, -1.5707964
        %vm1272 = vcmp.lt.f32.partialorder %v1080, -1.5707964
        %vm1273 = vcmp.lt.f32.partialorder %v1081, -1.5707964
        %vm1274 = vcmp.lt.f32.partialorder %v1082, -1.5707964
        %vm1275 = vcmp.lt.f32.partialorder %v1083, -1.5707964
        %vm1276 = vcmp.lt.f32.partialorder %v1084, -1.5707964
        %vm1277 = vcmp.lt.f32.partialorder %v1085, -1.5707964
        %vm1278 = vcmp.lt.f32.partialorder %v1086, -1.5707964
        %vm1279 = vcmp.lt.f32.partialorder %v1087, -1.5707964
        %vm1280 = vcmp.lt.f32.partialorder %v1088, -1.5707964
        %vm1281 = vcmp.lt.f32.partialorder %v1089, -1.5707964
        %vm1282 = vcmp.lt.f32.partialorder %v1090, -1.5707964
        %vm1283 = vcmp.lt.f32.partialorder %v1091, -1.5707964
        %vm1284 = vcmp.lt.f32.partialorder %v1092, -1.5707964
        %vm1285 = vcmp.lt.f32.partialorder %v1093, -1.5707964
        %vm1286 = vcmp.lt.f32.partialorder %v1094, -1.5707964
        %vm1287 = vcmp.lt.f32.partialorder %v1095, -1.5707964
        %vm1288 = vcmp.lt.f32.partialorder %v1096, -1.5707964
        %vm1289 = vcmp.lt.f32.partialorder %v1097, -1.5707964
        %vm1290 = vcmp.lt.f32.partialorder %v1098, -1.5707964
        %v1291 = vsub.f32 -3.1415927, %v1035
        %v1292 = vsub.f32 -3.1415927, %v1036
        %v1293 = vsub.f32 -3.1415927, %v1037
        %v1294 = vsub.f32 -3.1415927, %v1038
        %v1295 = vsub.f32 -3.1415927, %v1039
        %v1296 = vsub.f32 -3.1415927, %v1040
        %v1297 = vsub.f32 -3.1415927, %v1041
        %v1298 = vsub.f32 -3.1415927, %v1042
        %v1299 = vsub.f32 -3.1415927, %v1043
        %v1300 = vsub.f32 -3.1415927, %v1044
        %v1301 = vsub.f32 -3.1415927, %v1045
        %v1302 = vsub.f32 -3.1415927, %v1046
        %v1303 = vsub.f32 -3.1415927, %v1047
        %v1304 = vsub.f32 -3.1415927, %v1048
        %v1305 = vsub.f32 -3.1415927, %v1049
        %v1306 = vsub.f32 -3.1415927, %v1050
        %v1307 = vsub.f32 -3.1415927, %v1051
        %v1308 = vsub.f32 -3.1415927, %v1052
        %v1309 = vsub.f32 -3.1415927, %v1053
        %v1310 = vsub.f32 -3.1415927, %v1054
        %v1311 = vsub.f32 -3.1415927, %v1055
        %v1312 = vsub.f32 -3.1415927, %v1056
        %v1313 = vsub.f32 -3.1415927, %v1057
        %v1314 = vsub.f32 -3.1415927, %v1058
        %v1315 = vsub.f32 -3.1415927, %v1059
        %v1316 = vsub.f32 -3.1415927, %v1060
        %v1317 = vsub.f32 -3.1415927, %v1061
        %v1318 = vsub.f32 -3.1415927, %v1062
        %v1319 = vsub.f32 -3.1415927, %v1063
        %v1320 = vsub.f32 -3.1415927, %v1064
        %v1321 = vsub.f32 -3.1415927, %v1065
        %v1322 = vsub.f32 -3.1415927, %v1066
        %v1323 = vsub.f32 -3.1415927, %v1067
        %v1324 = vsub.f32 -3.1415927, %v1068
        %v1325 = vsub.f32 -3.1415927, %v1069
        %v1326 = vsub.f32 -3.1415927, %v1070
        %v1327 = vsub.f32 -3.1415927, %v1071
        %v1328 = vsub.f32 -3.1415927, %v1072
        %v1329 = vsub.f32 -3.1415927, %v1073
        %v1330 = vsub.f32 -3.1415927, %v1074
        %v1331 = vsub.f32 -3.1415927, %v1075
        %v1332 = vsub.f32 -3.1415927, %v1076
        %v1333 = vsub.f32 -3.1415927, %v1077
        %v1334 = vsub.f32 -3.1415927, %v1078
        %v1335 = vsub.f32 -3.1415927, %v1079
        %v1336 = vsub.f32 -3.1415927, %v1080
        %v1337 = vsub.f32 -3.1415927, %v1081
        %v1338 = vsub.f32 -3.1415927, %v1082
        %v1339 = vsub.f32 -3.1415927, %v1083
        %v1340 = vsub.f32 -3.1415927, %v1084
        %v1341 = vsub.f32 -3.1415927, %v1085
        %v1342 = vsub.f32 -3.1415927, %v1086
        %v1343 = vsub.f32 -3.1415927, %v1087
        %v1344 = vsub.f32 -3.1415927, %v1088
        %v1345 = vsub.f32 -3.1415927, %v1089
        %v1346 = vsub.f32 -3.1415927, %v1090
        %v1347 = vsub.f32 -3.1415927, %v1091
        %v1348 = vsub.f32 -3.1415927, %v1092
        %v1349 = vsub.f32 -3.1415927, %v1093
        %v1350 = vsub.f32 -3.1415927, %v1094
        %v1351 = vsub.f32 -3.1415927, %v1095
        %v1352 = vsub.f32 -3.1415927, %v1096
        %v1353 = vsub.f32 -3.1415927, %v1097
        %v1354 = vsub.f32 -3.1415927, %v1098
        %v1355 = vsel %vm1227, %v1291, %v1035
        %v1356 = vsel %vm1228, %v1292, %v1036
        %v1357 = vsel %vm1229, %v1293, %v1037
        %v1358 = vsel %vm1230, %v1294, %v1038
        %v1359 = vsel %vm1231, %v1295, %v1039
        %v1360 = vsel %vm1232, %v1296, %v1040
        %v1361 = vsel %vm1233, %v1297, %v1041
        %v1362 = vsel %vm1234, %v1298, %v1042
        %v1363 = vsel %vm1235, %v1299, %v1043
        %v1364 = vsel %vm1236, %v1300, %v1044
        %v1365 = vsel %vm1237, %v1301, %v1045
        %v1366 = vsel %vm1238, %v1302, %v1046
        %v1367 = vsel %vm1239, %v1303, %v1047
        %v1368 = vsel %vm1240, %v1304, %v1048
        %v1369 = vsel %vm1241, %v1305, %v1049
        %v1370 = vsel %vm1242, %v1306, %v1050
        %v1371 = vsel %vm1243, %v1307, %v1051
        %v1372 = vsel %vm1244, %v1308, %v1052
        %v1373 = vsel %vm1245, %v1309, %v1053
        %v1374 = vsel %vm1246, %v1310, %v1054
        %v1375 = vsel %vm1247, %v1311, %v1055
        %v1376 = vsel %vm1248, %v1312, %v1056
        %v1377 = vsel %vm1249, %v1313, %v1057
        %v1378 = vsel %vm1250, %v1314, %v1058
        %v1379 = vsel %vm1251, %v1315, %v1059
        %v1380 = vsel %vm1252, %v1316, %v1060
        %v1381 = vsel %vm1253, %v1317, %v1061
        %v1382 = vsel %vm1254, %v1318, %v1062
        %v1383 = vsel %vm1255, %v1319, %v1063
        %v1384 = vsel %vm1256, %v1320, %v1064
        %v1385 = vsel %vm1257, %v1321, %v1065
        %v1386 = vsel %vm1258, %v1322, %v1066
        %v1387 = vsel %vm1259, %v1323, %v1067
        %v1388 = vsel %vm1260, %v1324, %v1068
        %v1389 = vsel %vm1261, %v1325, %v1069
        %v1390 = vsel %vm1262, %v1326, %v1070
        %v1391 = vsel %vm1263, %v1327, %v1071
        %v1392 = vsel %vm1264, %v1328, %v1072
        %v1393 = vsel %vm1265, %v1329, %v1073
        %v1394 = vsel %vm1266, %v1330, %v1074
        %v1395 = vsel %vm1267, %v1331, %v1075
        %v1396 = vsel %vm1268, %v1332, %v1076
        %v1397 = vsel %vm1269, %v1333, %v1077
        %v1398 = vsel %vm1270, %v1334, %v1078
        %v1399 = vsel %vm1271, %v1335, %v1079
        %v1400 = vsel %vm1272, %v1336, %v1080
        %v1401 = vsel %vm1273, %v1337, %v1081
        %v1402 = vsel %vm1274, %v1338, %v1082
        %v1403 = vsel %vm1275, %v1339, %v1083
        %v1404 = vsel %vm1276, %v1340, %v1084
        %v1405 = vsel %vm1277, %v1341, %v1085
        %v1406 = vsel %vm1278, %v1342, %v1086
        %v1407 = vsel %vm1279, %v1343, %v1087
        %v1408 = vsel %vm1280, %v1344, %v1088
        %v1409 = vsel %vm1281, %v1345, %v1089
        %v1410 = vsel %vm1282, %v1346, %v1090
        %v1411 = vsel %vm1283, %v1347, %v1091
        %v1412 = vsel %vm1284, %v1348, %v1092
        %v1413 = vsel %vm1285, %v1349, %v1093
        %v1414 = vsel %vm1286, %v1350, %v1094
        %v1415 = vsel %vm1287, %v1351, %v1095
        %v1416 = vsel %vm1288, %v1352, %v1096
        %v1417 = vsel %vm1289, %v1353, %v1097
        %v1418 = vsel %vm1290, %v1354, %v1098
        %v1419 = vsel %vm1099, %v1163, %v1355
        %v1420 = vsel %vm1100, %v1164, %v1356
        %v1421 = vsel %vm1101, %v1165, %v1357
        %v1422 = vsel %vm1102, %v1166, %v1358
        %v1423 = vsel %vm1103, %v1167, %v1359
        %v1424 = vsel %vm1104, %v1168, %v1360
        %v1425 = vsel %vm1105, %v1169, %v1361
        %v1426 = vsel %vm1106, %v1170, %v1362
        %v1427 = vsel %vm1107, %v1171, %v1363
        %v1428 = vsel %vm1108, %v1172, %v1364
        %v1429 = vsel %vm1109, %v1173, %v1365
        %v1430 = vsel %vm1110, %v1174, %v1366
        %v1431 = vsel %vm1111, %v1175, %v1367
        %v1432 = vsel %vm1112, %v1176, %v1368
        %v1433 = vsel %vm1113, %v1177, %v1369
        %v1434 = vsel %vm1114, %v1178, %v1370
        %v1435 = vsel %vm1115, %v1179, %v1371
        %v1436 = vsel %vm1116, %v1180, %v1372
        %v1437 = vsel %vm1117, %v1181, %v1373
        %v1438 = vsel %vm1118, %v1182, %v1374
        %v1439 = vsel %vm1119, %v1183, %v1375
        %v1440 = vsel %vm1120, %v1184, %v1376
        %v1441 = vsel %vm1121, %v1185, %v1377
        %v1442 = vsel %vm1122, %v1186, %v1378
        %v1443 = vsel %vm1123, %v1187, %v1379
        %v1444 = vsel %vm1124, %v1188, %v1380
        %v1445 = vsel %vm1125, %v1189, %v1381
        %v1446 = vsel %vm1126, %v1190, %v1382
        %v1447 = vsel %vm1127, %v1191, %v1383
        %v1448 = vsel %vm1128, %v1192, %v1384
        %v1449 = vsel %vm1129, %v1193, %v1385
        %v1450 = vsel %vm1130, %v1194, %v1386
        %v1451 = vsel %vm1131, %v1195, %v1387
        %v1452 = vsel %vm1132, %v1196, %v1388
        %v1453 = vsel %vm1133, %v1197, %v1389
        %v1454 = vsel %vm1134, %v1198, %v1390
        %v1455 = vsel %vm1135, %v1199, %v1391
        %v1456 = vsel %vm1136, %v1200, %v1392
        %v1457 = vsel %vm1137, %v1201, %v1393
        %v1458 = vsel %vm1138, %v1202, %v1394
        %v1459 = vsel %vm1139, %v1203, %v1395
        %v1460 = vsel %vm1140, %v1204, %v1396
        %v1461 = vsel %vm1141, %v1205, %v1397
        %v1462 = vsel %vm1142, %v1206, %v1398
        %v1463 = vsel %vm1143, %v1207, %v1399
        %v1464 = vsel %vm1144, %v1208, %v1400
        %v1465 = vsel %vm1145, %v1209, %v1401
        %v1466 = vsel %vm1146, %v1210, %v1402
        %v1467 = vsel %vm1147, %v1211, %v1403
        %v1468 = vsel %vm1148, %v1212, %v1404
        %v1469 = vsel %vm1149, %v1213, %v1405
        %v1470 = vsel %vm1150, %v1214, %v1406
        %v1471 = vsel %vm1151, %v1215, %v1407
        %v1472 = vsel %vm1152, %v1216, %v1408
        %v1473 = vsel %vm1153, %v1217, %v1409
        %v1474 = vsel %vm1154, %v1218, %v1410
        %v1475 = vsel %vm1155, %v1219, %v1411
        %v1476 = vsel %vm1156, %v1220, %v1412
        %v1477 = vsel %vm1157, %v1221, %v1413
        %v1478 = vsel %vm1158, %v1222, %v1414
        %v1479 = vsel %vm1159, %v1223, %v1415
        %v1480 = vsel %vm1160, %v1224, %v1416
        %v1481 = vsel %vm1161, %v1225, %v1417
        %v1482 = vsel %vm1162, %v1226, %v1418
        %v1483 = vmul.f32 %v1419, %v1419
        %v1484 = vmul.f32 %v1420, %v1420
        %v1485 = vmul.f32 %v1421, %v1421
        %v1486 = vmul.f32 %v1422, %v1422
        %v1487 = vmul.f32 %v1423, %v1423
        %v1488 = vmul.f32 %v1424, %v1424
        %v1489 = vmul.f32 %v1425, %v1425
        %v1490 = vmul.f32 %v1426, %v1426
        %v1491 = vmul.f32 %v1427, %v1427
        %v1492 = vmul.f32 %v1428, %v1428
        %v1493 = vmul.f32 %v1429, %v1429
        %v1494 = vmul.f32 %v1430, %v1430
        %v1495 = vmul.f32 %v1431, %v1431
        %v1496 = vmul.f32 %v1432, %v1432
        %v1497 = vmul.f32 %v1433, %v1433
        %v1498 = vmul.f32 %v1434, %v1434
        %v1499 = vmul.f32 %v1435, %v1435
        %v1500 = vmul.f32 %v1436, %v1436
        %v1501 = vmul.f32 %v1437, %v1437
        %v1502 = vmul.f32 %v1438, %v1438
        %v1503 = vmul.f32 %v1439, %v1439
        %v1504 = vmul.f32 %v1440, %v1440
        %v1505 = vmul.f32 %v1441, %v1441
        %v1506 = vmul.f32 %v1442, %v1442
        %v1507 = vmul.f32 %v1443, %v1443
        %v1508 = vmul.f32 %v1444, %v1444
        %v1509 = vmul.f32 %v1445, %v1445
        %v1510 = vmul.f32 %v1446, %v1446
        %v1511 = vmul.f32 %v1447, %v1447
        %v1512 = vmul.f32 %v1448, %v1448
        %v1513 = vmul.f32 %v1449, %v1449
        %v1514 = vmul.f32 %v1450, %v1450
        %v1515 = vmul.f32 %v1451, %v1451
        %v1516 = vmul.f32 %v1452, %v1452
        %v1517 = vmul.f32 %v1453, %v1453
        %v1518 = vmul.f32 %v1454, %v1454
        %v1519 = vmul.f32 %v1455, %v1455
        %v1520 = vmul.f32 %v1456, %v1456
        %v1521 = vmul.f32 %v1457, %v1457
        %v1522 = vmul.f32 %v1458, %v1458
        %v1523 = vmul.f32 %v1459, %v1459
        %v1524 = vmul.f32 %v1460, %v1460
        %v1525 = vmul.f32 %v1461, %v1461
        %v1526 = vmul.f32 %v1462, %v1462
        %v1527 = vmul.f32 %v1463, %v1463
        %v1528 = vmul.f32 %v1464, %v1464
        %v1529 = vmul.f32 %v1465, %v1465
        %v1530 = vmul.f32 %v1466, %v1466
        %v1531 = vmul.f32 %v1467, %v1467
        %v1532 = vmul.f32 %v1468, %v1468
        %v1533 = vmul.f32 %v1469, %v1469
        %v1534 = vmul.f32 %v1470, %v1470
        %v1535 = vmul.f32 %v1471, %v1471
        %v1536 = vmul.f32 %v1472, %v1472
        %v1537 = vmul.f32 %v1473, %v1473
        %v1538 = vmul.f32 %v1474, %v1474
        %v1539 = vmul.f32 %v1475, %v1475
        %v1540 = vmul.f32 %v1476, %v1476
        %v1541 = vmul.f32 %v1477, %v1477
        %v1542 = vmul.f32 %v1478, %v1478
        %v1543 = vmul.f32 %v1479, %v1479
        %v1544 = vmul.f32 %v1480, %v1480
        %v1545 = vmul.f32 %v1481, %v1481
        %v1546 = vmul.f32 %v1482, %v1482
        %v1547 = vmul.f32 %v1483, -0.00019515296
        %v1548 = vmul.f32 %v1484, -0.00019515296
        %v1549 = vmul.f32 %v1485, -0.00019515296
        %v1550 = vmul.f32 %v1486, -0.00019515296
        %v1551 = vmul.f32 %v1487, -0.00019515296
        %v1552 = vmul.f32 %v1488, -0.00019515296
        %v1553 = vmul.f32 %v1489, -0.00019515296
        %v1554 = vmul.f32 %v1490, -0.00019515296
        %v1555 = vmul.f32 %v1491, -0.00019515296
        %v1556 = vmul.f32 %v1492, -0.00019515296
        %v1557 = vmul.f32 %v1493, -0.00019515296
        %v1558 = vmul.f32 %v1494, -0.00019515296
        %v1559 = vmul.f32 %v1495, -0.00019515296
        %v1560 = vmul.f32 %v1496, -0.00019515296
        %v1561 = vmul.f32 %v1497, -0.00019515296
        %v1562 = vmul.f32 %v1498, -0.00019515296
        %v1563 = vmul.f32 %v1499, -0.00019515296
        %v1564 = vmul.f32 %v1500, -0.00019515296
        %v1565 = vmul.f32 %v1501, -0.00019515296
        %v1566 = vmul.f32 %v1502, -0.00019515296
        %v1567 = vmul.f32 %v1503, -0.00019515296
        %v1568 = vmul.f32 %v1504, -0.00019515296
        %v1569 = vmul.f32 %v1505, -0.00019515296
        %v1570 = vmul.f32 %v1506, -0.00019515296
        %v1571 = vmul.f32 %v1507, -0.00019515296
        %v1572 = vmul.f32 %v1508, -0.00019515296
        %v1573 = vmul.f32 %v1509, -0.00019515296
        %v1574 = vmul.f32 %v1510, -0.00019515296
        %v1575 = vmul.f32 %v1511, -0.00019515296
        %v1576 = vmul.f32 %v1512, -0.00019515296
        %v1577 = vmul.f32 %v1513, -0.00019515296
        %v1578 = vmul.f32 %v1514, -0.00019515296
        %v1579 = vmul.f32 %v1515, -0.00019515296
        %v1580 = vmul.f32 %v1516, -0.00019515296
        %v1581 = vmul.f32 %v1517, -0.00019515296
        %v1582 = vmul.f32 %v1518, -0.00019515296
        %v1583 = vmul.f32 %v1519, -0.00019515296
        %v1584 = vmul.f32 %v1520, -0.00019515296
        %v1585 = vmul.f32 %v1521, -0.00019515296
        %v1586 = vmul.f32 %v1522, -0.00019515296
        %v1587 = vmul.f32 %v1523, -0.00019515296
        %v1588 = vmul.f32 %v1524, -0.00019515296
        %v1589 = vmul.f32 %v1525, -0.00019515296
        %v1590 = vmul.f32 %v1526, -0.00019515296
        %v1591 = vmul.f32 %v1527, -0.00019515296
        %v1592 = vmul.f32 %v1528, -0.00019515296
        %v1593 = vmul.f32 %v1529, -0.00019515296
        %v1594 = vmul.f32 %v1530, -0.00019515296
        %v1595 = vmul.f32 %v1531, -0.00019515296
        %v1596 = vmul.f32 %v1532, -0.00019515296
        %v1597 = vmul.f32 %v1533, -0.00019515296
        %v1598 = vmul.f32 %v1534, -0.00019515296
        %v1599 = vmul.f32 %v1535, -0.00019515296
        %v1600 = vmul.f32 %v1536, -0.00019515296
        %v1601 = vmul.f32 %v1537, -0.00019515296
        %v1602 = vmul.f32 %v1538, -0.00019515296
        %v1603 = vmul.f32 %v1539, -0.00019515296
        %v1604 = vmul.f32 %v1540, -0.00019515296
        %v1605 = vmul.f32 %v1541, -0.00019515296
        %v1606 = vmul.f32 %v1542, -0.00019515296
        %v1607 = vmul.f32 %v1543, -0.00019515296
        %v1608 = vmul.f32 %v1544, -0.00019515296
        %v1609 = vmul.f32 %v1545, -0.00019515296
        %v1610 = vmul.f32 %v1546, -0.00019515296
        %v1611 = vadd.f32 %v1547, 0.008332161
        %v1612 = vadd.f32 %v1548, 0.008332161
        %v1613 = vadd.f32 %v1549, 0.008332161
        %v1614 = vadd.f32 %v1550, 0.008332161
        %v1615 = vadd.f32 %v1551, 0.008332161
        %v1616 = vadd.f32 %v1552, 0.008332161
        %v1617 = vadd.f32 %v1553, 0.008332161
        %v1618 = vadd.f32 %v1554, 0.008332161
        %v1619 = vadd.f32 %v1555, 0.008332161
        %v1620 = vadd.f32 %v1556, 0.008332161
        %v1621 = vadd.f32 %v1557, 0.008332161
        %v1622 = vadd.f32 %v1558, 0.008332161
        %v1623 = vadd.f32 %v1559, 0.008332161
        %v1624 = vadd.f32 %v1560, 0.008332161
        %v1625 = vadd.f32 %v1561, 0.008332161
        %v1626 = vadd.f32 %v1562, 0.008332161
        %v1627 = vadd.f32 %v1563, 0.008332161
        %v1628 = vadd.f32 %v1564, 0.008332161
        %v1629 = vadd.f32 %v1565, 0.008332161
        %v1630 = vadd.f32 %v1566, 0.008332161
        %v1631 = vadd.f32 %v1567, 0.008332161
        %v1632 = vadd.f32 %v1568, 0.008332161
        %v1633 = vadd.f32 %v1569, 0.008332161
        %v1634 = vadd.f32 %v1570, 0.008332161
        %v1635 = vadd.f32 %v1571, 0.008332161
        %v1636 = vadd.f32 %v1572, 0.008332161
        %v1637 = vadd.f32 %v1573, 0.008332161
        %v1638 = vadd.f32 %v1574, 0.008332161
        %v1639 = vadd.f32 %v1575, 0.008332161
        %v1640 = vadd.f32 %v1576, 0.008332161
        %v1641 = vadd.f32 %v1577, 0.008332161
        %v1642 = vadd.f32 %v1578, 0.008332161
        %v1643 = vadd.f32 %v1579, 0.008332161
        %v1644 = vadd.f32 %v1580, 0.008332161
        %v1645 = vadd.f32 %v1581, 0.008332161
        %v1646 = vadd.f32 %v1582, 0.008332161
        %v1647 = vadd.f32 %v1583, 0.008332161
        %v1648 = vadd.f32 %v1584, 0.008332161
        %v1649 = vadd.f32 %v1585, 0.008332161
        %v1650 = vadd.f32 %v1586, 0.008332161
        %v1651 = vadd.f32 %v1587, 0.008332161
        %v1652 = vadd.f32 %v1588, 0.008332161
        %v1653 = vadd.f32 %v1589, 0.008332161
        %v1654 = vadd.f32 %v1590, 0.008332161
        %v1655 = vadd.f32 %v1591, 0.008332161
        %v1656 = vadd.f32 %v1592, 0.008332161
        %v1657 = vadd.f32 %v1593, 0.008332161
        %v1658 = vadd.f32 %v1594, 0.008332161
        %v1659 = vadd.f32 %v1595, 0.008332161
        %v1660 = vadd.f32 %v1596, 0.008332161
        %v1661 = vadd.f32 %v1597, 0.008332161
        %v1662 = vadd.f32 %v1598, 0.008332161
        %v1663 = vadd.f32 %v1599, 0.008332161
        %v1664 = vadd.f32 %v1600, 0.008332161
        %v1665 = vadd.f32 %v1601, 0.008332161
        %v1666 = vadd.f32 %v1602, 0.008332161
        %v1667 = vadd.f32 %v1603, 0.008332161
        %v1668 = vadd.f32 %v1604, 0.008332161
        %v1669 = vadd.f32 %v1605, 0.008332161
        %v1670 = vadd.f32 %v1606, 0.008332161
        %v1671 = vadd.f32 %v1607, 0.008332161
        %v1672 = vadd.f32 %v1608, 0.008332161
        %v1673 = vadd.f32 %v1609, 0.008332161
        %v1674 = vadd.f32 %v1610, 0.008332161
        %v1675 = vmul.f32 %v1483, %v1611
        %v1676 = vmul.f32 %v1484, %v1612
        %v1677 = vmul.f32 %v1485, %v1613
        %v1678 = vmul.f32 %v1486, %v1614
        %v1679 = vmul.f32 %v1487, %v1615
        %v1680 = vmul.f32 %v1488, %v1616
        %v1681 = vmul.f32 %v1489, %v1617
        %v1682 = vmul.f32 %v1490, %v1618
        %v1683 = vmul.f32 %v1491, %v1619
        %v1684 = vmul.f32 %v1492, %v1620
        %v1685 = vmul.f32 %v1493, %v1621
        %v1686 = vmul.f32 %v1494, %v1622
        %v1687 = vmul.f32 %v1495, %v1623
        %v1688 = vmul.f32 %v1496, %v1624
        %v1689 = vmul.f32 %v1497, %v1625
        %v1690 = vmul.f32 %v1498, %v1626
        %v1691 = vmul.f32 %v1499, %v1627
        %v1692 = vmul.f32 %v1500, %v1628
        %v1693 = vmul.f32 %v1501, %v1629
        %v1694 = vmul.f32 %v1502, %v1630
        %v1695 = vmul.f32 %v1503, %v1631
        %v1696 = vmul.f32 %v1504, %v1632
        %v1697 = vmul.f32 %v1505, %v1633
        %v1698 = vmul.f32 %v1506, %v1634
        %v1699 = vmul.f32 %v1507, %v1635
        %v1700 = vmul.f32 %v1508, %v1636
        %v1701 = vmul.f32 %v1509, %v1637
        %v1702 = vmul.f32 %v1510, %v1638
        %v1703 = vmul.f32 %v1511, %v1639
        %v1704 = vmul.f32 %v1512, %v1640
        %v1705 = vmul.f32 %v1513, %v1641
        %v1706 = vmul.f32 %v1514, %v1642
        %v1707 = vmul.f32 %v1515, %v1643
        %v1708 = vmul.f32 %v1516, %v1644
        %v1709 = vmul.f32 %v1517, %v1645
        %v1710 = vmul.f32 %v1518, %v1646
        %v1711 = vmul.f32 %v1519, %v1647
        %v1712 = vmul.f32 %v1520, %v1648
        %v1713 = vmul.f32 %v1521, %v1649
        %v1714 = vmul.f32 %v1522, %v1650
        %v1715 = vmul.f32 %v1523, %v1651
        %v1716 = vmul.f32 %v1524, %v1652
        %v1717 = vmul.f32 %v1525, %v1653
        %v1718 = vmul.f32 %v1526, %v1654
        %v1719 = vmul.f32 %v1527, %v1655
        %v1720 = vmul.f32 %v1528, %v1656
        %v1721 = vmul.f32 %v1529, %v1657
        %v1722 = vmul.f32 %v1530, %v1658
        %v1723 = vmul.f32 %v1531, %v1659
        %v1724 = vmul.f32 %v1532, %v1660
        %v1725 = vmul.f32 %v1533, %v1661
        %v1726 = vmul.f32 %v1534, %v1662
        %v1727 = vmul.f32 %v1535, %v1663
        %v1728 = vmul.f32 %v1536, %v1664
        %v1729 = vmul.f32 %v1537, %v1665
        %v1730 = vmul.f32 %v1538, %v1666
        %v1731 = vmul.f32 %v1539, %v1667
        %v1732 = vmul.f32 %v1540, %v1668
        %v1733 = vmul.f32 %v1541, %v1669
        %v1734 = vmul.f32 %v1542, %v1670
        %v1735 = vmul.f32 %v1543, %v1671
        %v1736 = vmul.f32 %v1544, %v1672
        %v1737 = vmul.f32 %v1545, %v1673
        %v1738 = vmul.f32 %v1546, %v1674
        %v1739 = vadd.f32 %v1675, -0.16666655
        %v1740 = vadd.f32 %v1676, -0.16666655
        %v1741 = vadd.f32 %v1677, -0.16666655
        %v1742 = vadd.f32 %v1678, -0.16666655
        %v1743 = vadd.f32 %v1679, -0.16666655
        %v1744 = vadd.f32 %v1680, -0.16666655
        %v1745 = vadd.f32 %v1681, -0.16666655
        %v1746 = vadd.f32 %v1682, -0.16666655
        %v1747 = vadd.f32 %v1683, -0.16666655
        %v1748 = vadd.f32 %v1684, -0.16666655
        %v1749 = vadd.f32 %v1685, -0.16666655
        %v1750 = vadd.f32 %v1686, -0.16666655
        %v1751 = vadd.f32 %v1687, -0.16666655
        %v1752 = vadd.f32 %v1688, -0.16666655
        %v1753 = vadd.f32 %v1689, -0.16666655
        %v1754 = vadd.f32 %v1690, -0.16666655
        %v1755 = vadd.f32 %v1691, -0.16666655
        %v1756 = vadd.f32 %v1692, -0.16666655
        %v1757 = vadd.f32 %v1693, -0.16666655
        %v1758 = vadd.f32 %v1694, -0.16666655
        %v1759 = vadd.f32 %v1695, -0.16666655
        %v1760 = vadd.f32 %v1696, -0.16666655
        %v1761 = vadd.f32 %v1697, -0.16666655
        %v1762 = vadd.f32 %v1698, -0.16666655
        %v1763 = vadd.f32 %v1699, -0.16666655
        %v1764 = vadd.f32 %v1700, -0.16666655
        %v1765 = vadd.f32 %v1701, -0.16666655
        %v1766 = vadd.f32 %v1702, -0.16666655
        %v1767 = vadd.f32 %v1703, -0.16666655
        %v1768 = vadd.f32 %v1704, -0.16666655
        %v1769 = vadd.f32 %v1705, -0.16666655
        %v1770 = vadd.f32 %v1706, -0.16666655
        %v1771 = vadd.f32 %v1707, -0.16666655
        %v1772 = vadd.f32 %v1708, -0.16666655
        %v1773 = vadd.f32 %v1709, -0.16666655
        %v1774 = vadd.f32 %v1710, -0.16666655
        %v1775 = vadd.f32 %v1711, -0.16666655
        %v1776 = vadd.f32 %v1712, -0.16666655
        %v1777 = vadd.f32 %v1713, -0.16666655
        %v1778 = vadd.f32 %v1714, -0.16666655
        %v1779 = vadd.f32 %v1715, -0.16666655
        %v1780 = vadd.f32 %v1716, -0.16666655
        %v1781 = vadd.f32 %v1717, -0.16666655
        %v1782 = vadd.f32 %v1718, -0.16666655
        %v1783 = vadd.f32 %v1719, -0.16666655
        %v1784 = vadd.f32 %v1720, -0.16666655
        %v1785 = vadd.f32 %v1721, -0.16666655
        %v1786 = vadd.f32 %v1722, -0.16666655
        %v1787 = vadd.f32 %v1723, -0.16666655
        %v1788 = vadd.f32 %v1724, -0.16666655
        %v1789 = vadd.f32 %v1725, -0.16666655
        %v1790 = vadd.f32 %v1726, -0.16666655
        %v1791 = vadd.f32 %v1727, -0.16666655
        %v1792 = vadd.f32 %v1728, -0.16666655
        %v1793 = vadd.f32 %v1729, -0.16666655
        %v1794 = vadd.f32 %v1730, -0.16666655
        %v1795 = vadd.f32 %v1731, -0.16666655
        %v1796 = vadd.f32 %v1732, -0.16666655
        %v1797 = vadd.f32 %v1733, -0.16666655
        %v1798 = vadd.f32 %v1734, -0.16666655
        %v1799 = vadd.f32 %v1735, -0.16666655
        %v1800 = vadd.f32 %v1736, -0.16666655
        %v1801 = vadd.f32 %v1737, -0.16666655
        %v1802 = vadd.f32 %v1738, -0.16666655
        %v1803 = vmul.f32 %v1483, %v1739
        %v1804 = vmul.f32 %v1484, %v1740
        %v1805 = vmul.f32 %v1485, %v1741
        %v1806 = vmul.f32 %v1486, %v1742
        %v1807 = vmul.f32 %v1487, %v1743
        %v1808 = vmul.f32 %v1488, %v1744
        %v1809 = vmul.f32 %v1489, %v1745
        %v1810 = vmul.f32 %v1490, %v1746
        %v1811 = vmul.f32 %v1491, %v1747
        %v1812 = vmul.f32 %v1492, %v1748
        %v1813 = vmul.f32 %v1493, %v1749
        %v1814 = vmul.f32 %v1494, %v1750
        %v1815 = vmul.f32 %v1495, %v1751
        %v1816 = vmul.f32 %v1496, %v1752
        %v1817 = vmul.f32 %v1497, %v1753
        %v1818 = vmul.f32 %v1498, %v1754
        %v1819 = vmul.f32 %v1499, %v1755
        %v1820 = vmul.f32 %v1500, %v1756
        %v1821 = vmul.f32 %v1501, %v1757
        %v1822 = vmul.f32 %v1502, %v1758
        %v1823 = vmul.f32 %v1503, %v1759
        %v1824 = vmul.f32 %v1504, %v1760
        %v1825 = vmul.f32 %v1505, %v1761
        %v1826 = vmul.f32 %v1506, %v1762
        %v1827 = vmul.f32 %v1507, %v1763
        %v1828 = vmul.f32 %v1508, %v1764
        %v1829 = vmul.f32 %v1509, %v1765
        %v1830 = vmul.f32 %v1510, %v1766
        %v1831 = vmul.f32 %v1511, %v1767
        %v1832 = vmul.f32 %v1512, %v1768
        %v1833 = vmul.f32 %v1513, %v1769
        %v1834 = vmul.f32 %v1514, %v1770
        %v1835 = vmul.f32 %v1515, %v1771
        %v1836 = vmul.f32 %v1516, %v1772
        %v1837 = vmul.f32 %v1517, %v1773
        %v1838 = vmul.f32 %v1518, %v1774
        %v1839 = vmul.f32 %v1519, %v1775
        %v1840 = vmul.f32 %v1520, %v1776
        %v1841 = vmul.f32 %v1521, %v1777
        %v1842 = vmul.f32 %v1522, %v1778
        %v1843 = vmul.f32 %v1523, %v1779
        %v1844 = vmul.f32 %v1524, %v1780
        %v1845 = vmul.f32 %v1525, %v1781
        %v1846 = vmul.f32 %v1526, %v1782
        %v1847 = vmul.f32 %v1527, %v1783
        %v1848 = vmul.f32 %v1528, %v1784
        %v1849 = vmul.f32 %v1529, %v1785
        %v1850 = vmul.f32 %v1530, %v1786
        %v1851 = vmul.f32 %v1531, %v1787
        %v1852 = vmul.f32 %v1532, %v1788
        %v1853 = vmul.f32 %v1533, %v1789
        %v1854 = vmul.f32 %v1534, %v1790
        %v1855 = vmul.f32 %v1535, %v1791
        %v1856 = vmul.f32 %v1536, %v1792
        %v1857 = vmul.f32 %v1537, %v1793
        %v1858 = vmul.f32 %v1538, %v1794
        %v1859 = vmul.f32 %v1539, %v1795
        %v1860 = vmul.f32 %v1540, %v1796
        %v1861 = vmul.f32 %v1541, %v1797
        %v1862 = vmul.f32 %v1542, %v1798
        %v1863 = vmul.f32 %v1543, %v1799
        %v1864 = vmul.f32 %v1544, %v1800
        %v1865 = vmul.f32 %v1545, %v1801
        %v1866 = vmul.f32 %v1546, %v1802
        %v1867 = vadd.f32 %v1803, 1.0
        %v1868 = vadd.f32 %v1804, 1.0
        %v1869 = vadd.f32 %v1805, 1.0
        %v1870 = vadd.f32 %v1806, 1.0
        %v1871 = vadd.f32 %v1807, 1.0
        %v1872 = vadd.f32 %v1808, 1.0
        %v1873 = vadd.f32 %v1809, 1.0
        %v1874 = vadd.f32 %v1810, 1.0
        %v1875 = vadd.f32 %v1811, 1.0
        %v1876 = vadd.f32 %v1812, 1.0
        %v1877 = vadd.f32 %v1813, 1.0
        %v1878 = vadd.f32 %v1814, 1.0
        %v1879 = vadd.f32 %v1815, 1.0
        %v1880 = vadd.f32 %v1816, 1.0
        %v1881 = vadd.f32 %v1817, 1.0
        %v1882 = vadd.f32 %v1818, 1.0
        %v1883 = vadd.f32 %v1819, 1.0
        %v1884 = vadd.f32 %v1820, 1.0
        %v1885 = vadd.f32 %v1821, 1.0
        %v1886 = vadd.f32 %v1822, 1.0
        %v1887 = vadd.f32 %v1823, 1.0
        %v1888 = vadd.f32 %v1824, 1.0
        %v1889 = vadd.f32 %v1825, 1.0
        %v1890 = vadd.f32 %v1826, 1.0
        %v1891 = vadd.f32 %v1827, 1.0
        %v1892 = vadd.f32 %v1828, 1.0
        %v1893 = vadd.f32 %v1829, 1.0
        %v1894 = vadd.f32 %v1830, 1.0
        %v1895 = vadd.f32 %v1831, 1.0
        %v1896 = vadd.f32 %v1832, 1.0
        %v1897 = vadd.f32 %v1833, 1.0
        %v1898 = vadd.f32 %v1834, 1.0
        %v1899 = vadd.f32 %v1835, 1.0
        %v1900 = vadd.f32 %v1836, 1.0
        %v1901 = vadd.f32 %v1837, 1.0
        %v1902 = vadd.f32 %v1838, 1.0
        %v1903 = vadd.f32 %v1839, 1.0
        %v1904 = vadd.f32 %v1840, 1.0
        %v1905 = vadd.f32 %v1841, 1.0
        %v1906 = vadd.f32 %v1842, 1.0
        %v1907 = vadd.f32 %v1843, 1.0
        %v1908 = vadd.f32 %v1844, 1.0
        %v1909 = vadd.f32 %v1845, 1.0
        %v1910 = vadd.f32 %v1846, 1.0
        %v1911 = vadd.f32 %v1847, 1.0
        %v1912 = vadd.f32 %v1848, 1.0
        %v1913 = vadd.f32 %v1849, 1.0
        %v1914 = vadd.f32 %v1850, 1.0
        %v1915 = vadd.f32 %v1851, 1.0
        %v1916 = vadd.f32 %v1852, 1.0
        %v1917 = vadd.f32 %v1853, 1.0
        %v1918 = vadd.f32 %v1854, 1.0
        %v1919 = vadd.f32 %v1855, 1.0
        %v1920 = vadd.f32 %v1856, 1.0
        %v1921 = vadd.f32 %v1857, 1.0
        %v1922 = vadd.f32 %v1858, 1.0
        %v1923 = vadd.f32 %v1859, 1.0
        %v1924 = vadd.f32 %v1860, 1.0
        %v1925 = vadd.f32 %v1861, 1.0
        %v1926 = vadd.f32 %v1862, 1.0
        %v1927 = vadd.f32 %v1863, 1.0
        %v1928 = vadd.f32 %v1864, 1.0
        %v1929 = vadd.f32 %v1865, 1.0
        %v1930 = vadd.f32 %v1866, 1.0
        %v1931 = vmul.f32 %v1419, %v1867
        %v1932 = vmul.f32 %v1420, %v1868
        %v1933 = vmul.f32 %v1421, %v1869
        %v1934 = vmul.f32 %v1422, %v1870
        %v1935 = vmul.f32 %v1423, %v1871
        %v1936 = vmul.f32 %v1424, %v1872
        %v1937 = vmul.f32 %v1425, %v1873
        %v1938 = vmul.f32 %v1426, %v1874
        %v1939 = vmul.f32 %v1427, %v1875
        %v1940 = vmul.f32 %v1428, %v1876
        %v1941 = vmul.f32 %v1429, %v1877
        %v1942 = vmul.f32 %v1430, %v1878
        %v1943 = vmul.f32 %v1431, %v1879
        %v1944 = vmul.f32 %v1432, %v1880
        %v1945 = vmul.f32 %v1433, %v1881
        %v1946 = vmul.f32 %v1434, %v1882
        %v1947 = vmul.f32 %v1435, %v1883
        %v1948 = vmul.f32 %v1436, %v1884
        %v1949 = vmul.f32 %v1437, %v1885
        %v1950 = vmul.f32 %v1438, %v1886
        %v1951 = vmul.f32 %v1439, %v1887
        %v1952 = vmul.f32 %v1440, %v1888
        %v1953 = vmul.f32 %v1441, %v1889
        %v1954 = vmul.f32 %v1442, %v1890
        %v1955 = vmul.f32 %v1443, %v1891
        %v1956 = vmul.f32 %v1444, %v1892
        %v1957 = vmul.f32 %v1445, %v1893
        %v1958 = vmul.f32 %v1446, %v1894
        %v1959 = vmul.f32 %v1447, %v1895
        %v1960 = vmul.f32 %v1448, %v1896
        %v1961 = vmul.f32 %v1449, %v1897
        %v1962 = vmul.f32 %v1450, %v1898
        %v1963 = vmul.f32 %v1451, %v1899
        %v1964 = vmul.f32 %v1452, %v1900
        %v1965 = vmul.f32 %v1453, %v1901
        %v1966 = vmul.f32 %v1454, %v1902
        %v1967 = vmul.f32 %v1455, %v1903
        %v1968 = vmul.f32 %v1456, %v1904
        %v1969 = vmul.f32 %v1457, %v1905
        %v1970 = vmul.f32 %v1458, %v1906
        %v1971 = vmul.f32 %v1459, %v1907
        %v1972 = vmul.f32 %v1460, %v1908
        %v1973 = vmul.f32 %v1461, %v1909
        %v1974 = vmul.f32 %v1462, %v1910
        %v1975 = vmul.f32 %v1463, %v1911
        %v1976 = vmul.f32 %v1464, %v1912
        %v1977 = vmul.f32 %v1465, %v1913
        %v1978 = vmul.f32 %v1466, %v1914
        %v1979 = vmul.f32 %v1467, %v1915
        %v1980 = vmul.f32 %v1468, %v1916
        %v1981 = vmul.f32 %v1469, %v1917
        %v1982 = vmul.f32 %v1470, %v1918
        %v1983 = vmul.f32 %v1471, %v1919
        %v1984 = vmul.f32 %v1472, %v1920
        %v1985 = vmul.f32 %v1473, %v1921
        %v1986 = vmul.f32 %v1474, %v1922
        %v1987 = vmul.f32 %v1475, %v1923
        %v1988 = vmul.f32 %v1476, %v1924
        %v1989 = vmul.f32 %v1477, %v1925
        %v1990 = vmul.f32 %v1478, %v1926
        %v1991 = vmul.f32 %v1479, %v1927
        %v1992 = vmul.f32 %v1480, %v1928
        %v1993 = vmul.f32 %v1481, %v1929
        %v1994 = vmul.f32 %v1482, %v1930
        %v1995 = vld [vmem:[%s3] sm:$0xf]
        %v1996 = vld [vmem:[%s3 + $0x4] sm:$0xf]
        %v1997 = vld [vmem:[%s3 + $0x8] sm:$0xf]
        %v1998 = vld [vmem:[%s3 + $0xc] sm:$0xf]
        %v1999 = vld [vmem:[%s3 + $0x10] sm:$0xf]
        %v2000 = vld [vmem:[%s3 + $0x14] sm:$0xf]
        %v2001 = vld [vmem:[%s3 + $0x18] sm:$0xf]
        %v2002 = vld [vmem:[%s3 + $0x1c] sm:$0xf]
        %v2003 = vld [vmem:[%s3 + $0x20] sm:$0xf]
        %v2004 = vld [vmem:[%s3 + $0x24] sm:$0xf]
        %v2005 = vld [vmem:[%s3 + $0x28] sm:$0xf]
        %v2006 = vld [vmem:[%s3 + $0x2c] sm:$0xf]
        %v2007 = vld [vmem:[%s3 + $0x30] sm:$0xf]
        %v2008 = vld [vmem:[%s3 + $0x34] sm:$0xf]
        %v2009 = vld [vmem:[%s3 + $0x38] sm:$0xf]
        %v2010 = vld [vmem:[%s3 + $0x3c] sm:$0xf]
        %v2011 = vpack.c.bf16 %v1935, %v1931
        %v2012 = vpack.c.bf16 %v1936, %v1932
        %v2013 = vpack.c.bf16 %v1937, %v1933
        %v2014 = vpack.c.bf16 %v1938, %v1934
        %v2015 = vpack.c.bf16 %v1943, %v1939
        %v2016 = vpack.c.bf16 %v1944, %v1940
        %v2017 = vpack.c.bf16 %v1945, %v1941
        %v2018 = vpack.c.bf16 %v1946, %v1942
        %v2019 = vpack.c.bf16 %v1951, %v1947
        %v2020 = vpack.c.bf16 %v1952, %v1948
        %v2021 = vpack.c.bf16 %v1953, %v1949
        %v2022 = vpack.c.bf16 %v1954, %v1950
        %v2023 = vpack.c.bf16 %v1959, %v1955
        %v2024 = vpack.c.bf16 %v1960, %v1956
        %v2025 = vpack.c.bf16 %v1961, %v1957
        %v2026 = vpack.c.bf16 %v1962, %v1958
        %v2027 = vpack.c.bf16 %v1967, %v1963
        %v2028 = vpack.c.bf16 %v1968, %v1964
        %v2029 = vpack.c.bf16 %v1969, %v1965
        %v2030 = vpack.c.bf16 %v1970, %v1966
        %v2031 = vpack.c.bf16 %v1975, %v1971
        %v2032 = vpack.c.bf16 %v1976, %v1972
        %v2033 = vpack.c.bf16 %v1977, %v1973
        %v2034 = vpack.c.bf16 %v1978, %v1974
        %v2035 = vpack.c.bf16 %v1983, %v1979
        %v2036 = vpack.c.bf16 %v1984, %v1980
        %v2037 = vpack.c.bf16 %v1985, %v1981
        %v2038 = vpack.c.bf16 %v1986, %v1982
        %v2039 = vpack.c.bf16 %v1991, %v1987
        %v2040 = vpack.c.bf16 %v1992, %v1988
        %v2041 = vpack.c.bf16 %v1993, %v1989
        %v2042 = vpack.c.bf16 %v1994, %v1990
        %v2043 = vld [vmem:[%s4] sm:$0xff]
        %v2044 = vld [vmem:[%s4 + $0x8] sm:$0xff]
        %v2045 = vld [vmem:[%s4 + $0x10] sm:$0xff]
        %v2046 = vld [vmem:[%s4 + $0x18] sm:$0xff]
        %v2047 = vld [vmem:[%s4 + $0x20] sm:$0xff]
        %v2048 = vld [vmem:[%s4 + $0x28] sm:$0xff]
        %v2049 = vld [vmem:[%s4 + $0x30] sm:$0xff]
        %v2050 = vld [vmem:[%s4 + $0x38] sm:$0xff]
        %v2051 = vld [vmem:[%s4 + $0x40] sm:$0xff]
        %v2052 = vld [vmem:[%s4 + $0x48] sm:$0xff]
        %v2053 = vld [vmem:[%s4 + $0x50] sm:$0xff]
        %v2054 = vld [vmem:[%s4 + $0x58] sm:$0xff]
        %v2055 = vld [vmem:[%s4 + $0x60] sm:$0xff]
        %v2056 = vld [vmem:[%s4 + $0x68] sm:$0xff]
        %v2057 = vld [vmem:[%s4 + $0x70] sm:$0xff]
        %v2058 = vld [vmem:[%s4 + $0x78] sm:$0xff]
        %2060 = vset.pattern.permute.xlu0 0
        %2061 = vperm.xlu0 %2060, %v2043
        %v2062 = vpop.permute.xlu0 %2061
        %2065 = vset.pattern.permute.xlu0 0
        %2066 = vperm.xlu0 %2065, %v2044
        %v2067 = vpop.permute.xlu0 %2066
        %2070 = vset.pattern.permute.xlu0 0
        %2071 = vperm.xlu0 %2070, %v2045
        %v2072 = vpop.permute.xlu0 %2071
        %2075 = vset.pattern.permute.xlu0 0
        %2076 = vperm.xlu0 %2075, %v2046
        %v2077 = vpop.permute.xlu0 %2076
        %2080 = vset.pattern.permute.xlu0 0
        %2081 = vperm.xlu0 %2080, %v2047
        %v2082 = vpop.permute.xlu0 %2081
        %2085 = vset.pattern.permute.xlu0 0
        %2086 = vperm.xlu0 %2085, %v2048
        %v2087 = vpop.permute.xlu0 %2086
        %2090 = vset.pattern.permute.xlu0 0
        %2091 = vperm.xlu0 %2090, %v2049
        %v2092 = vpop.permute.xlu0 %2091
        %2095 = vset.pattern.permute.xlu0 0
        %2096 = vperm.xlu0 %2095, %v2050
        %v2097 = vpop.permute.xlu0 %2096
        %2100 = vset.pattern.permute.xlu0 0
        %2101 = vperm.xlu0 %2100, %v2051
        %v2102 = vpop.permute.xlu0 %2101
        %2105 = vset.pattern.permute.xlu0 0
        %2106 = vperm.xlu0 %2105, %v2052
        %v2107 = vpop.permute.xlu0 %2106
        %2110 = vset.pattern.permute.xlu0 0
        %2111 = vperm.xlu0 %2110, %v2053
        %v2112 = vpop.permute.xlu0 %2111
        %2115 = vset.pattern.permute.xlu0 0
        %2116 = vperm.xlu0 %2115, %v2054
        %v2117 = vpop.permute.xlu0 %2116
        %2120 = vset.pattern.permute.xlu0 0
        %2121 = vperm.xlu0 %2120, %v2055
        %v2122 = vpop.permute.xlu0 %2121
        %2125 = vset.pattern.permute.xlu0 0
        %2126 = vperm.xlu0 %2125, %v2056
        %v2127 = vpop.permute.xlu0 %2126
        %2130 = vset.pattern.permute.xlu0 0
        %2131 = vperm.xlu0 %2130, %v2057
        %v2132 = vpop.permute.xlu0 %2131
        %2135 = vset.pattern.permute.xlu0 0
        %2136 = vperm.xlu0 %2135, %v2058
        %v2137 = vpop.permute.xlu0 %2136
        %v2155 = vunpack.c.l.b16 %v1995
        %v2156 = vunpack.c.l.b16 %v1996
        %v2157 = vunpack.c.l.b16 %v1997
        %v2158 = vunpack.c.l.b16 %v1998
        %v2159 = vunpack.c.l.b16 %v1999
        %v2160 = vunpack.c.l.b16 %v2000
        %v2161 = vunpack.c.l.b16 %v2001
        %v2162 = vunpack.c.l.b16 %v2002
        %v2163 = vunpack.c.l.b16 %v2003
        %v2164 = vunpack.c.l.b16 %v2004
        %v2165 = vunpack.c.l.b16 %v2005
        %v2166 = vunpack.c.l.b16 %v2006
        %v2167 = vunpack.c.l.b16 %v2007
        %v2168 = vunpack.c.l.b16 %v2008
        %v2169 = vunpack.c.l.b16 %v2009
        %v2170 = vunpack.c.l.b16 %v2010
        %v2171 = vpack.c.b16 %v2156, %v2155
        %v2172 = vpack.c.b16 %v2158, %v2157
        %v2173 = vpack.c.b16 %v2160, %v2159
        %v2174 = vpack.c.b16 %v2162, %v2161
        %v2175 = vpack.c.b16 %v2164, %v2163
        %v2176 = vpack.c.b16 %v2166, %v2165
        %v2177 = vpack.c.b16 %v2168, %v2167
        %v2178 = vpack.c.b16 %v2170, %v2169
        %2187 = vmatprep.subr.bf16.mxu0 %v2040
        %2188 = vmatpush1.bf16.msra.mxu0 %v2039
        %2189 = vmatprep.subr.bf16.mxu0 %v2036
        %2190 = vmatpush1.bf16.msra.mxu0 %v2035
        %2191 = vmatprep.subr.bf16.mxu0 %v2032
        %2192 = vmatpush1.bf16.msra.mxu0 %v2031
        %2193 = vmatprep.subr.bf16.mxu0 %v2028
        %2194 = vmatpush1.bf16.msra.mxu0 %v2027
        %2195 = vmatprep.subr.bf16.mxu0 %v2024
        %2196 = vmatpush1.bf16.msra.mxu0 %v2023
        %2197 = vmatprep.subr.bf16.mxu0 %v2020
        %2198 = vmatpush1.bf16.msra.mxu0 %v2019
        %2199 = vmatprep.subr.bf16.mxu0 %v2016
        %2200 = vmatpush1.bf16.msra.mxu0 %v2015
        %2201 = vmatprep.subr.bf16.mxu0 %v2012
        %2202 = vmatpush1.bf16.msra.mxu0 %v2011
        %2203 = vmatprep.subr.bf16.mxu0 0
        %2204 = vmatpush2.bf16.msra.mxu0 0
        %2205 = vmatprep.subr.bf16.mxu0 0
        %2206 = vmatpush2.bf16.msra.mxu0 0
        %2207 = vmatprep.subr.bf16.mxu0 0
        %2208 = vmatpush2.bf16.msra.mxu0 0
        %2209 = vmatprep.subr.bf16.mxu0 0
        %2210 = vmatpush2.bf16.msra.mxu0 0
        %2211 = vmatprep.subr.bf16.mxu0 0
        %2212 = vmatpush2.bf16.msra.mxu0 0
        %2213 = vmatprep.subr.bf16.mxu0 0
        %2214 = vmatpush2.bf16.msra.mxu0 0
        %2215 = vmatprep.subr.bf16.mxu0 0
        %2216 = vmatpush2.bf16.msra.mxu0 0
        %2217 = vmatprep.subr.bf16.mxu0 0
        %2218 = vmatpush2.bf16.msra.mxu0 0
        %2219 = vmatprep.mubr.bf16.mxu0 0
        %2220 = vmatmul.mubr.bf16.gmra.mxu0 %v2171
        %v2221 = vpop.f32.mrf.mxu0
        %v2222 = vadd.f32 %v2062, %v2221
        %v2223 = vpop.f32.mrf.mxu0
        %v2224 = vadd.f32 %v2062, %v2223
        %v2225 = vpop.f32.mrf.mxu0
        %v2226 = vadd.f32 %v2067, %v2225
        %v2227 = vpop.f32.mrf.mxu0
        %v2228 = vadd.f32 %v2067, %v2227
        %2229 = vmatprep.mubr.bf16.mxu0 0
        %2230 = vmatmul.mubr.bf16.gmra.mxu0 %v2172
        %v2231 = vpop.f32.mrf.mxu0
        %v2232 = vadd.f32 %v2072, %v2231
        %v2233 = vpop.f32.mrf.mxu0
        %v2234 = vadd.f32 %v2072, %v2233
        %v2235 = vpop.f32.mrf.mxu0
        %v2236 = vadd.f32 %v2077, %v2235
        %v2237 = vpop.f32.mrf.mxu0
        %v2238 = vadd.f32 %v2077, %v2237
        %2239 = vmatprep.mubr.bf16.mxu0 0
        %2240 = vmatmul.mubr.bf16.gmra.mxu0 %v2173
        %v2241 = vpop.f32.mrf.mxu0
        %v2242 = vadd.f32 %v2082, %v2241
        %v2243 = vpop.f32.mrf.mxu0
        %v2244 = vadd.f32 %v2082, %v2243
        %v2245 = vpop.f32.mrf.mxu0
        %v2246 = vadd.f32 %v2087, %v2245
        %v2247 = vpop.f32.mrf.mxu0
        %v2248 = vadd.f32 %v2087, %v2247
        %2249 = vmatprep.mubr.bf16.mxu0 0
        %2250 = vmatmul.mubr.bf16.gmra.mxu0 %v2174
        %v2251 = vpop.f32.mrf.mxu0
        %v2252 = vadd.f32 %v2092, %v2251
        %v2253 = vpop.f32.mrf.mxu0
        %v2254 = vadd.f32 %v2092, %v2253
        %v2255 = vpop.f32.mrf.mxu0
        %v2256 = vadd.f32 %v2097, %v2255
        %v2257 = vpop.f32.mrf.mxu0
        %v2258 = vadd.f32 %v2097, %v2257
        %2259 = vmatprep.mubr.bf16.mxu0 0
        %2260 = vmatmul.mubr.bf16.gmra.mxu0 %v2175
        %v2261 = vpop.f32.mrf.mxu0
        %v2262 = vadd.f32 %v2102, %v2261
        %v2263 = vpop.f32.mrf.mxu0
        %v2264 = vadd.f32 %v2102, %v2263
        %v2265 = vpop.f32.mrf.mxu0
        %v2266 = vadd.f32 %v2107, %v2265
        %v2267 = vpop.f32.mrf.mxu0
        %v2268 = vadd.f32 %v2107, %v2267
        %2269 = vmatprep.mubr.bf16.mxu0 0
        %2270 = vmatmul.mubr.bf16.gmra.mxu0 %v2176
        %v2271 = vpop.f32.mrf.mxu0
        %v2272 = vadd.f32 %v2112, %v2271
        %v2273 = vpop.f32.mrf.mxu0
        %v2274 = vadd.f32 %v2112, %v2273
        %v2275 = vpop.f32.mrf.mxu0
        %v2276 = vadd.f32 %v2117, %v2275
        %v2277 = vpop.f32.mrf.mxu0
        %v2278 = vadd.f32 %v2117, %v2277
        %2279 = vmatprep.mubr.bf16.mxu0 0
        %2280 = vmatmul.mubr.bf16.gmra.mxu0 %v2177
        %v2281 = vpop.f32.mrf.mxu0
        %v2282 = vadd.f32 %v2122, %v2281
        %v2283 = vpop.f32.mrf.mxu0
        %v2284 = vadd.f32 %v2122, %v2283
        %v2285 = vpop.f32.mrf.mxu0
        %v2286 = vadd.f32 %v2127, %v2285
        %v2287 = vpop.f32.mrf.mxu0
        %v2288 = vadd.f32 %v2127, %v2287
        %2289 = vmatprep.mubr.bf16.mxu0 0
        %2290 = vmatmul.mubr.bf16.gmra.mxu0 %v2178
        %v2291 = vpop.f32.mrf.mxu0
        %v2292 = vadd.f32 %v2132, %v2291
        %v2293 = vpop.f32.mrf.mxu0
        %v2294 = vadd.f32 %v2132, %v2293
        %v2295 = vpop.f32.mrf.mxu0
        %v2296 = vadd.f32 %v2137, %v2295
        %v2297 = vpop.f32.mrf.mxu0
        %v2298 = vadd.f32 %v2137, %v2297
        %2299 = vdwg.mxu0
        %2300 = vmatprep.subr.bf16.mxu0 %v2042
        %2301 = vmatpush1.bf16.msra.mxu0 %v2041
        %2302 = vmatprep.subr.bf16.mxu0 %v2038
        %2303 = vmatpush1.bf16.msra.mxu0 %v2037
        %2304 = vmatprep.subr.bf16.mxu0 %v2034
        %2305 = vmatpush1.bf16.msra.mxu0 %v2033
        %2306 = vmatprep.subr.bf16.mxu0 %v2030
        %2307 = vmatpush1.bf16.msra.mxu0 %v2029
        %2308 = vmatprep.subr.bf16.mxu0 %v2026
        %2309 = vmatpush1.bf16.msra.mxu0 %v2025
        %2310 = vmatprep.subr.bf16.mxu0 %v2022
        %2311 = vmatpush1.bf16.msra.mxu0 %v2021
        %2312 = vmatprep.subr.bf16.mxu0 %v2018
        %2313 = vmatpush1.bf16.msra.mxu0 %v2017
        %2314 = vmatprep.subr.bf16.mxu0 %v2014
        %2315 = vmatpush1.bf16.msra.mxu0 %v2013
        %2316 = vmatprep.subr.bf16.mxu0 0
        %2317 = vmatpush2.bf16.msra.mxu0 0
        %2318 = vmatprep.subr.bf16.mxu0 0
        %2319 = vmatpush2.bf16.msra.mxu0 0
        %2320 = vmatprep.subr.bf16.mxu0 0
        %2321 = vmatpush2.bf16.msra.mxu0 0
        %2322 = vmatprep.subr.bf16.mxu0 0
        %2323 = vmatpush2.bf16.msra.mxu0 0
        %2324 = vmatprep.subr.bf16.mxu0 0
        %2325 = vmatpush2.bf16.msra.mxu0 0
        %2326 = vmatprep.subr.bf16.mxu0 0
        %2327 = vmatpush2.bf16.msra.mxu0 0
        %2328 = vmatprep.subr.bf16.mxu0 0
        %2329 = vmatpush2.bf16.msra.mxu0 0
        %2330 = vmatprep.subr.bf16.mxu0 0
        %2331 = vmatpush2.bf16.msra.mxu0 0
        %2332 = vmatprep.mubr.bf16.mxu0 0
        %2333 = vmatmul.mubr.bf16.gmra.mxu0 %v2171
        %v2334 = vpop.f32.mrf.mxu0
        %v2335 = vadd.f32 %v2062, %v2334
        %v2336 = vpop.f32.mrf.mxu0
        %v2337 = vadd.f32 %v2062, %v2336
        %v2338 = vpop.f32.mrf.mxu0
        %v2339 = vadd.f32 %v2067, %v2338
        %v2340 = vpop.f32.mrf.mxu0
        %v2341 = vadd.f32 %v2067, %v2340
        %2342 = vmatprep.mubr.bf16.mxu0 0
        %2343 = vmatmul.mubr.bf16.gmra.mxu0 %v2172
        %v2344 = vpop.f32.mrf.mxu0
        %v2345 = vadd.f32 %v2072, %v2344
        %v2346 = vpop.f32.mrf.mxu0
        %v2347 = vadd.f32 %v2072, %v2346
        %v2348 = vpop.f32.mrf.mxu0
        %v2349 = vadd.f32 %v2077, %v2348
        %v2350 = vpop.f32.mrf.mxu0
        %v2351 = vadd.f32 %v2077, %v2350
        %2352 = vmatprep.mubr.bf16.mxu0 0
        %2353 = vmatmul.mubr.bf16.gmra.mxu0 %v2173
        %v2354 = vpop.f32.mrf.mxu0
        %v2355 = vadd.f32 %v2082, %v2354
        %v2356 = vpop.f32.mrf.mxu0
        %v2357 = vadd.f32 %v2082, %v2356
        %v2358 = vpop.f32.mrf.mxu0
        %v2359 = vadd.f32 %v2087, %v2358
        %v2360 = vpop.f32.mrf.mxu0
        %v2361 = vadd.f32 %v2087, %v2360
        %2362 = vmatprep.mubr.bf16.mxu0 0
        %2363 = vmatmul.mubr.bf16.gmra.mxu0 %v2174
        %v2364 = vpop.f32.mrf.mxu0
        %v2365 = vadd.f32 %v2092, %v2364
        %v2366 = vpop.f32.mrf.mxu0
        %v2367 = vadd.f32 %v2092, %v2366
        %v2368 = vpop.f32.mrf.mxu0
        %v2369 = vadd.f32 %v2097, %v2368
        %v2370 = vpop.f32.mrf.mxu0
        %v2371 = vadd.f32 %v2097, %v2370
        %2372 = vmatprep.mubr.bf16.mxu0 0
        %2373 = vmatmul.mubr.bf16.gmra.mxu0 %v2175
        %v2374 = vpop.f32.mrf.mxu0
        %v2375 = vadd.f32 %v2102, %v2374
        %v2376 = vpop.f32.mrf.mxu0
        %v2377 = vadd.f32 %v2102, %v2376
        %v2378 = vpop.f32.mrf.mxu0
        %v2379 = vadd.f32 %v2107, %v2378
        %v2380 = vpop.f32.mrf.mxu0
        %v2381 = vadd.f32 %v2107, %v2380
        %2382 = vmatprep.mubr.bf16.mxu0 0
        %2383 = vmatmul.mubr.bf16.gmra.mxu0 %v2176
        %v2384 = vpop.f32.mrf.mxu0
        %v2385 = vadd.f32 %v2112, %v2384
        %v2386 = vpop.f32.mrf.mxu0
        %v2387 = vadd.f32 %v2112, %v2386
        %v2388 = vpop.f32.mrf.mxu0
        %v2389 = vadd.f32 %v2117, %v2388
        %v2390 = vpop.f32.mrf.mxu0
        %v2391 = vadd.f32 %v2117, %v2390
        %2392 = vmatprep.mubr.bf16.mxu0 0
        %2393 = vmatmul.mubr.bf16.gmra.mxu0 %v2177
        %v2394 = vpop.f32.mrf.mxu0
        %v2395 = vadd.f32 %v2122, %v2394
        %v2396 = vpop.f32.mrf.mxu0
        %v2397 = vadd.f32 %v2122, %v2396
        %v2398 = vpop.f32.mrf.mxu0
        %v2399 = vadd.f32 %v2127, %v2398
        %v2400 = vpop.f32.mrf.mxu0
        %v2401 = vadd.f32 %v2127, %v2400
        %2402 = vmatprep.mubr.bf16.mxu0 0
        %2403 = vmatmul.mubr.bf16.gmra.mxu0 %v2178
        %v2404 = vpop.f32.mrf.mxu0
        %v2405 = vadd.f32 %v2132, %v2404
        %v2406 = vpop.f32.mrf.mxu0
        %v2407 = vadd.f32 %v2132, %v2406
        %v2408 = vpop.f32.mrf.mxu0
        %v2409 = vadd.f32 %v2137, %v2408
        %v2410 = vpop.f32.mrf.mxu0
        %v2411 = vadd.f32 %v2137, %v2410
        %2412 = vdwg.mxu0
        %v2413 = vmul.f32 %v2222, 0.15915494
        %v2414 = vmul.f32 %v2224, 0.15915494
        %v2415 = vmul.f32 %v2335, 0.15915494
        %v2416 = vmul.f32 %v2337, 0.15915494
        %v2417 = vmul.f32 %v2226, 0.15915494
        %v2418 = vmul.f32 %v2228, 0.15915494
        %v2419 = vmul.f32 %v2339, 0.15915494
        %v2420 = vmul.f32 %v2341, 0.15915494
        %v2421 = vmul.f32 %v2232, 0.15915494
        %v2422 = vmul.f32 %v2234, 0.15915494
        %v2423 = vmul.f32 %v2345, 0.15915494
        %v2424 = vmul.f32 %v2347, 0.15915494
        %v2425 = vmul.f32 %v2236, 0.15915494
        %v2426 = vmul.f32 %v2238, 0.15915494
        %v2427 = vmul.f32 %v2349, 0.15915494
        %v2428 = vmul.f32 %v2351, 0.15915494
        %v2429 = vmul.f32 %v2242, 0.15915494
        %v2430 = vmul.f32 %v2244, 0.15915494
        %v2431 = vmul.f32 %v2355, 0.15915494
        %v2432 = vmul.f32 %v2357, 0.15915494
        %v2433 = vmul.f32 %v2246, 0.15915494
        %v2434 = vmul.f32 %v2248, 0.15915494
        %v2435 = vmul.f32 %v2359, 0.15915494
        %v2436 = vmul.f32 %v2361, 0.15915494
        %v2437 = vmul.f32 %v2252, 0.15915494
        %v2438 = vmul.f32 %v2254, 0.15915494
        %v2439 = vmul.f32 %v2365, 0.15915494
        %v2440 = vmul.f32 %v2367, 0.15915494
        %v2441 = vmul.f32 %v2256, 0.15915494
        %v2442 = vmul.f32 %v2258, 0.15915494
        %v2443 = vmul.f32 %v2369, 0.15915494
        %v2444 = vmul.f32 %v2371, 0.15915494
        %v2445 = vmul.f32 %v2262, 0.15915494
        %v2446 = vmul.f32 %v2264, 0.15915494
        %v2447 = vmul.f32 %v2375, 0.15915494
        %v2448 = vmul.f32 %v2377, 0.15915494
        %v2449 = vmul.f32 %v2266, 0.15915494
        %v2450 = vmul.f32 %v2268, 0.15915494
        %v2451 = vmul.f32 %v2379, 0.15915494
        %v2452 = vmul.f32 %v2381, 0.15915494
        %v2453 = vmul.f32 %v2272, 0.15915494
        %v2454 = vmul.f32 %v2274, 0.15915494
        %v2455 = vmul.f32 %v2385, 0.15915494
        %v2456 = vmul.f32 %v2387, 0.15915494
        %v2457 = vmul.f32 %v2276, 0.15915494
        %v2458 = vmul.f32 %v2278, 0.15915494
        %v2459 = vmul.f32 %v2389, 0.15915494
        %v2460 = vmul.f32 %v2391, 0.15915494
        %v2461 = vmul.f32 %v2282, 0.15915494
        %v2462 = vmul.f32 %v2284, 0.15915494
        %v2463 = vmul.f32 %v2395, 0.15915494
        %v2464 = vmul.f32 %v2397, 0.15915494
        %v2465 = vmul.f32 %v2286, 0.15915494
        %v2466 = vmul.f32 %v2288, 0.15915494
        %v2467 = vmul.f32 %v2399, 0.15915494
        %v2468 = vmul.f32 %v2401, 0.15915494
        %v2469 = vmul.f32 %v2292, 0.15915494
        %v2470 = vmul.f32 %v2294, 0.15915494
        %v2471 = vmul.f32 %v2405, 0.15915494
        %v2472 = vmul.f32 %v2407, 0.15915494
        %v2473 = vmul.f32 %v2296, 0.15915494
        %v2474 = vmul.f32 %v2298, 0.15915494
        %v2475 = vmul.f32 %v2409, 0.15915494
        %v2476 = vmul.f32 %v2411, 0.15915494
        %v2477 = vadd.f32 %v2413, 0.5
        %v2478 = vadd.f32 %v2414, 0.5
        %v2479 = vadd.f32 %v2415, 0.5
        %v2480 = vadd.f32 %v2416, 0.5
        %v2481 = vadd.f32 %v2417, 0.5
        %v2482 = vadd.f32 %v2418, 0.5
        %v2483 = vadd.f32 %v2419, 0.5
        %v2484 = vadd.f32 %v2420, 0.5
        %v2485 = vadd.f32 %v2421, 0.5
        %v2486 = vadd.f32 %v2422, 0.5
        %v2487 = vadd.f32 %v2423, 0.5
        %v2488 = vadd.f32 %v2424, 0.5
        %v2489 = vadd.f32 %v2425, 0.5
        %v2490 = vadd.f32 %v2426, 0.5
        %v2491 = vadd.f32 %v2427, 0.5
        %v2492 = vadd.f32 %v2428, 0.5
        %v2493 = vadd.f32 %v2429, 0.5
        %v2494 = vadd.f32 %v2430, 0.5
        %v2495 = vadd.f32 %v2431, 0.5
        %v2496 = vadd.f32 %v2432, 0.5
        %v2497 = vadd.f32 %v2433, 0.5
        %v2498 = vadd.f32 %v2434, 0.5
        %v2499 = vadd.f32 %v2435, 0.5
        %v2500 = vadd.f32 %v2436, 0.5
        %v2501 = vadd.f32 %v2437, 0.5
        %v2502 = vadd.f32 %v2438, 0.5
        %v2503 = vadd.f32 %v2439, 0.5
        %v2504 = vadd.f32 %v2440, 0.5
        %v2505 = vadd.f32 %v2441, 0.5
        %v2506 = vadd.f32 %v2442, 0.5
        %v2507 = vadd.f32 %v2443, 0.5
        %v2508 = vadd.f32 %v2444, 0.5
        %v2509 = vadd.f32 %v2445, 0.5
        %v2510 = vadd.f32 %v2446, 0.5
        %v2511 = vadd.f32 %v2447, 0.5
        %v2512 = vadd.f32 %v2448, 0.5
        %v2513 = vadd.f32 %v2449, 0.5
        %v2514 = vadd.f32 %v2450, 0.5
        %v2515 = vadd.f32 %v2451, 0.5
        %v2516 = vadd.f32 %v2452, 0.5
        %v2517 = vadd.f32 %v2453, 0.5
        %v2518 = vadd.f32 %v2454, 0.5
        %v2519 = vadd.f32 %v2455, 0.5
        %v2520 = vadd.f32 %v2456, 0.5
        %v2521 = vadd.f32 %v2457, 0.5
        %v2522 = vadd.f32 %v2458, 0.5
        %v2523 = vadd.f32 %v2459, 0.5
        %v2524 = vadd.f32 %v2460, 0.5
        %v2525 = vadd.f32 %v2461, 0.5
        %v2526 = vadd.f32 %v2462, 0.5
        %v2527 = vadd.f32 %v2463, 0.5
        %v2528 = vadd.f32 %v2464, 0.5
        %v2529 = vadd.f32 %v2465, 0.5
        %v2530 = vadd.f32 %v2466, 0.5
        %v2531 = vadd.f32 %v2467, 0.5
        %v2532 = vadd.f32 %v2468, 0.5
        %v2533 = vadd.f32 %v2469, 0.5
        %v2534 = vadd.f32 %v2470, 0.5
        %v2535 = vadd.f32 %v2471, 0.5
        %v2536 = vadd.f32 %v2472, 0.5
        %v2537 = vadd.f32 %v2473, 0.5
        %v2538 = vadd.f32 %v2474, 0.5
        %v2539 = vadd.f32 %v2475, 0.5
        %v2540 = vadd.f32 %v2476, 0.5
        %v2541 = vfloor.f32 %v2477
        %v2542 = vfloor.f32 %v2478
        %v2543 = vfloor.f32 %v2479
        %v2544 = vfloor.f32 %v2480
        %v2545 = vfloor.f32 %v2481
        %v2546 = vfloor.f32 %v2482
        %v2547 = vfloor.f32 %v2483
        %v2548 = vfloor.f32 %v2484
        %v2549 = vfloor.f32 %v2485
        %v2550 = vfloor.f32 %v2486
        %v2551 = vfloor.f32 %v2487
        %v2552 = vfloor.f32 %v2488
        %v2553 = vfloor.f32 %v2489
        %v2554 = vfloor.f32 %v2490
        %v2555 = vfloor.f32 %v2491
        %v2556 = vfloor.f32 %v2492
        %v2557 = vfloor.f32 %v2493
        %v2558 = vfloor.f32 %v2494
        %v2559 = vfloor.f32 %v2495
        %v2560 = vfloor.f32 %v2496
        %v2561 = vfloor.f32 %v2497
        %v2562 = vfloor.f32 %v2498
        %v2563 = vfloor.f32 %v2499
        %v2564 = vfloor.f32 %v2500
        %v2565 = vfloor.f32 %v2501
        %v2566 = vfloor.f32 %v2502
        %v2567 = vfloor.f32 %v2503
        %v2568 = vfloor.f32 %v2504
        %v2569 = vfloor.f32 %v2505
        %v2570 = vfloor.f32 %v2506
        %v2571 = vfloor.f32 %v2507
        %v2572 = vfloor.f32 %v2508
        %v2573 = vfloor.f32 %v2509
        %v2574 = vfloor.f32 %v2510
        %v2575 = vfloor.f32 %v2511
        %v2576 = vfloor.f32 %v2512
        %v2577 = vfloor.f32 %v2513
        %v2578 = vfloor.f32 %v2514
        %v2579 = vfloor.f32 %v2515
        %v2580 = vfloor.f32 %v2516
        %v2581 = vfloor.f32 %v2517
        %v2582 = vfloor.f32 %v2518
        %v2583 = vfloor.f32 %v2519
        %v2584 = vfloor.f32 %v2520
        %v2585 = vfloor.f32 %v2521
        %v2586 = vfloor.f32 %v2522
        %v2587 = vfloor.f32 %v2523
        %v2588 = vfloor.f32 %v2524
        %v2589 = vfloor.f32 %v2525
        %v2590 = vfloor.f32 %v2526
        %v2591 = vfloor.f32 %v2527
        %v2592 = vfloor.f32 %v2528
        %v2593 = vfloor.f32 %v2529
        %v2594 = vfloor.f32 %v2530
        %v2595 = vfloor.f32 %v2531
        %v2596 = vfloor.f32 %v2532
        %v2597 = vfloor.f32 %v2533
        %v2598 = vfloor.f32 %v2534
        %v2599 = vfloor.f32 %v2535
        %v2600 = vfloor.f32 %v2536
        %v2601 = vfloor.f32 %v2537
        %v2602 = vfloor.f32 %v2538
        %v2603 = vfloor.f32 %v2539
        %v2604 = vfloor.f32 %v2540
        %v2605 = vmul.f32 %v2541, 6.2831855
        %v2606 = vmul.f32 %v2542, 6.2831855
        %v2607 = vmul.f32 %v2543, 6.2831855
        %v2608 = vmul.f32 %v2544, 6.2831855
        %v2609 = vmul.f32 %v2545, 6.2831855
        %v2610 = vmul.f32 %v2546, 6.2831855
        %v2611 = vmul.f32 %v2547, 6.2831855
        %v2612 = vmul.f32 %v2548, 6.2831855
        %v2613 = vmul.f32 %v2549, 6.2831855
        %v2614 = vmul.f32 %v2550, 6.2831855
        %v2615 = vmul.f32 %v2551, 6.2831855
        %v2616 = vmul.f32 %v2552, 6.2831855
        %v2617 = vmul.f32 %v2553, 6.2831855
        %v2618 = vmul.f32 %v2554, 6.2831855
        %v2619 = vmul.f32 %v2555, 6.2831855
        %v2620 = vmul.f32 %v2556, 6.2831855
        %v2621 = vmul.f32 %v2557, 6.2831855
        %v2622 = vmul.f32 %v2558, 6.2831855
        %v2623 = vmul.f32 %v2559, 6.2831855
        %v2624 = vmul.f32 %v2560, 6.2831855
        %v2625 = vmul.f32 %v2561, 6.2831855
        %v2626 = vmul.f32 %v2562, 6.2831855
        %v2627 = vmul.f32 %v2563, 6.2831855
        %v2628 = vmul.f32 %v2564, 6.2831855
        %v2629 = vmul.f32 %v2565, 6.2831855
        %v2630 = vmul.f32 %v2566, 6.2831855
        %v2631 = vmul.f32 %v2567, 6.2831855
        %v2632 = vmul.f32 %v2568, 6.2831855
        %v2633 = vmul.f32 %v2569, 6.2831855
        %v2634 = vmul.f32 %v2570, 6.2831855
        %v2635 = vmul.f32 %v2571, 6.2831855
        %v2636 = vmul.f32 %v2572, 6.2831855
        %v2637 = vmul.f32 %v2573, 6.2831855
        %v2638 = vmul.f32 %v2574, 6.2831855
        %v2639 = vmul.f32 %v2575, 6.2831855
        %v2640 = vmul.f32 %v2576, 6.2831855
        %v2641 = vmul.f32 %v2577, 6.2831855
        %v2642 = vmul.f32 %v2578, 6.2831855
        %v2643 = vmul.f32 %v2579, 6.2831855
        %v2644 = vmul.f32 %v2580, 6.2831855
        %v2645 = vmul.f32 %v2581, 6.2831855
        %v2646 = vmul.f32 %v2582, 6.2831855
        %v2647 = vmul.f32 %v2583, 6.2831855
        %v2648 = vmul.f32 %v2584, 6.2831855
        %v2649 = vmul.f32 %v2585, 6.2831855
        %v2650 = vmul.f32 %v2586, 6.2831855
        %v2651 = vmul.f32 %v2587, 6.2831855
        %v2652 = vmul.f32 %v2588, 6.2831855
        %v2653 = vmul.f32 %v2589, 6.2831855
        %v2654 = vmul.f32 %v2590, 6.2831855
        %v2655 = vmul.f32 %v2591, 6.2831855
        %v2656 = vmul.f32 %v2592, 6.2831855
        %v2657 = vmul.f32 %v2593, 6.2831855
        %v2658 = vmul.f32 %v2594, 6.2831855
        %v2659 = vmul.f32 %v2595, 6.2831855
        %v2660 = vmul.f32 %v2596, 6.2831855
        %v2661 = vmul.f32 %v2597, 6.2831855
        %v2662 = vmul.f32 %v2598, 6.2831855
        %v2663 = vmul.f32 %v2599, 6.2831855
        %v2664 = vmul.f32 %v2600, 6.2831855
        %v2665 = vmul.f32 %v2601, 6.2831855
        %v2666 = vmul.f32 %v2602, 6.2831855
        %v2667 = vmul.f32 %v2603, 6.2831855
        %v2668 = vmul.f32 %v2604, 6.2831855
        %v2669 = vsub.f32 %v2222, %v2605
        %v2670 = vsub.f32 %v2224, %v2606
        %v2671 = vsub.f32 %v2335, %v2607
        %v2672 = vsub.f32 %v2337, %v2608
        %v2673 = vsub.f32 %v2226, %v2609
        %v2674 = vsub.f32 %v2228, %v2610
        %v2675 = vsub.f32 %v2339, %v2611
        %v2676 = vsub.f32 %v2341, %v2612
        %v2677 = vsub.f32 %v2232, %v2613
        %v2678 = vsub.f32 %v2234, %v2614
        %v2679 = vsub.f32 %v2345, %v2615
        %v2680 = vsub.f32 %v2347, %v2616
        %v2681 = vsub.f32 %v2236, %v2617
        %v2682 = vsub.f32 %v2238, %v2618
        %v2683 = vsub.f32 %v2349, %v2619
        %v2684 = vsub.f32 %v2351, %v2620
        %v2685 = vsub.f32 %v2242, %v2621
        %v2686 = vsub.f32 %v2244, %v2622
        %v2687 = vsub.f32 %v2355, %v2623
        %v2688 = vsub.f32 %v2357, %v2624
        %v2689 = vsub.f32 %v2246, %v2625
        %v2690 = vsub.f32 %v2248, %v2626
        %v2691 = vsub.f32 %v2359, %v2627
        %v2692 = vsub.f32 %v2361, %v2628
        %v2693 = vsub.f32 %v2252, %v2629
        %v2694 = vsub.f32 %v2254, %v2630
        %v2695 = vsub.f32 %v2365, %v2631
        %v2696 = vsub.f32 %v2367, %v2632
        %v2697 = vsub.f32 %v2256, %v2633
        %v2698 = vsub.f32 %v2258, %v2634
        %v2699 = vsub.f32 %v2369, %v2635
        %v2700 = vsub.f32 %v2371, %v2636
        %v2701 = vsub.f32 %v2262, %v2637
        %v2702 = vsub.f32 %v2264, %v2638
        %v2703 = vsub.f32 %v2375, %v2639
        %v2704 = vsub.f32 %v2377, %v2640
        %v2705 = vsub.f32 %v2266, %v2641
        %v2706 = vsub.f32 %v2268, %v2642
        %v2707 = vsub.f32 %v2379, %v2643
        %v2708 = vsub.f32 %v2381, %v2644
        %v2709 = vsub.f32 %v2272, %v2645
        %v2710 = vsub.f32 %v2274, %v2646
        %v2711 = vsub.f32 %v2385, %v2647
        %v2712 = vsub.f32 %v2387, %v2648
        %v2713 = vsub.f32 %v2276, %v2649
        %v2714 = vsub.f32 %v2278, %v2650
        %v2715 = vsub.f32 %v2389, %v2651
        %v2716 = vsub.f32 %v2391, %v2652
        %v2717 = vsub.f32 %v2282, %v2653
        %v2718 = vsub.f32 %v2284, %v2654
        %v2719 = vsub.f32 %v2395, %v2655
        %v2720 = vsub.f32 %v2397, %v2656
        %v2721 = vsub.f32 %v2286, %v2657
        %v2722 = vsub.f32 %v2288, %v2658
        %v2723 = vsub.f32 %v2399, %v2659
        %v2724 = vsub.f32 %v2401, %v2660
        %v2725 = vsub.f32 %v2292, %v2661
        %v2726 = vsub.f32 %v2294, %v2662
        %v2727 = vsub.f32 %v2405, %v2663
        %v2728 = vsub.f32 %v2407, %v2664
        %v2729 = vsub.f32 %v2296, %v2665
        %v2730 = vsub.f32 %v2298, %v2666
        %v2731 = vsub.f32 %v2409, %v2667
        %v2732 = vsub.f32 %v2411, %v2668
        %vm2733 = vcmp.gt.f32.partialorder %v2669, 1.5707964
        %vm2734 = vcmp.gt.f32.partialorder %v2670, 1.5707964
        %vm2735 = vcmp.gt.f32.partialorder %v2671, 1.5707964
        %vm2736 = vcmp.gt.f32.partialorder %v2672, 1.5707964
        %vm2737 = vcmp.gt.f32.partialorder %v2673, 1.5707964
        %vm2738 = vcmp.gt.f32.partialorder %v2674, 1.5707964
        %vm2739 = vcmp.gt.f32.partialorder %v2675, 1.5707964
        %vm2740 = vcmp.gt.f32.partialorder %v2676, 1.5707964
        %vm2741 = vcmp.gt.f32.partialorder %v2677, 1.5707964
        %vm2742 = vcmp.gt.f32.partialorder %v2678, 1.5707964
        %vm2743 = vcmp.gt.f32.partialorder %v2679, 1.5707964
        %vm2744 = vcmp.gt.f32.partialorder %v2680, 1.5707964
        %vm2745 = vcmp.gt.f32.partialorder %v2681, 1.5707964
        %vm2746 = vcmp.gt.f32.partialorder %v2682, 1.5707964
        %vm2747 = vcmp.gt.f32.partialorder %v2683, 1.5707964
        %vm2748 = vcmp.gt.f32.partialorder %v2684, 1.5707964
        %vm2749 = vcmp.gt.f32.partialorder %v2685, 1.5707964
        %vm2750 = vcmp.gt.f32.partialorder %v2686, 1.5707964
        %vm2751 = vcmp.gt.f32.partialorder %v2687, 1.5707964
        %vm2752 = vcmp.gt.f32.partialorder %v2688, 1.5707964
        %vm2753 = vcmp.gt.f32.partialorder %v2689, 1.5707964
        %vm2754 = vcmp.gt.f32.partialorder %v2690, 1.5707964
        %vm2755 = vcmp.gt.f32.partialorder %v2691, 1.5707964
        %vm2756 = vcmp.gt.f32.partialorder %v2692, 1.5707964
        %vm2757 = vcmp.gt.f32.partialorder %v2693, 1.5707964
        %vm2758 = vcmp.gt.f32.partialorder %v2694, 1.5707964
        %vm2759 = vcmp.gt.f32.partialorder %v2695, 1.5707964
        %vm2760 = vcmp.gt.f32.partialorder %v2696, 1.5707964
        %vm2761 = vcmp.gt.f32.partialorder %v2697, 1.5707964
        %vm2762 = vcmp.gt.f32.partialorder %v2698, 1.5707964
        %vm2763 = vcmp.gt.f32.partialorder %v2699, 1.5707964
        %vm2764 = vcmp.gt.f32.partialorder %v2700, 1.5707964
        %vm2765 = vcmp.gt.f32.partialorder %v2701, 1.5707964
        %vm2766 = vcmp.gt.f32.partialorder %v2702, 1.5707964
        %vm2767 = vcmp.gt.f32.partialorder %v2703, 1.5707964
        %vm2768 = vcmp.gt.f32.partialorder %v2704, 1.5707964
        %vm2769 = vcmp.gt.f32.partialorder %v2705, 1.5707964
        %vm2770 = vcmp.gt.f32.partialorder %v2706, 1.5707964
        %vm2771 = vcmp.gt.f32.partialorder %v2707, 1.5707964
        %vm2772 = vcmp.gt.f32.partialorder %v2708, 1.5707964
        %vm2773 = vcmp.gt.f32.partialorder %v2709, 1.5707964
        %vm2774 = vcmp.gt.f32.partialorder %v2710, 1.5707964
        %vm2775 = vcmp.gt.f32.partialorder %v2711, 1.5707964
        %vm2776 = vcmp.gt.f32.partialorder %v2712, 1.5707964
        %vm2777 = vcmp.gt.f32.partialorder %v2713, 1.5707964
        %vm2778 = vcmp.gt.f32.partialorder %v2714, 1.5707964
        %vm2779 = vcmp.gt.f32.partialorder %v2715, 1.5707964
        %vm2780 = vcmp.gt.f32.partialorder %v2716, 1.5707964
        %vm2781 = vcmp.gt.f32.partialorder %v2717, 1.5707964
        %vm2782 = vcmp.gt.f32.partialorder %v2718, 1.5707964
        %vm2783 = vcmp.gt.f32.partialorder %v2719, 1.5707964
        %vm2784 = vcmp.gt.f32.partialorder %v2720, 1.5707964
        %vm2785 = vcmp.gt.f32.partialorder %v2721, 1.5707964
        %vm2786 = vcmp.gt.f32.partialorder %v2722, 1.5707964
        %vm2787 = vcmp.gt.f32.partialorder %v2723, 1.5707964
        %vm2788 = vcmp.gt.f32.partialorder %v2724, 1.5707964
        %vm2789 = vcmp.gt.f32.partialorder %v2725, 1.5707964
        %vm2790 = vcmp.gt.f32.partialorder %v2726, 1.5707964
        %vm2791 = vcmp.gt.f32.partialorder %v2727, 1.5707964
        %vm2792 = vcmp.gt.f32.partialorder %v2728, 1.5707964
        %vm2793 = vcmp.gt.f32.partialorder %v2729, 1.5707964
        %vm2794 = vcmp.gt.f32.partialorder %v2730, 1.5707964
        %vm2795 = vcmp.gt.f32.partialorder %v2731, 1.5707964
        %vm2796 = vcmp.gt.f32.partialorder %v2732, 1.5707964
        %v2797 = vsub.f32 3.1415927, %v2669
        %v2798 = vsub.f32 3.1415927, %v2670
        %v2799 = vsub.f32 3.1415927, %v2671
        %v2800 = vsub.f32 3.1415927, %v2672
        %v2801 = vsub.f32 3.1415927, %v2673
        %v2802 = vsub.f32 3.1415927, %v2674
        %v2803 = vsub.f32 3.1415927, %v2675
        %v2804 = vsub.f32 3.1415927, %v2676
        %v2805 = vsub.f32 3.1415927, %v2677
        %v2806 = vsub.f32 3.1415927, %v2678
        %v2807 = vsub.f32 3.1415927, %v2679
        %v2808 = vsub.f32 3.1415927, %v2680
        %v2809 = vsub.f32 3.1415927, %v2681
        %v2810 = vsub.f32 3.1415927, %v2682
        %v2811 = vsub.f32 3.1415927, %v2683
        %v2812 = vsub.f32 3.1415927, %v2684
        %v2813 = vsub.f32 3.1415927, %v2685
        %v2814 = vsub.f32 3.1415927, %v2686
        %v2815 = vsub.f32 3.1415927, %v2687
        %v2816 = vsub.f32 3.1415927, %v2688
        %v2817 = vsub.f32 3.1415927, %v2689
        %v2818 = vsub.f32 3.1415927, %v2690
        %v2819 = vsub.f32 3.1415927, %v2691
        %v2820 = vsub.f32 3.1415927, %v2692
        %v2821 = vsub.f32 3.1415927, %v2693
        %v2822 = vsub.f32 3.1415927, %v2694
        %v2823 = vsub.f32 3.1415927, %v2695
        %v2824 = vsub.f32 3.1415927, %v2696
        %v2825 = vsub.f32 3.1415927, %v2697
        %v2826 = vsub.f32 3.1415927, %v2698
        %v2827 = vsub.f32 3.1415927, %v2699
        %v2828 = vsub.f32 3.1415927, %v2700
        %v2829 = vsub.f32 3.1415927, %v2701
        %v2830 = vsub.f32 3.1415927, %v2702
        %v2831 = vsub.f32 3.1415927, %v2703
        %v2832 = vsub.f32 3.1415927, %v2704
        %v2833 = vsub.f32 3.1415927, %v2705
        %v2834 = vsub.f32 3.1415927, %v2706
        %v2835 = vsub.f32 3.1415927, %v2707
        %v2836 = vsub.f32 3.1415927, %v2708
        %v2837 = vsub.f32 3.1415927, %v2709
        %v2838 = vsub.f32 3.1415927, %v2710
        %v2839 = vsub.f32 3.1415927, %v2711
        %v2840 = vsub.f32 3.1415927, %v2712
        %v2841 = vsub.f32 3.1415927, %v2713
        %v2842 = vsub.f32 3.1415927, %v2714
        %v2843 = vsub.f32 3.1415927, %v2715
        %v2844 = vsub.f32 3.1415927, %v2716
        %v2845 = vsub.f32 3.1415927, %v2717
        %v2846 = vsub.f32 3.1415927, %v2718
        %v2847 = vsub.f32 3.1415927, %v2719
        %v2848 = vsub.f32 3.1415927, %v2720
        %v2849 = vsub.f32 3.1415927, %v2721
        %v2850 = vsub.f32 3.1415927, %v2722
        %v2851 = vsub.f32 3.1415927, %v2723
        %v2852 = vsub.f32 3.1415927, %v2724
        %v2853 = vsub.f32 3.1415927, %v2725
        %v2854 = vsub.f32 3.1415927, %v2726
        %v2855 = vsub.f32 3.1415927, %v2727
        %v2856 = vsub.f32 3.1415927, %v2728
        %v2857 = vsub.f32 3.1415927, %v2729
        %v2858 = vsub.f32 3.1415927, %v2730
        %v2859 = vsub.f32 3.1415927, %v2731
        %v2860 = vsub.f32 3.1415927, %v2732
        %vm2861 = vcmp.lt.f32.partialorder %v2669, -1.5707964
        %vm2862 = vcmp.lt.f32.partialorder %v2670, -1.5707964
        %vm2863 = vcmp.lt.f32.partialorder %v2671, -1.5707964
        %vm2864 = vcmp.lt.f32.partialorder %v2672, -1.5707964
        %vm2865 = vcmp.lt.f32.partialorder %v2673, -1.5707964
        %vm2866 = vcmp.lt.f32.partialorder %v2674, -1.5707964
        %vm2867 = vcmp.lt.f32.partialorder %v2675, -1.5707964
        %vm2868 = vcmp.lt.f32.partialorder %v2676, -1.5707964
        %vm2869 = vcmp.lt.f32.partialorder %v2677, -1.5707964
        %vm2870 = vcmp.lt.f32.partialorder %v2678, -1.5707964
        %vm2871 = vcmp.lt.f32.partialorder %v2679, -1.5707964
        %vm2872 = vcmp.lt.f32.partialorder %v2680, -1.5707964
        %vm2873 = vcmp.lt.f32.partialorder %v2681, -1.5707964
        %vm2874 = vcmp.lt.f32.partialorder %v2682, -1.5707964
        %vm2875 = vcmp.lt.f32.partialorder %v2683, -1.5707964
        %vm2876 = vcmp.lt.f32.partialorder %v2684, -1.5707964
        %vm2877 = vcmp.lt.f32.partialorder %v2685, -1.5707964
        %vm2878 = vcmp.lt.f32.partialorder %v2686, -1.5707964
        %vm2879 = vcmp.lt.f32.partialorder %v2687, -1.5707964
        %vm2880 = vcmp.lt.f32.partialorder %v2688, -1.5707964
        %vm2881 = vcmp.lt.f32.partialorder %v2689, -1.5707964
        %vm2882 = vcmp.lt.f32.partialorder %v2690, -1.5707964
        %vm2883 = vcmp.lt.f32.partialorder %v2691, -1.5707964
        %vm2884 = vcmp.lt.f32.partialorder %v2692, -1.5707964
        %vm2885 = vcmp.lt.f32.partialorder %v2693, -1.5707964
        %vm2886 = vcmp.lt.f32.partialorder %v2694, -1.5707964
        %vm2887 = vcmp.lt.f32.partialorder %v2695, -1.5707964
        %vm2888 = vcmp.lt.f32.partialorder %v2696, -1.5707964
        %vm2889 = vcmp.lt.f32.partialorder %v2697, -1.5707964
        %vm2890 = vcmp.lt.f32.partialorder %v2698, -1.5707964
        %vm2891 = vcmp.lt.f32.partialorder %v2699, -1.5707964
        %vm2892 = vcmp.lt.f32.partialorder %v2700, -1.5707964
        %vm2893 = vcmp.lt.f32.partialorder %v2701, -1.5707964
        %vm2894 = vcmp.lt.f32.partialorder %v2702, -1.5707964
        %vm2895 = vcmp.lt.f32.partialorder %v2703, -1.5707964
        %vm2896 = vcmp.lt.f32.partialorder %v2704, -1.5707964
        %vm2897 = vcmp.lt.f32.partialorder %v2705, -1.5707964
        %vm2898 = vcmp.lt.f32.partialorder %v2706, -1.5707964
        %vm2899 = vcmp.lt.f32.partialorder %v2707, -1.5707964
        %vm2900 = vcmp.lt.f32.partialorder %v2708, -1.5707964
        %vm2901 = vcmp.lt.f32.partialorder %v2709, -1.5707964
        %vm2902 = vcmp.lt.f32.partialorder %v2710, -1.5707964
        %vm2903 = vcmp.lt.f32.partialorder %v2711, -1.5707964
        %vm2904 = vcmp.lt.f32.partialorder %v2712, -1.5707964
        %vm2905 = vcmp.lt.f32.partialorder %v2713, -1.5707964
        %vm2906 = vcmp.lt.f32.partialorder %v2714, -1.5707964
        %vm2907 = vcmp.lt.f32.partialorder %v2715, -1.5707964
        %vm2908 = vcmp.lt.f32.partialorder %v2716, -1.5707964
        %vm2909 = vcmp.lt.f32.partialorder %v2717, -1.5707964
        %vm2910 = vcmp.lt.f32.partialorder %v2718, -1.5707964
        %vm2911 = vcmp.lt.f32.partialorder %v2719, -1.5707964
        %vm2912 = vcmp.lt.f32.partialorder %v2720, -1.5707964
        %vm2913 = vcmp.lt.f32.partialorder %v2721, -1.5707964
        %vm2914 = vcmp.lt.f32.partialorder %v2722, -1.5707964
        %vm2915 = vcmp.lt.f32.partialorder %v2723, -1.5707964
        %vm2916 = vcmp.lt.f32.partialorder %v2724, -1.5707964
        %vm2917 = vcmp.lt.f32.partialorder %v2725, -1.5707964
        %vm2918 = vcmp.lt.f32.partialorder %v2726, -1.5707964
        %vm2919 = vcmp.lt.f32.partialorder %v2727, -1.5707964
        %vm2920 = vcmp.lt.f32.partialorder %v2728, -1.5707964
        %vm2921 = vcmp.lt.f32.partialorder %v2729, -1.5707964
        %vm2922 = vcmp.lt.f32.partialorder %v2730, -1.5707964
        %vm2923 = vcmp.lt.f32.partialorder %v2731, -1.5707964
        %vm2924 = vcmp.lt.f32.partialorder %v2732, -1.5707964
        %v2925 = vsub.f32 -3.1415927, %v2669
        %v2926 = vsub.f32 -3.1415927, %v2670
        %v2927 = vsub.f32 -3.1415927, %v2671
        %v2928 = vsub.f32 -3.1415927, %v2672
        %v2929 = vsub.f32 -3.1415927, %v2673
        %v2930 = vsub.f32 -3.1415927, %v2674
        %v2931 = vsub.f32 -3.1415927, %v2675
        %v2932 = vsub.f32 -3.1415927, %v2676
        %v2933 = vsub.f32 -3.1415927, %v2677
        %v2934 = vsub.f32 -3.1415927, %v2678
        %v2935 = vsub.f32 -3.1415927, %v2679
        %v2936 = vsub.f32 -3.1415927, %v2680
        %v2937 = vsub.f32 -3.1415927, %v2681
        %v2938 = vsub.f32 -3.1415927, %v2682
        %v2939 = vsub.f32 -3.1415927, %v2683
        %v2940 = vsub.f32 -3.1415927, %v2684
        %v2941 = vsub.f32 -3.1415927, %v2685
        %v2942 = vsub.f32 -3.1415927, %v2686
        %v2943 = vsub.f32 -3.1415927, %v2687
        %v2944 = vsub.f32 -3.1415927, %v2688
        %v2945 = vsub.f32 -3.1415927, %v2689
        %v2946 = vsub.f32 -3.1415927, %v2690
        %v2947 = vsub.f32 -3.1415927, %v2691
        %v2948 = vsub.f32 -3.1415927, %v2692
        %v2949 = vsub.f32 -3.1415927, %v2693
        %v2950 = vsub.f32 -3.1415927, %v2694
        %v2951 = vsub.f32 -3.1415927, %v2695
        %v2952 = vsub.f32 -3.1415927, %v2696
        %v2953 = vsub.f32 -3.1415927, %v2697
        %v2954 = vsub.f32 -3.1415927, %v2698
        %v2955 = vsub.f32 -3.1415927, %v2699
        %v2956 = vsub.f32 -3.1415927, %v2700
        %v2957 = vsub.f32 -3.1415927, %v2701
        %v2958 = vsub.f32 -3.1415927, %v2702
        %v2959 = vsub.f32 -3.1415927, %v2703
        %v2960 = vsub.f32 -3.1415927, %v2704
        %v2961 = vsub.f32 -3.1415927, %v2705
        %v2962 = vsub.f32 -3.1415927, %v2706
        %v2963 = vsub.f32 -3.1415927, %v2707
        %v2964 = vsub.f32 -3.1415927, %v2708
        %v2965 = vsub.f32 -3.1415927, %v2709
        %v2966 = vsub.f32 -3.1415927, %v2710
        %v2967 = vsub.f32 -3.1415927, %v2711
        %v2968 = vsub.f32 -3.1415927, %v2712
        %v2969 = vsub.f32 -3.1415927, %v2713
        %v2970 = vsub.f32 -3.1415927, %v2714
        %v2971 = vsub.f32 -3.1415927, %v2715
        %v2972 = vsub.f32 -3.1415927, %v2716
        %v2973 = vsub.f32 -3.1415927, %v2717
        %v2974 = vsub.f32 -3.1415927, %v2718
        %v2975 = vsub.f32 -3.1415927, %v2719
        %v2976 = vsub.f32 -3.1415927, %v2720
        %v2977 = vsub.f32 -3.1415927, %v2721
        %v2978 = vsub.f32 -3.1415927, %v2722
        %v2979 = vsub.f32 -3.1415927, %v2723
        %v2980 = vsub.f32 -3.1415927, %v2724
        %v2981 = vsub.f32 -3.1415927, %v2725
        %v2982 = vsub.f32 -3.1415927, %v2726
        %v2983 = vsub.f32 -3.1415927, %v2727
        %v2984 = vsub.f32 -3.1415927, %v2728
        %v2985 = vsub.f32 -3.1415927, %v2729
        %v2986 = vsub.f32 -3.1415927, %v2730
        %v2987 = vsub.f32 -3.1415927, %v2731
        %v2988 = vsub.f32 -3.1415927, %v2732
        %v2989 = vsel %vm2861, %v2925, %v2669
        %v2990 = vsel %vm2862, %v2926, %v2670
        %v2991 = vsel %vm2863, %v2927, %v2671
        %v2992 = vsel %vm2864, %v2928, %v2672
        %v2993 = vsel %vm2865, %v2929, %v2673
        %v2994 = vsel %vm2866, %v2930, %v2674
        %v2995 = vsel %vm2867, %v2931, %v2675
        %v2996 = vsel %vm2868, %v2932, %v2676
        %v2997 = vsel %vm2869, %v2933, %v2677
        %v2998 = vsel %vm2870, %v2934, %v2678
        %v2999 = vsel %vm2871, %v2935, %v2679
        %v3000 = vsel %vm2872, %v2936, %v2680
        %v3001 = vsel %vm2873, %v2937, %v2681
        %v3002 = vsel %vm2874, %v2938, %v2682
        %v3003 = vsel %vm2875, %v2939, %v2683
        %v3004 = vsel %vm2876, %v2940, %v2684
        %v3005 = vsel %vm2877, %v2941, %v2685
        %v3006 = vsel %vm2878, %v2942, %v2686
        %v3007 = vsel %vm2879, %v2943, %v2687
        %v3008 = vsel %vm2880, %v2944, %v2688
        %v3009 = vsel %vm2881, %v2945, %v2689
        %v3010 = vsel %vm2882, %v2946, %v2690
        %v3011 = vsel %vm2883, %v2947, %v2691
        %v3012 = vsel %vm2884, %v2948, %v2692
        %v3013 = vsel %vm2885, %v2949, %v2693
        %v3014 = vsel %vm2886, %v2950, %v2694
        %v3015 = vsel %vm2887, %v2951, %v2695
        %v3016 = vsel %vm2888, %v2952, %v2696
        %v3017 = vsel %vm2889, %v2953, %v2697
        %v3018 = vsel %vm2890, %v2954, %v2698
        %v3019 = vsel %vm2891, %v2955, %v2699
        %v3020 = vsel %vm2892, %v2956, %v2700
        %v3021 = vsel %vm2893, %v2957, %v2701
        %v3022 = vsel %vm2894, %v2958, %v2702
        %v3023 = vsel %vm2895, %v2959, %v2703
        %v3024 = vsel %vm2896, %v2960, %v2704
        %v3025 = vsel %vm2897, %v2961, %v2705
        %v3026 = vsel %vm2898, %v2962, %v2706
        %v3027 = vsel %vm2899, %v2963, %v2707
        %v3028 = vsel %vm2900, %v2964, %v2708
        %v3029 = vsel %vm2901, %v2965, %v2709
        %v3030 = vsel %vm2902, %v2966, %v2710
        %v3031 = vsel %vm2903, %v2967, %v2711
        %v3032 = vsel %vm2904, %v2968, %v2712
        %v3033 = vsel %vm2905, %v2969, %v2713
        %v3034 = vsel %vm2906, %v2970, %v2714
        %v3035 = vsel %vm2907, %v2971, %v2715
        %v3036 = vsel %vm2908, %v2972, %v2716
        %v3037 = vsel %vm2909, %v2973, %v2717
        %v3038 = vsel %vm2910, %v2974, %v2718
        %v3039 = vsel %vm2911, %v2975, %v2719
        %v3040 = vsel %vm2912, %v2976, %v2720
        %v3041 = vsel %vm2913, %v2977, %v2721
        %v3042 = vsel %vm2914, %v2978, %v2722
        %v3043 = vsel %vm2915, %v2979, %v2723
        %v3044 = vsel %vm2916, %v2980, %v2724
        %v3045 = vsel %vm2917, %v2981, %v2725
        %v3046 = vsel %vm2918, %v2982, %v2726
        %v3047 = vsel %vm2919, %v2983, %v2727
        %v3048 = vsel %vm2920, %v2984, %v2728
        %v3049 = vsel %vm2921, %v2985, %v2729
        %v3050 = vsel %vm2922, %v2986, %v2730
        %v3051 = vsel %vm2923, %v2987, %v2731
        %v3052 = vsel %vm2924, %v2988, %v2732
        %v3053 = vsel %vm2733, %v2797, %v2989
        %v3054 = vsel %vm2734, %v2798, %v2990
        %v3055 = vsel %vm2735, %v2799, %v2991
        %v3056 = vsel %vm2736, %v2800, %v2992
        %v3057 = vsel %vm2737, %v2801, %v2993
        %v3058 = vsel %vm2738, %v2802, %v2994
        %v3059 = vsel %vm2739, %v2803, %v2995
        %v3060 = vsel %vm2740, %v2804, %v2996
        %v3061 = vsel %vm2741, %v2805, %v2997
        %v3062 = vsel %vm2742, %v2806, %v2998
        %v3063 = vsel %vm2743, %v2807, %v2999
        %v3064 = vsel %vm2744, %v2808, %v3000
        %v3065 = vsel %vm2745, %v2809, %v3001
        %v3066 = vsel %vm2746, %v2810, %v3002
        %v3067 = vsel %vm2747, %v2811, %v3003
        %v3068 = vsel %vm2748, %v2812, %v3004
        %v3069 = vsel %vm2749, %v2813, %v3005
        %v3070 = vsel %vm2750, %v2814, %v3006
        %v3071 = vsel %vm2751, %v2815, %v3007
        %v3072 = vsel %vm2752, %v2816, %v3008
        %v3073 = vsel %vm2753, %v2817, %v3009
        %v3074 = vsel %vm2754, %v2818, %v3010
        %v3075 = vsel %vm2755, %v2819, %v3011
        %v3076 = vsel %vm2756, %v2820, %v3012
        %v3077 = vsel %vm2757, %v2821, %v3013
        %v3078 = vsel %vm2758, %v2822, %v3014
        %v3079 = vsel %vm2759, %v2823, %v3015
        %v3080 = vsel %vm2760, %v2824, %v3016
        %v3081 = vsel %vm2761, %v2825, %v3017
        %v3082 = vsel %vm2762, %v2826, %v3018
        %v3083 = vsel %vm2763, %v2827, %v3019
        %v3084 = vsel %vm2764, %v2828, %v3020
        %v3085 = vsel %vm2765, %v2829, %v3021
        %v3086 = vsel %vm2766, %v2830, %v3022
        %v3087 = vsel %vm2767, %v2831, %v3023
        %v3088 = vsel %vm2768, %v2832, %v3024
        %v3089 = vsel %vm2769, %v2833, %v3025
        %v3090 = vsel %vm2770, %v2834, %v3026
        %v3091 = vsel %vm2771, %v2835, %v3027
        %v3092 = vsel %vm2772, %v2836, %v3028
        %v3093 = vsel %vm2773, %v2837, %v3029
        %v3094 = vsel %vm2774, %v2838, %v3030
        %v3095 = vsel %vm2775, %v2839, %v3031
        %v3096 = vsel %vm2776, %v2840, %v3032
        %v3097 = vsel %vm2777, %v2841, %v3033
        %v3098 = vsel %vm2778, %v2842, %v3034
        %v3099 = vsel %vm2779, %v2843, %v3035
        %v3100 = vsel %vm2780, %v2844, %v3036
        %v3101 = vsel %vm2781, %v2845, %v3037
        %v3102 = vsel %vm2782, %v2846, %v3038
        %v3103 = vsel %vm2783, %v2847, %v3039
        %v3104 = vsel %vm2784, %v2848, %v3040
        %v3105 = vsel %vm2785, %v2849, %v3041
        %v3106 = vsel %vm2786, %v2850, %v3042
        %v3107 = vsel %vm2787, %v2851, %v3043
        %v3108 = vsel %vm2788, %v2852, %v3044
        %v3109 = vsel %vm2789, %v2853, %v3045
        %v3110 = vsel %vm2790, %v2854, %v3046
        %v3111 = vsel %vm2791, %v2855, %v3047
        %v3112 = vsel %vm2792, %v2856, %v3048
        %v3113 = vsel %vm2793, %v2857, %v3049
        %v3114 = vsel %vm2794, %v2858, %v3050
        %v3115 = vsel %vm2795, %v2859, %v3051
        %v3116 = vsel %vm2796, %v2860, %v3052
        %v3117 = vmul.f32 %v3053, %v3053
        %v3118 = vmul.f32 %v3054, %v3054
        %v3119 = vmul.f32 %v3055, %v3055
        %v3120 = vmul.f32 %v3056, %v3056
        %v3121 = vmul.f32 %v3057, %v3057
        %v3122 = vmul.f32 %v3058, %v3058
        %v3123 = vmul.f32 %v3059, %v3059
        %v3124 = vmul.f32 %v3060, %v3060
        %v3125 = vmul.f32 %v3061, %v3061
        %v3126 = vmul.f32 %v3062, %v3062
        %v3127 = vmul.f32 %v3063, %v3063
        %v3128 = vmul.f32 %v3064, %v3064
        %v3129 = vmul.f32 %v3065, %v3065
        %v3130 = vmul.f32 %v3066, %v3066
        %v3131 = vmul.f32 %v3067, %v3067
        %v3132 = vmul.f32 %v3068, %v3068
        %v3133 = vmul.f32 %v3069, %v3069
        %v3134 = vmul.f32 %v3070, %v3070
        %v3135 = vmul.f32 %v3071, %v3071
        %v3136 = vmul.f32 %v3072, %v3072
        %v3137 = vmul.f32 %v3073, %v3073
        %v3138 = vmul.f32 %v3074, %v3074
        %v3139 = vmul.f32 %v3075, %v3075
        %v3140 = vmul.f32 %v3076, %v3076
        %v3141 = vmul.f32 %v3077, %v3077
        %v3142 = vmul.f32 %v3078, %v3078
        %v3143 = vmul.f32 %v3079, %v3079
        %v3144 = vmul.f32 %v3080, %v3080
        %v3145 = vmul.f32 %v3081, %v3081
        %v3146 = vmul.f32 %v3082, %v3082
        %v3147 = vmul.f32 %v3083, %v3083
        %v3148 = vmul.f32 %v3084, %v3084
        %v3149 = vmul.f32 %v3085, %v3085
        %v3150 = vmul.f32 %v3086, %v3086
        %v3151 = vmul.f32 %v3087, %v3087
        %v3152 = vmul.f32 %v3088, %v3088
        %v3153 = vmul.f32 %v3089, %v3089
        %v3154 = vmul.f32 %v3090, %v3090
        %v3155 = vmul.f32 %v3091, %v3091
        %v3156 = vmul.f32 %v3092, %v3092
        %v3157 = vmul.f32 %v3093, %v3093
        %v3158 = vmul.f32 %v3094, %v3094
        %v3159 = vmul.f32 %v3095, %v3095
        %v3160 = vmul.f32 %v3096, %v3096
        %v3161 = vmul.f32 %v3097, %v3097
        %v3162 = vmul.f32 %v3098, %v3098
        %v3163 = vmul.f32 %v3099, %v3099
        %v3164 = vmul.f32 %v3100, %v3100
        %v3165 = vmul.f32 %v3101, %v3101
        %v3166 = vmul.f32 %v3102, %v3102
        %v3167 = vmul.f32 %v3103, %v3103
        %v3168 = vmul.f32 %v3104, %v3104
        %v3169 = vmul.f32 %v3105, %v3105
        %v3170 = vmul.f32 %v3106, %v3106
        %v3171 = vmul.f32 %v3107, %v3107
        %v3172 = vmul.f32 %v3108, %v3108
        %v3173 = vmul.f32 %v3109, %v3109
        %v3174 = vmul.f32 %v3110, %v3110
        %v3175 = vmul.f32 %v3111, %v3111
        %v3176 = vmul.f32 %v3112, %v3112
        %v3177 = vmul.f32 %v3113, %v3113
        %v3178 = vmul.f32 %v3114, %v3114
        %v3179 = vmul.f32 %v3115, %v3115
        %v3180 = vmul.f32 %v3116, %v3116
        %v3181 = vmul.f32 %v3117, -0.00019515296
        %v3182 = vmul.f32 %v3118, -0.00019515296
        %v3183 = vmul.f32 %v3119, -0.00019515296
        %v3184 = vmul.f32 %v3120, -0.00019515296
        %v3185 = vmul.f32 %v3121, -0.00019515296
        %v3186 = vmul.f32 %v3122, -0.00019515296
        %v3187 = vmul.f32 %v3123, -0.00019515296
        %v3188 = vmul.f32 %v3124, -0.00019515296
        %v3189 = vmul.f32 %v3125, -0.00019515296
        %v3190 = vmul.f32 %v3126, -0.00019515296
        %v3191 = vmul.f32 %v3127, -0.00019515296
        %v3192 = vmul.f32 %v3128, -0.00019515296
        %v3193 = vmul.f32 %v3129, -0.00019515296
        %v3194 = vmul.f32 %v3130, -0.00019515296
        %v3195 = vmul.f32 %v3131, -0.00019515296
        %v3196 = vmul.f32 %v3132, -0.00019515296
        %v3197 = vmul.f32 %v3133, -0.00019515296
        %v3198 = vmul.f32 %v3134, -0.00019515296
        %v3199 = vmul.f32 %v3135, -0.00019515296
        %v3200 = vmul.f32 %v3136, -0.00019515296
        %v3201 = vmul.f32 %v3137, -0.00019515296
        %v3202 = vmul.f32 %v3138, -0.00019515296
        %v3203 = vmul.f32 %v3139, -0.00019515296
        %v3204 = vmul.f32 %v3140, -0.00019515296
        %v3205 = vmul.f32 %v3141, -0.00019515296
        %v3206 = vmul.f32 %v3142, -0.00019515296
        %v3207 = vmul.f32 %v3143, -0.00019515296
        %v3208 = vmul.f32 %v3144, -0.00019515296
        %v3209 = vmul.f32 %v3145, -0.00019515296
        %v3210 = vmul.f32 %v3146, -0.00019515296
        %v3211 = vmul.f32 %v3147, -0.00019515296
        %v3212 = vmul.f32 %v3148, -0.00019515296
        %v3213 = vmul.f32 %v3149, -0.00019515296
        %v3214 = vmul.f32 %v3150, -0.00019515296
        %v3215 = vmul.f32 %v3151, -0.00019515296
        %v3216 = vmul.f32 %v3152, -0.00019515296
        %v3217 = vmul.f32 %v3153, -0.00019515296
        %v3218 = vmul.f32 %v3154, -0.00019515296
        %v3219 = vmul.f32 %v3155, -0.00019515296
        %v3220 = vmul.f32 %v3156, -0.00019515296
        %v3221 = vmul.f32 %v3157, -0.00019515296
        %v3222 = vmul.f32 %v3158, -0.00019515296
        %v3223 = vmul.f32 %v3159, -0.00019515296
        %v3224 = vmul.f32 %v3160, -0.00019515296
        %v3225 = vmul.f32 %v3161, -0.00019515296
        %v3226 = vmul.f32 %v3162, -0.00019515296
        %v3227 = vmul.f32 %v3163, -0.00019515296
        %v3228 = vmul.f32 %v3164, -0.00019515296
        %v3229 = vmul.f32 %v3165, -0.00019515296
        %v3230 = vmul.f32 %v3166, -0.00019515296
        %v3231 = vmul.f32 %v3167, -0.00019515296
        %v3232 = vmul.f32 %v3168, -0.00019515296
        %v3233 = vmul.f32 %v3169, -0.00019515296
        %v3234 = vmul.f32 %v3170, -0.00019515296
        %v3235 = vmul.f32 %v3171, -0.00019515296
        %v3236 = vmul.f32 %v3172, -0.00019515296
        %v3237 = vmul.f32 %v3173, -0.00019515296
        %v3238 = vmul.f32 %v3174, -0.00019515296
        %v3239 = vmul.f32 %v3175, -0.00019515296
        %v3240 = vmul.f32 %v3176, -0.00019515296
        %v3241 = vmul.f32 %v3177, -0.00019515296
        %v3242 = vmul.f32 %v3178, -0.00019515296
        %v3243 = vmul.f32 %v3179, -0.00019515296
        %v3244 = vmul.f32 %v3180, -0.00019515296
        %v3245 = vadd.f32 %v3181, 0.008332161
        %v3246 = vadd.f32 %v3182, 0.008332161
        %v3247 = vadd.f32 %v3183, 0.008332161
        %v3248 = vadd.f32 %v3184, 0.008332161
        %v3249 = vadd.f32 %v3185, 0.008332161
        %v3250 = vadd.f32 %v3186, 0.008332161
        %v3251 = vadd.f32 %v3187, 0.008332161
        %v3252 = vadd.f32 %v3188, 0.008332161
        %v3253 = vadd.f32 %v3189, 0.008332161
        %v3254 = vadd.f32 %v3190, 0.008332161
        %v3255 = vadd.f32 %v3191, 0.008332161
        %v3256 = vadd.f32 %v3192, 0.008332161
        %v3257 = vadd.f32 %v3193, 0.008332161
        %v3258 = vadd.f32 %v3194, 0.008332161
        %v3259 = vadd.f32 %v3195, 0.008332161
        %v3260 = vadd.f32 %v3196, 0.008332161
        %v3261 = vadd.f32 %v3197, 0.008332161
        %v3262 = vadd.f32 %v3198, 0.008332161
        %v3263 = vadd.f32 %v3199, 0.008332161
        %v3264 = vadd.f32 %v3200, 0.008332161
        %v3265 = vadd.f32 %v3201, 0.008332161
        %v3266 = vadd.f32 %v3202, 0.008332161
        %v3267 = vadd.f32 %v3203, 0.008332161
        %v3268 = vadd.f32 %v3204, 0.008332161
        %v3269 = vadd.f32 %v3205, 0.008332161
        %v3270 = vadd.f32 %v3206, 0.008332161
        %v3271 = vadd.f32 %v3207, 0.008332161
        %v3272 = vadd.f32 %v3208, 0.008332161
        %v3273 = vadd.f32 %v3209, 0.008332161
        %v3274 = vadd.f32 %v3210, 0.008332161
        %v3275 = vadd.f32 %v3211, 0.008332161
        %v3276 = vadd.f32 %v3212, 0.008332161
        %v3277 = vadd.f32 %v3213, 0.008332161
        %v3278 = vadd.f32 %v3214, 0.008332161
        %v3279 = vadd.f32 %v3215, 0.008332161
        %v3280 = vadd.f32 %v3216, 0.008332161
        %v3281 = vadd.f32 %v3217, 0.008332161
        %v3282 = vadd.f32 %v3218, 0.008332161
        %v3283 = vadd.f32 %v3219, 0.008332161
        %v3284 = vadd.f32 %v3220, 0.008332161
        %v3285 = vadd.f32 %v3221, 0.008332161
        %v3286 = vadd.f32 %v3222, 0.008332161
        %v3287 = vadd.f32 %v3223, 0.008332161
        %v3288 = vadd.f32 %v3224, 0.008332161
        %v3289 = vadd.f32 %v3225, 0.008332161
        %v3290 = vadd.f32 %v3226, 0.008332161
        %v3291 = vadd.f32 %v3227, 0.008332161
        %v3292 = vadd.f32 %v3228, 0.008332161
        %v3293 = vadd.f32 %v3229, 0.008332161
        %v3294 = vadd.f32 %v3230, 0.008332161
        %v3295 = vadd.f32 %v3231, 0.008332161
        %v3296 = vadd.f32 %v3232, 0.008332161
        %v3297 = vadd.f32 %v3233, 0.008332161
        %v3298 = vadd.f32 %v3234, 0.008332161
        %v3299 = vadd.f32 %v3235, 0.008332161
        %v3300 = vadd.f32 %v3236, 0.008332161
        %v3301 = vadd.f32 %v3237, 0.008332161
        %v3302 = vadd.f32 %v3238, 0.008332161
        %v3303 = vadd.f32 %v3239, 0.008332161
        %v3304 = vadd.f32 %v3240, 0.008332161
        %v3305 = vadd.f32 %v3241, 0.008332161
        %v3306 = vadd.f32 %v3242, 0.008332161
        %v3307 = vadd.f32 %v3243, 0.008332161
        %v3308 = vadd.f32 %v3244, 0.008332161
        %v3309 = vmul.f32 %v3117, %v3245
        %v3310 = vmul.f32 %v3118, %v3246
        %v3311 = vmul.f32 %v3119, %v3247
        %v3312 = vmul.f32 %v3120, %v3248
        %v3313 = vmul.f32 %v3121, %v3249
        %v3314 = vmul.f32 %v3122, %v3250
        %v3315 = vmul.f32 %v3123, %v3251
        %v3316 = vmul.f32 %v3124, %v3252
        %v3317 = vmul.f32 %v3125, %v3253
        %v3318 = vmul.f32 %v3126, %v3254
        %v3319 = vmul.f32 %v3127, %v3255
        %v3320 = vmul.f32 %v3128, %v3256
        %v3321 = vmul.f32 %v3129, %v3257
        %v3322 = vmul.f32 %v3130, %v3258
        %v3323 = vmul.f32 %v3131, %v3259
        %v3324 = vmul.f32 %v3132, %v3260
        %v3325 = vmul.f32 %v3133, %v3261
        %v3326 = vmul.f32 %v3134, %v3262
        %v3327 = vmul.f32 %v3135, %v3263
        %v3328 = vmul.f32 %v3136, %v3264
        %v3329 = vmul.f32 %v3137, %v3265
        %v3330 = vmul.f32 %v3138, %v3266
        %v3331 = vmul.f32 %v3139, %v3267
        %v3332 = vmul.f32 %v3140, %v3268
        %v3333 = vmul.f32 %v3141, %v3269
        %v3334 = vmul.f32 %v3142, %v3270
        %v3335 = vmul.f32 %v3143, %v3271
        %v3336 = vmul.f32 %v3144, %v3272
        %v3337 = vmul.f32 %v3145, %v3273
        %v3338 = vmul.f32 %v3146, %v3274
        %v3339 = vmul.f32 %v3147, %v3275
        %v3340 = vmul.f32 %v3148, %v3276
        %v3341 = vmul.f32 %v3149, %v3277
        %v3342 = vmul.f32 %v3150, %v3278
        %v3343 = vmul.f32 %v3151, %v3279
        %v3344 = vmul.f32 %v3152, %v3280
        %v3345 = vmul.f32 %v3153, %v3281
        %v3346 = vmul.f32 %v3154, %v3282
        %v3347 = vmul.f32 %v3155, %v3283
        %v3348 = vmul.f32 %v3156, %v3284
        %v3349 = vmul.f32 %v3157, %v3285
        %v3350 = vmul.f32 %v3158, %v3286
        %v3351 = vmul.f32 %v3159, %v3287
        %v3352 = vmul.f32 %v3160, %v3288
        %v3353 = vmul.f32 %v3161, %v3289
        %v3354 = vmul.f32 %v3162, %v3290
        %v3355 = vmul.f32 %v3163, %v3291
        %v3356 = vmul.f32 %v3164, %v3292
        %v3357 = vmul.f32 %v3165, %v3293
        %v3358 = vmul.f32 %v3166, %v3294
        %v3359 = vmul.f32 %v3167, %v3295
        %v3360 = vmul.f32 %v3168, %v3296
        %v3361 = vmul.f32 %v3169, %v3297
        %v3362 = vmul.f32 %v3170, %v3298
        %v3363 = vmul.f32 %v3171, %v3299
        %v3364 = vmul.f32 %v3172, %v3300
        %v3365 = vmul.f32 %v3173, %v3301
        %v3366 = vmul.f32 %v3174, %v3302
        %v3367 = vmul.f32 %v3175, %v3303
        %v3368 = vmul.f32 %v3176, %v3304
        %v3369 = vmul.f32 %v3177, %v3305
        %v3370 = vmul.f32 %v3178, %v3306
        %v3371 = vmul.f32 %v3179, %v3307
        %v3372 = vmul.f32 %v3180, %v3308
        %v3373 = vadd.f32 %v3309, -0.16666655
        %v3374 = vadd.f32 %v3310, -0.16666655
        %v3375 = vadd.f32 %v3311, -0.16666655
        %v3376 = vadd.f32 %v3312, -0.16666655
        %v3377 = vadd.f32 %v3313, -0.16666655
        %v3378 = vadd.f32 %v3314, -0.16666655
        %v3379 = vadd.f32 %v3315, -0.16666655
        %v3380 = vadd.f32 %v3316, -0.16666655
        %v3381 = vadd.f32 %v3317, -0.16666655
        %v3382 = vadd.f32 %v3318, -0.16666655
        %v3383 = vadd.f32 %v3319, -0.16666655
        %v3384 = vadd.f32 %v3320, -0.16666655
        %v3385 = vadd.f32 %v3321, -0.16666655
        %v3386 = vadd.f32 %v3322, -0.16666655
        %v3387 = vadd.f32 %v3323, -0.16666655
        %v3388 = vadd.f32 %v3324, -0.16666655
        %v3389 = vadd.f32 %v3325, -0.16666655
        %v3390 = vadd.f32 %v3326, -0.16666655
        %v3391 = vadd.f32 %v3327, -0.16666655
        %v3392 = vadd.f32 %v3328, -0.16666655
        %v3393 = vadd.f32 %v3329, -0.16666655
        %v3394 = vadd.f32 %v3330, -0.16666655
        %v3395 = vadd.f32 %v3331, -0.16666655
        %v3396 = vadd.f32 %v3332, -0.16666655
        %v3397 = vadd.f32 %v3333, -0.16666655
        %v3398 = vadd.f32 %v3334, -0.16666655
        %v3399 = vadd.f32 %v3335, -0.16666655
        %v3400 = vadd.f32 %v3336, -0.16666655
        %v3401 = vadd.f32 %v3337, -0.16666655
        %v3402 = vadd.f32 %v3338, -0.16666655
        %v3403 = vadd.f32 %v3339, -0.16666655
        %v3404 = vadd.f32 %v3340, -0.16666655
        %v3405 = vadd.f32 %v3341, -0.16666655
        %v3406 = vadd.f32 %v3342, -0.16666655
        %v3407 = vadd.f32 %v3343, -0.16666655
        %v3408 = vadd.f32 %v3344, -0.16666655
        %v3409 = vadd.f32 %v3345, -0.16666655
        %v3410 = vadd.f32 %v3346, -0.16666655
        %v3411 = vadd.f32 %v3347, -0.16666655
        %v3412 = vadd.f32 %v3348, -0.16666655
        %v3413 = vadd.f32 %v3349, -0.16666655
        %v3414 = vadd.f32 %v3350, -0.16666655
        %v3415 = vadd.f32 %v3351, -0.16666655
        %v3416 = vadd.f32 %v3352, -0.16666655
        %v3417 = vadd.f32 %v3353, -0.16666655
        %v3418 = vadd.f32 %v3354, -0.16666655
        %v3419 = vadd.f32 %v3355, -0.16666655
        %v3420 = vadd.f32 %v3356, -0.16666655
        %v3421 = vadd.f32 %v3357, -0.16666655
        %v3422 = vadd.f32 %v3358, -0.16666655
        %v3423 = vadd.f32 %v3359, -0.16666655
        %v3424 = vadd.f32 %v3360, -0.16666655
        %v3425 = vadd.f32 %v3361, -0.16666655
        %v3426 = vadd.f32 %v3362, -0.16666655
        %v3427 = vadd.f32 %v3363, -0.16666655
        %v3428 = vadd.f32 %v3364, -0.16666655
        %v3429 = vadd.f32 %v3365, -0.16666655
        %v3430 = vadd.f32 %v3366, -0.16666655
        %v3431 = vadd.f32 %v3367, -0.16666655
        %v3432 = vadd.f32 %v3368, -0.16666655
        %v3433 = vadd.f32 %v3369, -0.16666655
        %v3434 = vadd.f32 %v3370, -0.16666655
        %v3435 = vadd.f32 %v3371, -0.16666655
        %v3436 = vadd.f32 %v3372, -0.16666655
        %v3437 = vmul.f32 %v3117, %v3373
        %v3438 = vmul.f32 %v3118, %v3374
        %v3439 = vmul.f32 %v3119, %v3375
        %v3440 = vmul.f32 %v3120, %v3376
        %v3441 = vmul.f32 %v3121, %v3377
        %v3442 = vmul.f32 %v3122, %v3378
        %v3443 = vmul.f32 %v3123, %v3379
        %v3444 = vmul.f32 %v3124, %v3380
        %v3445 = vmul.f32 %v3125, %v3381
        %v3446 = vmul.f32 %v3126, %v3382
        %v3447 = vmul.f32 %v3127, %v3383
        %v3448 = vmul.f32 %v3128, %v3384
        %v3449 = vmul.f32 %v3129, %v3385
        %v3450 = vmul.f32 %v3130, %v3386
        %v3451 = vmul.f32 %v3131, %v3387
        %v3452 = vmul.f32 %v3132, %v3388
        %v3453 = vmul.f32 %v3133, %v3389
        %v3454 = vmul.f32 %v3134, %v3390
        %v3455 = vmul.f32 %v3135, %v3391
        %v3456 = vmul.f32 %v3136, %v3392
        %v3457 = vmul.f32 %v3137, %v3393
        %v3458 = vmul.f32 %v3138, %v3394
        %v3459 = vmul.f32 %v3139, %v3395
        %v3460 = vmul.f32 %v3140, %v3396
        %v3461 = vmul.f32 %v3141, %v3397
        %v3462 = vmul.f32 %v3142, %v3398
        %v3463 = vmul.f32 %v3143, %v3399
        %v3464 = vmul.f32 %v3144, %v3400
        %v3465 = vmul.f32 %v3145, %v3401
        %v3466 = vmul.f32 %v3146, %v3402
        %v3467 = vmul.f32 %v3147, %v3403
        %v3468 = vmul.f32 %v3148, %v3404
        %v3469 = vmul.f32 %v3149, %v3405
        %v3470 = vmul.f32 %v3150, %v3406
        %v3471 = vmul.f32 %v3151, %v3407
        %v3472 = vmul.f32 %v3152, %v3408
        %v3473 = vmul.f32 %v3153, %v3409
        %v3474 = vmul.f32 %v3154, %v3410
        %v3475 = vmul.f32 %v3155, %v3411
        %v3476 = vmul.f32 %v3156, %v3412
        %v3477 = vmul.f32 %v3157, %v3413
        %v3478 = vmul.f32 %v3158, %v3414
        %v3479 = vmul.f32 %v3159, %v3415
        %v3480 = vmul.f32 %v3160, %v3416
        %v3481 = vmul.f32 %v3161, %v3417
        %v3482 = vmul.f32 %v3162, %v3418
        %v3483 = vmul.f32 %v3163, %v3419
        %v3484 = vmul.f32 %v3164, %v3420
        %v3485 = vmul.f32 %v3165, %v3421
        %v3486 = vmul.f32 %v3166, %v3422
        %v3487 = vmul.f32 %v3167, %v3423
        %v3488 = vmul.f32 %v3168, %v3424
        %v3489 = vmul.f32 %v3169, %v3425
        %v3490 = vmul.f32 %v3170, %v3426
        %v3491 = vmul.f32 %v3171, %v3427
        %v3492 = vmul.f32 %v3172, %v3428
        %v3493 = vmul.f32 %v3173, %v3429
        %v3494 = vmul.f32 %v3174, %v3430
        %v3495 = vmul.f32 %v3175, %v3431
        %v3496 = vmul.f32 %v3176, %v3432
        %v3497 = vmul.f32 %v3177, %v3433
        %v3498 = vmul.f32 %v3178, %v3434
        %v3499 = vmul.f32 %v3179, %v3435
        %v3500 = vmul.f32 %v3180, %v3436
        %v3501 = vadd.f32 %v3437, 1.0
        %v3502 = vadd.f32 %v3438, 1.0
        %v3503 = vadd.f32 %v3439, 1.0
        %v3504 = vadd.f32 %v3440, 1.0
        %v3505 = vadd.f32 %v3441, 1.0
        %v3506 = vadd.f32 %v3442, 1.0
        %v3507 = vadd.f32 %v3443, 1.0
        %v3508 = vadd.f32 %v3444, 1.0
        %v3509 = vadd.f32 %v3445, 1.0
        %v3510 = vadd.f32 %v3446, 1.0
        %v3511 = vadd.f32 %v3447, 1.0
        %v3512 = vadd.f32 %v3448, 1.0
        %v3513 = vadd.f32 %v3449, 1.0
        %v3514 = vadd.f32 %v3450, 1.0
        %v3515 = vadd.f32 %v3451, 1.0
        %v3516 = vadd.f32 %v3452, 1.0
        %v3517 = vadd.f32 %v3453, 1.0
        %v3518 = vadd.f32 %v3454, 1.0
        %v3519 = vadd.f32 %v3455, 1.0
        %v3520 = vadd.f32 %v3456, 1.0
        %v3521 = vadd.f32 %v3457, 1.0
        %v3522 = vadd.f32 %v3458, 1.0
        %v3523 = vadd.f32 %v3459, 1.0
        %v3524 = vadd.f32 %v3460, 1.0
        %v3525 = vadd.f32 %v3461, 1.0
        %v3526 = vadd.f32 %v3462, 1.0
        %v3527 = vadd.f32 %v3463, 1.0
        %v3528 = vadd.f32 %v3464, 1.0
        %v3529 = vadd.f32 %v3465, 1.0
        %v3530 = vadd.f32 %v3466, 1.0
        %v3531 = vadd.f32 %v3467, 1.0
        %v3532 = vadd.f32 %v3468, 1.0
        %v3533 = vadd.f32 %v3469, 1.0
        %v3534 = vadd.f32 %v3470, 1.0
        %v3535 = vadd.f32 %v3471, 1.0
        %v3536 = vadd.f32 %v3472, 1.0
        %v3537 = vadd.f32 %v3473, 1.0
        %v3538 = vadd.f32 %v3474, 1.0
        %v3539 = vadd.f32 %v3475, 1.0
        %v3540 = vadd.f32 %v3476, 1.0
        %v3541 = vadd.f32 %v3477, 1.0
        %v3542 = vadd.f32 %v3478, 1.0
        %v3543 = vadd.f32 %v3479, 1.0
        %v3544 = vadd.f32 %v3480, 1.0
        %v3545 = vadd.f32 %v3481, 1.0
        %v3546 = vadd.f32 %v3482, 1.0
        %v3547 = vadd.f32 %v3483, 1.0
        %v3548 = vadd.f32 %v3484, 1.0
        %v3549 = vadd.f32 %v3485, 1.0
        %v3550 = vadd.f32 %v3486, 1.0
        %v3551 = vadd.f32 %v3487, 1.0
        %v3552 = vadd.f32 %v3488, 1.0
        %v3553 = vadd.f32 %v3489, 1.0
        %v3554 = vadd.f32 %v3490, 1.0
        %v3555 = vadd.f32 %v3491, 1.0
        %v3556 = vadd.f32 %v3492, 1.0
        %v3557 = vadd.f32 %v3493, 1.0
        %v3558 = vadd.f32 %v3494, 1.0
        %v3559 = vadd.f32 %v3495, 1.0
        %v3560 = vadd.f32 %v3496, 1.0
        %v3561 = vadd.f32 %v3497, 1.0
        %v3562 = vadd.f32 %v3498, 1.0
        %v3563 = vadd.f32 %v3499, 1.0
        %v3564 = vadd.f32 %v3500, 1.0
        %v3565 = vmul.f32 %v3053, %v3501
        %v3566 = vmul.f32 %v3054, %v3502
        %v3567 = vmul.f32 %v3055, %v3503
        %v3568 = vmul.f32 %v3056, %v3504
        %v3569 = vmul.f32 %v3057, %v3505
        %v3570 = vmul.f32 %v3058, %v3506
        %v3571 = vmul.f32 %v3059, %v3507
        %v3572 = vmul.f32 %v3060, %v3508
        %v3573 = vmul.f32 %v3061, %v3509
        %v3574 = vmul.f32 %v3062, %v3510
        %v3575 = vmul.f32 %v3063, %v3511
        %v3576 = vmul.f32 %v3064, %v3512
        %v3577 = vmul.f32 %v3065, %v3513
        %v3578 = vmul.f32 %v3066, %v3514
        %v3579 = vmul.f32 %v3067, %v3515
        %v3580 = vmul.f32 %v3068, %v3516
        %v3581 = vmul.f32 %v3069, %v3517
        %v3582 = vmul.f32 %v3070, %v3518
        %v3583 = vmul.f32 %v3071, %v3519
        %v3584 = vmul.f32 %v3072, %v3520
        %v3585 = vmul.f32 %v3073, %v3521
        %v3586 = vmul.f32 %v3074, %v3522
        %v3587 = vmul.f32 %v3075, %v3523
        %v3588 = vmul.f32 %v3076, %v3524
        %v3589 = vmul.f32 %v3077, %v3525
        %v3590 = vmul.f32 %v3078, %v3526
        %v3591 = vmul.f32 %v3079, %v3527
        %v3592 = vmul.f32 %v3080, %v3528
        %v3593 = vmul.f32 %v3081, %v3529
        %v3594 = vmul.f32 %v3082, %v3530
        %v3595 = vmul.f32 %v3083, %v3531
        %v3596 = vmul.f32 %v3084, %v3532
        %v3597 = vmul.f32 %v3085, %v3533
        %v3598 = vmul.f32 %v3086, %v3534
        %v3599 = vmul.f32 %v3087, %v3535
        %v3600 = vmul.f32 %v3088, %v3536
        %v3601 = vmul.f32 %v3089, %v3537
        %v3602 = vmul.f32 %v3090, %v3538
        %v3603 = vmul.f32 %v3091, %v3539
        %v3604 = vmul.f32 %v3092, %v3540
        %v3605 = vmul.f32 %v3093, %v3541
        %v3606 = vmul.f32 %v3094, %v3542
        %v3607 = vmul.f32 %v3095, %v3543
        %v3608 = vmul.f32 %v3096, %v3544
        %v3609 = vmul.f32 %v3097, %v3545
        %v3610 = vmul.f32 %v3098, %v3546
        %v3611 = vmul.f32 %v3099, %v3547
        %v3612 = vmul.f32 %v3100, %v3548
        %v3613 = vmul.f32 %v3101, %v3549
        %v3614 = vmul.f32 %v3102, %v3550
        %v3615 = vmul.f32 %v3103, %v3551
        %v3616 = vmul.f32 %v3104, %v3552
        %v3617 = vmul.f32 %v3105, %v3553
        %v3618 = vmul.f32 %v3106, %v3554
        %v3619 = vmul.f32 %v3107, %v3555
        %v3620 = vmul.f32 %v3108, %v3556
        %v3621 = vmul.f32 %v3109, %v3557
        %v3622 = vmul.f32 %v3110, %v3558
        %v3623 = vmul.f32 %v3111, %v3559
        %v3624 = vmul.f32 %v3112, %v3560
        %v3625 = vmul.f32 %v3113, %v3561
        %v3626 = vmul.f32 %v3114, %v3562
        %v3627 = vmul.f32 %v3115, %v3563
        %v3628 = vmul.f32 %v3116, %v3564
        %s3629 = scalar_lea.vmem %s3, 64
        %v3630 = vld [vmem:[%s3629] sm:$0xf]
        %v3631 = vld [vmem:[%s3629 + $0x4] sm:$0xf]
        %v3632 = vld [vmem:[%s3629 + $0x8] sm:$0xf]
        %v3633 = vld [vmem:[%s3629 + $0xc] sm:$0xf]
        %v3634 = vld [vmem:[%s3629 + $0x10] sm:$0xf]
        %v3635 = vld [vmem:[%s3629 + $0x14] sm:$0xf]
        %v3636 = vld [vmem:[%s3629 + $0x18] sm:$0xf]
        %v3637 = vld [vmem:[%s3629 + $0x1c] sm:$0xf]
        %v3638 = vld [vmem:[%s3629 + $0x20] sm:$0xf]
        %v3639 = vld [vmem:[%s3629 + $0x24] sm:$0xf]
        %v3640 = vld [vmem:[%s3629 + $0x28] sm:$0xf]
        %v3641 = vld [vmem:[%s3629 + $0x2c] sm:$0xf]
        %v3642 = vld [vmem:[%s3629 + $0x30] sm:$0xf]
        %v3643 = vld [vmem:[%s3629 + $0x34] sm:$0xf]
        %v3644 = vld [vmem:[%s3629 + $0x38] sm:$0xf]
        %v3645 = vld [vmem:[%s3629 + $0x3c] sm:$0xf]
        %v3646 = vpack.c.bf16 %v3569, %v3565
        %v3647 = vpack.c.bf16 %v3570, %v3566
        %v3648 = vpack.c.bf16 %v3571, %v3567
        %v3649 = vpack.c.bf16 %v3572, %v3568
        %v3650 = vpack.c.bf16 %v3577, %v3573
        %v3651 = vpack.c.bf16 %v3578, %v3574
        %v3652 = vpack.c.bf16 %v3579, %v3575
        %v3653 = vpack.c.bf16 %v3580, %v3576
        %v3654 = vpack.c.bf16 %v3585, %v3581
        %v3655 = vpack.c.bf16 %v3586, %v3582
        %v3656 = vpack.c.bf16 %v3587, %v3583
        %v3657 = vpack.c.bf16 %v3588, %v3584
        %v3658 = vpack.c.bf16 %v3593, %v3589
        %v3659 = vpack.c.bf16 %v3594, %v3590
        %v3660 = vpack.c.bf16 %v3595, %v3591
        %v3661 = vpack.c.bf16 %v3596, %v3592
        %v3662 = vpack.c.bf16 %v3601, %v3597
        %v3663 = vpack.c.bf16 %v3602, %v3598
        %v3664 = vpack.c.bf16 %v3603, %v3599
        %v3665 = vpack.c.bf16 %v3604, %v3600
        %v3666 = vpack.c.bf16 %v3609, %v3605
        %v3667 = vpack.c.bf16 %v3610, %v3606
        %v3668 = vpack.c.bf16 %v3611, %v3607
        %v3669 = vpack.c.bf16 %v3612, %v3608
        %v3670 = vpack.c.bf16 %v3617, %v3613
        %v3671 = vpack.c.bf16 %v3618, %v3614
        %v3672 = vpack.c.bf16 %v3619, %v3615
        %v3673 = vpack.c.bf16 %v3620, %v3616
        %v3674 = vpack.c.bf16 %v3625, %v3621
        %v3675 = vpack.c.bf16 %v3626, %v3622
        %v3676 = vpack.c.bf16 %v3627, %v3623
        %v3677 = vpack.c.bf16 %v3628, %v3624
        %s3678 = scalar_lea.vmem %s4, 128
        %v3679 = vld [vmem:[%s3678] sm:$0xff]
        %v3680 = vld [vmem:[%s3678 + $0x8] sm:$0xff]
        %v3681 = vld [vmem:[%s3678 + $0x10] sm:$0xff]
        %v3682 = vld [vmem:[%s3678 + $0x18] sm:$0xff]
        %v3683 = vld [vmem:[%s3678 + $0x20] sm:$0xff]
        %v3684 = vld [vmem:[%s3678 + $0x28] sm:$0xff]
        %v3685 = vld [vmem:[%s3678 + $0x30] sm:$0xff]
        %v3686 = vld [vmem:[%s3678 + $0x38] sm:$0xff]
        %v3687 = vld [vmem:[%s3678 + $0x40] sm:$0xff]
        %v3688 = vld [vmem:[%s3678 + $0x48] sm:$0xff]
        %v3689 = vld [vmem:[%s3678 + $0x50] sm:$0xff]
        %v3690 = vld [vmem:[%s3678 + $0x58] sm:$0xff]
        %v3691 = vld [vmem:[%s3678 + $0x60] sm:$0xff]
        %v3692 = vld [vmem:[%s3678 + $0x68] sm:$0xff]
        %v3693 = vld [vmem:[%s3678 + $0x70] sm:$0xff]
        %v3694 = vld [vmem:[%s3678 + $0x78] sm:$0xff]
        %3696 = vset.pattern.permute.xlu0 0
        %3697 = vperm.xlu0 %3696, %v3679
        %v3698 = vpop.permute.xlu0 %3697
        %3701 = vset.pattern.permute.xlu0 0
        %3702 = vperm.xlu0 %3701, %v3680
        %v3703 = vpop.permute.xlu0 %3702
        %3706 = vset.pattern.permute.xlu0 0
        %3707 = vperm.xlu0 %3706, %v3681
        %v3708 = vpop.permute.xlu0 %3707
        %3711 = vset.pattern.permute.xlu0 0
        %3712 = vperm.xlu0 %3711, %v3682
        %v3713 = vpop.permute.xlu0 %3712
        %3716 = vset.pattern.permute.xlu0 0
        %3717 = vperm.xlu0 %3716, %v3683
        %v3718 = vpop.permute.xlu0 %3717
        %3721 = vset.pattern.permute.xlu0 0
        %3722 = vperm.xlu0 %3721, %v3684
        %v3723 = vpop.permute.xlu0 %3722
        %3726 = vset.pattern.permute.xlu0 0
        %3727 = vperm.xlu0 %3726, %v3685
        %v3728 = vpop.permute.xlu0 %3727
        %3731 = vset.pattern.permute.xlu0 0
        %3732 = vperm.xlu0 %3731, %v3686
        %v3733 = vpop.permute.xlu0 %3732
        %3736 = vset.pattern.permute.xlu0 0
        %3737 = vperm.xlu0 %3736, %v3687
        %v3738 = vpop.permute.xlu0 %3737
        %3741 = vset.pattern.permute.xlu0 0
        %3742 = vperm.xlu0 %3741, %v3688
        %v3743 = vpop.permute.xlu0 %3742
        %3746 = vset.pattern.permute.xlu0 0
        %3747 = vperm.xlu0 %3746, %v3689
        %v3748 = vpop.permute.xlu0 %3747
        %3751 = vset.pattern.permute.xlu0 0
        %3752 = vperm.xlu0 %3751, %v3690
        %v3753 = vpop.permute.xlu0 %3752
        %3756 = vset.pattern.permute.xlu0 0
        %3757 = vperm.xlu0 %3756, %v3691
        %v3758 = vpop.permute.xlu0 %3757
        %3761 = vset.pattern.permute.xlu0 0
        %3762 = vperm.xlu0 %3761, %v3692
        %v3763 = vpop.permute.xlu0 %3762
        %3766 = vset.pattern.permute.xlu0 0
        %3767 = vperm.xlu0 %3766, %v3693
        %v3768 = vpop.permute.xlu0 %3767
        %3771 = vset.pattern.permute.xlu0 0
        %3772 = vperm.xlu0 %3771, %v3694
        %v3773 = vpop.permute.xlu0 %3772
        %v3791 = vunpack.c.l.b16 %v3630
        %v3792 = vunpack.c.l.b16 %v3631
        %v3793 = vunpack.c.l.b16 %v3632
        %v3794 = vunpack.c.l.b16 %v3633
        %v3795 = vunpack.c.l.b16 %v3634
        %v3796 = vunpack.c.l.b16 %v3635
        %v3797 = vunpack.c.l.b16 %v3636
        %v3798 = vunpack.c.l.b16 %v3637
        %v3799 = vunpack.c.l.b16 %v3638
        %v3800 = vunpack.c.l.b16 %v3639
        %v3801 = vunpack.c.l.b16 %v3640
        %v3802 = vunpack.c.l.b16 %v3641
        %v3803 = vunpack.c.l.b16 %v3642
        %v3804 = vunpack.c.l.b16 %v3643
        %v3805 = vunpack.c.l.b16 %v3644
        %v3806 = vunpack.c.l.b16 %v3645
        %v3807 = vpack.c.b16 %v3792, %v3791
        %v3808 = vpack.c.b16 %v3794, %v3793
        %v3809 = vpack.c.b16 %v3796, %v3795
        %v3810 = vpack.c.b16 %v3798, %v3797
        %v3811 = vpack.c.b16 %v3800, %v3799
        %v3812 = vpack.c.b16 %v3802, %v3801
        %v3813 = vpack.c.b16 %v3804, %v3803
        %v3814 = vpack.c.b16 %v3806, %v3805
        %3823 = vmatprep.subr.bf16.mxu0 %v3675
        %3824 = vmatpush1.bf16.msra.mxu0 %v3674
        %3825 = vmatprep.subr.bf16.mxu0 %v3671
        %3826 = vmatpush1.bf16.msra.mxu0 %v3670
        %3827 = vmatprep.subr.bf16.mxu0 %v3667
        %3828 = vmatpush1.bf16.msra.mxu0 %v3666
        %3829 = vmatprep.subr.bf16.mxu0 %v3663
        %3830 = vmatpush1.bf16.msra.mxu0 %v3662
        %3831 = vmatprep.subr.bf16.mxu0 %v3659
        %3832 = vmatpush1.bf16.msra.mxu0 %v3658
        %3833 = vmatprep.subr.bf16.mxu0 %v3655
        %3834 = vmatpush1.bf16.msra.mxu0 %v3654
        %3835 = vmatprep.subr.bf16.mxu0 %v3651
        %3836 = vmatpush1.bf16.msra.mxu0 %v3650
        %3837 = vmatprep.subr.bf16.mxu0 %v3647
        %3838 = vmatpush1.bf16.msra.mxu0 %v3646
        %3839 = vmatprep.subr.bf16.mxu0 0
        %3840 = vmatpush2.bf16.msra.mxu0 0
        %3841 = vmatprep.subr.bf16.mxu0 0
        %3842 = vmatpush2.bf16.msra.mxu0 0
        %3843 = vmatprep.subr.bf16.mxu0 0
        %3844 = vmatpush2.bf16.msra.mxu0 0
        %3845 = vmatprep.subr.bf16.mxu0 0
        %3846 = vmatpush2.bf16.msra.mxu0 0
        %3847 = vmatprep.subr.bf16.mxu0 0
        %3848 = vmatpush2.bf16.msra.mxu0 0
        %3849 = vmatprep.subr.bf16.mxu0 0
        %3850 = vmatpush2.bf16.msra.mxu0 0
        %3851 = vmatprep.subr.bf16.mxu0 0
        %3852 = vmatpush2.bf16.msra.mxu0 0
        %3853 = vmatprep.subr.bf16.mxu0 0
        %3854 = vmatpush2.bf16.msra.mxu0 0
        %3855 = vmatprep.mubr.bf16.mxu0 0
        %3856 = vmatmul.mubr.bf16.gmra.mxu0 %v3807
        %v3857 = vpop.f32.mrf.mxu0
        %v3858 = vadd.f32 %v3698, %v3857
        %v3859 = vpop.f32.mrf.mxu0
        %v3860 = vadd.f32 %v3698, %v3859
        %v3861 = vpop.f32.mrf.mxu0
        %v3862 = vadd.f32 %v3703, %v3861
        %v3863 = vpop.f32.mrf.mxu0
        %v3864 = vadd.f32 %v3703, %v3863
        %3865 = vmatprep.mubr.bf16.mxu0 0
        %3866 = vmatmul.mubr.bf16.gmra.mxu0 %v3808
        %v3867 = vpop.f32.mrf.mxu0
        %v3868 = vadd.f32 %v3708, %v3867
        %v3869 = vpop.f32.mrf.mxu0
        %v3870 = vadd.f32 %v3708, %v3869
        %v3871 = vpop.f32.mrf.mxu0
        %v3872 = vadd.f32 %v3713, %v3871
        %v3873 = vpop.f32.mrf.mxu0
        %v3874 = vadd.f32 %v3713, %v3873
        %3875 = vmatprep.mubr.bf16.mxu0 0
        %3876 = vmatmul.mubr.bf16.gmra.mxu0 %v3809
        %v3877 = vpop.f32.mrf.mxu0
        %v3878 = vadd.f32 %v3718, %v3877
        %v3879 = vpop.f32.mrf.mxu0
        %v3880 = vadd.f32 %v3718, %v3879
        %v3881 = vpop.f32.mrf.mxu0
        %v3882 = vadd.f32 %v3723, %v3881
        %v3883 = vpop.f32.mrf.mxu0
        %v3884 = vadd.f32 %v3723, %v3883
        %3885 = vmatprep.mubr.bf16.mxu0 0
        %3886 = vmatmul.mubr.bf16.gmra.mxu0 %v3810
        %v3887 = vpop.f32.mrf.mxu0
        %v3888 = vadd.f32 %v3728, %v3887
        %v3889 = vpop.f32.mrf.mxu0
        %v3890 = vadd.f32 %v3728, %v3889
        %v3891 = vpop.f32.mrf.mxu0
        %v3892 = vadd.f32 %v3733, %v3891
        %v3893 = vpop.f32.mrf.mxu0
        %v3894 = vadd.f32 %v3733, %v3893
        %3895 = vmatprep.mubr.bf16.mxu0 0
        %3896 = vmatmul.mubr.bf16.gmra.mxu0 %v3811
        %v3897 = vpop.f32.mrf.mxu0
        %v3898 = vadd.f32 %v3738, %v3897
        %v3899 = vpop.f32.mrf.mxu0
        %v3900 = vadd.f32 %v3738, %v3899
        %v3901 = vpop.f32.mrf.mxu0
        %v3902 = vadd.f32 %v3743, %v3901
        %v3903 = vpop.f32.mrf.mxu0
        %v3904 = vadd.f32 %v3743, %v3903
        %3905 = vmatprep.mubr.bf16.mxu0 0
        %3906 = vmatmul.mubr.bf16.gmra.mxu0 %v3812
        %v3907 = vpop.f32.mrf.mxu0
        %v3908 = vadd.f32 %v3748, %v3907
        %v3909 = vpop.f32.mrf.mxu0
        %v3910 = vadd.f32 %v3748, %v3909
        %v3911 = vpop.f32.mrf.mxu0
        %v3912 = vadd.f32 %v3753, %v3911
        %v3913 = vpop.f32.mrf.mxu0
        %v3914 = vadd.f32 %v3753, %v3913
        %3915 = vmatprep.mubr.bf16.mxu0 0
        %3916 = vmatmul.mubr.bf16.gmra.mxu0 %v3813
        %v3917 = vpop.f32.mrf.mxu0
        %v3918 = vadd.f32 %v3758, %v3917
        %v3919 = vpop.f32.mrf.mxu0
        %v3920 = vadd.f32 %v3758, %v3919
        %v3921 = vpop.f32.mrf.mxu0
        %v3922 = vadd.f32 %v3763, %v3921
        %v3923 = vpop.f32.mrf.mxu0
        %v3924 = vadd.f32 %v3763, %v3923
        %3925 = vmatprep.mubr.bf16.mxu0 0
        %3926 = vmatmul.mubr.bf16.gmra.mxu0 %v3814
        %v3927 = vpop.f32.mrf.mxu0
        %v3928 = vadd.f32 %v3768, %v3927
        %v3929 = vpop.f32.mrf.mxu0
        %v3930 = vadd.f32 %v3768, %v3929
        %v3931 = vpop.f32.mrf.mxu0
        %v3932 = vadd.f32 %v3773, %v3931
        %v3933 = vpop.f32.mrf.mxu0
        %v3934 = vadd.f32 %v3773, %v3933
        %3935 = vdwg.mxu0
        %3936 = vmatprep.subr.bf16.mxu0 %v3677
        %3937 = vmatpush1.bf16.msra.mxu0 %v3676
        %3938 = vmatprep.subr.bf16.mxu0 %v3673
        %3939 = vmatpush1.bf16.msra.mxu0 %v3672
        %3940 = vmatprep.subr.bf16.mxu0 %v3669
        %3941 = vmatpush1.bf16.msra.mxu0 %v3668
        %3942 = vmatprep.subr.bf16.mxu0 %v3665
        %3943 = vmatpush1.bf16.msra.mxu0 %v3664
        %3944 = vmatprep.subr.bf16.mxu0 %v3661
        %3945 = vmatpush1.bf16.msra.mxu0 %v3660
        %3946 = vmatprep.subr.bf16.mxu0 %v3657
        %3947 = vmatpush1.bf16.msra.mxu0 %v3656
        %3948 = vmatprep.subr.bf16.mxu0 %v3653
        %3949 = vmatpush1.bf16.msra.mxu0 %v3652
        %3950 = vmatprep.subr.bf16.mxu0 %v3649
        %3951 = vmatpush1.bf16.msra.mxu0 %v3648
        %3952 = vmatprep.subr.bf16.mxu0 0
        %3953 = vmatpush2.bf16.msra.mxu0 0
        %3954 = vmatprep.subr.bf16.mxu0 0
        %3955 = vmatpush2.bf16.msra.mxu0 0
        %3956 = vmatprep.subr.bf16.mxu0 0
        %3957 = vmatpush2.bf16.msra.mxu0 0
        %3958 = vmatprep.subr.bf16.mxu0 0
        %3959 = vmatpush2.bf16.msra.mxu0 0
        %3960 = vmatprep.subr.bf16.mxu0 0
        %3961 = vmatpush2.bf16.msra.mxu0 0
        %3962 = vmatprep.subr.bf16.mxu0 0
        %3963 = vmatpush2.bf16.msra.mxu0 0
        %3964 = vmatprep.subr.bf16.mxu0 0
        %3965 = vmatpush2.bf16.msra.mxu0 0
        %3966 = vmatprep.subr.bf16.mxu0 0
        %3967 = vmatpush2.bf16.msra.mxu0 0
        %3968 = vmatprep.mubr.bf16.mxu0 0
        %3969 = vmatmul.mubr.bf16.gmra.mxu0 %v3807
        %v3970 = vpop.f32.mrf.mxu0
        %v3971 = vadd.f32 %v3698, %v3970
        %v3972 = vpop.f32.mrf.mxu0
        %v3973 = vadd.f32 %v3698, %v3972
        %v3974 = vpop.f32.mrf.mxu0
        %v3975 = vadd.f32 %v3703, %v3974
        %v3976 = vpop.f32.mrf.mxu0
        %v3977 = vadd.f32 %v3703, %v3976
        %3978 = vmatprep.mubr.bf16.mxu0 0
        %3979 = vmatmul.mubr.bf16.gmra.mxu0 %v3808
        %v3980 = vpop.f32.mrf.mxu0
        %v3981 = vadd.f32 %v3708, %v3980
        %v3982 = vpop.f32.mrf.mxu0
        %v3983 = vadd.f32 %v3708, %v3982
        %v3984 = vpop.f32.mrf.mxu0
        %v3985 = vadd.f32 %v3713, %v3984
        %v3986 = vpop.f32.mrf.mxu0
        %v3987 = vadd.f32 %v3713, %v3986
        %3988 = vmatprep.mubr.bf16.mxu0 0
        %3989 = vmatmul.mubr.bf16.gmra.mxu0 %v3809
        %v3990 = vpop.f32.mrf.mxu0
        %v3991 = vadd.f32 %v3718, %v3990
        %v3992 = vpop.f32.mrf.mxu0
        %v3993 = vadd.f32 %v3718, %v3992
        %v3994 = vpop.f32.mrf.mxu0
        %v3995 = vadd.f32 %v3723, %v3994
        %v3996 = vpop.f32.mrf.mxu0
        %v3997 = vadd.f32 %v3723, %v3996
        %3998 = vmatprep.mubr.bf16.mxu0 0
        %3999 = vmatmul.mubr.bf16.gmra.mxu0 %v3810
        %v4000 = vpop.f32.mrf.mxu0
        %v4001 = vadd.f32 %v3728, %v4000
        %v4002 = vpop.f32.mrf.mxu0
        %v4003 = vadd.f32 %v3728, %v4002
        %v4004 = vpop.f32.mrf.mxu0
        %v4005 = vadd.f32 %v3733, %v4004
        %v4006 = vpop.f32.mrf.mxu0
        %v4007 = vadd.f32 %v3733, %v4006
        %4008 = vmatprep.mubr.bf16.mxu0 0
        %4009 = vmatmul.mubr.bf16.gmra.mxu0 %v3811
        %v4010 = vpop.f32.mrf.mxu0
        %v4011 = vadd.f32 %v3738, %v4010
        %v4012 = vpop.f32.mrf.mxu0
        %v4013 = vadd.f32 %v3738, %v4012
        %v4014 = vpop.f32.mrf.mxu0
        %v4015 = vadd.f32 %v3743, %v4014
        %v4016 = vpop.f32.mrf.mxu0
        %v4017 = vadd.f32 %v3743, %v4016
        %4018 = vmatprep.mubr.bf16.mxu0 0
        %4019 = vmatmul.mubr.bf16.gmra.mxu0 %v3812
        %v4020 = vpop.f32.mrf.mxu0
        %v4021 = vadd.f32 %v3748, %v4020
        %v4022 = vpop.f32.mrf.mxu0
        %v4023 = vadd.f32 %v3748, %v4022
        %v4024 = vpop.f32.mrf.mxu0
        %v4025 = vadd.f32 %v3753, %v4024
        %v4026 = vpop.f32.mrf.mxu0
        %v4027 = vadd.f32 %v3753, %v4026
        %4028 = vmatprep.mubr.bf16.mxu0 0
        %4029 = vmatmul.mubr.bf16.gmra.mxu0 %v3813
        %v4030 = vpop.f32.mrf.mxu0
        %v4031 = vadd.f32 %v3758, %v4030
        %v4032 = vpop.f32.mrf.mxu0
        %v4033 = vadd.f32 %v3758, %v4032
        %v4034 = vpop.f32.mrf.mxu0
        %v4035 = vadd.f32 %v3763, %v4034
        %v4036 = vpop.f32.mrf.mxu0
        %v4037 = vadd.f32 %v3763, %v4036
        %4038 = vmatprep.mubr.bf16.mxu0 0
        %4039 = vmatmul.mubr.bf16.gmra.mxu0 %v3814
        %v4040 = vpop.f32.mrf.mxu0
        %v4041 = vadd.f32 %v3768, %v4040
        %v4042 = vpop.f32.mrf.mxu0
        %v4043 = vadd.f32 %v3768, %v4042
        %v4044 = vpop.f32.mrf.mxu0
        %v4045 = vadd.f32 %v3773, %v4044
        %v4046 = vpop.f32.mrf.mxu0
        %v4047 = vadd.f32 %v3773, %v4046
        %4048 = vdwg.mxu0
        %v4049 = vmul.f32 %v3858, 0.15915494
        %v4050 = vmul.f32 %v3860, 0.15915494
        %v4051 = vmul.f32 %v3971, 0.15915494
        %v4052 = vmul.f32 %v3973, 0.15915494
        %v4053 = vmul.f32 %v3862, 0.15915494
        %v4054 = vmul.f32 %v3864, 0.15915494
        %v4055 = vmul.f32 %v3975, 0.15915494
        %v4056 = vmul.f32 %v3977, 0.15915494
        %v4057 = vmul.f32 %v3868, 0.15915494
        %v4058 = vmul.f32 %v3870, 0.15915494
        %v4059 = vmul.f32 %v3981, 0.15915494
        %v4060 = vmul.f32 %v3983, 0.15915494
        %v4061 = vmul.f32 %v3872, 0.15915494
        %v4062 = vmul.f32 %v3874, 0.15915494
        %v4063 = vmul.f32 %v3985, 0.15915494
        %v4064 = vmul.f32 %v3987, 0.15915494
        %v4065 = vmul.f32 %v3878, 0.15915494
        %v4066 = vmul.f32 %v3880, 0.15915494
        %v4067 = vmul.f32 %v3991, 0.15915494
        %v4068 = vmul.f32 %v3993, 0.15915494
        %v4069 = vmul.f32 %v3882, 0.15915494
        %v4070 = vmul.f32 %v3884, 0.15915494
        %v4071 = vmul.f32 %v3995, 0.15915494
        %v4072 = vmul.f32 %v3997, 0.15915494
        %v4073 = vmul.f32 %v3888, 0.15915494
        %v4074 = vmul.f32 %v3890, 0.15915494
        %v4075 = vmul.f32 %v4001, 0.15915494
        %v4076 = vmul.f32 %v4003, 0.15915494
        %v4077 = vmul.f32 %v3892, 0.15915494
        %v4078 = vmul.f32 %v3894, 0.15915494
        %v4079 = vmul.f32 %v4005, 0.15915494
        %v4080 = vmul.f32 %v4007, 0.15915494
        %v4081 = vmul.f32 %v3898, 0.15915494
        %v4082 = vmul.f32 %v3900, 0.15915494
        %v4083 = vmul.f32 %v4011, 0.15915494
        %v4084 = vmul.f32 %v4013, 0.15915494
        %v4085 = vmul.f32 %v3902, 0.15915494
        %v4086 = vmul.f32 %v3904, 0.15915494
        %v4087 = vmul.f32 %v4015, 0.15915494
        %v4088 = vmul.f32 %v4017, 0.15915494
        %v4089 = vmul.f32 %v3908, 0.15915494
        %v4090 = vmul.f32 %v3910, 0.15915494
        %v4091 = vmul.f32 %v4021, 0.15915494
        %v4092 = vmul.f32 %v4023, 0.15915494
        %v4093 = vmul.f32 %v3912, 0.15915494
        %v4094 = vmul.f32 %v3914, 0.15915494
        %v4095 = vmul.f32 %v4025, 0.15915494
        %v4096 = vmul.f32 %v4027, 0.15915494
        %v4097 = vmul.f32 %v3918, 0.15915494
        %v4098 = vmul.f32 %v3920, 0.15915494
        %v4099 = vmul.f32 %v4031, 0.15915494
        %v4100 = vmul.f32 %v4033, 0.15915494
        %v4101 = vmul.f32 %v3922, 0.15915494
        %v4102 = vmul.f32 %v3924, 0.15915494
        %v4103 = vmul.f32 %v4035, 0.15915494
        %v4104 = vmul.f32 %v4037, 0.15915494
        %v4105 = vmul.f32 %v3928, 0.15915494
        %v4106 = vmul.f32 %v3930, 0.15915494
        %v4107 = vmul.f32 %v4041, 0.15915494
        %v4108 = vmul.f32 %v4043, 0.15915494
        %v4109 = vmul.f32 %v3932, 0.15915494
        %v4110 = vmul.f32 %v3934, 0.15915494
        %v4111 = vmul.f32 %v4045, 0.15915494
        %v4112 = vmul.f32 %v4047, 0.15915494
        %v4113 = vadd.f32 %v4049, 0.5
        %v4114 = vadd.f32 %v4050, 0.5
        %v4115 = vadd.f32 %v4051, 0.5
        %v4116 = vadd.f32 %v4052, 0.5
        %v4117 = vadd.f32 %v4053, 0.5
        %v4118 = vadd.f32 %v4054, 0.5
        %v4119 = vadd.f32 %v4055, 0.5
        %v4120 = vadd.f32 %v4056, 0.5
        %v4121 = vadd.f32 %v4057, 0.5
        %v4122 = vadd.f32 %v4058, 0.5
        %v4123 = vadd.f32 %v4059, 0.5
        %v4124 = vadd.f32 %v4060, 0.5
        %v4125 = vadd.f32 %v4061, 0.5
        %v4126 = vadd.f32 %v4062, 0.5
        %v4127 = vadd.f32 %v4063, 0.5
        %v4128 = vadd.f32 %v4064, 0.5
        %v4129 = vadd.f32 %v4065, 0.5
        %v4130 = vadd.f32 %v4066, 0.5
        %v4131 = vadd.f32 %v4067, 0.5
        %v4132 = vadd.f32 %v4068, 0.5
        %v4133 = vadd.f32 %v4069, 0.5
        %v4134 = vadd.f32 %v4070, 0.5
        %v4135 = vadd.f32 %v4071, 0.5
        %v4136 = vadd.f32 %v4072, 0.5
        %v4137 = vadd.f32 %v4073, 0.5
        %v4138 = vadd.f32 %v4074, 0.5
        %v4139 = vadd.f32 %v4075, 0.5
        %v4140 = vadd.f32 %v4076, 0.5
        %v4141 = vadd.f32 %v4077, 0.5
        %v4142 = vadd.f32 %v4078, 0.5
        %v4143 = vadd.f32 %v4079, 0.5
        %v4144 = vadd.f32 %v4080, 0.5
        %v4145 = vadd.f32 %v4081, 0.5
        %v4146 = vadd.f32 %v4082, 0.5
        %v4147 = vadd.f32 %v4083, 0.5
        %v4148 = vadd.f32 %v4084, 0.5
        %v4149 = vadd.f32 %v4085, 0.5
        %v4150 = vadd.f32 %v4086, 0.5
        %v4151 = vadd.f32 %v4087, 0.5
        %v4152 = vadd.f32 %v4088, 0.5
        %v4153 = vadd.f32 %v4089, 0.5
        %v4154 = vadd.f32 %v4090, 0.5
        %v4155 = vadd.f32 %v4091, 0.5
        %v4156 = vadd.f32 %v4092, 0.5
        %v4157 = vadd.f32 %v4093, 0.5
        %v4158 = vadd.f32 %v4094, 0.5
        %v4159 = vadd.f32 %v4095, 0.5
        %v4160 = vadd.f32 %v4096, 0.5
        %v4161 = vadd.f32 %v4097, 0.5
        %v4162 = vadd.f32 %v4098, 0.5
        %v4163 = vadd.f32 %v4099, 0.5
        %v4164 = vadd.f32 %v4100, 0.5
        %v4165 = vadd.f32 %v4101, 0.5
        %v4166 = vadd.f32 %v4102, 0.5
        %v4167 = vadd.f32 %v4103, 0.5
        %v4168 = vadd.f32 %v4104, 0.5
        %v4169 = vadd.f32 %v4105, 0.5
        %v4170 = vadd.f32 %v4106, 0.5
        %v4171 = vadd.f32 %v4107, 0.5
        %v4172 = vadd.f32 %v4108, 0.5
        %v4173 = vadd.f32 %v4109, 0.5
        %v4174 = vadd.f32 %v4110, 0.5
        %v4175 = vadd.f32 %v4111, 0.5
        %v4176 = vadd.f32 %v4112, 0.5
        %v4177 = vfloor.f32 %v4113
        %v4178 = vfloor.f32 %v4114
        %v4179 = vfloor.f32 %v4115
        %v4180 = vfloor.f32 %v4116
        %v4181 = vfloor.f32 %v4117
        %v4182 = vfloor.f32 %v4118
        %v4183 = vfloor.f32 %v4119
        %v4184 = vfloor.f32 %v4120
        %v4185 = vfloor.f32 %v4121
        %v4186 = vfloor.f32 %v4122
        %v4187 = vfloor.f32 %v4123
        %v4188 = vfloor.f32 %v4124
        %v4189 = vfloor.f32 %v4125
        %v4190 = vfloor.f32 %v4126
        %v4191 = vfloor.f32 %v4127
        %v4192 = vfloor.f32 %v4128
        %v4193 = vfloor.f32 %v4129
        %v4194 = vfloor.f32 %v4130
        %v4195 = vfloor.f32 %v4131
        %v4196 = vfloor.f32 %v4132
        %v4197 = vfloor.f32 %v4133
        %v4198 = vfloor.f32 %v4134
        %v4199 = vfloor.f32 %v4135
        %v4200 = vfloor.f32 %v4136
        %v4201 = vfloor.f32 %v4137
        %v4202 = vfloor.f32 %v4138
        %v4203 = vfloor.f32 %v4139
        %v4204 = vfloor.f32 %v4140
        %v4205 = vfloor.f32 %v4141
        %v4206 = vfloor.f32 %v4142
        %v4207 = vfloor.f32 %v4143
        %v4208 = vfloor.f32 %v4144
        %v4209 = vfloor.f32 %v4145
        %v4210 = vfloor.f32 %v4146
        %v4211 = vfloor.f32 %v4147
        %v4212 = vfloor.f32 %v4148
        %v4213 = vfloor.f32 %v4149
        %v4214 = vfloor.f32 %v4150
        %v4215 = vfloor.f32 %v4151
        %v4216 = vfloor.f32 %v4152
        %v4217 = vfloor.f32 %v4153
        %v4218 = vfloor.f32 %v4154
        %v4219 = vfloor.f32 %v4155
        %v4220 = vfloor.f32 %v4156
        %v4221 = vfloor.f32 %v4157
        %v4222 = vfloor.f32 %v4158
        %v4223 = vfloor.f32 %v4159
        %v4224 = vfloor.f32 %v4160
        %v4225 = vfloor.f32 %v4161
        %v4226 = vfloor.f32 %v4162
        %v4227 = vfloor.f32 %v4163
        %v4228 = vfloor.f32 %v4164
        %v4229 = vfloor.f32 %v4165
        %v4230 = vfloor.f32 %v4166
        %v4231 = vfloor.f32 %v4167
        %v4232 = vfloor.f32 %v4168
        %v4233 = vfloor.f32 %v4169
        %v4234 = vfloor.f32 %v4170
        %v4235 = vfloor.f32 %v4171
        %v4236 = vfloor.f32 %v4172
        %v4237 = vfloor.f32 %v4173
        %v4238 = vfloor.f32 %v4174
        %v4239 = vfloor.f32 %v4175
        %v4240 = vfloor.f32 %v4176
        %v4241 = vmul.f32 %v4177, 6.2831855
        %v4242 = vmul.f32 %v4178, 6.2831855
        %v4243 = vmul.f32 %v4179, 6.2831855
        %v4244 = vmul.f32 %v4180, 6.2831855
        %v4245 = vmul.f32 %v4181, 6.2831855
        %v4246 = vmul.f32 %v4182, 6.2831855
        %v4247 = vmul.f32 %v4183, 6.2831855
        %v4248 = vmul.f32 %v4184, 6.2831855
        %v4249 = vmul.f32 %v4185, 6.2831855
        %v4250 = vmul.f32 %v4186, 6.2831855
        %v4251 = vmul.f32 %v4187, 6.2831855
        %v4252 = vmul.f32 %v4188, 6.2831855
        %v4253 = vmul.f32 %v4189, 6.2831855
        %v4254 = vmul.f32 %v4190, 6.2831855
        %v4255 = vmul.f32 %v4191, 6.2831855
        %v4256 = vmul.f32 %v4192, 6.2831855
        %v4257 = vmul.f32 %v4193, 6.2831855
        %v4258 = vmul.f32 %v4194, 6.2831855
        %v4259 = vmul.f32 %v4195, 6.2831855
        %v4260 = vmul.f32 %v4196, 6.2831855
        %v4261 = vmul.f32 %v4197, 6.2831855
        %v4262 = vmul.f32 %v4198, 6.2831855
        %v4263 = vmul.f32 %v4199, 6.2831855
        %v4264 = vmul.f32 %v4200, 6.2831855
        %v4265 = vmul.f32 %v4201, 6.2831855
        %v4266 = vmul.f32 %v4202, 6.2831855
        %v4267 = vmul.f32 %v4203, 6.2831855
        %v4268 = vmul.f32 %v4204, 6.2831855
        %v4269 = vmul.f32 %v4205, 6.2831855
        %v4270 = vmul.f32 %v4206, 6.2831855
        %v4271 = vmul.f32 %v4207, 6.2831855
        %v4272 = vmul.f32 %v4208, 6.2831855
        %v4273 = vmul.f32 %v4209, 6.2831855
        %v4274 = vmul.f32 %v4210, 6.2831855
        %v4275 = vmul.f32 %v4211, 6.2831855
        %v4276 = vmul.f32 %v4212, 6.2831855
        %v4277 = vmul.f32 %v4213, 6.2831855
        %v4278 = vmul.f32 %v4214, 6.2831855
        %v4279 = vmul.f32 %v4215, 6.2831855
        %v4280 = vmul.f32 %v4216, 6.2831855
        %v4281 = vmul.f32 %v4217, 6.2831855
        %v4282 = vmul.f32 %v4218, 6.2831855
        %v4283 = vmul.f32 %v4219, 6.2831855
        %v4284 = vmul.f32 %v4220, 6.2831855
        %v4285 = vmul.f32 %v4221, 6.2831855
        %v4286 = vmul.f32 %v4222, 6.2831855
        %v4287 = vmul.f32 %v4223, 6.2831855
        %v4288 = vmul.f32 %v4224, 6.2831855
        %v4289 = vmul.f32 %v4225, 6.2831855
        %v4290 = vmul.f32 %v4226, 6.2831855
        %v4291 = vmul.f32 %v4227, 6.2831855
        %v4292 = vmul.f32 %v4228, 6.2831855
        %v4293 = vmul.f32 %v4229, 6.2831855
        %v4294 = vmul.f32 %v4230, 6.2831855
        %v4295 = vmul.f32 %v4231, 6.2831855
        %v4296 = vmul.f32 %v4232, 6.2831855
        %v4297 = vmul.f32 %v4233, 6.2831855
        %v4298 = vmul.f32 %v4234, 6.2831855
        %v4299 = vmul.f32 %v4235, 6.2831855
        %v4300 = vmul.f32 %v4236, 6.2831855
        %v4301 = vmul.f32 %v4237, 6.2831855
        %v4302 = vmul.f32 %v4238, 6.2831855
        %v4303 = vmul.f32 %v4239, 6.2831855
        %v4304 = vmul.f32 %v4240, 6.2831855
        %v4305 = vsub.f32 %v3858, %v4241
        %v4306 = vsub.f32 %v3860, %v4242
        %v4307 = vsub.f32 %v3971, %v4243
        %v4308 = vsub.f32 %v3973, %v4244
        %v4309 = vsub.f32 %v3862, %v4245
        %v4310 = vsub.f32 %v3864, %v4246
        %v4311 = vsub.f32 %v3975, %v4247
        %v4312 = vsub.f32 %v3977, %v4248
        %v4313 = vsub.f32 %v3868, %v4249
        %v4314 = vsub.f32 %v3870, %v4250
        %v4315 = vsub.f32 %v3981, %v4251
        %v4316 = vsub.f32 %v3983, %v4252
        %v4317 = vsub.f32 %v3872, %v4253
        %v4318 = vsub.f32 %v3874, %v4254
        %v4319 = vsub.f32 %v3985, %v4255
        %v4320 = vsub.f32 %v3987, %v4256
        %v4321 = vsub.f32 %v3878, %v4257
        %v4322 = vsub.f32 %v3880, %v4258
        %v4323 = vsub.f32 %v3991, %v4259
        %v4324 = vsub.f32 %v3993, %v4260
        %v4325 = vsub.f32 %v3882, %v4261
        %v4326 = vsub.f32 %v3884, %v4262
        %v4327 = vsub.f32 %v3995, %v4263
        %v4328 = vsub.f32 %v3997, %v4264
        %v4329 = vsub.f32 %v3888, %v4265
        %v4330 = vsub.f32 %v3890, %v4266
        %v4331 = vsub.f32 %v4001, %v4267
        %v4332 = vsub.f32 %v4003, %v4268
        %v4333 = vsub.f32 %v3892, %v4269
        %v4334 = vsub.f32 %v3894, %v4270
        %v4335 = vsub.f32 %v4005, %v4271
        %v4336 = vsub.f32 %v4007, %v4272
        %v4337 = vsub.f32 %v3898, %v4273
        %v4338 = vsub.f32 %v3900, %v4274
        %v4339 = vsub.f32 %v4011, %v4275
        %v4340 = vsub.f32 %v4013, %v4276
        %v4341 = vsub.f32 %v3902, %v4277
        %v4342 = vsub.f32 %v3904, %v4278
        %v4343 = vsub.f32 %v4015, %v4279
        %v4344 = vsub.f32 %v4017, %v4280
        %v4345 = vsub.f32 %v3908, %v4281
        %v4346 = vsub.f32 %v3910, %v4282
        %v4347 = vsub.f32 %v4021, %v4283
        %v4348 = vsub.f32 %v4023, %v4284
        %v4349 = vsub.f32 %v3912, %v4285
        %v4350 = vsub.f32 %v3914, %v4286
        %v4351 = vsub.f32 %v4025, %v4287
        %v4352 = vsub.f32 %v4027, %v4288
        %v4353 = vsub.f32 %v3918, %v4289
        %v4354 = vsub.f32 %v3920, %v4290
        %v4355 = vsub.f32 %v4031, %v4291
        %v4356 = vsub.f32 %v4033, %v4292
        %v4357 = vsub.f32 %v3922, %v4293
        %v4358 = vsub.f32 %v3924, %v4294
        %v4359 = vsub.f32 %v4035, %v4295
        %v4360 = vsub.f32 %v4037, %v4296
        %v4361 = vsub.f32 %v3928, %v4297
        %v4362 = vsub.f32 %v3930, %v4298
        %v4363 = vsub.f32 %v4041, %v4299
        %v4364 = vsub.f32 %v4043, %v4300
        %v4365 = vsub.f32 %v3932, %v4301
        %v4366 = vsub.f32 %v3934, %v4302
        %v4367 = vsub.f32 %v4045, %v4303
        %v4368 = vsub.f32 %v4047, %v4304
        %vm4369 = vcmp.gt.f32.partialorder %v4305, 1.5707964
        %vm4370 = vcmp.gt.f32.partialorder %v4306, 1.5707964
        %vm4371 = vcmp.gt.f32.partialorder %v4307, 1.5707964
        %vm4372 = vcmp.gt.f32.partialorder %v4308, 1.5707964
        %vm4373 = vcmp.gt.f32.partialorder %v4309, 1.5707964
        %vm4374 = vcmp.gt.f32.partialorder %v4310, 1.5707964
        %vm4375 = vcmp.gt.f32.partialorder %v4311, 1.5707964
        %vm4376 = vcmp.gt.f32.partialorder %v4312, 1.5707964
        %vm4377 = vcmp.gt.f32.partialorder %v4313, 1.5707964
        %vm4378 = vcmp.gt.f32.partialorder %v4314, 1.5707964
        %vm4379 = vcmp.gt.f32.partialorder %v4315, 1.5707964
        %vm4380 = vcmp.gt.f32.partialorder %v4316, 1.5707964
        %vm4381 = vcmp.gt.f32.partialorder %v4317, 1.5707964
        %vm4382 = vcmp.gt.f32.partialorder %v4318, 1.5707964
        %vm4383 = vcmp.gt.f32.partialorder %v4319, 1.5707964
        %vm4384 = vcmp.gt.f32.partialorder %v4320, 1.5707964
        %vm4385 = vcmp.gt.f32.partialorder %v4321, 1.5707964
        %vm4386 = vcmp.gt.f32.partialorder %v4322, 1.5707964
        %vm4387 = vcmp.gt.f32.partialorder %v4323, 1.5707964
        %vm4388 = vcmp.gt.f32.partialorder %v4324, 1.5707964
        %vm4389 = vcmp.gt.f32.partialorder %v4325, 1.5707964
        %vm4390 = vcmp.gt.f32.partialorder %v4326, 1.5707964
        %vm4391 = vcmp.gt.f32.partialorder %v4327, 1.5707964
        %vm4392 = vcmp.gt.f32.partialorder %v4328, 1.5707964
        %vm4393 = vcmp.gt.f32.partialorder %v4329, 1.5707964
        %vm4394 = vcmp.gt.f32.partialorder %v4330, 1.5707964
        %vm4395 = vcmp.gt.f32.partialorder %v4331, 1.5707964
        %vm4396 = vcmp.gt.f32.partialorder %v4332, 1.5707964
        %vm4397 = vcmp.gt.f32.partialorder %v4333, 1.5707964
        %vm4398 = vcmp.gt.f32.partialorder %v4334, 1.5707964
        %vm4399 = vcmp.gt.f32.partialorder %v4335, 1.5707964
        %vm4400 = vcmp.gt.f32.partialorder %v4336, 1.5707964
        %vm4401 = vcmp.gt.f32.partialorder %v4337, 1.5707964
        %vm4402 = vcmp.gt.f32.partialorder %v4338, 1.5707964
        %vm4403 = vcmp.gt.f32.partialorder %v4339, 1.5707964
        %vm4404 = vcmp.gt.f32.partialorder %v4340, 1.5707964
        %vm4405 = vcmp.gt.f32.partialorder %v4341, 1.5707964
        %vm4406 = vcmp.gt.f32.partialorder %v4342, 1.5707964
        %vm4407 = vcmp.gt.f32.partialorder %v4343, 1.5707964
        %vm4408 = vcmp.gt.f32.partialorder %v4344, 1.5707964
        %vm4409 = vcmp.gt.f32.partialorder %v4345, 1.5707964
        %vm4410 = vcmp.gt.f32.partialorder %v4346, 1.5707964
        %vm4411 = vcmp.gt.f32.partialorder %v4347, 1.5707964
        %vm4412 = vcmp.gt.f32.partialorder %v4348, 1.5707964
        %vm4413 = vcmp.gt.f32.partialorder %v4349, 1.5707964
        %vm4414 = vcmp.gt.f32.partialorder %v4350, 1.5707964
        %vm4415 = vcmp.gt.f32.partialorder %v4351, 1.5707964
        %vm4416 = vcmp.gt.f32.partialorder %v4352, 1.5707964
        %vm4417 = vcmp.gt.f32.partialorder %v4353, 1.5707964
        %vm4418 = vcmp.gt.f32.partialorder %v4354, 1.5707964
        %vm4419 = vcmp.gt.f32.partialorder %v4355, 1.5707964
        %vm4420 = vcmp.gt.f32.partialorder %v4356, 1.5707964
        %vm4421 = vcmp.gt.f32.partialorder %v4357, 1.5707964
        %vm4422 = vcmp.gt.f32.partialorder %v4358, 1.5707964
        %vm4423 = vcmp.gt.f32.partialorder %v4359, 1.5707964
        %vm4424 = vcmp.gt.f32.partialorder %v4360, 1.5707964
        %vm4425 = vcmp.gt.f32.partialorder %v4361, 1.5707964
        %vm4426 = vcmp.gt.f32.partialorder %v4362, 1.5707964
        %vm4427 = vcmp.gt.f32.partialorder %v4363, 1.5707964
        %vm4428 = vcmp.gt.f32.partialorder %v4364, 1.5707964
        %vm4429 = vcmp.gt.f32.partialorder %v4365, 1.5707964
        %vm4430 = vcmp.gt.f32.partialorder %v4366, 1.5707964
        %vm4431 = vcmp.gt.f32.partialorder %v4367, 1.5707964
        %vm4432 = vcmp.gt.f32.partialorder %v4368, 1.5707964
        %v4433 = vsub.f32 3.1415927, %v4305
        %v4434 = vsub.f32 3.1415927, %v4306
        %v4435 = vsub.f32 3.1415927, %v4307
        %v4436 = vsub.f32 3.1415927, %v4308
        %v4437 = vsub.f32 3.1415927, %v4309
        %v4438 = vsub.f32 3.1415927, %v4310
        %v4439 = vsub.f32 3.1415927, %v4311
        %v4440 = vsub.f32 3.1415927, %v4312
        %v4441 = vsub.f32 3.1415927, %v4313
        %v4442 = vsub.f32 3.1415927, %v4314
        %v4443 = vsub.f32 3.1415927, %v4315
        %v4444 = vsub.f32 3.1415927, %v4316
        %v4445 = vsub.f32 3.1415927, %v4317
        %v4446 = vsub.f32 3.1415927, %v4318
        %v4447 = vsub.f32 3.1415927, %v4319
        %v4448 = vsub.f32 3.1415927, %v4320
        %v4449 = vsub.f32 3.1415927, %v4321
        %v4450 = vsub.f32 3.1415927, %v4322
        %v4451 = vsub.f32 3.1415927, %v4323
        %v4452 = vsub.f32 3.1415927, %v4324
        %v4453 = vsub.f32 3.1415927, %v4325
        %v4454 = vsub.f32 3.1415927, %v4326
        %v4455 = vsub.f32 3.1415927, %v4327
        %v4456 = vsub.f32 3.1415927, %v4328
        %v4457 = vsub.f32 3.1415927, %v4329
        %v4458 = vsub.f32 3.1415927, %v4330
        %v4459 = vsub.f32 3.1415927, %v4331
        %v4460 = vsub.f32 3.1415927, %v4332
        %v4461 = vsub.f32 3.1415927, %v4333
        %v4462 = vsub.f32 3.1415927, %v4334
        %v4463 = vsub.f32 3.1415927, %v4335
        %v4464 = vsub.f32 3.1415927, %v4336
        %v4465 = vsub.f32 3.1415927, %v4337
        %v4466 = vsub.f32 3.1415927, %v4338
        %v4467 = vsub.f32 3.1415927, %v4339
        %v4468 = vsub.f32 3.1415927, %v4340
        %v4469 = vsub.f32 3.1415927, %v4341
        %v4470 = vsub.f32 3.1415927, %v4342
        %v4471 = vsub.f32 3.1415927, %v4343
        %v4472 = vsub.f32 3.1415927, %v4344
        %v4473 = vsub.f32 3.1415927, %v4345
        %v4474 = vsub.f32 3.1415927, %v4346
        %v4475 = vsub.f32 3.1415927, %v4347
        %v4476 = vsub.f32 3.1415927, %v4348
        %v4477 = vsub.f32 3.1415927, %v4349
        %v4478 = vsub.f32 3.1415927, %v4350
        %v4479 = vsub.f32 3.1415927, %v4351
        %v4480 = vsub.f32 3.1415927, %v4352
        %v4481 = vsub.f32 3.1415927, %v4353
        %v4482 = vsub.f32 3.1415927, %v4354
        %v4483 = vsub.f32 3.1415927, %v4355
        %v4484 = vsub.f32 3.1415927, %v4356
        %v4485 = vsub.f32 3.1415927, %v4357
        %v4486 = vsub.f32 3.1415927, %v4358
        %v4487 = vsub.f32 3.1415927, %v4359
        %v4488 = vsub.f32 3.1415927, %v4360
        %v4489 = vsub.f32 3.1415927, %v4361
        %v4490 = vsub.f32 3.1415927, %v4362
        %v4491 = vsub.f32 3.1415927, %v4363
        %v4492 = vsub.f32 3.1415927, %v4364
        %v4493 = vsub.f32 3.1415927, %v4365
        %v4494 = vsub.f32 3.1415927, %v4366
        %v4495 = vsub.f32 3.1415927, %v4367
        %v4496 = vsub.f32 3.1415927, %v4368
        %vm4497 = vcmp.lt.f32.partialorder %v4305, -1.5707964
        %vm4498 = vcmp.lt.f32.partialorder %v4306, -1.5707964
        %vm4499 = vcmp.lt.f32.partialorder %v4307, -1.5707964
        %vm4500 = vcmp.lt.f32.partialorder %v4308, -1.5707964
        %vm4501 = vcmp.lt.f32.partialorder %v4309, -1.5707964
        %vm4502 = vcmp.lt.f32.partialorder %v4310, -1.5707964
        %vm4503 = vcmp.lt.f32.partialorder %v4311, -1.5707964
        %vm4504 = vcmp.lt.f32.partialorder %v4312, -1.5707964
        %vm4505 = vcmp.lt.f32.partialorder %v4313, -1.5707964
        %vm4506 = vcmp.lt.f32.partialorder %v4314, -1.5707964
        %vm4507 = vcmp.lt.f32.partialorder %v4315, -1.5707964
        %vm4508 = vcmp.lt.f32.partialorder %v4316, -1.5707964
        %vm4509 = vcmp.lt.f32.partialorder %v4317, -1.5707964
        %vm4510 = vcmp.lt.f32.partialorder %v4318, -1.5707964
        %vm4511 = vcmp.lt.f32.partialorder %v4319, -1.5707964
        %vm4512 = vcmp.lt.f32.partialorder %v4320, -1.5707964
        %vm4513 = vcmp.lt.f32.partialorder %v4321, -1.5707964
        %vm4514 = vcmp.lt.f32.partialorder %v4322, -1.5707964
        %vm4515 = vcmp.lt.f32.partialorder %v4323, -1.5707964
        %vm4516 = vcmp.lt.f32.partialorder %v4324, -1.5707964
        %vm4517 = vcmp.lt.f32.partialorder %v4325, -1.5707964
        %vm4518 = vcmp.lt.f32.partialorder %v4326, -1.5707964
        %vm4519 = vcmp.lt.f32.partialorder %v4327, -1.5707964
        %vm4520 = vcmp.lt.f32.partialorder %v4328, -1.5707964
        %vm4521 = vcmp.lt.f32.partialorder %v4329, -1.5707964
        %vm4522 = vcmp.lt.f32.partialorder %v4330, -1.5707964
        %vm4523 = vcmp.lt.f32.partialorder %v4331, -1.5707964
        %vm4524 = vcmp.lt.f32.partialorder %v4332, -1.5707964
        %vm4525 = vcmp.lt.f32.partialorder %v4333, -1.5707964
        %vm4526 = vcmp.lt.f32.partialorder %v4334, -1.5707964
        %vm4527 = vcmp.lt.f32.partialorder %v4335, -1.5707964
        %vm4528 = vcmp.lt.f32.partialorder %v4336, -1.5707964
        %vm4529 = vcmp.lt.f32.partialorder %v4337, -1.5707964
        %vm4530 = vcmp.lt.f32.partialorder %v4338, -1.5707964
        %vm4531 = vcmp.lt.f32.partialorder %v4339, -1.5707964
        %vm4532 = vcmp.lt.f32.partialorder %v4340, -1.5707964
        %vm4533 = vcmp.lt.f32.partialorder %v4341, -1.5707964
        %vm4534 = vcmp.lt.f32.partialorder %v4342, -1.5707964
        %vm4535 = vcmp.lt.f32.partialorder %v4343, -1.5707964
        %vm4536 = vcmp.lt.f32.partialorder %v4344, -1.5707964
        %vm4537 = vcmp.lt.f32.partialorder %v4345, -1.5707964
        %vm4538 = vcmp.lt.f32.partialorder %v4346, -1.5707964
        %vm4539 = vcmp.lt.f32.partialorder %v4347, -1.5707964
        %vm4540 = vcmp.lt.f32.partialorder %v4348, -1.5707964
        %vm4541 = vcmp.lt.f32.partialorder %v4349, -1.5707964
        %vm4542 = vcmp.lt.f32.partialorder %v4350, -1.5707964
        %vm4543 = vcmp.lt.f32.partialorder %v4351, -1.5707964
        %vm4544 = vcmp.lt.f32.partialorder %v4352, -1.5707964
        %vm4545 = vcmp.lt.f32.partialorder %v4353, -1.5707964
        %vm4546 = vcmp.lt.f32.partialorder %v4354, -1.5707964
        %vm4547 = vcmp.lt.f32.partialorder %v4355, -1.5707964
        %vm4548 = vcmp.lt.f32.partialorder %v4356, -1.5707964
        %vm4549 = vcmp.lt.f32.partialorder %v4357, -1.5707964
        %vm4550 = vcmp.lt.f32.partialorder %v4358, -1.5707964
        %vm4551 = vcmp.lt.f32.partialorder %v4359, -1.5707964
        %vm4552 = vcmp.lt.f32.partialorder %v4360, -1.5707964
        %vm4553 = vcmp.lt.f32.partialorder %v4361, -1.5707964
        %vm4554 = vcmp.lt.f32.partialorder %v4362, -1.5707964
        %vm4555 = vcmp.lt.f32.partialorder %v4363, -1.5707964
        %vm4556 = vcmp.lt.f32.partialorder %v4364, -1.5707964
        %vm4557 = vcmp.lt.f32.partialorder %v4365, -1.5707964
        %vm4558 = vcmp.lt.f32.partialorder %v4366, -1.5707964
        %vm4559 = vcmp.lt.f32.partialorder %v4367, -1.5707964
        %vm4560 = vcmp.lt.f32.partialorder %v4368, -1.5707964
        %v4561 = vsub.f32 -3.1415927, %v4305
        %v4562 = vsub.f32 -3.1415927, %v4306
        %v4563 = vsub.f32 -3.1415927, %v4307
        %v4564 = vsub.f32 -3.1415927, %v4308
        %v4565 = vsub.f32 -3.1415927, %v4309
        %v4566 = vsub.f32 -3.1415927, %v4310
        %v4567 = vsub.f32 -3.1415927, %v4311
        %v4568 = vsub.f32 -3.1415927, %v4312
        %v4569 = vsub.f32 -3.1415927, %v4313
        %v4570 = vsub.f32 -3.1415927, %v4314
        %v4571 = vsub.f32 -3.1415927, %v4315
        %v4572 = vsub.f32 -3.1415927, %v4316
        %v4573 = vsub.f32 -3.1415927, %v4317
        %v4574 = vsub.f32 -3.1415927, %v4318
        %v4575 = vsub.f32 -3.1415927, %v4319
        %v4576 = vsub.f32 -3.1415927, %v4320
        %v4577 = vsub.f32 -3.1415927, %v4321
        %v4578 = vsub.f32 -3.1415927, %v4322
        %v4579 = vsub.f32 -3.1415927, %v4323
        %v4580 = vsub.f32 -3.1415927, %v4324
        %v4581 = vsub.f32 -3.1415927, %v4325
        %v4582 = vsub.f32 -3.1415927, %v4326
        %v4583 = vsub.f32 -3.1415927, %v4327
        %v4584 = vsub.f32 -3.1415927, %v4328
        %v4585 = vsub.f32 -3.1415927, %v4329
        %v4586 = vsub.f32 -3.1415927, %v4330
        %v4587 = vsub.f32 -3.1415927, %v4331
        %v4588 = vsub.f32 -3.1415927, %v4332
        %v4589 = vsub.f32 -3.1415927, %v4333
        %v4590 = vsub.f32 -3.1415927, %v4334
        %v4591 = vsub.f32 -3.1415927, %v4335
        %v4592 = vsub.f32 -3.1415927, %v4336
        %v4593 = vsub.f32 -3.1415927, %v4337
        %v4594 = vsub.f32 -3.1415927, %v4338
        %v4595 = vsub.f32 -3.1415927, %v4339
        %v4596 = vsub.f32 -3.1415927, %v4340
        %v4597 = vsub.f32 -3.1415927, %v4341
        %v4598 = vsub.f32 -3.1415927, %v4342
        %v4599 = vsub.f32 -3.1415927, %v4343
        %v4600 = vsub.f32 -3.1415927, %v4344
        %v4601 = vsub.f32 -3.1415927, %v4345
        %v4602 = vsub.f32 -3.1415927, %v4346
        %v4603 = vsub.f32 -3.1415927, %v4347
        %v4604 = vsub.f32 -3.1415927, %v4348
        %v4605 = vsub.f32 -3.1415927, %v4349
        %v4606 = vsub.f32 -3.1415927, %v4350
        %v4607 = vsub.f32 -3.1415927, %v4351
        %v4608 = vsub.f32 -3.1415927, %v4352
        %v4609 = vsub.f32 -3.1415927, %v4353
        %v4610 = vsub.f32 -3.1415927, %v4354
        %v4611 = vsub.f32 -3.1415927, %v4355
        %v4612 = vsub.f32 -3.1415927, %v4356
        %v4613 = vsub.f32 -3.1415927, %v4357
        %v4614 = vsub.f32 -3.1415927, %v4358
        %v4615 = vsub.f32 -3.1415927, %v4359
        %v4616 = vsub.f32 -3.1415927, %v4360
        %v4617 = vsub.f32 -3.1415927, %v4361
        %v4618 = vsub.f32 -3.1415927, %v4362
        %v4619 = vsub.f32 -3.1415927, %v4363
        %v4620 = vsub.f32 -3.1415927, %v4364
        %v4621 = vsub.f32 -3.1415927, %v4365
        %v4622 = vsub.f32 -3.1415927, %v4366
        %v4623 = vsub.f32 -3.1415927, %v4367
        %v4624 = vsub.f32 -3.1415927, %v4368
        %v4625 = vsel %vm4497, %v4561, %v4305
        %v4626 = vsel %vm4498, %v4562, %v4306
        %v4627 = vsel %vm4499, %v4563, %v4307
        %v4628 = vsel %vm4500, %v4564, %v4308
        %v4629 = vsel %vm4501, %v4565, %v4309
        %v4630 = vsel %vm4502, %v4566, %v4310
        %v4631 = vsel %vm4503, %v4567, %v4311
        %v4632 = vsel %vm4504, %v4568, %v4312
        %v4633 = vsel %vm4505, %v4569, %v4313
        %v4634 = vsel %vm4506, %v4570, %v4314
        %v4635 = vsel %vm4507, %v4571, %v4315
        %v4636 = vsel %vm4508, %v4572, %v4316
        %v4637 = vsel %vm4509, %v4573, %v4317
        %v4638 = vsel %vm4510, %v4574, %v4318
        %v4639 = vsel %vm4511, %v4575, %v4319
        %v4640 = vsel %vm4512, %v4576, %v4320
        %v4641 = vsel %vm4513, %v4577, %v4321
        %v4642 = vsel %vm4514, %v4578, %v4322
        %v4643 = vsel %vm4515, %v4579, %v4323
        %v4644 = vsel %vm4516, %v4580, %v4324
        %v4645 = vsel %vm4517, %v4581, %v4325
        %v4646 = vsel %vm4518, %v4582, %v4326
        %v4647 = vsel %vm4519, %v4583, %v4327
        %v4648 = vsel %vm4520, %v4584, %v4328
        %v4649 = vsel %vm4521, %v4585, %v4329
        %v4650 = vsel %vm4522, %v4586, %v4330
        %v4651 = vsel %vm4523, %v4587, %v4331
        %v4652 = vsel %vm4524, %v4588, %v4332
        %v4653 = vsel %vm4525, %v4589, %v4333
        %v4654 = vsel %vm4526, %v4590, %v4334
        %v4655 = vsel %vm4527, %v4591, %v4335
        %v4656 = vsel %vm4528, %v4592, %v4336
        %v4657 = vsel %vm4529, %v4593, %v4337
        %v4658 = vsel %vm4530, %v4594, %v4338
        %v4659 = vsel %vm4531, %v4595, %v4339
        %v4660 = vsel %vm4532, %v4596, %v4340
        %v4661 = vsel %vm4533, %v4597, %v4341
        %v4662 = vsel %vm4534, %v4598, %v4342
        %v4663 = vsel %vm4535, %v4599, %v4343
        %v4664 = vsel %vm4536, %v4600, %v4344
        %v4665 = vsel %vm4537, %v4601, %v4345
        %v4666 = vsel %vm4538, %v4602, %v4346
        %v4667 = vsel %vm4539, %v4603, %v4347
        %v4668 = vsel %vm4540, %v4604, %v4348
        %v4669 = vsel %vm4541, %v4605, %v4349
        %v4670 = vsel %vm4542, %v4606, %v4350
        %v4671 = vsel %vm4543, %v4607, %v4351
        %v4672 = vsel %vm4544, %v4608, %v4352
        %v4673 = vsel %vm4545, %v4609, %v4353
        %v4674 = vsel %vm4546, %v4610, %v4354
        %v4675 = vsel %vm4547, %v4611, %v4355
        %v4676 = vsel %vm4548, %v4612, %v4356
        %v4677 = vsel %vm4549, %v4613, %v4357
        %v4678 = vsel %vm4550, %v4614, %v4358
        %v4679 = vsel %vm4551, %v4615, %v4359
        %v4680 = vsel %vm4552, %v4616, %v4360
        %v4681 = vsel %vm4553, %v4617, %v4361
        %v4682 = vsel %vm4554, %v4618, %v4362
        %v4683 = vsel %vm4555, %v4619, %v4363
        %v4684 = vsel %vm4556, %v4620, %v4364
        %v4685 = vsel %vm4557, %v4621, %v4365
        %v4686 = vsel %vm4558, %v4622, %v4366
        %v4687 = vsel %vm4559, %v4623, %v4367
        %v4688 = vsel %vm4560, %v4624, %v4368
        %v4689 = vsel %vm4369, %v4433, %v4625
        %v4690 = vsel %vm4370, %v4434, %v4626
        %v4691 = vsel %vm4371, %v4435, %v4627
        %v4692 = vsel %vm4372, %v4436, %v4628
        %v4693 = vsel %vm4373, %v4437, %v4629
        %v4694 = vsel %vm4374, %v4438, %v4630
        %v4695 = vsel %vm4375, %v4439, %v4631
        %v4696 = vsel %vm4376, %v4440, %v4632
        %v4697 = vsel %vm4377, %v4441, %v4633
        %v4698 = vsel %vm4378, %v4442, %v4634
        %v4699 = vsel %vm4379, %v4443, %v4635
        %v4700 = vsel %vm4380, %v4444, %v4636
        %v4701 = vsel %vm4381, %v4445, %v4637
        %v4702 = vsel %vm4382, %v4446, %v4638
        %v4703 = vsel %vm4383, %v4447, %v4639
        %v4704 = vsel %vm4384, %v4448, %v4640
        %v4705 = vsel %vm4385, %v4449, %v4641
        %v4706 = vsel %vm4386, %v4450, %v4642
        %v4707 = vsel %vm4387, %v4451, %v4643
        %v4708 = vsel %vm4388, %v4452, %v4644
        %v4709 = vsel %vm4389, %v4453, %v4645
        %v4710 = vsel %vm4390, %v4454, %v4646
        %v4711 = vsel %vm4391, %v4455, %v4647
        %v4712 = vsel %vm4392, %v4456, %v4648
        %v4713 = vsel %vm4393, %v4457, %v4649
        %v4714 = vsel %vm4394, %v4458, %v4650
        %v4715 = vsel %vm4395, %v4459, %v4651
        %v4716 = vsel %vm4396, %v4460, %v4652
        %v4717 = vsel %vm4397, %v4461, %v4653
        %v4718 = vsel %vm4398, %v4462, %v4654
        %v4719 = vsel %vm4399, %v4463, %v4655
        %v4720 = vsel %vm4400, %v4464, %v4656
        %v4721 = vsel %vm4401, %v4465, %v4657
        %v4722 = vsel %vm4402, %v4466, %v4658
        %v4723 = vsel %vm4403, %v4467, %v4659
        %v4724 = vsel %vm4404, %v4468, %v4660
        %v4725 = vsel %vm4405, %v4469, %v4661
        %v4726 = vsel %vm4406, %v4470, %v4662
        %v4727 = vsel %vm4407, %v4471, %v4663
        %v4728 = vsel %vm4408, %v4472, %v4664
        %v4729 = vsel %vm4409, %v4473, %v4665
        %v4730 = vsel %vm4410, %v4474, %v4666
        %v4731 = vsel %vm4411, %v4475, %v4667
        %v4732 = vsel %vm4412, %v4476, %v4668
        %v4733 = vsel %vm4413, %v4477, %v4669
        %v4734 = vsel %vm4414, %v4478, %v4670
        %v4735 = vsel %vm4415, %v4479, %v4671
        %v4736 = vsel %vm4416, %v4480, %v4672
        %v4737 = vsel %vm4417, %v4481, %v4673
        %v4738 = vsel %vm4418, %v4482, %v4674
        %v4739 = vsel %vm4419, %v4483, %v4675
        %v4740 = vsel %vm4420, %v4484, %v4676
        %v4741 = vsel %vm4421, %v4485, %v4677
        %v4742 = vsel %vm4422, %v4486, %v4678
        %v4743 = vsel %vm4423, %v4487, %v4679
        %v4744 = vsel %vm4424, %v4488, %v4680
        %v4745 = vsel %vm4425, %v4489, %v4681
        %v4746 = vsel %vm4426, %v4490, %v4682
        %v4747 = vsel %vm4427, %v4491, %v4683
        %v4748 = vsel %vm4428, %v4492, %v4684
        %v4749 = vsel %vm4429, %v4493, %v4685
        %v4750 = vsel %vm4430, %v4494, %v4686
        %v4751 = vsel %vm4431, %v4495, %v4687
        %v4752 = vsel %vm4432, %v4496, %v4688
        %v4753 = vmul.f32 %v4689, %v4689
        %v4754 = vmul.f32 %v4690, %v4690
        %v4755 = vmul.f32 %v4691, %v4691
        %v4756 = vmul.f32 %v4692, %v4692
        %v4757 = vmul.f32 %v4693, %v4693
        %v4758 = vmul.f32 %v4694, %v4694
        %v4759 = vmul.f32 %v4695, %v4695
        %v4760 = vmul.f32 %v4696, %v4696
        %v4761 = vmul.f32 %v4697, %v4697
        %v4762 = vmul.f32 %v4698, %v4698
        %v4763 = vmul.f32 %v4699, %v4699
        %v4764 = vmul.f32 %v4700, %v4700
        %v4765 = vmul.f32 %v4701, %v4701
        %v4766 = vmul.f32 %v4702, %v4702
        %v4767 = vmul.f32 %v4703, %v4703
        %v4768 = vmul.f32 %v4704, %v4704
        %v4769 = vmul.f32 %v4705, %v4705
        %v4770 = vmul.f32 %v4706, %v4706
        %v4771 = vmul.f32 %v4707, %v4707
        %v4772 = vmul.f32 %v4708, %v4708
        %v4773 = vmul.f32 %v4709, %v4709
        %v4774 = vmul.f32 %v4710, %v4710
        %v4775 = vmul.f32 %v4711, %v4711
        %v4776 = vmul.f32 %v4712, %v4712
        %v4777 = vmul.f32 %v4713, %v4713
        %v4778 = vmul.f32 %v4714, %v4714
        %v4779 = vmul.f32 %v4715, %v4715
        %v4780 = vmul.f32 %v4716, %v4716
        %v4781 = vmul.f32 %v4717, %v4717
        %v4782 = vmul.f32 %v4718, %v4718
        %v4783 = vmul.f32 %v4719, %v4719
        %v4784 = vmul.f32 %v4720, %v4720
        %v4785 = vmul.f32 %v4721, %v4721
        %v4786 = vmul.f32 %v4722, %v4722
        %v4787 = vmul.f32 %v4723, %v4723
        %v4788 = vmul.f32 %v4724, %v4724
        %v4789 = vmul.f32 %v4725, %v4725
        %v4790 = vmul.f32 %v4726, %v4726
        %v4791 = vmul.f32 %v4727, %v4727
        %v4792 = vmul.f32 %v4728, %v4728
        %v4793 = vmul.f32 %v4729, %v4729
        %v4794 = vmul.f32 %v4730, %v4730
        %v4795 = vmul.f32 %v4731, %v4731
        %v4796 = vmul.f32 %v4732, %v4732
        %v4797 = vmul.f32 %v4733, %v4733
        %v4798 = vmul.f32 %v4734, %v4734
        %v4799 = vmul.f32 %v4735, %v4735
        %v4800 = vmul.f32 %v4736, %v4736
        %v4801 = vmul.f32 %v4737, %v4737
        %v4802 = vmul.f32 %v4738, %v4738
        %v4803 = vmul.f32 %v4739, %v4739
        %v4804 = vmul.f32 %v4740, %v4740
        %v4805 = vmul.f32 %v4741, %v4741
        %v4806 = vmul.f32 %v4742, %v4742
        %v4807 = vmul.f32 %v4743, %v4743
        %v4808 = vmul.f32 %v4744, %v4744
        %v4809 = vmul.f32 %v4745, %v4745
        %v4810 = vmul.f32 %v4746, %v4746
        %v4811 = vmul.f32 %v4747, %v4747
        %v4812 = vmul.f32 %v4748, %v4748
        %v4813 = vmul.f32 %v4749, %v4749
        %v4814 = vmul.f32 %v4750, %v4750
        %v4815 = vmul.f32 %v4751, %v4751
        %v4816 = vmul.f32 %v4752, %v4752
        %v4817 = vmul.f32 %v4753, -0.00019515296
        %v4818 = vmul.f32 %v4754, -0.00019515296
        %v4819 = vmul.f32 %v4755, -0.00019515296
        %v4820 = vmul.f32 %v4756, -0.00019515296
        %v4821 = vmul.f32 %v4757, -0.00019515296
        %v4822 = vmul.f32 %v4758, -0.00019515296
        %v4823 = vmul.f32 %v4759, -0.00019515296
        %v4824 = vmul.f32 %v4760, -0.00019515296
        %v4825 = vmul.f32 %v4761, -0.00019515296
        %v4826 = vmul.f32 %v4762, -0.00019515296
        %v4827 = vmul.f32 %v4763, -0.00019515296
        %v4828 = vmul.f32 %v4764, -0.00019515296
        %v4829 = vmul.f32 %v4765, -0.00019515296
        %v4830 = vmul.f32 %v4766, -0.00019515296
        %v4831 = vmul.f32 %v4767, -0.00019515296
        %v4832 = vmul.f32 %v4768, -0.00019515296
        %v4833 = vmul.f32 %v4769, -0.00019515296
        %v4834 = vmul.f32 %v4770, -0.00019515296
        %v4835 = vmul.f32 %v4771, -0.00019515296
        %v4836 = vmul.f32 %v4772, -0.00019515296
        %v4837 = vmul.f32 %v4773, -0.00019515296
        %v4838 = vmul.f32 %v4774, -0.00019515296
        %v4839 = vmul.f32 %v4775, -0.00019515296
        %v4840 = vmul.f32 %v4776, -0.00019515296
        %v4841 = vmul.f32 %v4777, -0.00019515296
        %v4842 = vmul.f32 %v4778, -0.00019515296
        %v4843 = vmul.f32 %v4779, -0.00019515296
        %v4844 = vmul.f32 %v4780, -0.00019515296
        %v4845 = vmul.f32 %v4781, -0.00019515296
        %v4846 = vmul.f32 %v4782, -0.00019515296
        %v4847 = vmul.f32 %v4783, -0.00019515296
        %v4848 = vmul.f32 %v4784, -0.00019515296
        %v4849 = vmul.f32 %v4785, -0.00019515296
        %v4850 = vmul.f32 %v4786, -0.00019515296
        %v4851 = vmul.f32 %v4787, -0.00019515296
        %v4852 = vmul.f32 %v4788, -0.00019515296
        %v4853 = vmul.f32 %v4789, -0.00019515296
        %v4854 = vmul.f32 %v4790, -0.00019515296
        %v4855 = vmul.f32 %v4791, -0.00019515296
        %v4856 = vmul.f32 %v4792, -0.00019515296
        %v4857 = vmul.f32 %v4793, -0.00019515296
        %v4858 = vmul.f32 %v4794, -0.00019515296
        %v4859 = vmul.f32 %v4795, -0.00019515296
        %v4860 = vmul.f32 %v4796, -0.00019515296
        %v4861 = vmul.f32 %v4797, -0.00019515296
        %v4862 = vmul.f32 %v4798, -0.00019515296
        %v4863 = vmul.f32 %v4799, -0.00019515296
        %v4864 = vmul.f32 %v4800, -0.00019515296
        %v4865 = vmul.f32 %v4801, -0.00019515296
        %v4866 = vmul.f32 %v4802, -0.00019515296
        %v4867 = vmul.f32 %v4803, -0.00019515296
        %v4868 = vmul.f32 %v4804, -0.00019515296
        %v4869 = vmul.f32 %v4805, -0.00019515296
        %v4870 = vmul.f32 %v4806, -0.00019515296
        %v4871 = vmul.f32 %v4807, -0.00019515296
        %v4872 = vmul.f32 %v4808, -0.00019515296
        %v4873 = vmul.f32 %v4809, -0.00019515296
        %v4874 = vmul.f32 %v4810, -0.00019515296
        %v4875 = vmul.f32 %v4811, -0.00019515296
        %v4876 = vmul.f32 %v4812, -0.00019515296
        %v4877 = vmul.f32 %v4813, -0.00019515296
        %v4878 = vmul.f32 %v4814, -0.00019515296
        %v4879 = vmul.f32 %v4815, -0.00019515296
        %v4880 = vmul.f32 %v4816, -0.00019515296
        %v4881 = vadd.f32 %v4817, 0.008332161
        %v4882 = vadd.f32 %v4818, 0.008332161
        %v4883 = vadd.f32 %v4819, 0.008332161
        %v4884 = vadd.f32 %v4820, 0.008332161
        %v4885 = vadd.f32 %v4821, 0.008332161
        %v4886 = vadd.f32 %v4822, 0.008332161
        %v4887 = vadd.f32 %v4823, 0.008332161
        %v4888 = vadd.f32 %v4824, 0.008332161
        %v4889 = vadd.f32 %v4825, 0.008332161
        %v4890 = vadd.f32 %v4826, 0.008332161
        %v4891 = vadd.f32 %v4827, 0.008332161
        %v4892 = vadd.f32 %v4828, 0.008332161
        %v4893 = vadd.f32 %v4829, 0.008332161
        %v4894 = vadd.f32 %v4830, 0.008332161
        %v4895 = vadd.f32 %v4831, 0.008332161
        %v4896 = vadd.f32 %v4832, 0.008332161
        %v4897 = vadd.f32 %v4833, 0.008332161
        %v4898 = vadd.f32 %v4834, 0.008332161
        %v4899 = vadd.f32 %v4835, 0.008332161
        %v4900 = vadd.f32 %v4836, 0.008332161
        %v4901 = vadd.f32 %v4837, 0.008332161
        %v4902 = vadd.f32 %v4838, 0.008332161
        %v4903 = vadd.f32 %v4839, 0.008332161
        %v4904 = vadd.f32 %v4840, 0.008332161
        %v4905 = vadd.f32 %v4841, 0.008332161
        %v4906 = vadd.f32 %v4842, 0.008332161
        %v4907 = vadd.f32 %v4843, 0.008332161
        %v4908 = vadd.f32 %v4844, 0.008332161
        %v4909 = vadd.f32 %v4845, 0.008332161
        %v4910 = vadd.f32 %v4846, 0.008332161
        %v4911 = vadd.f32 %v4847, 0.008332161
        %v4912 = vadd.f32 %v4848, 0.008332161
        %v4913 = vadd.f32 %v4849, 0.008332161
        %v4914 = vadd.f32 %v4850, 0.008332161
        %v4915 = vadd.f32 %v4851, 0.008332161
        %v4916 = vadd.f32 %v4852, 0.008332161
        %v4917 = vadd.f32 %v4853, 0.008332161
        %v4918 = vadd.f32 %v4854, 0.008332161
        %v4919 = vadd.f32 %v4855, 0.008332161
        %v4920 = vadd.f32 %v4856, 0.008332161
        %v4921 = vadd.f32 %v4857, 0.008332161
        %v4922 = vadd.f32 %v4858, 0.008332161
        %v4923 = vadd.f32 %v4859, 0.008332161
        %v4924 = vadd.f32 %v4860, 0.008332161
        %v4925 = vadd.f32 %v4861, 0.008332161
        %v4926 = vadd.f32 %v4862, 0.008332161
        %v4927 = vadd.f32 %v4863, 0.008332161
        %v4928 = vadd.f32 %v4864, 0.008332161
        %v4929 = vadd.f32 %v4865, 0.008332161
        %v4930 = vadd.f32 %v4866, 0.008332161
        %v4931 = vadd.f32 %v4867, 0.008332161
        %v4932 = vadd.f32 %v4868, 0.008332161
        %v4933 = vadd.f32 %v4869, 0.008332161
        %v4934 = vadd.f32 %v4870, 0.008332161
        %v4935 = vadd.f32 %v4871, 0.008332161
        %v4936 = vadd.f32 %v4872, 0.008332161
        %v4937 = vadd.f32 %v4873, 0.008332161
        %v4938 = vadd.f32 %v4874, 0.008332161
        %v4939 = vadd.f32 %v4875, 0.008332161
        %v4940 = vadd.f32 %v4876, 0.008332161
        %v4941 = vadd.f32 %v4877, 0.008332161
        %v4942 = vadd.f32 %v4878, 0.008332161
        %v4943 = vadd.f32 %v4879, 0.008332161
        %v4944 = vadd.f32 %v4880, 0.008332161
        %v4945 = vmul.f32 %v4753, %v4881
        %v4946 = vmul.f32 %v4754, %v4882
        %v4947 = vmul.f32 %v4755, %v4883
        %v4948 = vmul.f32 %v4756, %v4884
        %v4949 = vmul.f32 %v4757, %v4885
        %v4950 = vmul.f32 %v4758, %v4886
        %v4951 = vmul.f32 %v4759, %v4887
        %v4952 = vmul.f32 %v4760, %v4888
        %v4953 = vmul.f32 %v4761, %v4889
        %v4954 = vmul.f32 %v4762, %v4890
        %v4955 = vmul.f32 %v4763, %v4891
        %v4956 = vmul.f32 %v4764, %v4892
        %v4957 = vmul.f32 %v4765, %v4893
        %v4958 = vmul.f32 %v4766, %v4894
        %v4959 = vmul.f32 %v4767, %v4895
        %v4960 = vmul.f32 %v4768, %v4896
        %v4961 = vmul.f32 %v4769, %v4897
        %v4962 = vmul.f32 %v4770, %v4898
        %v4963 = vmul.f32 %v4771, %v4899
        %v4964 = vmul.f32 %v4772, %v4900
        %v4965 = vmul.f32 %v4773, %v4901
        %v4966 = vmul.f32 %v4774, %v4902
        %v4967 = vmul.f32 %v4775, %v4903
        %v4968 = vmul.f32 %v4776, %v4904
        %v4969 = vmul.f32 %v4777, %v4905
        %v4970 = vmul.f32 %v4778, %v4906
        %v4971 = vmul.f32 %v4779, %v4907
        %v4972 = vmul.f32 %v4780, %v4908
        %v4973 = vmul.f32 %v4781, %v4909
        %v4974 = vmul.f32 %v4782, %v4910
        %v4975 = vmul.f32 %v4783, %v4911
        %v4976 = vmul.f32 %v4784, %v4912
        %v4977 = vmul.f32 %v4785, %v4913
        %v4978 = vmul.f32 %v4786, %v4914
        %v4979 = vmul.f32 %v4787, %v4915
        %v4980 = vmul.f32 %v4788, %v4916
        %v4981 = vmul.f32 %v4789, %v4917
        %v4982 = vmul.f32 %v4790, %v4918
        %v4983 = vmul.f32 %v4791, %v4919
        %v4984 = vmul.f32 %v4792, %v4920
        %v4985 = vmul.f32 %v4793, %v4921
        %v4986 = vmul.f32 %v4794, %v4922
        %v4987 = vmul.f32 %v4795, %v4923
        %v4988 = vmul.f32 %v4796, %v4924
        %v4989 = vmul.f32 %v4797, %v4925
        %v4990 = vmul.f32 %v4798, %v4926
        %v4991 = vmul.f32 %v4799, %v4927
        %v4992 = vmul.f32 %v4800, %v4928
        %v4993 = vmul.f32 %v4801, %v4929
        %v4994 = vmul.f32 %v4802, %v4930
        %v4995 = vmul.f32 %v4803, %v4931
        %v4996 = vmul.f32 %v4804, %v4932
        %v4997 = vmul.f32 %v4805, %v4933
        %v4998 = vmul.f32 %v4806, %v4934
        %v4999 = vmul.f32 %v4807, %v4935
        %v5000 = vmul.f32 %v4808, %v4936
        %v5001 = vmul.f32 %v4809, %v4937
        %v5002 = vmul.f32 %v4810, %v4938
        %v5003 = vmul.f32 %v4811, %v4939
        %v5004 = vmul.f32 %v4812, %v4940
        %v5005 = vmul.f32 %v4813, %v4941
        %v5006 = vmul.f32 %v4814, %v4942
        %v5007 = vmul.f32 %v4815, %v4943
        %v5008 = vmul.f32 %v4816, %v4944
        %v5009 = vadd.f32 %v4945, -0.16666655
        %v5010 = vadd.f32 %v4946, -0.16666655
        %v5011 = vadd.f32 %v4947, -0.16666655
        %v5012 = vadd.f32 %v4948, -0.16666655
        %v5013 = vadd.f32 %v4949, -0.16666655
        %v5014 = vadd.f32 %v4950, -0.16666655
        %v5015 = vadd.f32 %v4951, -0.16666655
        %v5016 = vadd.f32 %v4952, -0.16666655
        %v5017 = vadd.f32 %v4953, -0.16666655
        %v5018 = vadd.f32 %v4954, -0.16666655
        %v5019 = vadd.f32 %v4955, -0.16666655
        %v5020 = vadd.f32 %v4956, -0.16666655
        %v5021 = vadd.f32 %v4957, -0.16666655
        %v5022 = vadd.f32 %v4958, -0.16666655
        %v5023 = vadd.f32 %v4959, -0.16666655
        %v5024 = vadd.f32 %v4960, -0.16666655
        %v5025 = vadd.f32 %v4961, -0.16666655
        %v5026 = vadd.f32 %v4962, -0.16666655
        %v5027 = vadd.f32 %v4963, -0.16666655
        %v5028 = vadd.f32 %v4964, -0.16666655
        %v5029 = vadd.f32 %v4965, -0.16666655
        %v5030 = vadd.f32 %v4966, -0.16666655
        %v5031 = vadd.f32 %v4967, -0.16666655
        %v5032 = vadd.f32 %v4968, -0.16666655
        %v5033 = vadd.f32 %v4969, -0.16666655
        %v5034 = vadd.f32 %v4970, -0.16666655
        %v5035 = vadd.f32 %v4971, -0.16666655
        %v5036 = vadd.f32 %v4972, -0.16666655
        %v5037 = vadd.f32 %v4973, -0.16666655
        %v5038 = vadd.f32 %v4974, -0.16666655
        %v5039 = vadd.f32 %v4975, -0.16666655
        %v5040 = vadd.f32 %v4976, -0.16666655
        %v5041 = vadd.f32 %v4977, -0.16666655
        %v5042 = vadd.f32 %v4978, -0.16666655
        %v5043 = vadd.f32 %v4979, -0.16666655
        %v5044 = vadd.f32 %v4980, -0.16666655
        %v5045 = vadd.f32 %v4981, -0.16666655
        %v5046 = vadd.f32 %v4982, -0.16666655
        %v5047 = vadd.f32 %v4983, -0.16666655
        %v5048 = vadd.f32 %v4984, -0.16666655
        %v5049 = vadd.f32 %v4985, -0.16666655
        %v5050 = vadd.f32 %v4986, -0.16666655
        %v5051 = vadd.f32 %v4987, -0.16666655
        %v5052 = vadd.f32 %v4988, -0.16666655
        %v5053 = vadd.f32 %v4989, -0.16666655
        %v5054 = vadd.f32 %v4990, -0.16666655
        %v5055 = vadd.f32 %v4991, -0.16666655
        %v5056 = vadd.f32 %v4992, -0.16666655
        %v5057 = vadd.f32 %v4993, -0.16666655
        %v5058 = vadd.f32 %v4994, -0.16666655
        %v5059 = vadd.f32 %v4995, -0.16666655
        %v5060 = vadd.f32 %v4996, -0.16666655
        %v5061 = vadd.f32 %v4997, -0.16666655
        %v5062 = vadd.f32 %v4998, -0.16666655
        %v5063 = vadd.f32 %v4999, -0.16666655
        %v5064 = vadd.f32 %v5000, -0.16666655
        %v5065 = vadd.f32 %v5001, -0.16666655
        %v5066 = vadd.f32 %v5002, -0.16666655
        %v5067 = vadd.f32 %v5003, -0.16666655
        %v5068 = vadd.f32 %v5004, -0.16666655
        %v5069 = vadd.f32 %v5005, -0.16666655
        %v5070 = vadd.f32 %v5006, -0.16666655
        %v5071 = vadd.f32 %v5007, -0.16666655
        %v5072 = vadd.f32 %v5008, -0.16666655
        %v5073 = vmul.f32 %v4753, %v5009
        %v5074 = vmul.f32 %v4754, %v5010
        %v5075 = vmul.f32 %v4755, %v5011
        %v5076 = vmul.f32 %v4756, %v5012
        %v5077 = vmul.f32 %v4757, %v5013
        %v5078 = vmul.f32 %v4758, %v5014
        %v5079 = vmul.f32 %v4759, %v5015
        %v5080 = vmul.f32 %v4760, %v5016
        %v5081 = vmul.f32 %v4761, %v5017
        %v5082 = vmul.f32 %v4762, %v5018
        %v5083 = vmul.f32 %v4763, %v5019
        %v5084 = vmul.f32 %v4764, %v5020
        %v5085 = vmul.f32 %v4765, %v5021
        %v5086 = vmul.f32 %v4766, %v5022
        %v5087 = vmul.f32 %v4767, %v5023
        %v5088 = vmul.f32 %v4768, %v5024
        %v5089 = vmul.f32 %v4769, %v5025
        %v5090 = vmul.f32 %v4770, %v5026
        %v5091 = vmul.f32 %v4771, %v5027
        %v5092 = vmul.f32 %v4772, %v5028
        %v5093 = vmul.f32 %v4773, %v5029
        %v5094 = vmul.f32 %v4774, %v5030
        %v5095 = vmul.f32 %v4775, %v5031
        %v5096 = vmul.f32 %v4776, %v5032
        %v5097 = vmul.f32 %v4777, %v5033
        %v5098 = vmul.f32 %v4778, %v5034
        %v5099 = vmul.f32 %v4779, %v5035
        %v5100 = vmul.f32 %v4780, %v5036
        %v5101 = vmul.f32 %v4781, %v5037
        %v5102 = vmul.f32 %v4782, %v5038
        %v5103 = vmul.f32 %v4783, %v5039
        %v5104 = vmul.f32 %v4784, %v5040
        %v5105 = vmul.f32 %v4785, %v5041
        %v5106 = vmul.f32 %v4786, %v5042
        %v5107 = vmul.f32 %v4787, %v5043
        %v5108 = vmul.f32 %v4788, %v5044
        %v5109 = vmul.f32 %v4789, %v5045
        %v5110 = vmul.f32 %v4790, %v5046
        %v5111 = vmul.f32 %v4791, %v5047
        %v5112 = vmul.f32 %v4792, %v5048
        %v5113 = vmul.f32 %v4793, %v5049
        %v5114 = vmul.f32 %v4794, %v5050
        %v5115 = vmul.f32 %v4795, %v5051
        %v5116 = vmul.f32 %v4796, %v5052
        %v5117 = vmul.f32 %v4797, %v5053
        %v5118 = vmul.f32 %v4798, %v5054
        %v5119 = vmul.f32 %v4799, %v5055
        %v5120 = vmul.f32 %v4800, %v5056
        %v5121 = vmul.f32 %v4801, %v5057
        %v5122 = vmul.f32 %v4802, %v5058
        %v5123 = vmul.f32 %v4803, %v5059
        %v5124 = vmul.f32 %v4804, %v5060
        %v5125 = vmul.f32 %v4805, %v5061
        %v5126 = vmul.f32 %v4806, %v5062
        %v5127 = vmul.f32 %v4807, %v5063
        %v5128 = vmul.f32 %v4808, %v5064
        %v5129 = vmul.f32 %v4809, %v5065
        %v5130 = vmul.f32 %v4810, %v5066
        %v5131 = vmul.f32 %v4811, %v5067
        %v5132 = vmul.f32 %v4812, %v5068
        %v5133 = vmul.f32 %v4813, %v5069
        %v5134 = vmul.f32 %v4814, %v5070
        %v5135 = vmul.f32 %v4815, %v5071
        %v5136 = vmul.f32 %v4816, %v5072
        %v5137 = vadd.f32 %v5073, 1.0
        %v5138 = vadd.f32 %v5074, 1.0
        %v5139 = vadd.f32 %v5075, 1.0
        %v5140 = vadd.f32 %v5076, 1.0
        %v5141 = vadd.f32 %v5077, 1.0
        %v5142 = vadd.f32 %v5078, 1.0
        %v5143 = vadd.f32 %v5079, 1.0
        %v5144 = vadd.f32 %v5080, 1.0
        %v5145 = vadd.f32 %v5081, 1.0
        %v5146 = vadd.f32 %v5082, 1.0
        %v5147 = vadd.f32 %v5083, 1.0
        %v5148 = vadd.f32 %v5084, 1.0
        %v5149 = vadd.f32 %v5085, 1.0
        %v5150 = vadd.f32 %v5086, 1.0
        %v5151 = vadd.f32 %v5087, 1.0
        %v5152 = vadd.f32 %v5088, 1.0
        %v5153 = vadd.f32 %v5089, 1.0
        %v5154 = vadd.f32 %v5090, 1.0
        %v5155 = vadd.f32 %v5091, 1.0
        %v5156 = vadd.f32 %v5092, 1.0
        %v5157 = vadd.f32 %v5093, 1.0
        %v5158 = vadd.f32 %v5094, 1.0
        %v5159 = vadd.f32 %v5095, 1.0
        %v5160 = vadd.f32 %v5096, 1.0
        %v5161 = vadd.f32 %v5097, 1.0
        %v5162 = vadd.f32 %v5098, 1.0
        %v5163 = vadd.f32 %v5099, 1.0
        %v5164 = vadd.f32 %v5100, 1.0
        %v5165 = vadd.f32 %v5101, 1.0
        %v5166 = vadd.f32 %v5102, 1.0
        %v5167 = vadd.f32 %v5103, 1.0
        %v5168 = vadd.f32 %v5104, 1.0
        %v5169 = vadd.f32 %v5105, 1.0
        %v5170 = vadd.f32 %v5106, 1.0
        %v5171 = vadd.f32 %v5107, 1.0
        %v5172 = vadd.f32 %v5108, 1.0
        %v5173 = vadd.f32 %v5109, 1.0
        %v5174 = vadd.f32 %v5110, 1.0
        %v5175 = vadd.f32 %v5111, 1.0
        %v5176 = vadd.f32 %v5112, 1.0
        %v5177 = vadd.f32 %v5113, 1.0
        %v5178 = vadd.f32 %v5114, 1.0
        %v5179 = vadd.f32 %v5115, 1.0
        %v5180 = vadd.f32 %v5116, 1.0
        %v5181 = vadd.f32 %v5117, 1.0
        %v5182 = vadd.f32 %v5118, 1.0
        %v5183 = vadd.f32 %v5119, 1.0
        %v5184 = vadd.f32 %v5120, 1.0
        %v5185 = vadd.f32 %v5121, 1.0
        %v5186 = vadd.f32 %v5122, 1.0
        %v5187 = vadd.f32 %v5123, 1.0
        %v5188 = vadd.f32 %v5124, 1.0
        %v5189 = vadd.f32 %v5125, 1.0
        %v5190 = vadd.f32 %v5126, 1.0
        %v5191 = vadd.f32 %v5127, 1.0
        %v5192 = vadd.f32 %v5128, 1.0
        %v5193 = vadd.f32 %v5129, 1.0
        %v5194 = vadd.f32 %v5130, 1.0
        %v5195 = vadd.f32 %v5131, 1.0
        %v5196 = vadd.f32 %v5132, 1.0
        %v5197 = vadd.f32 %v5133, 1.0
        %v5198 = vadd.f32 %v5134, 1.0
        %v5199 = vadd.f32 %v5135, 1.0
        %v5200 = vadd.f32 %v5136, 1.0
        %v5201 = vmul.f32 %v4689, %v5137
        %v5202 = vmul.f32 %v4690, %v5138
        %v5203 = vmul.f32 %v4691, %v5139
        %v5204 = vmul.f32 %v4692, %v5140
        %v5205 = vmul.f32 %v4693, %v5141
        %v5206 = vmul.f32 %v4694, %v5142
        %v5207 = vmul.f32 %v4695, %v5143
        %v5208 = vmul.f32 %v4696, %v5144
        %v5209 = vmul.f32 %v4697, %v5145
        %v5210 = vmul.f32 %v4698, %v5146
        %v5211 = vmul.f32 %v4699, %v5147
        %v5212 = vmul.f32 %v4700, %v5148
        %v5213 = vmul.f32 %v4701, %v5149
        %v5214 = vmul.f32 %v4702, %v5150
        %v5215 = vmul.f32 %v4703, %v5151
        %v5216 = vmul.f32 %v4704, %v5152
        %v5217 = vmul.f32 %v4705, %v5153
        %v5218 = vmul.f32 %v4706, %v5154
        %v5219 = vmul.f32 %v4707, %v5155
        %v5220 = vmul.f32 %v4708, %v5156
        %v5221 = vmul.f32 %v4709, %v5157
        %v5222 = vmul.f32 %v4710, %v5158
        %v5223 = vmul.f32 %v4711, %v5159
        %v5224 = vmul.f32 %v4712, %v5160
        %v5225 = vmul.f32 %v4713, %v5161
        %v5226 = vmul.f32 %v4714, %v5162
        %v5227 = vmul.f32 %v4715, %v5163
        %v5228 = vmul.f32 %v4716, %v5164
        %v5229 = vmul.f32 %v4717, %v5165
        %v5230 = vmul.f32 %v4718, %v5166
        %v5231 = vmul.f32 %v4719, %v5167
        %v5232 = vmul.f32 %v4720, %v5168
        %v5233 = vmul.f32 %v4721, %v5169
        %v5234 = vmul.f32 %v4722, %v5170
        %v5235 = vmul.f32 %v4723, %v5171
        %v5236 = vmul.f32 %v4724, %v5172
        %v5237 = vmul.f32 %v4725, %v5173
        %v5238 = vmul.f32 %v4726, %v5174
        %v5239 = vmul.f32 %v4727, %v5175
        %v5240 = vmul.f32 %v4728, %v5176
        %v5241 = vmul.f32 %v4729, %v5177
        %v5242 = vmul.f32 %v4730, %v5178
        %v5243 = vmul.f32 %v4731, %v5179
        %v5244 = vmul.f32 %v4732, %v5180
        %v5245 = vmul.f32 %v4733, %v5181
        %v5246 = vmul.f32 %v4734, %v5182
        %v5247 = vmul.f32 %v4735, %v5183
        %v5248 = vmul.f32 %v4736, %v5184
        %v5249 = vmul.f32 %v4737, %v5185
        %v5250 = vmul.f32 %v4738, %v5186
        %v5251 = vmul.f32 %v4739, %v5187
        %v5252 = vmul.f32 %v4740, %v5188
        %v5253 = vmul.f32 %v4741, %v5189
        %v5254 = vmul.f32 %v4742, %v5190
        %v5255 = vmul.f32 %v4743, %v5191
        %v5256 = vmul.f32 %v4744, %v5192
        %v5257 = vmul.f32 %v4745, %v5193
        %v5258 = vmul.f32 %v4746, %v5194
        %v5259 = vmul.f32 %v4747, %v5195
        %v5260 = vmul.f32 %v4748, %v5196
        %v5261 = vmul.f32 %v4749, %v5197
        %v5262 = vmul.f32 %v4750, %v5198
        %v5263 = vmul.f32 %v4751, %v5199
        %v5264 = vmul.f32 %v4752, %v5200
        %s5265 = scalar_lea.vmem %s3, 128
        %v5266 = vld [vmem:[%s5265] sm:$0xf]
        %v5267 = vld [vmem:[%s5265 + $0x4] sm:$0xf]
        %v5268 = vld [vmem:[%s5265 + $0x8] sm:$0xf]
        %v5269 = vld [vmem:[%s5265 + $0xc] sm:$0xf]
        %v5270 = vld [vmem:[%s5265 + $0x10] sm:$0xf]
        %v5271 = vld [vmem:[%s5265 + $0x14] sm:$0xf]
        %v5272 = vld [vmem:[%s5265 + $0x18] sm:$0xf]
        %v5273 = vld [vmem:[%s5265 + $0x1c] sm:$0xf]
        %v5274 = vld [vmem:[%s5265 + $0x20] sm:$0xf]
        %v5275 = vld [vmem:[%s5265 + $0x24] sm:$0xf]
        %v5276 = vld [vmem:[%s5265 + $0x28] sm:$0xf]
        %v5277 = vld [vmem:[%s5265 + $0x2c] sm:$0xf]
        %v5278 = vld [vmem:[%s5265 + $0x30] sm:$0xf]
        %v5279 = vld [vmem:[%s5265 + $0x34] sm:$0xf]
        %v5280 = vld [vmem:[%s5265 + $0x38] sm:$0xf]
        %v5281 = vld [vmem:[%s5265 + $0x3c] sm:$0xf]
        %v5282 = vpack.c.bf16 %v5205, %v5201
        %v5283 = vpack.c.bf16 %v5206, %v5202
        %v5284 = vpack.c.bf16 %v5207, %v5203
        %v5285 = vpack.c.bf16 %v5208, %v5204
        %v5286 = vpack.c.bf16 %v5213, %v5209
        %v5287 = vpack.c.bf16 %v5214, %v5210
        %v5288 = vpack.c.bf16 %v5215, %v5211
        %v5289 = vpack.c.bf16 %v5216, %v5212
        %v5290 = vpack.c.bf16 %v5221, %v5217
        %v5291 = vpack.c.bf16 %v5222, %v5218
        %v5292 = vpack.c.bf16 %v5223, %v5219
        %v5293 = vpack.c.bf16 %v5224, %v5220
        %v5294 = vpack.c.bf16 %v5229, %v5225
        %v5295 = vpack.c.bf16 %v5230, %v5226
        %v5296 = vpack.c.bf16 %v5231, %v5227
        %v5297 = vpack.c.bf16 %v5232, %v5228
        %v5298 = vpack.c.bf16 %v5237, %v5233
        %v5299 = vpack.c.bf16 %v5238, %v5234
        %v5300 = vpack.c.bf16 %v5239, %v5235
        %v5301 = vpack.c.bf16 %v5240, %v5236
        %v5302 = vpack.c.bf16 %v5245, %v5241
        %v5303 = vpack.c.bf16 %v5246, %v5242
        %v5304 = vpack.c.bf16 %v5247, %v5243
        %v5305 = vpack.c.bf16 %v5248, %v5244
        %v5306 = vpack.c.bf16 %v5253, %v5249
        %v5307 = vpack.c.bf16 %v5254, %v5250
        %v5308 = vpack.c.bf16 %v5255, %v5251
        %v5309 = vpack.c.bf16 %v5256, %v5252
        %v5310 = vpack.c.bf16 %v5261, %v5257
        %v5311 = vpack.c.bf16 %v5262, %v5258
        %v5312 = vpack.c.bf16 %v5263, %v5259
        %v5313 = vpack.c.bf16 %v5264, %v5260
        %s5314 = scalar_lea.vmem %s4, 256
        %v5315 = vld [vmem:[%s5314] sm:$0xff]
        %v5316 = vld [vmem:[%s5314 + $0x8] sm:$0xff]
        %v5317 = vld [vmem:[%s5314 + $0x10] sm:$0xff]
        %v5318 = vld [vmem:[%s5314 + $0x18] sm:$0xff]
        %v5319 = vld [vmem:[%s5314 + $0x20] sm:$0xff]
        %v5320 = vld [vmem:[%s5314 + $0x28] sm:$0xff]
        %v5321 = vld [vmem:[%s5314 + $0x30] sm:$0xff]
        %v5322 = vld [vmem:[%s5314 + $0x38] sm:$0xff]
        %v5323 = vld [vmem:[%s5314 + $0x40] sm:$0xff]
        %v5324 = vld [vmem:[%s5314 + $0x48] sm:$0xff]
        %v5325 = vld [vmem:[%s5314 + $0x50] sm:$0xff]
        %v5326 = vld [vmem:[%s5314 + $0x58] sm:$0xff]
        %v5327 = vld [vmem:[%s5314 + $0x60] sm:$0xff]
        %v5328 = vld [vmem:[%s5314 + $0x68] sm:$0xff]
        %v5329 = vld [vmem:[%s5314 + $0x70] sm:$0xff]
        %v5330 = vld [vmem:[%s5314 + $0x78] sm:$0xff]
        %5332 = vset.pattern.permute.xlu0 0
        %5333 = vperm.xlu0 %5332, %v5315
        %v5334 = vpop.permute.xlu0 %5333
        %5337 = vset.pattern.permute.xlu0 0
        %5338 = vperm.xlu0 %5337, %v5316
        %v5339 = vpop.permute.xlu0 %5338
        %5342 = vset.pattern.permute.xlu0 0
        %5343 = vperm.xlu0 %5342, %v5317
        %v5344 = vpop.permute.xlu0 %5343
        %5347 = vset.pattern.permute.xlu0 0
        %5348 = vperm.xlu0 %5347, %v5318
        %v5349 = vpop.permute.xlu0 %5348
        %5352 = vset.pattern.permute.xlu0 0
        %5353 = vperm.xlu0 %5352, %v5319
        %v5354 = vpop.permute.xlu0 %5353
        %5357 = vset.pattern.permute.xlu0 0
        %5358 = vperm.xlu0 %5357, %v5320
        %v5359 = vpop.permute.xlu0 %5358
        %5362 = vset.pattern.permute.xlu0 0
        %5363 = vperm.xlu0 %5362, %v5321
        %v5364 = vpop.permute.xlu0 %5363
        %5367 = vset.pattern.permute.xlu0 0
        %5368 = vperm.xlu0 %5367, %v5322
        %v5369 = vpop.permute.xlu0 %5368
        %5372 = vset.pattern.permute.xlu0 0
        %5373 = vperm.xlu0 %5372, %v5323
        %v5374 = vpop.permute.xlu0 %5373
        %5377 = vset.pattern.permute.xlu0 0
        %5378 = vperm.xlu0 %5377, %v5324
        %v5379 = vpop.permute.xlu0 %5378
        %5382 = vset.pattern.permute.xlu0 0
        %5383 = vperm.xlu0 %5382, %v5325
        %v5384 = vpop.permute.xlu0 %5383
        %5387 = vset.pattern.permute.xlu0 0
        %5388 = vperm.xlu0 %5387, %v5326
        %v5389 = vpop.permute.xlu0 %5388
        %5392 = vset.pattern.permute.xlu0 0
        %5393 = vperm.xlu0 %5392, %v5327
        %v5394 = vpop.permute.xlu0 %5393
        %5397 = vset.pattern.permute.xlu0 0
        %5398 = vperm.xlu0 %5397, %v5328
        %v5399 = vpop.permute.xlu0 %5398
        %5402 = vset.pattern.permute.xlu0 0
        %5403 = vperm.xlu0 %5402, %v5329
        %v5404 = vpop.permute.xlu0 %5403
        %5407 = vset.pattern.permute.xlu0 0
        %5408 = vperm.xlu0 %5407, %v5330
        %v5409 = vpop.permute.xlu0 %5408
        %v5427 = vunpack.c.l.b16 %v5266
        %v5428 = vunpack.c.l.b16 %v5267
        %v5429 = vunpack.c.l.b16 %v5268
        %v5430 = vunpack.c.l.b16 %v5269
        %v5431 = vunpack.c.l.b16 %v5270
        %v5432 = vunpack.c.l.b16 %v5271
        %v5433 = vunpack.c.l.b16 %v5272
        %v5434 = vunpack.c.l.b16 %v5273
        %v5435 = vunpack.c.l.b16 %v5274
        %v5436 = vunpack.c.l.b16 %v5275
        %v5437 = vunpack.c.l.b16 %v5276
        %v5438 = vunpack.c.l.b16 %v5277
        %v5439 = vunpack.c.l.b16 %v5278
        %v5440 = vunpack.c.l.b16 %v5279
        %v5441 = vunpack.c.l.b16 %v5280
        %v5442 = vunpack.c.l.b16 %v5281
        %v5443 = vpack.c.b16 %v5428, %v5427
        %v5444 = vpack.c.b16 %v5430, %v5429
        %v5445 = vpack.c.b16 %v5432, %v5431
        %v5446 = vpack.c.b16 %v5434, %v5433
        %v5447 = vpack.c.b16 %v5436, %v5435
        %v5448 = vpack.c.b16 %v5438, %v5437
        %v5449 = vpack.c.b16 %v5440, %v5439
        %v5450 = vpack.c.b16 %v5442, %v5441
        %5459 = vmatprep.subr.bf16.mxu0 %v5311
        %5460 = vmatpush1.bf16.msra.mxu0 %v5310
        %5461 = vmatprep.subr.bf16.mxu0 %v5307
        %5462 = vmatpush1.bf16.msra.mxu0 %v5306
        %5463 = vmatprep.subr.bf16.mxu0 %v5303
        %5464 = vmatpush1.bf16.msra.mxu0 %v5302
        %5465 = vmatprep.subr.bf16.mxu0 %v5299
        %5466 = vmatpush1.bf16.msra.mxu0 %v5298
        %5467 = vmatprep.subr.bf16.mxu0 %v5295
        %5468 = vmatpush1.bf16.msra.mxu0 %v5294
        %5469 = vmatprep.subr.bf16.mxu0 %v5291
        %5470 = vmatpush1.bf16.msra.mxu0 %v5290
        %5471 = vmatprep.subr.bf16.mxu0 %v5287
        %5472 = vmatpush1.bf16.msra.mxu0 %v5286
        %5473 = vmatprep.subr.bf16.mxu0 %v5283
        %5474 = vmatpush1.bf16.msra.mxu0 %v5282
        %5475 = vmatprep.subr.bf16.mxu0 0
        %5476 = vmatpush2.bf16.msra.mxu0 0
        %5477 = vmatprep.subr.bf16.mxu0 0
        %5478 = vmatpush2.bf16.msra.mxu0 0
        %5479 = vmatprep.subr.bf16.mxu0 0
        %5480 = vmatpush2.bf16.msra.mxu0 0
        %5481 = vmatprep.subr.bf16.mxu0 0
        %5482 = vmatpush2.bf16.msra.mxu0 0
        %5483 = vmatprep.subr.bf16.mxu0 0
        %5484 = vmatpush2.bf16.msra.mxu0 0
        %5485 = vmatprep.subr.bf16.mxu0 0
        %5486 = vmatpush2.bf16.msra.mxu0 0
        %5487 = vmatprep.subr.bf16.mxu0 0
        %5488 = vmatpush2.bf16.msra.mxu0 0
        %5489 = vmatprep.subr.bf16.mxu0 0
        %5490 = vmatpush2.bf16.msra.mxu0 0
        %5491 = vmatprep.mubr.bf16.mxu0 0
        %5492 = vmatmul.mubr.bf16.gmra.mxu0 %v5443
        %v5493 = vpop.f32.mrf.mxu0
        %v5494 = vadd.f32 %v5334, %v5493
        %v5495 = vpop.f32.mrf.mxu0
        %v5496 = vadd.f32 %v5334, %v5495
        %v5497 = vpop.f32.mrf.mxu0
        %v5498 = vadd.f32 %v5339, %v5497
        %v5499 = vpop.f32.mrf.mxu0
        %v5500 = vadd.f32 %v5339, %v5499
        %5501 = vmatprep.mubr.bf16.mxu0 0
        %5502 = vmatmul.mubr.bf16.gmra.mxu0 %v5444
        %v5503 = vpop.f32.mrf.mxu0
        %v5504 = vadd.f32 %v5344, %v5503
        %v5505 = vpop.f32.mrf.mxu0
        %v5506 = vadd.f32 %v5344, %v5505
        %v5507 = vpop.f32.mrf.mxu0
        %v5508 = vadd.f32 %v5349, %v5507
        %v5509 = vpop.f32.mrf.mxu0
        %v5510 = vadd.f32 %v5349, %v5509
        %5511 = vmatprep.mubr.bf16.mxu0 0
        %5512 = vmatmul.mubr.bf16.gmra.mxu0 %v5445
        %v5513 = vpop.f32.mrf.mxu0
        %v5514 = vadd.f32 %v5354, %v5513
        %v5515 = vpop.f32.mrf.mxu0
        %v5516 = vadd.f32 %v5354, %v5515
        %v5517 = vpop.f32.mrf.mxu0
        %v5518 = vadd.f32 %v5359, %v5517
        %v5519 = vpop.f32.mrf.mxu0
        %v5520 = vadd.f32 %v5359, %v5519
        %5521 = vmatprep.mubr.bf16.mxu0 0
        %5522 = vmatmul.mubr.bf16.gmra.mxu0 %v5446
        %v5523 = vpop.f32.mrf.mxu0
        %v5524 = vadd.f32 %v5364, %v5523
        %v5525 = vpop.f32.mrf.mxu0
        %v5526 = vadd.f32 %v5364, %v5525
        %v5527 = vpop.f32.mrf.mxu0
        %v5528 = vadd.f32 %v5369, %v5527
        %v5529 = vpop.f32.mrf.mxu0
        %v5530 = vadd.f32 %v5369, %v5529
        %5531 = vmatprep.mubr.bf16.mxu0 0
        %5532 = vmatmul.mubr.bf16.gmra.mxu0 %v5447
        %v5533 = vpop.f32.mrf.mxu0
        %v5534 = vadd.f32 %v5374, %v5533
        %v5535 = vpop.f32.mrf.mxu0
        %v5536 = vadd.f32 %v5374, %v5535
        %v5537 = vpop.f32.mrf.mxu0
        %v5538 = vadd.f32 %v5379, %v5537
        %v5539 = vpop.f32.mrf.mxu0
        %v5540 = vadd.f32 %v5379, %v5539
        %5541 = vmatprep.mubr.bf16.mxu0 0
        %5542 = vmatmul.mubr.bf16.gmra.mxu0 %v5448
        %v5543 = vpop.f32.mrf.mxu0
        %v5544 = vadd.f32 %v5384, %v5543
        %v5545 = vpop.f32.mrf.mxu0
        %v5546 = vadd.f32 %v5384, %v5545
        %v5547 = vpop.f32.mrf.mxu0
        %v5548 = vadd.f32 %v5389, %v5547
        %v5549 = vpop.f32.mrf.mxu0
        %v5550 = vadd.f32 %v5389, %v5549
        %5551 = vmatprep.mubr.bf16.mxu0 0
        %5552 = vmatmul.mubr.bf16.gmra.mxu0 %v5449
        %v5553 = vpop.f32.mrf.mxu0
        %v5554 = vadd.f32 %v5394, %v5553
        %v5555 = vpop.f32.mrf.mxu0
        %v5556 = vadd.f32 %v5394, %v5555
        %v5557 = vpop.f32.mrf.mxu0
        %v5558 = vadd.f32 %v5399, %v5557
        %v5559 = vpop.f32.mrf.mxu0
        %v5560 = vadd.f32 %v5399, %v5559
        %5561 = vmatprep.mubr.bf16.mxu0 0
        %5562 = vmatmul.mubr.bf16.gmra.mxu0 %v5450
        %v5563 = vpop.f32.mrf.mxu0
        %v5564 = vadd.f32 %v5404, %v5563
        %v5565 = vpop.f32.mrf.mxu0
        %v5566 = vadd.f32 %v5404, %v5565
        %v5567 = vpop.f32.mrf.mxu0
        %v5568 = vadd.f32 %v5409, %v5567
        %v5569 = vpop.f32.mrf.mxu0
        %v5570 = vadd.f32 %v5409, %v5569
        %5571 = vdwg.mxu0
        %5572 = vmatprep.subr.bf16.mxu0 %v5313
        %5573 = vmatpush1.bf16.msra.mxu0 %v5312
        %5574 = vmatprep.subr.bf16.mxu0 %v5309
        %5575 = vmatpush1.bf16.msra.mxu0 %v5308
        %5576 = vmatprep.subr.bf16.mxu0 %v5305
        %5577 = vmatpush1.bf16.msra.mxu0 %v5304
        %5578 = vmatprep.subr.bf16.mxu0 %v5301
        %5579 = vmatpush1.bf16.msra.mxu0 %v5300
        %5580 = vmatprep.subr.bf16.mxu0 %v5297
        %5581 = vmatpush1.bf16.msra.mxu0 %v5296
        %5582 = vmatprep.subr.bf16.mxu0 %v5293
        %5583 = vmatpush1.bf16.msra.mxu0 %v5292
        %5584 = vmatprep.subr.bf16.mxu0 %v5289
        %5585 = vmatpush1.bf16.msra.mxu0 %v5288
        %5586 = vmatprep.subr.bf16.mxu0 %v5285
        %5587 = vmatpush1.bf16.msra.mxu0 %v5284
        %5588 = vmatprep.subr.bf16.mxu0 0
        %5589 = vmatpush2.bf16.msra.mxu0 0
        %5590 = vmatprep.subr.bf16.mxu0 0
        %5591 = vmatpush2.bf16.msra.mxu0 0
        %5592 = vmatprep.subr.bf16.mxu0 0
        %5593 = vmatpush2.bf16.msra.mxu0 0
        %5594 = vmatprep.subr.bf16.mxu0 0
        %5595 = vmatpush2.bf16.msra.mxu0 0
        %5596 = vmatprep.subr.bf16.mxu0 0
        %5597 = vmatpush2.bf16.msra.mxu0 0
        %5598 = vmatprep.subr.bf16.mxu0 0
        %5599 = vmatpush2.bf16.msra.mxu0 0
        %5600 = vmatprep.subr.bf16.mxu0 0
        %5601 = vmatpush2.bf16.msra.mxu0 0
        %5602 = vmatprep.subr.bf16.mxu0 0
        %5603 = vmatpush2.bf16.msra.mxu0 0
        %5604 = vmatprep.mubr.bf16.mxu0 0
        %5605 = vmatmul.mubr.bf16.gmra.mxu0 %v5443
        %v5606 = vpop.f32.mrf.mxu0
        %v5607 = vadd.f32 %v5334, %v5606
        %v5608 = vpop.f32.mrf.mxu0
        %v5609 = vadd.f32 %v5334, %v5608
        %v5610 = vpop.f32.mrf.mxu0
        %v5611 = vadd.f32 %v5339, %v5610
        %v5612 = vpop.f32.mrf.mxu0
        %v5613 = vadd.f32 %v5339, %v5612
        %5614 = vmatprep.mubr.bf16.mxu0 0
        %5615 = vmatmul.mubr.bf16.gmra.mxu0 %v5444
        %v5616 = vpop.f32.mrf.mxu0
        %v5617 = vadd.f32 %v5344, %v5616
        %v5618 = vpop.f32.mrf.mxu0
        %v5619 = vadd.f32 %v5344, %v5618
        %v5620 = vpop.f32.mrf.mxu0
        %v5621 = vadd.f32 %v5349, %v5620
        %v5622 = vpop.f32.mrf.mxu0
        %v5623 = vadd.f32 %v5349, %v5622
        %5624 = vmatprep.mubr.bf16.mxu0 0
        %5625 = vmatmul.mubr.bf16.gmra.mxu0 %v5445
        %v5626 = vpop.f32.mrf.mxu0
        %v5627 = vadd.f32 %v5354, %v5626
        %v5628 = vpop.f32.mrf.mxu0
        %v5629 = vadd.f32 %v5354, %v5628
        %v5630 = vpop.f32.mrf.mxu0
        %v5631 = vadd.f32 %v5359, %v5630
        %v5632 = vpop.f32.mrf.mxu0
        %v5633 = vadd.f32 %v5359, %v5632
        %5634 = vmatprep.mubr.bf16.mxu0 0
        %5635 = vmatmul.mubr.bf16.gmra.mxu0 %v5446
        %v5636 = vpop.f32.mrf.mxu0
        %v5637 = vadd.f32 %v5364, %v5636
        %v5638 = vpop.f32.mrf.mxu0
        %v5639 = vadd.f32 %v5364, %v5638
        %v5640 = vpop.f32.mrf.mxu0
        %v5641 = vadd.f32 %v5369, %v5640
        %v5642 = vpop.f32.mrf.mxu0
        %v5643 = vadd.f32 %v5369, %v5642
        %5644 = vmatprep.mubr.bf16.mxu0 0
        %5645 = vmatmul.mubr.bf16.gmra.mxu0 %v5447
        %v5646 = vpop.f32.mrf.mxu0
        %v5647 = vadd.f32 %v5374, %v5646
        %v5648 = vpop.f32.mrf.mxu0
        %v5649 = vadd.f32 %v5374, %v5648
        %v5650 = vpop.f32.mrf.mxu0
        %v5651 = vadd.f32 %v5379, %v5650
        %v5652 = vpop.f32.mrf.mxu0
        %v5653 = vadd.f32 %v5379, %v5652
        %5654 = vmatprep.mubr.bf16.mxu0 0
        %5655 = vmatmul.mubr.bf16.gmra.mxu0 %v5448
        %v5656 = vpop.f32.mrf.mxu0
        %v5657 = vadd.f32 %v5384, %v5656
        %v5658 = vpop.f32.mrf.mxu0
        %v5659 = vadd.f32 %v5384, %v5658
        %v5660 = vpop.f32.mrf.mxu0
        %v5661 = vadd.f32 %v5389, %v5660
        %v5662 = vpop.f32.mrf.mxu0
        %v5663 = vadd.f32 %v5389, %v5662
        %5664 = vmatprep.mubr.bf16.mxu0 0
        %5665 = vmatmul.mubr.bf16.gmra.mxu0 %v5449
        %v5666 = vpop.f32.mrf.mxu0
        %v5667 = vadd.f32 %v5394, %v5666
        %v5668 = vpop.f32.mrf.mxu0
        %v5669 = vadd.f32 %v5394, %v5668
        %v5670 = vpop.f32.mrf.mxu0
        %v5671 = vadd.f32 %v5399, %v5670
        %v5672 = vpop.f32.mrf.mxu0
        %v5673 = vadd.f32 %v5399, %v5672
        %5674 = vmatprep.mubr.bf16.mxu0 0
        %5675 = vmatmul.mubr.bf16.gmra.mxu0 %v5450
        %v5676 = vpop.f32.mrf.mxu0
        %v5677 = vadd.f32 %v5404, %v5676
        %v5678 = vpop.f32.mrf.mxu0
        %v5679 = vadd.f32 %v5404, %v5678
        %v5680 = vpop.f32.mrf.mxu0
        %v5681 = vadd.f32 %v5409, %v5680
        %v5682 = vpop.f32.mrf.mxu0
        %v5683 = vadd.f32 %v5409, %v5682
        %5684 = vdwg.mxu0
        %v5685 = vmul.f32 %v5494, 0.15915494
        %v5686 = vmul.f32 %v5496, 0.15915494
        %v5687 = vmul.f32 %v5607, 0.15915494
        %v5688 = vmul.f32 %v5609, 0.15915494
        %v5689 = vmul.f32 %v5498, 0.15915494
        %v5690 = vmul.f32 %v5500, 0.15915494
        %v5691 = vmul.f32 %v5611, 0.15915494
        %v5692 = vmul.f32 %v5613, 0.15915494
        %v5693 = vmul.f32 %v5504, 0.15915494
        %v5694 = vmul.f32 %v5506, 0.15915494
        %v5695 = vmul.f32 %v5617, 0.15915494
        %v5696 = vmul.f32 %v5619, 0.15915494
        %v5697 = vmul.f32 %v5508, 0.15915494
        %v5698 = vmul.f32 %v5510, 0.15915494
        %v5699 = vmul.f32 %v5621, 0.15915494
        %v5700 = vmul.f32 %v5623, 0.15915494
        %v5701 = vmul.f32 %v5514, 0.15915494
        %v5702 = vmul.f32 %v5516, 0.15915494
        %v5703 = vmul.f32 %v5627, 0.15915494
        %v5704 = vmul.f32 %v5629, 0.15915494
        %v5705 = vmul.f32 %v5518, 0.15915494
        %v5706 = vmul.f32 %v5520, 0.15915494
        %v5707 = vmul.f32 %v5631, 0.15915494
        %v5708 = vmul.f32 %v5633, 0.15915494
        %v5709 = vmul.f32 %v5524, 0.15915494
        %v5710 = vmul.f32 %v5526, 0.15915494
        %v5711 = vmul.f32 %v5637, 0.15915494
        %v5712 = vmul.f32 %v5639, 0.15915494
        %v5713 = vmul.f32 %v5528, 0.15915494
        %v5714 = vmul.f32 %v5530, 0.15915494
        %v5715 = vmul.f32 %v5641, 0.15915494
        %v5716 = vmul.f32 %v5643, 0.15915494
        %v5717 = vmul.f32 %v5534, 0.15915494
        %v5718 = vmul.f32 %v5536, 0.15915494
        %v5719 = vmul.f32 %v5647, 0.15915494
        %v5720 = vmul.f32 %v5649, 0.15915494
        %v5721 = vmul.f32 %v5538, 0.15915494
        %v5722 = vmul.f32 %v5540, 0.15915494
        %v5723 = vmul.f32 %v5651, 0.15915494
        %v5724 = vmul.f32 %v5653, 0.15915494
        %v5725 = vmul.f32 %v5544, 0.15915494
        %v5726 = vmul.f32 %v5546, 0.15915494
        %v5727 = vmul.f32 %v5657, 0.15915494
        %v5728 = vmul.f32 %v5659, 0.15915494
        %v5729 = vmul.f32 %v5548, 0.15915494
        %v5730 = vmul.f32 %v5550, 0.15915494
        %v5731 = vmul.f32 %v5661, 0.15915494
        %v5732 = vmul.f32 %v5663, 0.15915494
        %v5733 = vmul.f32 %v5554, 0.15915494
        %v5734 = vmul.f32 %v5556, 0.15915494
        %v5735 = vmul.f32 %v5667, 0.15915494
        %v5736 = vmul.f32 %v5669, 0.15915494
        %v5737 = vmul.f32 %v5558, 0.15915494
        %v5738 = vmul.f32 %v5560, 0.15915494
        %v5739 = vmul.f32 %v5671, 0.15915494
        %v5740 = vmul.f32 %v5673, 0.15915494
        %v5741 = vmul.f32 %v5564, 0.15915494
        %v5742 = vmul.f32 %v5566, 0.15915494
        %v5743 = vmul.f32 %v5677, 0.15915494
        %v5744 = vmul.f32 %v5679, 0.15915494
        %v5745 = vmul.f32 %v5568, 0.15915494
        %v5746 = vmul.f32 %v5570, 0.15915494
        %v5747 = vmul.f32 %v5681, 0.15915494
        %v5748 = vmul.f32 %v5683, 0.15915494
        %v5749 = vadd.f32 %v5685, 0.5
        %v5750 = vadd.f32 %v5686, 0.5
        %v5751 = vadd.f32 %v5687, 0.5
        %v5752 = vadd.f32 %v5688, 0.5
        %v5753 = vadd.f32 %v5689, 0.5
        %v5754 = vadd.f32 %v5690, 0.5
        %v5755 = vadd.f32 %v5691, 0.5
        %v5756 = vadd.f32 %v5692, 0.5
        %v5757 = vadd.f32 %v5693, 0.5
        %v5758 = vadd.f32 %v5694, 0.5
        %v5759 = vadd.f32 %v5695, 0.5
        %v5760 = vadd.f32 %v5696, 0.5
        %v5761 = vadd.f32 %v5697, 0.5
        %v5762 = vadd.f32 %v5698, 0.5
        %v5763 = vadd.f32 %v5699, 0.5
        %v5764 = vadd.f32 %v5700, 0.5
        %v5765 = vadd.f32 %v5701, 0.5
        %v5766 = vadd.f32 %v5702, 0.5
        %v5767 = vadd.f32 %v5703, 0.5
        %v5768 = vadd.f32 %v5704, 0.5
        %v5769 = vadd.f32 %v5705, 0.5
        %v5770 = vadd.f32 %v5706, 0.5
        %v5771 = vadd.f32 %v5707, 0.5
        %v5772 = vadd.f32 %v5708, 0.5
        %v5773 = vadd.f32 %v5709, 0.5
        %v5774 = vadd.f32 %v5710, 0.5
        %v5775 = vadd.f32 %v5711, 0.5
        %v5776 = vadd.f32 %v5712, 0.5
        %v5777 = vadd.f32 %v5713, 0.5
        %v5778 = vadd.f32 %v5714, 0.5
        %v5779 = vadd.f32 %v5715, 0.5
        %v5780 = vadd.f32 %v5716, 0.5
        %v5781 = vadd.f32 %v5717, 0.5
        %v5782 = vadd.f32 %v5718, 0.5
        %v5783 = vadd.f32 %v5719, 0.5
        %v5784 = vadd.f32 %v5720, 0.5
        %v5785 = vadd.f32 %v5721, 0.5
        %v5786 = vadd.f32 %v5722, 0.5
        %v5787 = vadd.f32 %v5723, 0.5
        %v5788 = vadd.f32 %v5724, 0.5
        %v5789 = vadd.f32 %v5725, 0.5
        %v5790 = vadd.f32 %v5726, 0.5
        %v5791 = vadd.f32 %v5727, 0.5
        %v5792 = vadd.f32 %v5728, 0.5
        %v5793 = vadd.f32 %v5729, 0.5
        %v5794 = vadd.f32 %v5730, 0.5
        %v5795 = vadd.f32 %v5731, 0.5
        %v5796 = vadd.f32 %v5732, 0.5
        %v5797 = vadd.f32 %v5733, 0.5
        %v5798 = vadd.f32 %v5734, 0.5
        %v5799 = vadd.f32 %v5735, 0.5
        %v5800 = vadd.f32 %v5736, 0.5
        %v5801 = vadd.f32 %v5737, 0.5
        %v5802 = vadd.f32 %v5738, 0.5
        %v5803 = vadd.f32 %v5739, 0.5
        %v5804 = vadd.f32 %v5740, 0.5
        %v5805 = vadd.f32 %v5741, 0.5
        %v5806 = vadd.f32 %v5742, 0.5
        %v5807 = vadd.f32 %v5743, 0.5
        %v5808 = vadd.f32 %v5744, 0.5
        %v5809 = vadd.f32 %v5745, 0.5
        %v5810 = vadd.f32 %v5746, 0.5
        %v5811 = vadd.f32 %v5747, 0.5
        %v5812 = vadd.f32 %v5748, 0.5
        %v5813 = vfloor.f32 %v5749
        %v5814 = vfloor.f32 %v5750
        %v5815 = vfloor.f32 %v5751
        %v5816 = vfloor.f32 %v5752
        %v5817 = vfloor.f32 %v5753
        %v5818 = vfloor.f32 %v5754
        %v5819 = vfloor.f32 %v5755
        %v5820 = vfloor.f32 %v5756
        %v5821 = vfloor.f32 %v5757
        %v5822 = vfloor.f32 %v5758
        %v5823 = vfloor.f32 %v5759
        %v5824 = vfloor.f32 %v5760
        %v5825 = vfloor.f32 %v5761
        %v5826 = vfloor.f32 %v5762
        %v5827 = vfloor.f32 %v5763
        %v5828 = vfloor.f32 %v5764
        %v5829 = vfloor.f32 %v5765
        %v5830 = vfloor.f32 %v5766
        %v5831 = vfloor.f32 %v5767
        %v5832 = vfloor.f32 %v5768
        %v5833 = vfloor.f32 %v5769
        %v5834 = vfloor.f32 %v5770
        %v5835 = vfloor.f32 %v5771
        %v5836 = vfloor.f32 %v5772
        %v5837 = vfloor.f32 %v5773
        %v5838 = vfloor.f32 %v5774
        %v5839 = vfloor.f32 %v5775
        %v5840 = vfloor.f32 %v5776
        %v5841 = vfloor.f32 %v5777
        %v5842 = vfloor.f32 %v5778
        %v5843 = vfloor.f32 %v5779
        %v5844 = vfloor.f32 %v5780
        %v5845 = vfloor.f32 %v5781
        %v5846 = vfloor.f32 %v5782
        %v5847 = vfloor.f32 %v5783
        %v5848 = vfloor.f32 %v5784
        %v5849 = vfloor.f32 %v5785
        %v5850 = vfloor.f32 %v5786
        %v5851 = vfloor.f32 %v5787
        %v5852 = vfloor.f32 %v5788
        %v5853 = vfloor.f32 %v5789
        %v5854 = vfloor.f32 %v5790
        %v5855 = vfloor.f32 %v5791
        %v5856 = vfloor.f32 %v5792
        %v5857 = vfloor.f32 %v5793
        %v5858 = vfloor.f32 %v5794
        %v5859 = vfloor.f32 %v5795
        %v5860 = vfloor.f32 %v5796
        %v5861 = vfloor.f32 %v5797
        %v5862 = vfloor.f32 %v5798
        %v5863 = vfloor.f32 %v5799
        %v5864 = vfloor.f32 %v5800
        %v5865 = vfloor.f32 %v5801
        %v5866 = vfloor.f32 %v5802
        %v5867 = vfloor.f32 %v5803
        %v5868 = vfloor.f32 %v5804
        %v5869 = vfloor.f32 %v5805
        %v5870 = vfloor.f32 %v5806
        %v5871 = vfloor.f32 %v5807
        %v5872 = vfloor.f32 %v5808
        %v5873 = vfloor.f32 %v5809
        %v5874 = vfloor.f32 %v5810
        %v5875 = vfloor.f32 %v5811
        %v5876 = vfloor.f32 %v5812
        %v5877 = vmul.f32 %v5813, 6.2831855
        %v5878 = vmul.f32 %v5814, 6.2831855
        %v5879 = vmul.f32 %v5815, 6.2831855
        %v5880 = vmul.f32 %v5816, 6.2831855
        %v5881 = vmul.f32 %v5817, 6.2831855
        %v5882 = vmul.f32 %v5818, 6.2831855
        %v5883 = vmul.f32 %v5819, 6.2831855
        %v5884 = vmul.f32 %v5820, 6.2831855
        %v5885 = vmul.f32 %v5821, 6.2831855
        %v5886 = vmul.f32 %v5822, 6.2831855
        %v5887 = vmul.f32 %v5823, 6.2831855
        %v5888 = vmul.f32 %v5824, 6.2831855
        %v5889 = vmul.f32 %v5825, 6.2831855
        %v5890 = vmul.f32 %v5826, 6.2831855
        %v5891 = vmul.f32 %v5827, 6.2831855
        %v5892 = vmul.f32 %v5828, 6.2831855
        %v5893 = vmul.f32 %v5829, 6.2831855
        %v5894 = vmul.f32 %v5830, 6.2831855
        %v5895 = vmul.f32 %v5831, 6.2831855
        %v5896 = vmul.f32 %v5832, 6.2831855
        %v5897 = vmul.f32 %v5833, 6.2831855
        %v5898 = vmul.f32 %v5834, 6.2831855
        %v5899 = vmul.f32 %v5835, 6.2831855
        %v5900 = vmul.f32 %v5836, 6.2831855
        %v5901 = vmul.f32 %v5837, 6.2831855
        %v5902 = vmul.f32 %v5838, 6.2831855
        %v5903 = vmul.f32 %v5839, 6.2831855
        %v5904 = vmul.f32 %v5840, 6.2831855
        %v5905 = vmul.f32 %v5841, 6.2831855
        %v5906 = vmul.f32 %v5842, 6.2831855
        %v5907 = vmul.f32 %v5843, 6.2831855
        %v5908 = vmul.f32 %v5844, 6.2831855
        %v5909 = vmul.f32 %v5845, 6.2831855
        %v5910 = vmul.f32 %v5846, 6.2831855
        %v5911 = vmul.f32 %v5847, 6.2831855
        %v5912 = vmul.f32 %v5848, 6.2831855
        %v5913 = vmul.f32 %v5849, 6.2831855
        %v5914 = vmul.f32 %v5850, 6.2831855
        %v5915 = vmul.f32 %v5851, 6.2831855
        %v5916 = vmul.f32 %v5852, 6.2831855
        %v5917 = vmul.f32 %v5853, 6.2831855
        %v5918 = vmul.f32 %v5854, 6.2831855
        %v5919 = vmul.f32 %v5855, 6.2831855
        %v5920 = vmul.f32 %v5856, 6.2831855
        %v5921 = vmul.f32 %v5857, 6.2831855
        %v5922 = vmul.f32 %v5858, 6.2831855
        %v5923 = vmul.f32 %v5859, 6.2831855
        %v5924 = vmul.f32 %v5860, 6.2831855
        %v5925 = vmul.f32 %v5861, 6.2831855
        %v5926 = vmul.f32 %v5862, 6.2831855
        %v5927 = vmul.f32 %v5863, 6.2831855
        %v5928 = vmul.f32 %v5864, 6.2831855
        %v5929 = vmul.f32 %v5865, 6.2831855
        %v5930 = vmul.f32 %v5866, 6.2831855
        %v5931 = vmul.f32 %v5867, 6.2831855
        %v5932 = vmul.f32 %v5868, 6.2831855
        %v5933 = vmul.f32 %v5869, 6.2831855
        %v5934 = vmul.f32 %v5870, 6.2831855
        %v5935 = vmul.f32 %v5871, 6.2831855
        %v5936 = vmul.f32 %v5872, 6.2831855
        %v5937 = vmul.f32 %v5873, 6.2831855
        %v5938 = vmul.f32 %v5874, 6.2831855
        %v5939 = vmul.f32 %v5875, 6.2831855
        %v5940 = vmul.f32 %v5876, 6.2831855
        %v5941 = vsub.f32 %v5494, %v5877
        %v5942 = vsub.f32 %v5496, %v5878
        %v5943 = vsub.f32 %v5607, %v5879
        %v5944 = vsub.f32 %v5609, %v5880
        %v5945 = vsub.f32 %v5498, %v5881
        %v5946 = vsub.f32 %v5500, %v5882
        %v5947 = vsub.f32 %v5611, %v5883
        %v5948 = vsub.f32 %v5613, %v5884
        %v5949 = vsub.f32 %v5504, %v5885
        %v5950 = vsub.f32 %v5506, %v5886
        %v5951 = vsub.f32 %v5617, %v5887
        %v5952 = vsub.f32 %v5619, %v5888
        %v5953 = vsub.f32 %v5508, %v5889
        %v5954 = vsub.f32 %v5510, %v5890
        %v5955 = vsub.f32 %v5621, %v5891
        %v5956 = vsub.f32 %v5623, %v5892
        %v5957 = vsub.f32 %v5514, %v5893
        %v5958 = vsub.f32 %v5516, %v5894
        %v5959 = vsub.f32 %v5627, %v5895
        %v5960 = vsub.f32 %v5629, %v5896
        %v5961 = vsub.f32 %v5518, %v5897
        %v5962 = vsub.f32 %v5520, %v5898
        %v5963 = vsub.f32 %v5631, %v5899
        %v5964 = vsub.f32 %v5633, %v5900
        %v5965 = vsub.f32 %v5524, %v5901
        %v5966 = vsub.f32 %v5526, %v5902
        %v5967 = vsub.f32 %v5637, %v5903
        %v5968 = vsub.f32 %v5639, %v5904
        %v5969 = vsub.f32 %v5528, %v5905
        %v5970 = vsub.f32 %v5530, %v5906
        %v5971 = vsub.f32 %v5641, %v5907
        %v5972 = vsub.f32 %v5643, %v5908
        %v5973 = vsub.f32 %v5534, %v5909
        %v5974 = vsub.f32 %v5536, %v5910
        %v5975 = vsub.f32 %v5647, %v5911
        %v5976 = vsub.f32 %v5649, %v5912
        %v5977 = vsub.f32 %v5538, %v5913
        %v5978 = vsub.f32 %v5540, %v5914
        %v5979 = vsub.f32 %v5651, %v5915
        %v5980 = vsub.f32 %v5653, %v5916
        %v5981 = vsub.f32 %v5544, %v5917
        %v5982 = vsub.f32 %v5546, %v5918
        %v5983 = vsub.f32 %v5657, %v5919
        %v5984 = vsub.f32 %v5659, %v5920
        %v5985 = vsub.f32 %v5548, %v5921
        %v5986 = vsub.f32 %v5550, %v5922
        %v5987 = vsub.f32 %v5661, %v5923
        %v5988 = vsub.f32 %v5663, %v5924
        %v5989 = vsub.f32 %v5554, %v5925
        %v5990 = vsub.f32 %v5556, %v5926
        %v5991 = vsub.f32 %v5667, %v5927
        %v5992 = vsub.f32 %v5669, %v5928
        %v5993 = vsub.f32 %v5558, %v5929
        %v5994 = vsub.f32 %v5560, %v5930
        %v5995 = vsub.f32 %v5671, %v5931
        %v5996 = vsub.f32 %v5673, %v5932
        %v5997 = vsub.f32 %v5564, %v5933
        %v5998 = vsub.f32 %v5566, %v5934
        %v5999 = vsub.f32 %v5677, %v5935
        %v6000 = vsub.f32 %v5679, %v5936
        %v6001 = vsub.f32 %v5568, %v5937
        %v6002 = vsub.f32 %v5570, %v5938
        %v6003 = vsub.f32 %v5681, %v5939
        %v6004 = vsub.f32 %v5683, %v5940
        %vm6005 = vcmp.gt.f32.partialorder %v5941, 1.5707964
        %vm6006 = vcmp.gt.f32.partialorder %v5942, 1.5707964
        %vm6007 = vcmp.gt.f32.partialorder %v5943, 1.5707964
        %vm6008 = vcmp.gt.f32.partialorder %v5944, 1.5707964
        %vm6009 = vcmp.gt.f32.partialorder %v5945, 1.5707964
        %vm6010 = vcmp.gt.f32.partialorder %v5946, 1.5707964
        %vm6011 = vcmp.gt.f32.partialorder %v5947, 1.5707964
        %vm6012 = vcmp.gt.f32.partialorder %v5948, 1.5707964
        %vm6013 = vcmp.gt.f32.partialorder %v5949, 1.5707964
        %vm6014 = vcmp.gt.f32.partialorder %v5950, 1.5707964
        %vm6015 = vcmp.gt.f32.partialorder %v5951, 1.5707964
        %vm6016 = vcmp.gt.f32.partialorder %v5952, 1.5707964
        %vm6017 = vcmp.gt.f32.partialorder %v5953, 1.5707964
        %vm6018 = vcmp.gt.f32.partialorder %v5954, 1.5707964
        %vm6019 = vcmp.gt.f32.partialorder %v5955, 1.5707964
        %vm6020 = vcmp.gt.f32.partialorder %v5956, 1.5707964
        %vm6021 = vcmp.gt.f32.partialorder %v5957, 1.5707964
        %vm6022 = vcmp.gt.f32.partialorder %v5958, 1.5707964
        %vm6023 = vcmp.gt.f32.partialorder %v5959, 1.5707964
        %vm6024 = vcmp.gt.f32.partialorder %v5960, 1.5707964
        %vm6025 = vcmp.gt.f32.partialorder %v5961, 1.5707964
        %vm6026 = vcmp.gt.f32.partialorder %v5962, 1.5707964
        %vm6027 = vcmp.gt.f32.partialorder %v5963, 1.5707964
        %vm6028 = vcmp.gt.f32.partialorder %v5964, 1.5707964
        %vm6029 = vcmp.gt.f32.partialorder %v5965, 1.5707964
        %vm6030 = vcmp.gt.f32.partialorder %v5966, 1.5707964
        %vm6031 = vcmp.gt.f32.partialorder %v5967, 1.5707964
        %vm6032 = vcmp.gt.f32.partialorder %v5968, 1.5707964
        %vm6033 = vcmp.gt.f32.partialorder %v5969, 1.5707964
        %vm6034 = vcmp.gt.f32.partialorder %v5970, 1.5707964
        %vm6035 = vcmp.gt.f32.partialorder %v5971, 1.5707964
        %vm6036 = vcmp.gt.f32.partialorder %v5972, 1.5707964
        %vm6037 = vcmp.gt.f32.partialorder %v5973, 1.5707964
        %vm6038 = vcmp.gt.f32.partialorder %v5974, 1.5707964
        %vm6039 = vcmp.gt.f32.partialorder %v5975, 1.5707964
        %vm6040 = vcmp.gt.f32.partialorder %v5976, 1.5707964
        %vm6041 = vcmp.gt.f32.partialorder %v5977, 1.5707964
        %vm6042 = vcmp.gt.f32.partialorder %v5978, 1.5707964
        %vm6043 = vcmp.gt.f32.partialorder %v5979, 1.5707964
        %vm6044 = vcmp.gt.f32.partialorder %v5980, 1.5707964
        %vm6045 = vcmp.gt.f32.partialorder %v5981, 1.5707964
        %vm6046 = vcmp.gt.f32.partialorder %v5982, 1.5707964
        %vm6047 = vcmp.gt.f32.partialorder %v5983, 1.5707964
        %vm6048 = vcmp.gt.f32.partialorder %v5984, 1.5707964
        %vm6049 = vcmp.gt.f32.partialorder %v5985, 1.5707964
        %vm6050 = vcmp.gt.f32.partialorder %v5986, 1.5707964
        %vm6051 = vcmp.gt.f32.partialorder %v5987, 1.5707964
        %vm6052 = vcmp.gt.f32.partialorder %v5988, 1.5707964
        %vm6053 = vcmp.gt.f32.partialorder %v5989, 1.5707964
        %vm6054 = vcmp.gt.f32.partialorder %v5990, 1.5707964
        %vm6055 = vcmp.gt.f32.partialorder %v5991, 1.5707964
        %vm6056 = vcmp.gt.f32.partialorder %v5992, 1.5707964
        %vm6057 = vcmp.gt.f32.partialorder %v5993, 1.5707964
        %vm6058 = vcmp.gt.f32.partialorder %v5994, 1.5707964
        %vm6059 = vcmp.gt.f32.partialorder %v5995, 1.5707964
        %vm6060 = vcmp.gt.f32.partialorder %v5996, 1.5707964
        %vm6061 = vcmp.gt.f32.partialorder %v5997, 1.5707964
        %vm6062 = vcmp.gt.f32.partialorder %v5998, 1.5707964
        %vm6063 = vcmp.gt.f32.partialorder %v5999, 1.5707964
        %vm6064 = vcmp.gt.f32.partialorder %v6000, 1.5707964
        %vm6065 = vcmp.gt.f32.partialorder %v6001, 1.5707964
        %vm6066 = vcmp.gt.f32.partialorder %v6002, 1.5707964
        %vm6067 = vcmp.gt.f32.partialorder %v6003, 1.5707964
        %vm6068 = vcmp.gt.f32.partialorder %v6004, 1.5707964
        %v6069 = vsub.f32 3.1415927, %v5941
        %v6070 = vsub.f32 3.1415927, %v5942
        %v6071 = vsub.f32 3.1415927, %v5943
        %v6072 = vsub.f32 3.1415927, %v5944
        %v6073 = vsub.f32 3.1415927, %v5945
        %v6074 = vsub.f32 3.1415927, %v5946
        %v6075 = vsub.f32 3.1415927, %v5947
        %v6076 = vsub.f32 3.1415927, %v5948
        %v6077 = vsub.f32 3.1415927, %v5949
        %v6078 = vsub.f32 3.1415927, %v5950
        %v6079 = vsub.f32 3.1415927, %v5951
        %v6080 = vsub.f32 3.1415927, %v5952
        %v6081 = vsub.f32 3.1415927, %v5953
        %v6082 = vsub.f32 3.1415927, %v5954
        %v6083 = vsub.f32 3.1415927, %v5955
        %v6084 = vsub.f32 3.1415927, %v5956
        %v6085 = vsub.f32 3.1415927, %v5957
        %v6086 = vsub.f32 3.1415927, %v5958
        %v6087 = vsub.f32 3.1415927, %v5959
        %v6088 = vsub.f32 3.1415927, %v5960
        %v6089 = vsub.f32 3.1415927, %v5961
        %v6090 = vsub.f32 3.1415927, %v5962
        %v6091 = vsub.f32 3.1415927, %v5963
        %v6092 = vsub.f32 3.1415927, %v5964
        %v6093 = vsub.f32 3.1415927, %v5965
        %v6094 = vsub.f32 3.1415927, %v5966
        %v6095 = vsub.f32 3.1415927, %v5967
        %v6096 = vsub.f32 3.1415927, %v5968
        %v6097 = vsub.f32 3.1415927, %v5969
        %v6098 = vsub.f32 3.1415927, %v5970
        %v6099 = vsub.f32 3.1415927, %v5971
        %v6100 = vsub.f32 3.1415927, %v5972
        %v6101 = vsub.f32 3.1415927, %v5973
        %v6102 = vsub.f32 3.1415927, %v5974
        %v6103 = vsub.f32 3.1415927, %v5975
        %v6104 = vsub.f32 3.1415927, %v5976
        %v6105 = vsub.f32 3.1415927, %v5977
        %v6106 = vsub.f32 3.1415927, %v5978
        %v6107 = vsub.f32 3.1415927, %v5979
        %v6108 = vsub.f32 3.1415927, %v5980
        %v6109 = vsub.f32 3.1415927, %v5981
        %v6110 = vsub.f32 3.1415927, %v5982
        %v6111 = vsub.f32 3.1415927, %v5983
        %v6112 = vsub.f32 3.1415927, %v5984
        %v6113 = vsub.f32 3.1415927, %v5985
        %v6114 = vsub.f32 3.1415927, %v5986
        %v6115 = vsub.f32 3.1415927, %v5987
        %v6116 = vsub.f32 3.1415927, %v5988
        %v6117 = vsub.f32 3.1415927, %v5989
        %v6118 = vsub.f32 3.1415927, %v5990
        %v6119 = vsub.f32 3.1415927, %v5991
        %v6120 = vsub.f32 3.1415927, %v5992
        %v6121 = vsub.f32 3.1415927, %v5993
        %v6122 = vsub.f32 3.1415927, %v5994
        %v6123 = vsub.f32 3.1415927, %v5995
        %v6124 = vsub.f32 3.1415927, %v5996
        %v6125 = vsub.f32 3.1415927, %v5997
        %v6126 = vsub.f32 3.1415927, %v5998
        %v6127 = vsub.f32 3.1415927, %v5999
        %v6128 = vsub.f32 3.1415927, %v6000
        %v6129 = vsub.f32 3.1415927, %v6001
        %v6130 = vsub.f32 3.1415927, %v6002
        %v6131 = vsub.f32 3.1415927, %v6003
        %v6132 = vsub.f32 3.1415927, %v6004
        %vm6133 = vcmp.lt.f32.partialorder %v5941, -1.5707964
        %vm6134 = vcmp.lt.f32.partialorder %v5942, -1.5707964
        %vm6135 = vcmp.lt.f32.partialorder %v5943, -1.5707964
        %vm6136 = vcmp.lt.f32.partialorder %v5944, -1.5707964
        %vm6137 = vcmp.lt.f32.partialorder %v5945, -1.5707964
        %vm6138 = vcmp.lt.f32.partialorder %v5946, -1.5707964
        %vm6139 = vcmp.lt.f32.partialorder %v5947, -1.5707964
        %vm6140 = vcmp.lt.f32.partialorder %v5948, -1.5707964
        %vm6141 = vcmp.lt.f32.partialorder %v5949, -1.5707964
        %vm6142 = vcmp.lt.f32.partialorder %v5950, -1.5707964
        %vm6143 = vcmp.lt.f32.partialorder %v5951, -1.5707964
        %vm6144 = vcmp.lt.f32.partialorder %v5952, -1.5707964
        %vm6145 = vcmp.lt.f32.partialorder %v5953, -1.5707964
        %vm6146 = vcmp.lt.f32.partialorder %v5954, -1.5707964
        %vm6147 = vcmp.lt.f32.partialorder %v5955, -1.5707964
        %vm6148 = vcmp.lt.f32.partialorder %v5956, -1.5707964
        %vm6149 = vcmp.lt.f32.partialorder %v5957, -1.5707964
        %vm6150 = vcmp.lt.f32.partialorder %v5958, -1.5707964
        %vm6151 = vcmp.lt.f32.partialorder %v5959, -1.5707964
        %vm6152 = vcmp.lt.f32.partialorder %v5960, -1.5707964
        %vm6153 = vcmp.lt.f32.partialorder %v5961, -1.5707964
        %vm6154 = vcmp.lt.f32.partialorder %v5962, -1.5707964
        %vm6155 = vcmp.lt.f32.partialorder %v5963, -1.5707964
        %vm6156 = vcmp.lt.f32.partialorder %v5964, -1.5707964
        %vm6157 = vcmp.lt.f32.partialorder %v5965, -1.5707964
        %vm6158 = vcmp.lt.f32.partialorder %v5966, -1.5707964
        %vm6159 = vcmp.lt.f32.partialorder %v5967, -1.5707964
        %vm6160 = vcmp.lt.f32.partialorder %v5968, -1.5707964
        %vm6161 = vcmp.lt.f32.partialorder %v5969, -1.5707964
        %vm6162 = vcmp.lt.f32.partialorder %v5970, -1.5707964
        %vm6163 = vcmp.lt.f32.partialorder %v5971, -1.5707964
        %vm6164 = vcmp.lt.f32.partialorder %v5972, -1.5707964
        %vm6165 = vcmp.lt.f32.partialorder %v5973, -1.5707964
        %vm6166 = vcmp.lt.f32.partialorder %v5974, -1.5707964
        %vm6167 = vcmp.lt.f32.partialorder %v5975, -1.5707964
        %vm6168 = vcmp.lt.f32.partialorder %v5976, -1.5707964
        %vm6169 = vcmp.lt.f32.partialorder %v5977, -1.5707964
        %vm6170 = vcmp.lt.f32.partialorder %v5978, -1.5707964
        %vm6171 = vcmp.lt.f32.partialorder %v5979, -1.5707964
        %vm6172 = vcmp.lt.f32.partialorder %v5980, -1.5707964
        %vm6173 = vcmp.lt.f32.partialorder %v5981, -1.5707964
        %vm6174 = vcmp.lt.f32.partialorder %v5982, -1.5707964
        %vm6175 = vcmp.lt.f32.partialorder %v5983, -1.5707964
        %vm6176 = vcmp.lt.f32.partialorder %v5984, -1.5707964
        %vm6177 = vcmp.lt.f32.partialorder %v5985, -1.5707964
        %vm6178 = vcmp.lt.f32.partialorder %v5986, -1.5707964
        %vm6179 = vcmp.lt.f32.partialorder %v5987, -1.5707964
        %vm6180 = vcmp.lt.f32.partialorder %v5988, -1.5707964
        %vm6181 = vcmp.lt.f32.partialorder %v5989, -1.5707964
        %vm6182 = vcmp.lt.f32.partialorder %v5990, -1.5707964
        %vm6183 = vcmp.lt.f32.partialorder %v5991, -1.5707964
        %vm6184 = vcmp.lt.f32.partialorder %v5992, -1.5707964
        %vm6185 = vcmp.lt.f32.partialorder %v5993, -1.5707964
        %vm6186 = vcmp.lt.f32.partialorder %v5994, -1.5707964
        %vm6187 = vcmp.lt.f32.partialorder %v5995, -1.5707964
        %vm6188 = vcmp.lt.f32.partialorder %v5996, -1.5707964
        %vm6189 = vcmp.lt.f32.partialorder %v5997, -1.5707964
        %vm6190 = vcmp.lt.f32.partialorder %v5998, -1.5707964
        %vm6191 = vcmp.lt.f32.partialorder %v5999, -1.5707964
        %vm6192 = vcmp.lt.f32.partialorder %v6000, -1.5707964
        %vm6193 = vcmp.lt.f32.partialorder %v6001, -1.5707964
        %vm6194 = vcmp.lt.f32.partialorder %v6002, -1.5707964
        %vm6195 = vcmp.lt.f32.partialorder %v6003, -1.5707964
        %vm6196 = vcmp.lt.f32.partialorder %v6004, -1.5707964
        %v6197 = vsub.f32 -3.1415927, %v5941
        %v6198 = vsub.f32 -3.1415927, %v5942
        %v6199 = vsub.f32 -3.1415927, %v5943
        %v6200 = vsub.f32 -3.1415927, %v5944
        %v6201 = vsub.f32 -3.1415927, %v5945
        %v6202 = vsub.f32 -3.1415927, %v5946
        %v6203 = vsub.f32 -3.1415927, %v5947
        %v6204 = vsub.f32 -3.1415927, %v5948
        %v6205 = vsub.f32 -3.1415927, %v5949
        %v6206 = vsub.f32 -3.1415927, %v5950
        %v6207 = vsub.f32 -3.1415927, %v5951
        %v6208 = vsub.f32 -3.1415927, %v5952
        %v6209 = vsub.f32 -3.1415927, %v5953
        %v6210 = vsub.f32 -3.1415927, %v5954
        %v6211 = vsub.f32 -3.1415927, %v5955
        %v6212 = vsub.f32 -3.1415927, %v5956
        %v6213 = vsub.f32 -3.1415927, %v5957
        %v6214 = vsub.f32 -3.1415927, %v5958
        %v6215 = vsub.f32 -3.1415927, %v5959
        %v6216 = vsub.f32 -3.1415927, %v5960
        %v6217 = vsub.f32 -3.1415927, %v5961
        %v6218 = vsub.f32 -3.1415927, %v5962
        %v6219 = vsub.f32 -3.1415927, %v5963
        %v6220 = vsub.f32 -3.1415927, %v5964
        %v6221 = vsub.f32 -3.1415927, %v5965
        %v6222 = vsub.f32 -3.1415927, %v5966
        %v6223 = vsub.f32 -3.1415927, %v5967
        %v6224 = vsub.f32 -3.1415927, %v5968
        %v6225 = vsub.f32 -3.1415927, %v5969
        %v6226 = vsub.f32 -3.1415927, %v5970
        %v6227 = vsub.f32 -3.1415927, %v5971
        %v6228 = vsub.f32 -3.1415927, %v5972
        %v6229 = vsub.f32 -3.1415927, %v5973
        %v6230 = vsub.f32 -3.1415927, %v5974
        %v6231 = vsub.f32 -3.1415927, %v5975
        %v6232 = vsub.f32 -3.1415927, %v5976
        %v6233 = vsub.f32 -3.1415927, %v5977
        %v6234 = vsub.f32 -3.1415927, %v5978
        %v6235 = vsub.f32 -3.1415927, %v5979
        %v6236 = vsub.f32 -3.1415927, %v5980
        %v6237 = vsub.f32 -3.1415927, %v5981
        %v6238 = vsub.f32 -3.1415927, %v5982
        %v6239 = vsub.f32 -3.1415927, %v5983
        %v6240 = vsub.f32 -3.1415927, %v5984
        %v6241 = vsub.f32 -3.1415927, %v5985
        %v6242 = vsub.f32 -3.1415927, %v5986
        %v6243 = vsub.f32 -3.1415927, %v5987
        %v6244 = vsub.f32 -3.1415927, %v5988
        %v6245 = vsub.f32 -3.1415927, %v5989
        %v6246 = vsub.f32 -3.1415927, %v5990
        %v6247 = vsub.f32 -3.1415927, %v5991
        %v6248 = vsub.f32 -3.1415927, %v5992
        %v6249 = vsub.f32 -3.1415927, %v5993
        %v6250 = vsub.f32 -3.1415927, %v5994
        %v6251 = vsub.f32 -3.1415927, %v5995
        %v6252 = vsub.f32 -3.1415927, %v5996
        %v6253 = vsub.f32 -3.1415927, %v5997
        %v6254 = vsub.f32 -3.1415927, %v5998
        %v6255 = vsub.f32 -3.1415927, %v5999
        %v6256 = vsub.f32 -3.1415927, %v6000
        %v6257 = vsub.f32 -3.1415927, %v6001
        %v6258 = vsub.f32 -3.1415927, %v6002
        %v6259 = vsub.f32 -3.1415927, %v6003
        %v6260 = vsub.f32 -3.1415927, %v6004
        %v6261 = vsel %vm6133, %v6197, %v5941
        %v6262 = vsel %vm6134, %v6198, %v5942
        %v6263 = vsel %vm6135, %v6199, %v5943
        %v6264 = vsel %vm6136, %v6200, %v5944
        %v6265 = vsel %vm6137, %v6201, %v5945
        %v6266 = vsel %vm6138, %v6202, %v5946
        %v6267 = vsel %vm6139, %v6203, %v5947
        %v6268 = vsel %vm6140, %v6204, %v5948
        %v6269 = vsel %vm6141, %v6205, %v5949
        %v6270 = vsel %vm6142, %v6206, %v5950
        %v6271 = vsel %vm6143, %v6207, %v5951
        %v6272 = vsel %vm6144, %v6208, %v5952
        %v6273 = vsel %vm6145, %v6209, %v5953
        %v6274 = vsel %vm6146, %v6210, %v5954
        %v6275 = vsel %vm6147, %v6211, %v5955
        %v6276 = vsel %vm6148, %v6212, %v5956
        %v6277 = vsel %vm6149, %v6213, %v5957
        %v6278 = vsel %vm6150, %v6214, %v5958
        %v6279 = vsel %vm6151, %v6215, %v5959
        %v6280 = vsel %vm6152, %v6216, %v5960
        %v6281 = vsel %vm6153, %v6217, %v5961
        %v6282 = vsel %vm6154, %v6218, %v5962
        %v6283 = vsel %vm6155, %v6219, %v5963
        %v6284 = vsel %vm6156, %v6220, %v5964
        %v6285 = vsel %vm6157, %v6221, %v5965
        %v6286 = vsel %vm6158, %v6222, %v5966
        %v6287 = vsel %vm6159, %v6223, %v5967
        %v6288 = vsel %vm6160, %v6224, %v5968
        %v6289 = vsel %vm6161, %v6225, %v5969
        %v6290 = vsel %vm6162, %v6226, %v5970
        %v6291 = vsel %vm6163, %v6227, %v5971
        %v6292 = vsel %vm6164, %v6228, %v5972
        %v6293 = vsel %vm6165, %v6229, %v5973
        %v6294 = vsel %vm6166, %v6230, %v5974
        %v6295 = vsel %vm6167, %v6231, %v5975
        %v6296 = vsel %vm6168, %v6232, %v5976
        %v6297 = vsel %vm6169, %v6233, %v5977
        %v6298 = vsel %vm6170, %v6234, %v5978
        %v6299 = vsel %vm6171, %v6235, %v5979
        %v6300 = vsel %vm6172, %v6236, %v5980
        %v6301 = vsel %vm6173, %v6237, %v5981
        %v6302 = vsel %vm6174, %v6238, %v5982
        %v6303 = vsel %vm6175, %v6239, %v5983
        %v6304 = vsel %vm6176, %v6240, %v5984
        %v6305 = vsel %vm6177, %v6241, %v5985
        %v6306 = vsel %vm6178, %v6242, %v5986
        %v6307 = vsel %vm6179, %v6243, %v5987
        %v6308 = vsel %vm6180, %v6244, %v5988
        %v6309 = vsel %vm6181, %v6245, %v5989
        %v6310 = vsel %vm6182, %v6246, %v5990
        %v6311 = vsel %vm6183, %v6247, %v5991
        %v6312 = vsel %vm6184, %v6248, %v5992
        %v6313 = vsel %vm6185, %v6249, %v5993
        %v6314 = vsel %vm6186, %v6250, %v5994
        %v6315 = vsel %vm6187, %v6251, %v5995
        %v6316 = vsel %vm6188, %v6252, %v5996
        %v6317 = vsel %vm6189, %v6253, %v5997
        %v6318 = vsel %vm6190, %v6254, %v5998
        %v6319 = vsel %vm6191, %v6255, %v5999
        %v6320 = vsel %vm6192, %v6256, %v6000
        %v6321 = vsel %vm6193, %v6257, %v6001
        %v6322 = vsel %vm6194, %v6258, %v6002
        %v6323 = vsel %vm6195, %v6259, %v6003
        %v6324 = vsel %vm6196, %v6260, %v6004
        %v6325 = vsel %vm6005, %v6069, %v6261
        %v6326 = vsel %vm6006, %v6070, %v6262
        %v6327 = vsel %vm6007, %v6071, %v6263
        %v6328 = vsel %vm6008, %v6072, %v6264
        %v6329 = vsel %vm6009, %v6073, %v6265
        %v6330 = vsel %vm6010, %v6074, %v6266
        %v6331 = vsel %vm6011, %v6075, %v6267
        %v6332 = vsel %vm6012, %v6076, %v6268
        %v6333 = vsel %vm6013, %v6077, %v6269
        %v6334 = vsel %vm6014, %v6078, %v6270
        %v6335 = vsel %vm6015, %v6079, %v6271
        %v6336 = vsel %vm6016, %v6080, %v6272
        %v6337 = vsel %vm6017, %v6081, %v6273
        %v6338 = vsel %vm6018, %v6082, %v6274
        %v6339 = vsel %vm6019, %v6083, %v6275
        %v6340 = vsel %vm6020, %v6084, %v6276
        %v6341 = vsel %vm6021, %v6085, %v6277
        %v6342 = vsel %vm6022, %v6086, %v6278
        %v6343 = vsel %vm6023, %v6087, %v6279
        %v6344 = vsel %vm6024, %v6088, %v6280
        %v6345 = vsel %vm6025, %v6089, %v6281
        %v6346 = vsel %vm6026, %v6090, %v6282
        %v6347 = vsel %vm6027, %v6091, %v6283
        %v6348 = vsel %vm6028, %v6092, %v6284
        %v6349 = vsel %vm6029, %v6093, %v6285
        %v6350 = vsel %vm6030, %v6094, %v6286
        %v6351 = vsel %vm6031, %v6095, %v6287
        %v6352 = vsel %vm6032, %v6096, %v6288
        %v6353 = vsel %vm6033, %v6097, %v6289
        %v6354 = vsel %vm6034, %v6098, %v6290
        %v6355 = vsel %vm6035, %v6099, %v6291
        %v6356 = vsel %vm6036, %v6100, %v6292
        %v6357 = vsel %vm6037, %v6101, %v6293
        %v6358 = vsel %vm6038, %v6102, %v6294
        %v6359 = vsel %vm6039, %v6103, %v6295
        %v6360 = vsel %vm6040, %v6104, %v6296
        %v6361 = vsel %vm6041, %v6105, %v6297
        %v6362 = vsel %vm6042, %v6106, %v6298
        %v6363 = vsel %vm6043, %v6107, %v6299
        %v6364 = vsel %vm6044, %v6108, %v6300
        %v6365 = vsel %vm6045, %v6109, %v6301
        %v6366 = vsel %vm6046, %v6110, %v6302
        %v6367 = vsel %vm6047, %v6111, %v6303
        %v6368 = vsel %vm6048, %v6112, %v6304
        %v6369 = vsel %vm6049, %v6113, %v6305
        %v6370 = vsel %vm6050, %v6114, %v6306
        %v6371 = vsel %vm6051, %v6115, %v6307
        %v6372 = vsel %vm6052, %v6116, %v6308
        %v6373 = vsel %vm6053, %v6117, %v6309
        %v6374 = vsel %vm6054, %v6118, %v6310
        %v6375 = vsel %vm6055, %v6119, %v6311
        %v6376 = vsel %vm6056, %v6120, %v6312
        %v6377 = vsel %vm6057, %v6121, %v6313
        %v6378 = vsel %vm6058, %v6122, %v6314
        %v6379 = vsel %vm6059, %v6123, %v6315
        %v6380 = vsel %vm6060, %v6124, %v6316
        %v6381 = vsel %vm6061, %v6125, %v6317
        %v6382 = vsel %vm6062, %v6126, %v6318
        %v6383 = vsel %vm6063, %v6127, %v6319
        %v6384 = vsel %vm6064, %v6128, %v6320
        %v6385 = vsel %vm6065, %v6129, %v6321
        %v6386 = vsel %vm6066, %v6130, %v6322
        %v6387 = vsel %vm6067, %v6131, %v6323
        %v6388 = vsel %vm6068, %v6132, %v6324
        %v6389 = vmul.f32 %v6325, %v6325
        %v6390 = vmul.f32 %v6326, %v6326
        %v6391 = vmul.f32 %v6327, %v6327
        %v6392 = vmul.f32 %v6328, %v6328
        %v6393 = vmul.f32 %v6329, %v6329
        %v6394 = vmul.f32 %v6330, %v6330
        %v6395 = vmul.f32 %v6331, %v6331
        %v6396 = vmul.f32 %v6332, %v6332
        %v6397 = vmul.f32 %v6333, %v6333
        %v6398 = vmul.f32 %v6334, %v6334
        %v6399 = vmul.f32 %v6335, %v6335
        %v6400 = vmul.f32 %v6336, %v6336
        %v6401 = vmul.f32 %v6337, %v6337
        %v6402 = vmul.f32 %v6338, %v6338
        %v6403 = vmul.f32 %v6339, %v6339
        %v6404 = vmul.f32 %v6340, %v6340
        %v6405 = vmul.f32 %v6341, %v6341
        %v6406 = vmul.f32 %v6342, %v6342
        %v6407 = vmul.f32 %v6343, %v6343
        %v6408 = vmul.f32 %v6344, %v6344
        %v6409 = vmul.f32 %v6345, %v6345
        %v6410 = vmul.f32 %v6346, %v6346
        %v6411 = vmul.f32 %v6347, %v6347
        %v6412 = vmul.f32 %v6348, %v6348
        %v6413 = vmul.f32 %v6349, %v6349
        %v6414 = vmul.f32 %v6350, %v6350
        %v6415 = vmul.f32 %v6351, %v6351
        %v6416 = vmul.f32 %v6352, %v6352
        %v6417 = vmul.f32 %v6353, %v6353
        %v6418 = vmul.f32 %v6354, %v6354
        %v6419 = vmul.f32 %v6355, %v6355
        %v6420 = vmul.f32 %v6356, %v6356
        %v6421 = vmul.f32 %v6357, %v6357
        %v6422 = vmul.f32 %v6358, %v6358
        %v6423 = vmul.f32 %v6359, %v6359
        %v6424 = vmul.f32 %v6360, %v6360
        %v6425 = vmul.f32 %v6361, %v6361
        %v6426 = vmul.f32 %v6362, %v6362
        %v6427 = vmul.f32 %v6363, %v6363
        %v6428 = vmul.f32 %v6364, %v6364
        %v6429 = vmul.f32 %v6365, %v6365
        %v6430 = vmul.f32 %v6366, %v6366
        %v6431 = vmul.f32 %v6367, %v6367
        %v6432 = vmul.f32 %v6368, %v6368
        %v6433 = vmul.f32 %v6369, %v6369
        %v6434 = vmul.f32 %v6370, %v6370
        %v6435 = vmul.f32 %v6371, %v6371
        %v6436 = vmul.f32 %v6372, %v6372
        %v6437 = vmul.f32 %v6373, %v6373
        %v6438 = vmul.f32 %v6374, %v6374
        %v6439 = vmul.f32 %v6375, %v6375
        %v6440 = vmul.f32 %v6376, %v6376
        %v6441 = vmul.f32 %v6377, %v6377
        %v6442 = vmul.f32 %v6378, %v6378
        %v6443 = vmul.f32 %v6379, %v6379
        %v6444 = vmul.f32 %v6380, %v6380
        %v6445 = vmul.f32 %v6381, %v6381
        %v6446 = vmul.f32 %v6382, %v6382
        %v6447 = vmul.f32 %v6383, %v6383
        %v6448 = vmul.f32 %v6384, %v6384
        %v6449 = vmul.f32 %v6385, %v6385
        %v6450 = vmul.f32 %v6386, %v6386
        %v6451 = vmul.f32 %v6387, %v6387
        %v6452 = vmul.f32 %v6388, %v6388
        %v6453 = vmul.f32 %v6389, -0.00019515296
        %v6454 = vmul.f32 %v6390, -0.00019515296
        %v6455 = vmul.f32 %v6391, -0.00019515296
        %v6456 = vmul.f32 %v6392, -0.00019515296
        %v6457 = vmul.f32 %v6393, -0.00019515296
        %v6458 = vmul.f32 %v6394, -0.00019515296
        %v6459 = vmul.f32 %v6395, -0.00019515296
        %v6460 = vmul.f32 %v6396, -0.00019515296
        %v6461 = vmul.f32 %v6397, -0.00019515296
        %v6462 = vmul.f32 %v6398, -0.00019515296
        %v6463 = vmul.f32 %v6399, -0.00019515296
        %v6464 = vmul.f32 %v6400, -0.00019515296
        %v6465 = vmul.f32 %v6401, -0.00019515296
        %v6466 = vmul.f32 %v6402, -0.00019515296
        %v6467 = vmul.f32 %v6403, -0.00019515296
        %v6468 = vmul.f32 %v6404, -0.00019515296
        %v6469 = vmul.f32 %v6405, -0.00019515296
        %v6470 = vmul.f32 %v6406, -0.00019515296
        %v6471 = vmul.f32 %v6407, -0.00019515296
        %v6472 = vmul.f32 %v6408, -0.00019515296
        %v6473 = vmul.f32 %v6409, -0.00019515296
        %v6474 = vmul.f32 %v6410, -0.00019515296
        %v6475 = vmul.f32 %v6411, -0.00019515296
        %v6476 = vmul.f32 %v6412, -0.00019515296
        %v6477 = vmul.f32 %v6413, -0.00019515296
        %v6478 = vmul.f32 %v6414, -0.00019515296
        %v6479 = vmul.f32 %v6415, -0.00019515296
        %v6480 = vmul.f32 %v6416, -0.00019515296
        %v6481 = vmul.f32 %v6417, -0.00019515296
        %v6482 = vmul.f32 %v6418, -0.00019515296
        %v6483 = vmul.f32 %v6419, -0.00019515296
        %v6484 = vmul.f32 %v6420, -0.00019515296
        %v6485 = vmul.f32 %v6421, -0.00019515296
        %v6486 = vmul.f32 %v6422, -0.00019515296
        %v6487 = vmul.f32 %v6423, -0.00019515296
        %v6488 = vmul.f32 %v6424, -0.00019515296
        %v6489 = vmul.f32 %v6425, -0.00019515296
        %v6490 = vmul.f32 %v6426, -0.00019515296
        %v6491 = vmul.f32 %v6427, -0.00019515296
        %v6492 = vmul.f32 %v6428, -0.00019515296
        %v6493 = vmul.f32 %v6429, -0.00019515296
        %v6494 = vmul.f32 %v6430, -0.00019515296
        %v6495 = vmul.f32 %v6431, -0.00019515296
        %v6496 = vmul.f32 %v6432, -0.00019515296
        %v6497 = vmul.f32 %v6433, -0.00019515296
        %v6498 = vmul.f32 %v6434, -0.00019515296
        %v6499 = vmul.f32 %v6435, -0.00019515296
        %v6500 = vmul.f32 %v6436, -0.00019515296
        %v6501 = vmul.f32 %v6437, -0.00019515296
        %v6502 = vmul.f32 %v6438, -0.00019515296
        %v6503 = vmul.f32 %v6439, -0.00019515296
        %v6504 = vmul.f32 %v6440, -0.00019515296
        %v6505 = vmul.f32 %v6441, -0.00019515296
        %v6506 = vmul.f32 %v6442, -0.00019515296
        %v6507 = vmul.f32 %v6443, -0.00019515296
        %v6508 = vmul.f32 %v6444, -0.00019515296
        %v6509 = vmul.f32 %v6445, -0.00019515296
        %v6510 = vmul.f32 %v6446, -0.00019515296
        %v6511 = vmul.f32 %v6447, -0.00019515296
        %v6512 = vmul.f32 %v6448, -0.00019515296
        %v6513 = vmul.f32 %v6449, -0.00019515296
        %v6514 = vmul.f32 %v6450, -0.00019515296
        %v6515 = vmul.f32 %v6451, -0.00019515296
        %v6516 = vmul.f32 %v6452, -0.00019515296
        %v6517 = vadd.f32 %v6453, 0.008332161
        %v6518 = vadd.f32 %v6454, 0.008332161
        %v6519 = vadd.f32 %v6455, 0.008332161
        %v6520 = vadd.f32 %v6456, 0.008332161
        %v6521 = vadd.f32 %v6457, 0.008332161
        %v6522 = vadd.f32 %v6458, 0.008332161
        %v6523 = vadd.f32 %v6459, 0.008332161
        %v6524 = vadd.f32 %v6460, 0.008332161
        %v6525 = vadd.f32 %v6461, 0.008332161
        %v6526 = vadd.f32 %v6462, 0.008332161
        %v6527 = vadd.f32 %v6463, 0.008332161
        %v6528 = vadd.f32 %v6464, 0.008332161
        %v6529 = vadd.f32 %v6465, 0.008332161
        %v6530 = vadd.f32 %v6466, 0.008332161
        %v6531 = vadd.f32 %v6467, 0.008332161
        %v6532 = vadd.f32 %v6468, 0.008332161
        %v6533 = vadd.f32 %v6469, 0.008332161
        %v6534 = vadd.f32 %v6470, 0.008332161
        %v6535 = vadd.f32 %v6471, 0.008332161
        %v6536 = vadd.f32 %v6472, 0.008332161
        %v6537 = vadd.f32 %v6473, 0.008332161
        %v6538 = vadd.f32 %v6474, 0.008332161
        %v6539 = vadd.f32 %v6475, 0.008332161
        %v6540 = vadd.f32 %v6476, 0.008332161
        %v6541 = vadd.f32 %v6477, 0.008332161
        %v6542 = vadd.f32 %v6478, 0.008332161
        %v6543 = vadd.f32 %v6479, 0.008332161
        %v6544 = vadd.f32 %v6480, 0.008332161
        %v6545 = vadd.f32 %v6481, 0.008332161
        %v6546 = vadd.f32 %v6482, 0.008332161
        %v6547 = vadd.f32 %v6483, 0.008332161
        %v6548 = vadd.f32 %v6484, 0.008332161
        %v6549 = vadd.f32 %v6485, 0.008332161
        %v6550 = vadd.f32 %v6486, 0.008332161
        %v6551 = vadd.f32 %v6487, 0.008332161
        %v6552 = vadd.f32 %v6488, 0.008332161
        %v6553 = vadd.f32 %v6489, 0.008332161
        %v6554 = vadd.f32 %v6490, 0.008332161
        %v6555 = vadd.f32 %v6491, 0.008332161
        %v6556 = vadd.f32 %v6492, 0.008332161
        %v6557 = vadd.f32 %v6493, 0.008332161
        %v6558 = vadd.f32 %v6494, 0.008332161
        %v6559 = vadd.f32 %v6495, 0.008332161
        %v6560 = vadd.f32 %v6496, 0.008332161
        %v6561 = vadd.f32 %v6497, 0.008332161
        %v6562 = vadd.f32 %v6498, 0.008332161
        %v6563 = vadd.f32 %v6499, 0.008332161
        %v6564 = vadd.f32 %v6500, 0.008332161
        %v6565 = vadd.f32 %v6501, 0.008332161
        %v6566 = vadd.f32 %v6502, 0.008332161
        %v6567 = vadd.f32 %v6503, 0.008332161
        %v6568 = vadd.f32 %v6504, 0.008332161
        %v6569 = vadd.f32 %v6505, 0.008332161
        %v6570 = vadd.f32 %v6506, 0.008332161
        %v6571 = vadd.f32 %v6507, 0.008332161
        %v6572 = vadd.f32 %v6508, 0.008332161
        %v6573 = vadd.f32 %v6509, 0.008332161
        %v6574 = vadd.f32 %v6510, 0.008332161
        %v6575 = vadd.f32 %v6511, 0.008332161
        %v6576 = vadd.f32 %v6512, 0.008332161
        %v6577 = vadd.f32 %v6513, 0.008332161
        %v6578 = vadd.f32 %v6514, 0.008332161
        %v6579 = vadd.f32 %v6515, 0.008332161
        %v6580 = vadd.f32 %v6516, 0.008332161
        %v6581 = vmul.f32 %v6389, %v6517
        %v6582 = vmul.f32 %v6390, %v6518
        %v6583 = vmul.f32 %v6391, %v6519
        %v6584 = vmul.f32 %v6392, %v6520
        %v6585 = vmul.f32 %v6393, %v6521
        %v6586 = vmul.f32 %v6394, %v6522
        %v6587 = vmul.f32 %v6395, %v6523
        %v6588 = vmul.f32 %v6396, %v6524
        %v6589 = vmul.f32 %v6397, %v6525
        %v6590 = vmul.f32 %v6398, %v6526
        %v6591 = vmul.f32 %v6399, %v6527
        %v6592 = vmul.f32 %v6400, %v6528
        %v6593 = vmul.f32 %v6401, %v6529
        %v6594 = vmul.f32 %v6402, %v6530
        %v6595 = vmul.f32 %v6403, %v6531
        %v6596 = vmul.f32 %v6404, %v6532
        %v6597 = vmul.f32 %v6405, %v6533
        %v6598 = vmul.f32 %v6406, %v6534
        %v6599 = vmul.f32 %v6407, %v6535
        %v6600 = vmul.f32 %v6408, %v6536
        %v6601 = vmul.f32 %v6409, %v6537
        %v6602 = vmul.f32 %v6410, %v6538
        %v6603 = vmul.f32 %v6411, %v6539
        %v6604 = vmul.f32 %v6412, %v6540
        %v6605 = vmul.f32 %v6413, %v6541
        %v6606 = vmul.f32 %v6414, %v6542
        %v6607 = vmul.f32 %v6415, %v6543
        %v6608 = vmul.f32 %v6416, %v6544
        %v6609 = vmul.f32 %v6417, %v6545
        %v6610 = vmul.f32 %v6418, %v6546
        %v6611 = vmul.f32 %v6419, %v6547
        %v6612 = vmul.f32 %v6420, %v6548
        %v6613 = vmul.f32 %v6421, %v6549
        %v6614 = vmul.f32 %v6422, %v6550
        %v6615 = vmul.f32 %v6423, %v6551
        %v6616 = vmul.f32 %v6424, %v6552
        %v6617 = vmul.f32 %v6425, %v6553
        %v6618 = vmul.f32 %v6426, %v6554
        %v6619 = vmul.f32 %v6427, %v6555
        %v6620 = vmul.f32 %v6428, %v6556
        %v6621 = vmul.f32 %v6429, %v6557
        %v6622 = vmul.f32 %v6430, %v6558
        %v6623 = vmul.f32 %v6431, %v6559
        %v6624 = vmul.f32 %v6432, %v6560
        %v6625 = vmul.f32 %v6433, %v6561
        %v6626 = vmul.f32 %v6434, %v6562
        %v6627 = vmul.f32 %v6435, %v6563
        %v6628 = vmul.f32 %v6436, %v6564
        %v6629 = vmul.f32 %v6437, %v6565
        %v6630 = vmul.f32 %v6438, %v6566
        %v6631 = vmul.f32 %v6439, %v6567
        %v6632 = vmul.f32 %v6440, %v6568
        %v6633 = vmul.f32 %v6441, %v6569
        %v6634 = vmul.f32 %v6442, %v6570
        %v6635 = vmul.f32 %v6443, %v6571
        %v6636 = vmul.f32 %v6444, %v6572
        %v6637 = vmul.f32 %v6445, %v6573
        %v6638 = vmul.f32 %v6446, %v6574
        %v6639 = vmul.f32 %v6447, %v6575
        %v6640 = vmul.f32 %v6448, %v6576
        %v6641 = vmul.f32 %v6449, %v6577
        %v6642 = vmul.f32 %v6450, %v6578
        %v6643 = vmul.f32 %v6451, %v6579
        %v6644 = vmul.f32 %v6452, %v6580
        %v6645 = vadd.f32 %v6581, -0.16666655
        %v6646 = vadd.f32 %v6582, -0.16666655
        %v6647 = vadd.f32 %v6583, -0.16666655
        %v6648 = vadd.f32 %v6584, -0.16666655
        %v6649 = vadd.f32 %v6585, -0.16666655
        %v6650 = vadd.f32 %v6586, -0.16666655
        %v6651 = vadd.f32 %v6587, -0.16666655
        %v6652 = vadd.f32 %v6588, -0.16666655
        %v6653 = vadd.f32 %v6589, -0.16666655
        %v6654 = vadd.f32 %v6590, -0.16666655
        %v6655 = vadd.f32 %v6591, -0.16666655
        %v6656 = vadd.f32 %v6592, -0.16666655
        %v6657 = vadd.f32 %v6593, -0.16666655
        %v6658 = vadd.f32 %v6594, -0.16666655
        %v6659 = vadd.f32 %v6595, -0.16666655
        %v6660 = vadd.f32 %v6596, -0.16666655
        %v6661 = vadd.f32 %v6597, -0.16666655
        %v6662 = vadd.f32 %v6598, -0.16666655
        %v6663 = vadd.f32 %v6599, -0.16666655
        %v6664 = vadd.f32 %v6600, -0.16666655
        %v6665 = vadd.f32 %v6601, -0.16666655
        %v6666 = vadd.f32 %v6602, -0.16666655
        %v6667 = vadd.f32 %v6603, -0.16666655
        %v6668 = vadd.f32 %v6604, -0.16666655
        %v6669 = vadd.f32 %v6605, -0.16666655
        %v6670 = vadd.f32 %v6606, -0.16666655
        %v6671 = vadd.f32 %v6607, -0.16666655
        %v6672 = vadd.f32 %v6608, -0.16666655
        %v6673 = vadd.f32 %v6609, -0.16666655
        %v6674 = vadd.f32 %v6610, -0.16666655
        %v6675 = vadd.f32 %v6611, -0.16666655
        %v6676 = vadd.f32 %v6612, -0.16666655
        %v6677 = vadd.f32 %v6613, -0.16666655
        %v6678 = vadd.f32 %v6614, -0.16666655
        %v6679 = vadd.f32 %v6615, -0.16666655
        %v6680 = vadd.f32 %v6616, -0.16666655
        %v6681 = vadd.f32 %v6617, -0.16666655
        %v6682 = vadd.f32 %v6618, -0.16666655
        %v6683 = vadd.f32 %v6619, -0.16666655
        %v6684 = vadd.f32 %v6620, -0.16666655
        %v6685 = vadd.f32 %v6621, -0.16666655
        %v6686 = vadd.f32 %v6622, -0.16666655
        %v6687 = vadd.f32 %v6623, -0.16666655
        %v6688 = vadd.f32 %v6624, -0.16666655
        %v6689 = vadd.f32 %v6625, -0.16666655
        %v6690 = vadd.f32 %v6626, -0.16666655
        %v6691 = vadd.f32 %v6627, -0.16666655
        %v6692 = vadd.f32 %v6628, -0.16666655
        %v6693 = vadd.f32 %v6629, -0.16666655
        %v6694 = vadd.f32 %v6630, -0.16666655
        %v6695 = vadd.f32 %v6631, -0.16666655
        %v6696 = vadd.f32 %v6632, -0.16666655
        %v6697 = vadd.f32 %v6633, -0.16666655
        %v6698 = vadd.f32 %v6634, -0.16666655
        %v6699 = vadd.f32 %v6635, -0.16666655
        %v6700 = vadd.f32 %v6636, -0.16666655
        %v6701 = vadd.f32 %v6637, -0.16666655
        %v6702 = vadd.f32 %v6638, -0.16666655
        %v6703 = vadd.f32 %v6639, -0.16666655
        %v6704 = vadd.f32 %v6640, -0.16666655
        %v6705 = vadd.f32 %v6641, -0.16666655
        %v6706 = vadd.f32 %v6642, -0.16666655
        %v6707 = vadd.f32 %v6643, -0.16666655
        %v6708 = vadd.f32 %v6644, -0.16666655
        %v6709 = vmul.f32 %v6389, %v6645
        %v6710 = vmul.f32 %v6390, %v6646
        %v6711 = vmul.f32 %v6391, %v6647
        %v6712 = vmul.f32 %v6392, %v6648
        %v6713 = vmul.f32 %v6393, %v6649
        %v6714 = vmul.f32 %v6394, %v6650
        %v6715 = vmul.f32 %v6395, %v6651
        %v6716 = vmul.f32 %v6396, %v6652
        %v6717 = vmul.f32 %v6397, %v6653
        %v6718 = vmul.f32 %v6398, %v6654
        %v6719 = vmul.f32 %v6399, %v6655
        %v6720 = vmul.f32 %v6400, %v6656
        %v6721 = vmul.f32 %v6401, %v6657
        %v6722 = vmul.f32 %v6402, %v6658
        %v6723 = vmul.f32 %v6403, %v6659
        %v6724 = vmul.f32 %v6404, %v6660
        %v6725 = vmul.f32 %v6405, %v6661
        %v6726 = vmul.f32 %v6406, %v6662
        %v6727 = vmul.f32 %v6407, %v6663
        %v6728 = vmul.f32 %v6408, %v6664
        %v6729 = vmul.f32 %v6409, %v6665
        %v6730 = vmul.f32 %v6410, %v6666
        %v6731 = vmul.f32 %v6411, %v6667
        %v6732 = vmul.f32 %v6412, %v6668
        %v6733 = vmul.f32 %v6413, %v6669
        %v6734 = vmul.f32 %v6414, %v6670
        %v6735 = vmul.f32 %v6415, %v6671
        %v6736 = vmul.f32 %v6416, %v6672
        %v6737 = vmul.f32 %v6417, %v6673
        %v6738 = vmul.f32 %v6418, %v6674
        %v6739 = vmul.f32 %v6419, %v6675
        %v6740 = vmul.f32 %v6420, %v6676
        %v6741 = vmul.f32 %v6421, %v6677
        %v6742 = vmul.f32 %v6422, %v6678
        %v6743 = vmul.f32 %v6423, %v6679
        %v6744 = vmul.f32 %v6424, %v6680
        %v6745 = vmul.f32 %v6425, %v6681
        %v6746 = vmul.f32 %v6426, %v6682
        %v6747 = vmul.f32 %v6427, %v6683
        %v6748 = vmul.f32 %v6428, %v6684
        %v6749 = vmul.f32 %v6429, %v6685
        %v6750 = vmul.f32 %v6430, %v6686
        %v6751 = vmul.f32 %v6431, %v6687
        %v6752 = vmul.f32 %v6432, %v6688
        %v6753 = vmul.f32 %v6433, %v6689
        %v6754 = vmul.f32 %v6434, %v6690
        %v6755 = vmul.f32 %v6435, %v6691
        %v6756 = vmul.f32 %v6436, %v6692
        %v6757 = vmul.f32 %v6437, %v6693
        %v6758 = vmul.f32 %v6438, %v6694
        %v6759 = vmul.f32 %v6439, %v6695
        %v6760 = vmul.f32 %v6440, %v6696
        %v6761 = vmul.f32 %v6441, %v6697
        %v6762 = vmul.f32 %v6442, %v6698
        %v6763 = vmul.f32 %v6443, %v6699
        %v6764 = vmul.f32 %v6444, %v6700
        %v6765 = vmul.f32 %v6445, %v6701
        %v6766 = vmul.f32 %v6446, %v6702
        %v6767 = vmul.f32 %v6447, %v6703
        %v6768 = vmul.f32 %v6448, %v6704
        %v6769 = vmul.f32 %v6449, %v6705
        %v6770 = vmul.f32 %v6450, %v6706
        %v6771 = vmul.f32 %v6451, %v6707
        %v6772 = vmul.f32 %v6452, %v6708
        %v6773 = vadd.f32 %v6709, 1.0
        %v6774 = vadd.f32 %v6710, 1.0
        %v6775 = vadd.f32 %v6711, 1.0
        %v6776 = vadd.f32 %v6712, 1.0
        %v6777 = vadd.f32 %v6713, 1.0
        %v6778 = vadd.f32 %v6714, 1.0
        %v6779 = vadd.f32 %v6715, 1.0
        %v6780 = vadd.f32 %v6716, 1.0
        %v6781 = vadd.f32 %v6717, 1.0
        %v6782 = vadd.f32 %v6718, 1.0
        %v6783 = vadd.f32 %v6719, 1.0
        %v6784 = vadd.f32 %v6720, 1.0
        %v6785 = vadd.f32 %v6721, 1.0
        %v6786 = vadd.f32 %v6722, 1.0
        %v6787 = vadd.f32 %v6723, 1.0
        %v6788 = vadd.f32 %v6724, 1.0
        %v6789 = vadd.f32 %v6725, 1.0
        %v6790 = vadd.f32 %v6726, 1.0
        %v6791 = vadd.f32 %v6727, 1.0
        %v6792 = vadd.f32 %v6728, 1.0
        %v6793 = vadd.f32 %v6729, 1.0
        %v6794 = vadd.f32 %v6730, 1.0
        %v6795 = vadd.f32 %v6731, 1.0
        %v6796 = vadd.f32 %v6732, 1.0
        %v6797 = vadd.f32 %v6733, 1.0
        %v6798 = vadd.f32 %v6734, 1.0
        %v6799 = vadd.f32 %v6735, 1.0
        %v6800 = vadd.f32 %v6736, 1.0
        %v6801 = vadd.f32 %v6737, 1.0
        %v6802 = vadd.f32 %v6738, 1.0
        %v6803 = vadd.f32 %v6739, 1.0
        %v6804 = vadd.f32 %v6740, 1.0
        %v6805 = vadd.f32 %v6741, 1.0
        %v6806 = vadd.f32 %v6742, 1.0
        %v6807 = vadd.f32 %v6743, 1.0
        %v6808 = vadd.f32 %v6744, 1.0
        %v6809 = vadd.f32 %v6745, 1.0
        %v6810 = vadd.f32 %v6746, 1.0
        %v6811 = vadd.f32 %v6747, 1.0
        %v6812 = vadd.f32 %v6748, 1.0
        %v6813 = vadd.f32 %v6749, 1.0
        %v6814 = vadd.f32 %v6750, 1.0
        %v6815 = vadd.f32 %v6751, 1.0
        %v6816 = vadd.f32 %v6752, 1.0
        %v6817 = vadd.f32 %v6753, 1.0
        %v6818 = vadd.f32 %v6754, 1.0
        %v6819 = vadd.f32 %v6755, 1.0
        %v6820 = vadd.f32 %v6756, 1.0
        %v6821 = vadd.f32 %v6757, 1.0
        %v6822 = vadd.f32 %v6758, 1.0
        %v6823 = vadd.f32 %v6759, 1.0
        %v6824 = vadd.f32 %v6760, 1.0
        %v6825 = vadd.f32 %v6761, 1.0
        %v6826 = vadd.f32 %v6762, 1.0
        %v6827 = vadd.f32 %v6763, 1.0
        %v6828 = vadd.f32 %v6764, 1.0
        %v6829 = vadd.f32 %v6765, 1.0
        %v6830 = vadd.f32 %v6766, 1.0
        %v6831 = vadd.f32 %v6767, 1.0
        %v6832 = vadd.f32 %v6768, 1.0
        %v6833 = vadd.f32 %v6769, 1.0
        %v6834 = vadd.f32 %v6770, 1.0
        %v6835 = vadd.f32 %v6771, 1.0
        %v6836 = vadd.f32 %v6772, 1.0
        %v6837 = vmul.f32 %v6325, %v6773
        %v6838 = vmul.f32 %v6326, %v6774
        %v6839 = vmul.f32 %v6327, %v6775
        %v6840 = vmul.f32 %v6328, %v6776
        %v6841 = vmul.f32 %v6329, %v6777
        %v6842 = vmul.f32 %v6330, %v6778
        %v6843 = vmul.f32 %v6331, %v6779
        %v6844 = vmul.f32 %v6332, %v6780
        %v6845 = vmul.f32 %v6333, %v6781
        %v6846 = vmul.f32 %v6334, %v6782
        %v6847 = vmul.f32 %v6335, %v6783
        %v6848 = vmul.f32 %v6336, %v6784
        %v6849 = vmul.f32 %v6337, %v6785
        %v6850 = vmul.f32 %v6338, %v6786
        %v6851 = vmul.f32 %v6339, %v6787
        %v6852 = vmul.f32 %v6340, %v6788
        %v6853 = vmul.f32 %v6341, %v6789
        %v6854 = vmul.f32 %v6342, %v6790
        %v6855 = vmul.f32 %v6343, %v6791
        %v6856 = vmul.f32 %v6344, %v6792
        %v6857 = vmul.f32 %v6345, %v6793
        %v6858 = vmul.f32 %v6346, %v6794
        %v6859 = vmul.f32 %v6347, %v6795
        %v6860 = vmul.f32 %v6348, %v6796
        %v6861 = vmul.f32 %v6349, %v6797
        %v6862 = vmul.f32 %v6350, %v6798
        %v6863 = vmul.f32 %v6351, %v6799
        %v6864 = vmul.f32 %v6352, %v6800
        %v6865 = vmul.f32 %v6353, %v6801
        %v6866 = vmul.f32 %v6354, %v6802
        %v6867 = vmul.f32 %v6355, %v6803
        %v6868 = vmul.f32 %v6356, %v6804
        %v6869 = vmul.f32 %v6357, %v6805
        %v6870 = vmul.f32 %v6358, %v6806
        %v6871 = vmul.f32 %v6359, %v6807
        %v6872 = vmul.f32 %v6360, %v6808
        %v6873 = vmul.f32 %v6361, %v6809
        %v6874 = vmul.f32 %v6362, %v6810
        %v6875 = vmul.f32 %v6363, %v6811
        %v6876 = vmul.f32 %v6364, %v6812
        %v6877 = vmul.f32 %v6365, %v6813
        %v6878 = vmul.f32 %v6366, %v6814
        %v6879 = vmul.f32 %v6367, %v6815
        %v6880 = vmul.f32 %v6368, %v6816
        %v6881 = vmul.f32 %v6369, %v6817
        %v6882 = vmul.f32 %v6370, %v6818
        %v6883 = vmul.f32 %v6371, %v6819
        %v6884 = vmul.f32 %v6372, %v6820
        %v6885 = vmul.f32 %v6373, %v6821
        %v6886 = vmul.f32 %v6374, %v6822
        %v6887 = vmul.f32 %v6375, %v6823
        %v6888 = vmul.f32 %v6376, %v6824
        %v6889 = vmul.f32 %v6377, %v6825
        %v6890 = vmul.f32 %v6378, %v6826
        %v6891 = vmul.f32 %v6379, %v6827
        %v6892 = vmul.f32 %v6380, %v6828
        %v6893 = vmul.f32 %v6381, %v6829
        %v6894 = vmul.f32 %v6382, %v6830
        %v6895 = vmul.f32 %v6383, %v6831
        %v6896 = vmul.f32 %v6384, %v6832
        %v6897 = vmul.f32 %v6385, %v6833
        %v6898 = vmul.f32 %v6386, %v6834
        %v6899 = vmul.f32 %v6387, %v6835
        %v6900 = vmul.f32 %v6388, %v6836
        %s6901 = scalar_lea.vmem %s3, 192
        %v6902 = vld [vmem:[%s6901] sm:$0xf]
        %v6903 = vld [vmem:[%s6901 + $0x4] sm:$0xf]
        %v6904 = vld [vmem:[%s6901 + $0x8] sm:$0xf]
        %v6905 = vld [vmem:[%s6901 + $0xc] sm:$0xf]
        %v6906 = vld [vmem:[%s6901 + $0x10] sm:$0xf]
        %v6907 = vld [vmem:[%s6901 + $0x14] sm:$0xf]
        %v6908 = vld [vmem:[%s6901 + $0x18] sm:$0xf]
        %v6909 = vld [vmem:[%s6901 + $0x1c] sm:$0xf]
        %v6910 = vld [vmem:[%s6901 + $0x20] sm:$0xf]
        %v6911 = vld [vmem:[%s6901 + $0x24] sm:$0xf]
        %v6912 = vld [vmem:[%s6901 + $0x28] sm:$0xf]
        %v6913 = vld [vmem:[%s6901 + $0x2c] sm:$0xf]
        %v6914 = vld [vmem:[%s6901 + $0x30] sm:$0xf]
        %v6915 = vld [vmem:[%s6901 + $0x34] sm:$0xf]
        %v6916 = vld [vmem:[%s6901 + $0x38] sm:$0xf]
        %v6917 = vld [vmem:[%s6901 + $0x3c] sm:$0xf]
        %v6918 = vpack.c.bf16 %v6841, %v6837
        %v6919 = vpack.c.bf16 %v6842, %v6838
        %v6920 = vpack.c.bf16 %v6843, %v6839
        %v6921 = vpack.c.bf16 %v6844, %v6840
        %v6922 = vpack.c.bf16 %v6849, %v6845
        %v6923 = vpack.c.bf16 %v6850, %v6846
        %v6924 = vpack.c.bf16 %v6851, %v6847
        %v6925 = vpack.c.bf16 %v6852, %v6848
        %v6926 = vpack.c.bf16 %v6857, %v6853
        %v6927 = vpack.c.bf16 %v6858, %v6854
        %v6928 = vpack.c.bf16 %v6859, %v6855
        %v6929 = vpack.c.bf16 %v6860, %v6856
        %v6930 = vpack.c.bf16 %v6865, %v6861
        %v6931 = vpack.c.bf16 %v6866, %v6862
        %v6932 = vpack.c.bf16 %v6867, %v6863
        %v6933 = vpack.c.bf16 %v6868, %v6864
        %v6934 = vpack.c.bf16 %v6873, %v6869
        %v6935 = vpack.c.bf16 %v6874, %v6870
        %v6936 = vpack.c.bf16 %v6875, %v6871
        %v6937 = vpack.c.bf16 %v6876, %v6872
        %v6938 = vpack.c.bf16 %v6881, %v6877
        %v6939 = vpack.c.bf16 %v6882, %v6878
        %v6940 = vpack.c.bf16 %v6883, %v6879
        %v6941 = vpack.c.bf16 %v6884, %v6880
        %v6942 = vpack.c.bf16 %v6889, %v6885
        %v6943 = vpack.c.bf16 %v6890, %v6886
        %v6944 = vpack.c.bf16 %v6891, %v6887
        %v6945 = vpack.c.bf16 %v6892, %v6888
        %v6946 = vpack.c.bf16 %v6897, %v6893
        %v6947 = vpack.c.bf16 %v6898, %v6894
        %v6948 = vpack.c.bf16 %v6899, %v6895
        %v6949 = vpack.c.bf16 %v6900, %v6896
        %s6950 = scalar_lea.vmem %s4, 384
        %v6951 = vld [vmem:[%s6950] sm:$0xff]
        %v6952 = vld [vmem:[%s6950 + $0x8] sm:$0xff]
        %v6953 = vld [vmem:[%s6950 + $0x10] sm:$0xff]
        %v6954 = vld [vmem:[%s6950 + $0x18] sm:$0xff]
        %v6955 = vld [vmem:[%s6950 + $0x20] sm:$0xff]
        %v6956 = vld [vmem:[%s6950 + $0x28] sm:$0xff]
        %v6957 = vld [vmem:[%s6950 + $0x30] sm:$0xff]
        %v6958 = vld [vmem:[%s6950 + $0x38] sm:$0xff]
        %v6959 = vld [vmem:[%s6950 + $0x40] sm:$0xff]
        %v6960 = vld [vmem:[%s6950 + $0x48] sm:$0xff]
        %v6961 = vld [vmem:[%s6950 + $0x50] sm:$0xff]
        %v6962 = vld [vmem:[%s6950 + $0x58] sm:$0xff]
        %v6963 = vld [vmem:[%s6950 + $0x60] sm:$0xff]
        %v6964 = vld [vmem:[%s6950 + $0x68] sm:$0xff]
        %v6965 = vld [vmem:[%s6950 + $0x70] sm:$0xff]
        %v6966 = vld [vmem:[%s6950 + $0x78] sm:$0xff]
        %6968 = vset.pattern.permute.xlu0 0
        %6969 = vperm.xlu0 %6968, %v6951
        %v6970 = vpop.permute.xlu0 %6969
        %6973 = vset.pattern.permute.xlu0 0
        %6974 = vperm.xlu0 %6973, %v6952
        %v6975 = vpop.permute.xlu0 %6974
        %6978 = vset.pattern.permute.xlu0 0
        %6979 = vperm.xlu0 %6978, %v6953
        %v6980 = vpop.permute.xlu0 %6979
        %6983 = vset.pattern.permute.xlu0 0
        %6984 = vperm.xlu0 %6983, %v6954
        %v6985 = vpop.permute.xlu0 %6984
        %6988 = vset.pattern.permute.xlu0 0
        %6989 = vperm.xlu0 %6988, %v6955
        %v6990 = vpop.permute.xlu0 %6989
        %6993 = vset.pattern.permute.xlu0 0
        %6994 = vperm.xlu0 %6993, %v6956
        %v6995 = vpop.permute.xlu0 %6994
        %6998 = vset.pattern.permute.xlu0 0
        %6999 = vperm.xlu0 %6998, %v6957
        %v7000 = vpop.permute.xlu0 %6999
        %7003 = vset.pattern.permute.xlu0 0
        %7004 = vperm.xlu0 %7003, %v6958
        %v7005 = vpop.permute.xlu0 %7004
        %7008 = vset.pattern.permute.xlu0 0
        %7009 = vperm.xlu0 %7008, %v6959
        %v7010 = vpop.permute.xlu0 %7009
        %7013 = vset.pattern.permute.xlu0 0
        %7014 = vperm.xlu0 %7013, %v6960
        %v7015 = vpop.permute.xlu0 %7014
        %7018 = vset.pattern.permute.xlu0 0
        %7019 = vperm.xlu0 %7018, %v6961
        %v7020 = vpop.permute.xlu0 %7019
        %7023 = vset.pattern.permute.xlu0 0
        %7024 = vperm.xlu0 %7023, %v6962
        %v7025 = vpop.permute.xlu0 %7024
        %7028 = vset.pattern.permute.xlu0 0
        %7029 = vperm.xlu0 %7028, %v6963
        %v7030 = vpop.permute.xlu0 %7029
        %7033 = vset.pattern.permute.xlu0 0
        %7034 = vperm.xlu0 %7033, %v6964
        %v7035 = vpop.permute.xlu0 %7034
        %7038 = vset.pattern.permute.xlu0 0
        %7039 = vperm.xlu0 %7038, %v6965
        %v7040 = vpop.permute.xlu0 %7039
        %7043 = vset.pattern.permute.xlu0 0
        %7044 = vperm.xlu0 %7043, %v6966
        %v7045 = vpop.permute.xlu0 %7044
        %v7063 = vunpack.c.l.b16 %v6902
        %v7064 = vunpack.c.l.b16 %v6903
        %v7065 = vunpack.c.l.b16 %v6904
        %v7066 = vunpack.c.l.b16 %v6905
        %v7067 = vunpack.c.l.b16 %v6906
        %v7068 = vunpack.c.l.b16 %v6907
        %v7069 = vunpack.c.l.b16 %v6908
        %v7070 = vunpack.c.l.b16 %v6909
        %v7071 = vunpack.c.l.b16 %v6910
        %v7072 = vunpack.c.l.b16 %v6911
        %v7073 = vunpack.c.l.b16 %v6912
        %v7074 = vunpack.c.l.b16 %v6913
        %v7075 = vunpack.c.l.b16 %v6914
        %v7076 = vunpack.c.l.b16 %v6915
        %v7077 = vunpack.c.l.b16 %v6916
        %v7078 = vunpack.c.l.b16 %v6917
        %v7079 = vpack.c.b16 %v7064, %v7063
        %v7080 = vpack.c.b16 %v7066, %v7065
        %v7081 = vpack.c.b16 %v7068, %v7067
        %v7082 = vpack.c.b16 %v7070, %v7069
        %v7083 = vpack.c.b16 %v7072, %v7071
        %v7084 = vpack.c.b16 %v7074, %v7073
        %v7085 = vpack.c.b16 %v7076, %v7075
        %v7086 = vpack.c.b16 %v7078, %v7077
        %7095 = vmatprep.subr.bf16.mxu0 %v6947
        %7096 = vmatpush1.bf16.msra.mxu0 %v6946
        %7097 = vmatprep.subr.bf16.mxu0 %v6943
        %7098 = vmatpush1.bf16.msra.mxu0 %v6942
        %7099 = vmatprep.subr.bf16.mxu0 %v6939
        %7100 = vmatpush1.bf16.msra.mxu0 %v6938
        %7101 = vmatprep.subr.bf16.mxu0 %v6935
        %7102 = vmatpush1.bf16.msra.mxu0 %v6934
        %7103 = vmatprep.subr.bf16.mxu0 %v6931
        %7104 = vmatpush1.bf16.msra.mxu0 %v6930
        %7105 = vmatprep.subr.bf16.mxu0 %v6927
        %7106 = vmatpush1.bf16.msra.mxu0 %v6926
        %7107 = vmatprep.subr.bf16.mxu0 %v6923
        %7108 = vmatpush1.bf16.msra.mxu0 %v6922
        %7109 = vmatprep.subr.bf16.mxu0 %v6919
        %7110 = vmatpush1.bf16.msra.mxu0 %v6918
        %7111 = vmatprep.subr.bf16.mxu0 0
        %7112 = vmatpush2.bf16.msra.mxu0 0
        %7113 = vmatprep.subr.bf16.mxu0 0
        %7114 = vmatpush2.bf16.msra.mxu0 0
        %7115 = vmatprep.subr.bf16.mxu0 0
        %7116 = vmatpush2.bf16.msra.mxu0 0
        %7117 = vmatprep.subr.bf16.mxu0 0
        %7118 = vmatpush2.bf16.msra.mxu0 0
        %7119 = vmatprep.subr.bf16.mxu0 0
        %7120 = vmatpush2.bf16.msra.mxu0 0
        %7121 = vmatprep.subr.bf16.mxu0 0
        %7122 = vmatpush2.bf16.msra.mxu0 0
        %7123 = vmatprep.subr.bf16.mxu0 0
        %7124 = vmatpush2.bf16.msra.mxu0 0
        %7125 = vmatprep.subr.bf16.mxu0 0
        %7126 = vmatpush2.bf16.msra.mxu0 0
        %7127 = vmatprep.mubr.bf16.mxu0 0
        %7128 = vmatmul.mubr.bf16.gmra.mxu0 %v7079
        %v7129 = vpop.f32.mrf.mxu0
        %v7130 = vadd.f32 %v6970, %v7129
        %v7131 = vpop.f32.mrf.mxu0
        %v7132 = vadd.f32 %v6970, %v7131
        %v7133 = vpop.f32.mrf.mxu0
        %v7134 = vadd.f32 %v6975, %v7133
        %v7135 = vpop.f32.mrf.mxu0
        %v7136 = vadd.f32 %v6975, %v7135
        %7137 = vmatprep.mubr.bf16.mxu0 0
        %7138 = vmatmul.mubr.bf16.gmra.mxu0 %v7080
        %v7139 = vpop.f32.mrf.mxu0
        %v7140 = vadd.f32 %v6980, %v7139
        %v7141 = vpop.f32.mrf.mxu0
        %v7142 = vadd.f32 %v6980, %v7141
        %v7143 = vpop.f32.mrf.mxu0
        %v7144 = vadd.f32 %v6985, %v7143
        %v7145 = vpop.f32.mrf.mxu0
        %v7146 = vadd.f32 %v6985, %v7145
        %7147 = vmatprep.mubr.bf16.mxu0 0
        %7148 = vmatmul.mubr.bf16.gmra.mxu0 %v7081
        %v7149 = vpop.f32.mrf.mxu0
        %v7150 = vadd.f32 %v6990, %v7149
        %v7151 = vpop.f32.mrf.mxu0
        %v7152 = vadd.f32 %v6990, %v7151
        %v7153 = vpop.f32.mrf.mxu0
        %v7154 = vadd.f32 %v6995, %v7153
        %v7155 = vpop.f32.mrf.mxu0
        %v7156 = vadd.f32 %v6995, %v7155
        %7157 = vmatprep.mubr.bf16.mxu0 0
        %7158 = vmatmul.mubr.bf16.gmra.mxu0 %v7082
        %v7159 = vpop.f32.mrf.mxu0
        %v7160 = vadd.f32 %v7000, %v7159
        %v7161 = vpop.f32.mrf.mxu0
        %v7162 = vadd.f32 %v7000, %v7161
        %v7163 = vpop.f32.mrf.mxu0
        %v7164 = vadd.f32 %v7005, %v7163
        %v7165 = vpop.f32.mrf.mxu0
        %v7166 = vadd.f32 %v7005, %v7165
        %7167 = vmatprep.mubr.bf16.mxu0 0
        %7168 = vmatmul.mubr.bf16.gmra.mxu0 %v7083
        %v7169 = vpop.f32.mrf.mxu0
        %v7170 = vadd.f32 %v7010, %v7169
        %v7171 = vpop.f32.mrf.mxu0
        %v7172 = vadd.f32 %v7010, %v7171
        %v7173 = vpop.f32.mrf.mxu0
        %v7174 = vadd.f32 %v7015, %v7173
        %v7175 = vpop.f32.mrf.mxu0
        %v7176 = vadd.f32 %v7015, %v7175
        %7177 = vmatprep.mubr.bf16.mxu0 0
        %7178 = vmatmul.mubr.bf16.gmra.mxu0 %v7084
        %v7179 = vpop.f32.mrf.mxu0
        %v7180 = vadd.f32 %v7020, %v7179
        %v7181 = vpop.f32.mrf.mxu0
        %v7182 = vadd.f32 %v7020, %v7181
        %v7183 = vpop.f32.mrf.mxu0
        %v7184 = vadd.f32 %v7025, %v7183
        %v7185 = vpop.f32.mrf.mxu0
        %v7186 = vadd.f32 %v7025, %v7185
        %7187 = vmatprep.mubr.bf16.mxu0 0
        %7188 = vmatmul.mubr.bf16.gmra.mxu0 %v7085
        %v7189 = vpop.f32.mrf.mxu0
        %v7190 = vadd.f32 %v7030, %v7189
        %v7191 = vpop.f32.mrf.mxu0
        %v7192 = vadd.f32 %v7030, %v7191
        %v7193 = vpop.f32.mrf.mxu0
        %v7194 = vadd.f32 %v7035, %v7193
        %v7195 = vpop.f32.mrf.mxu0
        %v7196 = vadd.f32 %v7035, %v7195
        %7197 = vmatprep.mubr.bf16.mxu0 0
        %7198 = vmatmul.mubr.bf16.gmra.mxu0 %v7086
        %v7199 = vpop.f32.mrf.mxu0
        %v7200 = vadd.f32 %v7040, %v7199
        %v7201 = vpop.f32.mrf.mxu0
        %v7202 = vadd.f32 %v7040, %v7201
        %v7203 = vpop.f32.mrf.mxu0
        %v7204 = vadd.f32 %v7045, %v7203
        %v7205 = vpop.f32.mrf.mxu0
        %v7206 = vadd.f32 %v7045, %v7205
        %7207 = vdwg.mxu0
        %7208 = vmatprep.subr.bf16.mxu0 %v6949
        %7209 = vmatpush1.bf16.msra.mxu0 %v6948
        %7210 = vmatprep.subr.bf16.mxu0 %v6945
        %7211 = vmatpush1.bf16.msra.mxu0 %v6944
        %7212 = vmatprep.subr.bf16.mxu0 %v6941
        %7213 = vmatpush1.bf16.msra.mxu0 %v6940
        %7214 = vmatprep.subr.bf16.mxu0 %v6937
        %7215 = vmatpush1.bf16.msra.mxu0 %v6936
        %7216 = vmatprep.subr.bf16.mxu0 %v6933
        %7217 = vmatpush1.bf16.msra.mxu0 %v6932
        %7218 = vmatprep.subr.bf16.mxu0 %v6929
        %7219 = vmatpush1.bf16.msra.mxu0 %v6928
        %7220 = vmatprep.subr.bf16.mxu0 %v6925
        %7221 = vmatpush1.bf16.msra.mxu0 %v6924
        %7222 = vmatprep.subr.bf16.mxu0 %v6921
        %7223 = vmatpush1.bf16.msra.mxu0 %v6920
        %7224 = vmatprep.subr.bf16.mxu0 0
        %7225 = vmatpush2.bf16.msra.mxu0 0
        %7226 = vmatprep.subr.bf16.mxu0 0
        %7227 = vmatpush2.bf16.msra.mxu0 0
        %7228 = vmatprep.subr.bf16.mxu0 0
        %7229 = vmatpush2.bf16.msra.mxu0 0
        %7230 = vmatprep.subr.bf16.mxu0 0
        %7231 = vmatpush2.bf16.msra.mxu0 0
        %7232 = vmatprep.subr.bf16.mxu0 0
        %7233 = vmatpush2.bf16.msra.mxu0 0
        %7234 = vmatprep.subr.bf16.mxu0 0
        %7235 = vmatpush2.bf16.msra.mxu0 0
        %7236 = vmatprep.subr.bf16.mxu0 0
        %7237 = vmatpush2.bf16.msra.mxu0 0
        %7238 = vmatprep.subr.bf16.mxu0 0
        %7239 = vmatpush2.bf16.msra.mxu0 0
        %7240 = vmatprep.mubr.bf16.mxu0 0
        %7241 = vmatmul.mubr.bf16.gmra.mxu0 %v7079
        %v7242 = vpop.f32.mrf.mxu0
        %v7243 = vadd.f32 %v6970, %v7242
        %v7244 = vpop.f32.mrf.mxu0
        %v7245 = vadd.f32 %v6970, %v7244
        %v7246 = vpop.f32.mrf.mxu0
        %v7247 = vadd.f32 %v6975, %v7246
        %v7248 = vpop.f32.mrf.mxu0
        %v7249 = vadd.f32 %v6975, %v7248
        %7250 = vmatprep.mubr.bf16.mxu0 0
        %7251 = vmatmul.mubr.bf16.gmra.mxu0 %v7080
        %v7252 = vpop.f32.mrf.mxu0
        %v7253 = vadd.f32 %v6980, %v7252
        %v7254 = vpop.f32.mrf.mxu0
        %v7255 = vadd.f32 %v6980, %v7254
        %v7256 = vpop.f32.mrf.mxu0
        %v7257 = vadd.f32 %v6985, %v7256
        %v7258 = vpop.f32.mrf.mxu0
        %v7259 = vadd.f32 %v6985, %v7258
        %7260 = vmatprep.mubr.bf16.mxu0 0
        %7261 = vmatmul.mubr.bf16.gmra.mxu0 %v7081
        %v7262 = vpop.f32.mrf.mxu0
        %v7263 = vadd.f32 %v6990, %v7262
        %v7264 = vpop.f32.mrf.mxu0
        %v7265 = vadd.f32 %v6990, %v7264
        %v7266 = vpop.f32.mrf.mxu0
        %v7267 = vadd.f32 %v6995, %v7266
        %v7268 = vpop.f32.mrf.mxu0
        %v7269 = vadd.f32 %v6995, %v7268
        %7270 = vmatprep.mubr.bf16.mxu0 0
        %7271 = vmatmul.mubr.bf16.gmra.mxu0 %v7082
        %v7272 = vpop.f32.mrf.mxu0
        %v7273 = vadd.f32 %v7000, %v7272
        %v7274 = vpop.f32.mrf.mxu0
        %v7275 = vadd.f32 %v7000, %v7274
        %v7276 = vpop.f32.mrf.mxu0
        %v7277 = vadd.f32 %v7005, %v7276
        %v7278 = vpop.f32.mrf.mxu0
        %v7279 = vadd.f32 %v7005, %v7278
        %7280 = vmatprep.mubr.bf16.mxu0 0
        %7281 = vmatmul.mubr.bf16.gmra.mxu0 %v7083
        %v7282 = vpop.f32.mrf.mxu0
        %v7283 = vadd.f32 %v7010, %v7282
        %v7284 = vpop.f32.mrf.mxu0
        %v7285 = vadd.f32 %v7010, %v7284
        %v7286 = vpop.f32.mrf.mxu0
        %v7287 = vadd.f32 %v7015, %v7286
        %v7288 = vpop.f32.mrf.mxu0
        %v7289 = vadd.f32 %v7015, %v7288
        %7290 = vmatprep.mubr.bf16.mxu0 0
        %7291 = vmatmul.mubr.bf16.gmra.mxu0 %v7084
        %v7292 = vpop.f32.mrf.mxu0
        %v7293 = vadd.f32 %v7020, %v7292
        %v7294 = vpop.f32.mrf.mxu0
        %v7295 = vadd.f32 %v7020, %v7294
        %v7296 = vpop.f32.mrf.mxu0
        %v7297 = vadd.f32 %v7025, %v7296
        %v7298 = vpop.f32.mrf.mxu0
        %v7299 = vadd.f32 %v7025, %v7298
        %7300 = vmatprep.mubr.bf16.mxu0 0
        %7301 = vmatmul.mubr.bf16.gmra.mxu0 %v7085
        %v7302 = vpop.f32.mrf.mxu0
        %v7303 = vadd.f32 %v7030, %v7302
        %v7304 = vpop.f32.mrf.mxu0
        %v7305 = vadd.f32 %v7030, %v7304
        %v7306 = vpop.f32.mrf.mxu0
        %v7307 = vadd.f32 %v7035, %v7306
        %v7308 = vpop.f32.mrf.mxu0
        %v7309 = vadd.f32 %v7035, %v7308
        %7310 = vmatprep.mubr.bf16.mxu0 0
        %7311 = vmatmul.mubr.bf16.gmra.mxu0 %v7086
        %v7312 = vpop.f32.mrf.mxu0
        %v7313 = vadd.f32 %v7040, %v7312
        %v7314 = vpop.f32.mrf.mxu0
        %v7315 = vadd.f32 %v7040, %v7314
        %v7316 = vpop.f32.mrf.mxu0
        %v7317 = vadd.f32 %v7045, %v7316
        %v7318 = vpop.f32.mrf.mxu0
        %v7319 = vadd.f32 %v7045, %v7318
        %7320 = vdwg.mxu0
        %v7321 = vmul.f32 %v7130, 0.15915494
        %v7322 = vmul.f32 %v7132, 0.15915494
        %v7323 = vmul.f32 %v7243, 0.15915494
        %v7324 = vmul.f32 %v7245, 0.15915494
        %v7325 = vmul.f32 %v7134, 0.15915494
        %v7326 = vmul.f32 %v7136, 0.15915494
        %v7327 = vmul.f32 %v7247, 0.15915494
        %v7328 = vmul.f32 %v7249, 0.15915494
        %v7329 = vmul.f32 %v7140, 0.15915494
        %v7330 = vmul.f32 %v7142, 0.15915494
        %v7331 = vmul.f32 %v7253, 0.15915494
        %v7332 = vmul.f32 %v7255, 0.15915494
        %v7333 = vmul.f32 %v7144, 0.15915494
        %v7334 = vmul.f32 %v7146, 0.15915494
        %v7335 = vmul.f32 %v7257, 0.15915494
        %v7336 = vmul.f32 %v7259, 0.15915494
        %v7337 = vmul.f32 %v7150, 0.15915494
        %v7338 = vmul.f32 %v7152, 0.15915494
        %v7339 = vmul.f32 %v7263, 0.15915494
        %v7340 = vmul.f32 %v7265, 0.15915494
        %v7341 = vmul.f32 %v7154, 0.15915494
        %v7342 = vmul.f32 %v7156, 0.15915494
        %v7343 = vmul.f32 %v7267, 0.15915494
        %v7344 = vmul.f32 %v7269, 0.15915494
        %v7345 = vmul.f32 %v7160, 0.15915494
        %v7346 = vmul.f32 %v7162, 0.15915494
        %v7347 = vmul.f32 %v7273, 0.15915494
        %v7348 = vmul.f32 %v7275, 0.15915494
        %v7349 = vmul.f32 %v7164, 0.15915494
        %v7350 = vmul.f32 %v7166, 0.15915494
        %v7351 = vmul.f32 %v7277, 0.15915494
        %v7352 = vmul.f32 %v7279, 0.15915494
        %v7353 = vmul.f32 %v7170, 0.15915494
        %v7354 = vmul.f32 %v7172, 0.15915494
        %v7355 = vmul.f32 %v7283, 0.15915494
        %v7356 = vmul.f32 %v7285, 0.15915494
        %v7357 = vmul.f32 %v7174, 0.15915494
        %v7358 = vmul.f32 %v7176, 0.15915494
        %v7359 = vmul.f32 %v7287, 0.15915494
        %v7360 = vmul.f32 %v7289, 0.15915494
        %v7361 = vmul.f32 %v7180, 0.15915494
        %v7362 = vmul.f32 %v7182, 0.15915494
        %v7363 = vmul.f32 %v7293, 0.15915494
        %v7364 = vmul.f32 %v7295, 0.15915494
        %v7365 = vmul.f32 %v7184, 0.15915494
        %v7366 = vmul.f32 %v7186, 0.15915494
        %v7367 = vmul.f32 %v7297, 0.15915494
        %v7368 = vmul.f32 %v7299, 0.15915494
        %v7369 = vmul.f32 %v7190, 0.15915494
        %v7370 = vmul.f32 %v7192, 0.15915494
        %v7371 = vmul.f32 %v7303, 0.15915494
        %v7372 = vmul.f32 %v7305, 0.15915494
        %v7373 = vmul.f32 %v7194, 0.15915494
        %v7374 = vmul.f32 %v7196, 0.15915494
        %v7375 = vmul.f32 %v7307, 0.15915494
        %v7376 = vmul.f32 %v7309, 0.15915494
        %v7377 = vmul.f32 %v7200, 0.15915494
        %v7378 = vmul.f32 %v7202, 0.15915494
        %v7379 = vmul.f32 %v7313, 0.15915494
        %v7380 = vmul.f32 %v7315, 0.15915494
        %v7381 = vmul.f32 %v7204, 0.15915494
        %v7382 = vmul.f32 %v7206, 0.15915494
        %v7383 = vmul.f32 %v7317, 0.15915494
        %v7384 = vmul.f32 %v7319, 0.15915494
        %v7385 = vadd.f32 %v7321, 0.5
        %v7386 = vadd.f32 %v7322, 0.5
        %v7387 = vadd.f32 %v7323, 0.5
        %v7388 = vadd.f32 %v7324, 0.5
        %v7389 = vadd.f32 %v7325, 0.5
        %v7390 = vadd.f32 %v7326, 0.5
        %v7391 = vadd.f32 %v7327, 0.5
        %v7392 = vadd.f32 %v7328, 0.5
        %v7393 = vadd.f32 %v7329, 0.5
        %v7394 = vadd.f32 %v7330, 0.5
        %v7395 = vadd.f32 %v7331, 0.5
        %v7396 = vadd.f32 %v7332, 0.5
        %v7397 = vadd.f32 %v7333, 0.5
        %v7398 = vadd.f32 %v7334, 0.5
        %v7399 = vadd.f32 %v7335, 0.5
        %v7400 = vadd.f32 %v7336, 0.5
        %v7401 = vadd.f32 %v7337, 0.5
        %v7402 = vadd.f32 %v7338, 0.5
        %v7403 = vadd.f32 %v7339, 0.5
        %v7404 = vadd.f32 %v7340, 0.5
        %v7405 = vadd.f32 %v7341, 0.5
        %v7406 = vadd.f32 %v7342, 0.5
        %v7407 = vadd.f32 %v7343, 0.5
        %v7408 = vadd.f32 %v7344, 0.5
        %v7409 = vadd.f32 %v7345, 0.5
        %v7410 = vadd.f32 %v7346, 0.5
        %v7411 = vadd.f32 %v7347, 0.5
        %v7412 = vadd.f32 %v7348, 0.5
        %v7413 = vadd.f32 %v7349, 0.5
        %v7414 = vadd.f32 %v7350, 0.5
        %v7415 = vadd.f32 %v7351, 0.5
        %v7416 = vadd.f32 %v7352, 0.5
        %v7417 = vadd.f32 %v7353, 0.5
        %v7418 = vadd.f32 %v7354, 0.5
        %v7419 = vadd.f32 %v7355, 0.5
        %v7420 = vadd.f32 %v7356, 0.5
        %v7421 = vadd.f32 %v7357, 0.5
        %v7422 = vadd.f32 %v7358, 0.5
        %v7423 = vadd.f32 %v7359, 0.5
        %v7424 = vadd.f32 %v7360, 0.5
        %v7425 = vadd.f32 %v7361, 0.5
        %v7426 = vadd.f32 %v7362, 0.5
        %v7427 = vadd.f32 %v7363, 0.5
        %v7428 = vadd.f32 %v7364, 0.5
        %v7429 = vadd.f32 %v7365, 0.5
        %v7430 = vadd.f32 %v7366, 0.5
        %v7431 = vadd.f32 %v7367, 0.5
        %v7432 = vadd.f32 %v7368, 0.5
        %v7433 = vadd.f32 %v7369, 0.5
        %v7434 = vadd.f32 %v7370, 0.5
        %v7435 = vadd.f32 %v7371, 0.5
        %v7436 = vadd.f32 %v7372, 0.5
        %v7437 = vadd.f32 %v7373, 0.5
        %v7438 = vadd.f32 %v7374, 0.5
        %v7439 = vadd.f32 %v7375, 0.5
        %v7440 = vadd.f32 %v7376, 0.5
        %v7441 = vadd.f32 %v7377, 0.5
        %v7442 = vadd.f32 %v7378, 0.5
        %v7443 = vadd.f32 %v7379, 0.5
        %v7444 = vadd.f32 %v7380, 0.5
        %v7445 = vadd.f32 %v7381, 0.5
        %v7446 = vadd.f32 %v7382, 0.5
        %v7447 = vadd.f32 %v7383, 0.5
        %v7448 = vadd.f32 %v7384, 0.5
        %v7449 = vfloor.f32 %v7385
        %v7450 = vfloor.f32 %v7386
        %v7451 = vfloor.f32 %v7387
        %v7452 = vfloor.f32 %v7388
        %v7453 = vfloor.f32 %v7389
        %v7454 = vfloor.f32 %v7390
        %v7455 = vfloor.f32 %v7391
        %v7456 = vfloor.f32 %v7392
        %v7457 = vfloor.f32 %v7393
        %v7458 = vfloor.f32 %v7394
        %v7459 = vfloor.f32 %v7395
        %v7460 = vfloor.f32 %v7396
        %v7461 = vfloor.f32 %v7397
        %v7462 = vfloor.f32 %v7398
        %v7463 = vfloor.f32 %v7399
        %v7464 = vfloor.f32 %v7400
        %v7465 = vfloor.f32 %v7401
        %v7466 = vfloor.f32 %v7402
        %v7467 = vfloor.f32 %v7403
        %v7468 = vfloor.f32 %v7404
        %v7469 = vfloor.f32 %v7405
        %v7470 = vfloor.f32 %v7406
        %v7471 = vfloor.f32 %v7407
        %v7472 = vfloor.f32 %v7408
        %v7473 = vfloor.f32 %v7409
        %v7474 = vfloor.f32 %v7410
        %v7475 = vfloor.f32 %v7411
        %v7476 = vfloor.f32 %v7412
        %v7477 = vfloor.f32 %v7413
        %v7478 = vfloor.f32 %v7414
        %v7479 = vfloor.f32 %v7415
        %v7480 = vfloor.f32 %v7416
        %v7481 = vfloor.f32 %v7417
        %v7482 = vfloor.f32 %v7418
        %v7483 = vfloor.f32 %v7419
        %v7484 = vfloor.f32 %v7420
        %v7485 = vfloor.f32 %v7421
        %v7486 = vfloor.f32 %v7422
        %v7487 = vfloor.f32 %v7423
        %v7488 = vfloor.f32 %v7424
        %v7489 = vfloor.f32 %v7425
        %v7490 = vfloor.f32 %v7426
        %v7491 = vfloor.f32 %v7427
        %v7492 = vfloor.f32 %v7428
        %v7493 = vfloor.f32 %v7429
        %v7494 = vfloor.f32 %v7430
        %v7495 = vfloor.f32 %v7431
        %v7496 = vfloor.f32 %v7432
        %v7497 = vfloor.f32 %v7433
        %v7498 = vfloor.f32 %v7434
        %v7499 = vfloor.f32 %v7435
        %v7500 = vfloor.f32 %v7436
        %v7501 = vfloor.f32 %v7437
        %v7502 = vfloor.f32 %v7438
        %v7503 = vfloor.f32 %v7439
        %v7504 = vfloor.f32 %v7440
        %v7505 = vfloor.f32 %v7441
        %v7506 = vfloor.f32 %v7442
        %v7507 = vfloor.f32 %v7443
        %v7508 = vfloor.f32 %v7444
        %v7509 = vfloor.f32 %v7445
        %v7510 = vfloor.f32 %v7446
        %v7511 = vfloor.f32 %v7447
        %v7512 = vfloor.f32 %v7448
        %v7513 = vmul.f32 %v7449, 6.2831855
        %v7514 = vmul.f32 %v7450, 6.2831855
        %v7515 = vmul.f32 %v7451, 6.2831855
        %v7516 = vmul.f32 %v7452, 6.2831855
        %v7517 = vmul.f32 %v7453, 6.2831855
        %v7518 = vmul.f32 %v7454, 6.2831855
        %v7519 = vmul.f32 %v7455, 6.2831855
        %v7520 = vmul.f32 %v7456, 6.2831855
        %v7521 = vmul.f32 %v7457, 6.2831855
        %v7522 = vmul.f32 %v7458, 6.2831855
        %v7523 = vmul.f32 %v7459, 6.2831855
        %v7524 = vmul.f32 %v7460, 6.2831855
        %v7525 = vmul.f32 %v7461, 6.2831855
        %v7526 = vmul.f32 %v7462, 6.2831855
        %v7527 = vmul.f32 %v7463, 6.2831855
        %v7528 = vmul.f32 %v7464, 6.2831855
        %v7529 = vmul.f32 %v7465, 6.2831855
        %v7530 = vmul.f32 %v7466, 6.2831855
        %v7531 = vmul.f32 %v7467, 6.2831855
        %v7532 = vmul.f32 %v7468, 6.2831855
        %v7533 = vmul.f32 %v7469, 6.2831855
        %v7534 = vmul.f32 %v7470, 6.2831855
        %v7535 = vmul.f32 %v7471, 6.2831855
        %v7536 = vmul.f32 %v7472, 6.2831855
        %v7537 = vmul.f32 %v7473, 6.2831855
        %v7538 = vmul.f32 %v7474, 6.2831855
        %v7539 = vmul.f32 %v7475, 6.2831855
        %v7540 = vmul.f32 %v7476, 6.2831855
        %v7541 = vmul.f32 %v7477, 6.2831855
        %v7542 = vmul.f32 %v7478, 6.2831855
        %v7543 = vmul.f32 %v7479, 6.2831855
        %v7544 = vmul.f32 %v7480, 6.2831855
        %v7545 = vmul.f32 %v7481, 6.2831855
        %v7546 = vmul.f32 %v7482, 6.2831855
        %v7547 = vmul.f32 %v7483, 6.2831855
        %v7548 = vmul.f32 %v7484, 6.2831855
        %v7549 = vmul.f32 %v7485, 6.2831855
        %v7550 = vmul.f32 %v7486, 6.2831855
        %v7551 = vmul.f32 %v7487, 6.2831855
        %v7552 = vmul.f32 %v7488, 6.2831855
        %v7553 = vmul.f32 %v7489, 6.2831855
        %v7554 = vmul.f32 %v7490, 6.2831855
        %v7555 = vmul.f32 %v7491, 6.2831855
        %v7556 = vmul.f32 %v7492, 6.2831855
        %v7557 = vmul.f32 %v7493, 6.2831855
        %v7558 = vmul.f32 %v7494, 6.2831855
        %v7559 = vmul.f32 %v7495, 6.2831855
        %v7560 = vmul.f32 %v7496, 6.2831855
        %v7561 = vmul.f32 %v7497, 6.2831855
        %v7562 = vmul.f32 %v7498, 6.2831855
        %v7563 = vmul.f32 %v7499, 6.2831855
        %v7564 = vmul.f32 %v7500, 6.2831855
        %v7565 = vmul.f32 %v7501, 6.2831855
        %v7566 = vmul.f32 %v7502, 6.2831855
        %v7567 = vmul.f32 %v7503, 6.2831855
        %v7568 = vmul.f32 %v7504, 6.2831855
        %v7569 = vmul.f32 %v7505, 6.2831855
        %v7570 = vmul.f32 %v7506, 6.2831855
        %v7571 = vmul.f32 %v7507, 6.2831855
        %v7572 = vmul.f32 %v7508, 6.2831855
        %v7573 = vmul.f32 %v7509, 6.2831855
        %v7574 = vmul.f32 %v7510, 6.2831855
        %v7575 = vmul.f32 %v7511, 6.2831855
        %v7576 = vmul.f32 %v7512, 6.2831855
        %v7577 = vsub.f32 %v7130, %v7513
        %v7578 = vsub.f32 %v7132, %v7514
        %v7579 = vsub.f32 %v7243, %v7515
        %v7580 = vsub.f32 %v7245, %v7516
        %v7581 = vsub.f32 %v7134, %v7517
        %v7582 = vsub.f32 %v7136, %v7518
        %v7583 = vsub.f32 %v7247, %v7519
        %v7584 = vsub.f32 %v7249, %v7520
        %v7585 = vsub.f32 %v7140, %v7521
        %v7586 = vsub.f32 %v7142, %v7522
        %v7587 = vsub.f32 %v7253, %v7523
        %v7588 = vsub.f32 %v7255, %v7524
        %v7589 = vsub.f32 %v7144, %v7525
        %v7590 = vsub.f32 %v7146, %v7526
        %v7591 = vsub.f32 %v7257, %v7527
        %v7592 = vsub.f32 %v7259, %v7528
        %v7593 = vsub.f32 %v7150, %v7529
        %v7594 = vsub.f32 %v7152, %v7530
        %v7595 = vsub.f32 %v7263, %v7531
        %v7596 = vsub.f32 %v7265, %v7532
        %v7597 = vsub.f32 %v7154, %v7533
        %v7598 = vsub.f32 %v7156, %v7534
        %v7599 = vsub.f32 %v7267, %v7535
        %v7600 = vsub.f32 %v7269, %v7536
        %v7601 = vsub.f32 %v7160, %v7537
        %v7602 = vsub.f32 %v7162, %v7538
        %v7603 = vsub.f32 %v7273, %v7539
        %v7604 = vsub.f32 %v7275, %v7540
        %v7605 = vsub.f32 %v7164, %v7541
        %v7606 = vsub.f32 %v7166, %v7542
        %v7607 = vsub.f32 %v7277, %v7543
        %v7608 = vsub.f32 %v7279, %v7544
        %v7609 = vsub.f32 %v7170, %v7545
        %v7610 = vsub.f32 %v7172, %v7546
        %v7611 = vsub.f32 %v7283, %v7547
        %v7612 = vsub.f32 %v7285, %v7548
        %v7613 = vsub.f32 %v7174, %v7549
        %v7614 = vsub.f32 %v7176, %v7550
        %v7615 = vsub.f32 %v7287, %v7551
        %v7616 = vsub.f32 %v7289, %v7552
        %v7617 = vsub.f32 %v7180, %v7553
        %v7618 = vsub.f32 %v7182, %v7554
        %v7619 = vsub.f32 %v7293, %v7555
        %v7620 = vsub.f32 %v7295, %v7556
        %v7621 = vsub.f32 %v7184, %v7557
        %v7622 = vsub.f32 %v7186, %v7558
        %v7623 = vsub.f32 %v7297, %v7559
        %v7624 = vsub.f32 %v7299, %v7560
        %v7625 = vsub.f32 %v7190, %v7561
        %v7626 = vsub.f32 %v7192, %v7562
        %v7627 = vsub.f32 %v7303, %v7563
        %v7628 = vsub.f32 %v7305, %v7564
        %v7629 = vsub.f32 %v7194, %v7565
        %v7630 = vsub.f32 %v7196, %v7566
        %v7631 = vsub.f32 %v7307, %v7567
        %v7632 = vsub.f32 %v7309, %v7568
        %v7633 = vsub.f32 %v7200, %v7569
        %v7634 = vsub.f32 %v7202, %v7570
        %v7635 = vsub.f32 %v7313, %v7571
        %v7636 = vsub.f32 %v7315, %v7572
        %v7637 = vsub.f32 %v7204, %v7573
        %v7638 = vsub.f32 %v7206, %v7574
        %v7639 = vsub.f32 %v7317, %v7575
        %v7640 = vsub.f32 %v7319, %v7576
        %vm7641 = vcmp.gt.f32.partialorder %v7577, 1.5707964
        %vm7642 = vcmp.gt.f32.partialorder %v7578, 1.5707964
        %vm7643 = vcmp.gt.f32.partialorder %v7579, 1.5707964
        %vm7644 = vcmp.gt.f32.partialorder %v7580, 1.5707964
        %vm7645 = vcmp.gt.f32.partialorder %v7581, 1.5707964
        %vm7646 = vcmp.gt.f32.partialorder %v7582, 1.5707964
        %vm7647 = vcmp.gt.f32.partialorder %v7583, 1.5707964
        %vm7648 = vcmp.gt.f32.partialorder %v7584, 1.5707964
        %vm7649 = vcmp.gt.f32.partialorder %v7585, 1.5707964
        %vm7650 = vcmp.gt.f32.partialorder %v7586, 1.5707964
        %vm7651 = vcmp.gt.f32.partialorder %v7587, 1.5707964
        %vm7652 = vcmp.gt.f32.partialorder %v7588, 1.5707964
        %vm7653 = vcmp.gt.f32.partialorder %v7589, 1.5707964
        %vm7654 = vcmp.gt.f32.partialorder %v7590, 1.5707964
        %vm7655 = vcmp.gt.f32.partialorder %v7591, 1.5707964
        %vm7656 = vcmp.gt.f32.partialorder %v7592, 1.5707964
        %vm7657 = vcmp.gt.f32.partialorder %v7593, 1.5707964
        %vm7658 = vcmp.gt.f32.partialorder %v7594, 1.5707964
        %vm7659 = vcmp.gt.f32.partialorder %v7595, 1.5707964
        %vm7660 = vcmp.gt.f32.partialorder %v7596, 1.5707964
        %vm7661 = vcmp.gt.f32.partialorder %v7597, 1.5707964
        %vm7662 = vcmp.gt.f32.partialorder %v7598, 1.5707964
        %vm7663 = vcmp.gt.f32.partialorder %v7599, 1.5707964
        %vm7664 = vcmp.gt.f32.partialorder %v7600, 1.5707964
        %vm7665 = vcmp.gt.f32.partialorder %v7601, 1.5707964
        %vm7666 = vcmp.gt.f32.partialorder %v7602, 1.5707964
        %vm7667 = vcmp.gt.f32.partialorder %v7603, 1.5707964
        %vm7668 = vcmp.gt.f32.partialorder %v7604, 1.5707964
        %vm7669 = vcmp.gt.f32.partialorder %v7605, 1.5707964
        %vm7670 = vcmp.gt.f32.partialorder %v7606, 1.5707964
        %vm7671 = vcmp.gt.f32.partialorder %v7607, 1.5707964
        %vm7672 = vcmp.gt.f32.partialorder %v7608, 1.5707964
        %vm7673 = vcmp.gt.f32.partialorder %v7609, 1.5707964
        %vm7674 = vcmp.gt.f32.partialorder %v7610, 1.5707964
        %vm7675 = vcmp.gt.f32.partialorder %v7611, 1.5707964
        %vm7676 = vcmp.gt.f32.partialorder %v7612, 1.5707964
        %vm7677 = vcmp.gt.f32.partialorder %v7613, 1.5707964
        %vm7678 = vcmp.gt.f32.partialorder %v7614, 1.5707964
        %vm7679 = vcmp.gt.f32.partialorder %v7615, 1.5707964
        %vm7680 = vcmp.gt.f32.partialorder %v7616, 1.5707964
        %vm7681 = vcmp.gt.f32.partialorder %v7617, 1.5707964
        %vm7682 = vcmp.gt.f32.partialorder %v7618, 1.5707964
        %vm7683 = vcmp.gt.f32.partialorder %v7619, 1.5707964
        %vm7684 = vcmp.gt.f32.partialorder %v7620, 1.5707964
        %vm7685 = vcmp.gt.f32.partialorder %v7621, 1.5707964
        %vm7686 = vcmp.gt.f32.partialorder %v7622, 1.5707964
        %vm7687 = vcmp.gt.f32.partialorder %v7623, 1.5707964
        %vm7688 = vcmp.gt.f32.partialorder %v7624, 1.5707964
        %vm7689 = vcmp.gt.f32.partialorder %v7625, 1.5707964
        %vm7690 = vcmp.gt.f32.partialorder %v7626, 1.5707964
        %vm7691 = vcmp.gt.f32.partialorder %v7627, 1.5707964
        %vm7692 = vcmp.gt.f32.partialorder %v7628, 1.5707964
        %vm7693 = vcmp.gt.f32.partialorder %v7629, 1.5707964
        %vm7694 = vcmp.gt.f32.partialorder %v7630, 1.5707964
        %vm7695 = vcmp.gt.f32.partialorder %v7631, 1.5707964
        %vm7696 = vcmp.gt.f32.partialorder %v7632, 1.5707964
        %vm7697 = vcmp.gt.f32.partialorder %v7633, 1.5707964
        %vm7698 = vcmp.gt.f32.partialorder %v7634, 1.5707964
        %vm7699 = vcmp.gt.f32.partialorder %v7635, 1.5707964
        %vm7700 = vcmp.gt.f32.partialorder %v7636, 1.5707964
        %vm7701 = vcmp.gt.f32.partialorder %v7637, 1.5707964
        %vm7702 = vcmp.gt.f32.partialorder %v7638, 1.5707964
        %vm7703 = vcmp.gt.f32.partialorder %v7639, 1.5707964
        %vm7704 = vcmp.gt.f32.partialorder %v7640, 1.5707964
        %v7705 = vsub.f32 3.1415927, %v7577
        %v7706 = vsub.f32 3.1415927, %v7578
        %v7707 = vsub.f32 3.1415927, %v7579
        %v7708 = vsub.f32 3.1415927, %v7580
        %v7709 = vsub.f32 3.1415927, %v7581
        %v7710 = vsub.f32 3.1415927, %v7582
        %v7711 = vsub.f32 3.1415927, %v7583
        %v7712 = vsub.f32 3.1415927, %v7584
        %v7713 = vsub.f32 3.1415927, %v7585
        %v7714 = vsub.f32 3.1415927, %v7586
        %v7715 = vsub.f32 3.1415927, %v7587
        %v7716 = vsub.f32 3.1415927, %v7588
        %v7717 = vsub.f32 3.1415927, %v7589
        %v7718 = vsub.f32 3.1415927, %v7590
        %v7719 = vsub.f32 3.1415927, %v7591
        %v7720 = vsub.f32 3.1415927, %v7592
        %v7721 = vsub.f32 3.1415927, %v7593
        %v7722 = vsub.f32 3.1415927, %v7594
        %v7723 = vsub.f32 3.1415927, %v7595
        %v7724 = vsub.f32 3.1415927, %v7596
        %v7725 = vsub.f32 3.1415927, %v7597
        %v7726 = vsub.f32 3.1415927, %v7598
        %v7727 = vsub.f32 3.1415927, %v7599
        %v7728 = vsub.f32 3.1415927, %v7600
        %v7729 = vsub.f32 3.1415927, %v7601
        %v7730 = vsub.f32 3.1415927, %v7602
        %v7731 = vsub.f32 3.1415927, %v7603
        %v7732 = vsub.f32 3.1415927, %v7604
        %v7733 = vsub.f32 3.1415927, %v7605
        %v7734 = vsub.f32 3.1415927, %v7606
        %v7735 = vsub.f32 3.1415927, %v7607
        %v7736 = vsub.f32 3.1415927, %v7608
        %v7737 = vsub.f32 3.1415927, %v7609
        %v7738 = vsub.f32 3.1415927, %v7610
        %v7739 = vsub.f32 3.1415927, %v7611
        %v7740 = vsub.f32 3.1415927, %v7612
        %v7741 = vsub.f32 3.1415927, %v7613
        %v7742 = vsub.f32 3.1415927, %v7614
        %v7743 = vsub.f32 3.1415927, %v7615
        %v7744 = vsub.f32 3.1415927, %v7616
        %v7745 = vsub.f32 3.1415927, %v7617
        %v7746 = vsub.f32 3.1415927, %v7618
        %v7747 = vsub.f32 3.1415927, %v7619
        %v7748 = vsub.f32 3.1415927, %v7620
        %v7749 = vsub.f32 3.1415927, %v7621
        %v7750 = vsub.f32 3.1415927, %v7622
        %v7751 = vsub.f32 3.1415927, %v7623
        %v7752 = vsub.f32 3.1415927, %v7624
        %v7753 = vsub.f32 3.1415927, %v7625
        %v7754 = vsub.f32 3.1415927, %v7626
        %v7755 = vsub.f32 3.1415927, %v7627
        %v7756 = vsub.f32 3.1415927, %v7628
        %v7757 = vsub.f32 3.1415927, %v7629
        %v7758 = vsub.f32 3.1415927, %v7630
        %v7759 = vsub.f32 3.1415927, %v7631
        %v7760 = vsub.f32 3.1415927, %v7632
        %v7761 = vsub.f32 3.1415927, %v7633
        %v7762 = vsub.f32 3.1415927, %v7634
        %v7763 = vsub.f32 3.1415927, %v7635
        %v7764 = vsub.f32 3.1415927, %v7636
        %v7765 = vsub.f32 3.1415927, %v7637
        %v7766 = vsub.f32 3.1415927, %v7638
        %v7767 = vsub.f32 3.1415927, %v7639
        %v7768 = vsub.f32 3.1415927, %v7640
        %vm7769 = vcmp.lt.f32.partialorder %v7577, -1.5707964
        %vm7770 = vcmp.lt.f32.partialorder %v7578, -1.5707964
        %vm7771 = vcmp.lt.f32.partialorder %v7579, -1.5707964
        %vm7772 = vcmp.lt.f32.partialorder %v7580, -1.5707964
        %vm7773 = vcmp.lt.f32.partialorder %v7581, -1.5707964
        %vm7774 = vcmp.lt.f32.partialorder %v7582, -1.5707964
        %vm7775 = vcmp.lt.f32.partialorder %v7583, -1.5707964
        %vm7776 = vcmp.lt.f32.partialorder %v7584, -1.5707964
        %vm7777 = vcmp.lt.f32.partialorder %v7585, -1.5707964
        %vm7778 = vcmp.lt.f32.partialorder %v7586, -1.5707964
        %vm7779 = vcmp.lt.f32.partialorder %v7587, -1.5707964
        %vm7780 = vcmp.lt.f32.partialorder %v7588, -1.5707964
        %vm7781 = vcmp.lt.f32.partialorder %v7589, -1.5707964
        %vm7782 = vcmp.lt.f32.partialorder %v7590, -1.5707964
        %vm7783 = vcmp.lt.f32.partialorder %v7591, -1.5707964
        %vm7784 = vcmp.lt.f32.partialorder %v7592, -1.5707964
        %vm7785 = vcmp.lt.f32.partialorder %v7593, -1.5707964
        %vm7786 = vcmp.lt.f32.partialorder %v7594, -1.5707964
        %vm7787 = vcmp.lt.f32.partialorder %v7595, -1.5707964
        %vm7788 = vcmp.lt.f32.partialorder %v7596, -1.5707964
        %vm7789 = vcmp.lt.f32.partialorder %v7597, -1.5707964
        %vm7790 = vcmp.lt.f32.partialorder %v7598, -1.5707964
        %vm7791 = vcmp.lt.f32.partialorder %v7599, -1.5707964
        %vm7792 = vcmp.lt.f32.partialorder %v7600, -1.5707964
        %vm7793 = vcmp.lt.f32.partialorder %v7601, -1.5707964
        %vm7794 = vcmp.lt.f32.partialorder %v7602, -1.5707964
        %vm7795 = vcmp.lt.f32.partialorder %v7603, -1.5707964
        %vm7796 = vcmp.lt.f32.partialorder %v7604, -1.5707964
        %vm7797 = vcmp.lt.f32.partialorder %v7605, -1.5707964
        %vm7798 = vcmp.lt.f32.partialorder %v7606, -1.5707964
        %vm7799 = vcmp.lt.f32.partialorder %v7607, -1.5707964
        %vm7800 = vcmp.lt.f32.partialorder %v7608, -1.5707964
        %vm7801 = vcmp.lt.f32.partialorder %v7609, -1.5707964
        %vm7802 = vcmp.lt.f32.partialorder %v7610, -1.5707964
        %vm7803 = vcmp.lt.f32.partialorder %v7611, -1.5707964
        %vm7804 = vcmp.lt.f32.partialorder %v7612, -1.5707964
        %vm7805 = vcmp.lt.f32.partialorder %v7613, -1.5707964
        %vm7806 = vcmp.lt.f32.partialorder %v7614, -1.5707964
        %vm7807 = vcmp.lt.f32.partialorder %v7615, -1.5707964
        %vm7808 = vcmp.lt.f32.partialorder %v7616, -1.5707964
        %vm7809 = vcmp.lt.f32.partialorder %v7617, -1.5707964
        %vm7810 = vcmp.lt.f32.partialorder %v7618, -1.5707964
        %vm7811 = vcmp.lt.f32.partialorder %v7619, -1.5707964
        %vm7812 = vcmp.lt.f32.partialorder %v7620, -1.5707964
        %vm7813 = vcmp.lt.f32.partialorder %v7621, -1.5707964
        %vm7814 = vcmp.lt.f32.partialorder %v7622, -1.5707964
        %vm7815 = vcmp.lt.f32.partialorder %v7623, -1.5707964
        %vm7816 = vcmp.lt.f32.partialorder %v7624, -1.5707964
        %vm7817 = vcmp.lt.f32.partialorder %v7625, -1.5707964
        %vm7818 = vcmp.lt.f32.partialorder %v7626, -1.5707964
        %vm7819 = vcmp.lt.f32.partialorder %v7627, -1.5707964
        %vm7820 = vcmp.lt.f32.partialorder %v7628, -1.5707964
        %vm7821 = vcmp.lt.f32.partialorder %v7629, -1.5707964
        %vm7822 = vcmp.lt.f32.partialorder %v7630, -1.5707964
        %vm7823 = vcmp.lt.f32.partialorder %v7631, -1.5707964
        %vm7824 = vcmp.lt.f32.partialorder %v7632, -1.5707964
        %vm7825 = vcmp.lt.f32.partialorder %v7633, -1.5707964
        %vm7826 = vcmp.lt.f32.partialorder %v7634, -1.5707964
        %vm7827 = vcmp.lt.f32.partialorder %v7635, -1.5707964
        %vm7828 = vcmp.lt.f32.partialorder %v7636, -1.5707964
        %vm7829 = vcmp.lt.f32.partialorder %v7637, -1.5707964
        %vm7830 = vcmp.lt.f32.partialorder %v7638, -1.5707964
        %vm7831 = vcmp.lt.f32.partialorder %v7639, -1.5707964
        %vm7832 = vcmp.lt.f32.partialorder %v7640, -1.5707964
        %v7833 = vsub.f32 -3.1415927, %v7577
        %v7834 = vsub.f32 -3.1415927, %v7578
        %v7835 = vsub.f32 -3.1415927, %v7579
        %v7836 = vsub.f32 -3.1415927, %v7580
        %v7837 = vsub.f32 -3.1415927, %v7581
        %v7838 = vsub.f32 -3.1415927, %v7582
        %v7839 = vsub.f32 -3.1415927, %v7583
        %v7840 = vsub.f32 -3.1415927, %v7584
        %v7841 = vsub.f32 -3.1415927, %v7585
        %v7842 = vsub.f32 -3.1415927, %v7586
        %v7843 = vsub.f32 -3.1415927, %v7587
        %v7844 = vsub.f32 -3.1415927, %v7588
        %v7845 = vsub.f32 -3.1415927, %v7589
        %v7846 = vsub.f32 -3.1415927, %v7590
        %v7847 = vsub.f32 -3.1415927, %v7591
        %v7848 = vsub.f32 -3.1415927, %v7592
        %v7849 = vsub.f32 -3.1415927, %v7593
        %v7850 = vsub.f32 -3.1415927, %v7594
        %v7851 = vsub.f32 -3.1415927, %v7595
        %v7852 = vsub.f32 -3.1415927, %v7596
        %v7853 = vsub.f32 -3.1415927, %v7597
        %v7854 = vsub.f32 -3.1415927, %v7598
        %v7855 = vsub.f32 -3.1415927, %v7599
        %v7856 = vsub.f32 -3.1415927, %v7600
        %v7857 = vsub.f32 -3.1415927, %v7601
        %v7858 = vsub.f32 -3.1415927, %v7602
        %v7859 = vsub.f32 -3.1415927, %v7603
        %v7860 = vsub.f32 -3.1415927, %v7604
        %v7861 = vsub.f32 -3.1415927, %v7605
        %v7862 = vsub.f32 -3.1415927, %v7606
        %v7863 = vsub.f32 -3.1415927, %v7607
        %v7864 = vsub.f32 -3.1415927, %v7608
        %v7865 = vsub.f32 -3.1415927, %v7609
        %v7866 = vsub.f32 -3.1415927, %v7610
        %v7867 = vsub.f32 -3.1415927, %v7611
        %v7868 = vsub.f32 -3.1415927, %v7612
        %v7869 = vsub.f32 -3.1415927, %v7613
        %v7870 = vsub.f32 -3.1415927, %v7614
        %v7871 = vsub.f32 -3.1415927, %v7615
        %v7872 = vsub.f32 -3.1415927, %v7616
        %v7873 = vsub.f32 -3.1415927, %v7617
        %v7874 = vsub.f32 -3.1415927, %v7618
        %v7875 = vsub.f32 -3.1415927, %v7619
        %v7876 = vsub.f32 -3.1415927, %v7620
        %v7877 = vsub.f32 -3.1415927, %v7621
        %v7878 = vsub.f32 -3.1415927, %v7622
        %v7879 = vsub.f32 -3.1415927, %v7623
        %v7880 = vsub.f32 -3.1415927, %v7624
        %v7881 = vsub.f32 -3.1415927, %v7625
        %v7882 = vsub.f32 -3.1415927, %v7626
        %v7883 = vsub.f32 -3.1415927, %v7627
        %v7884 = vsub.f32 -3.1415927, %v7628
        %v7885 = vsub.f32 -3.1415927, %v7629
        %v7886 = vsub.f32 -3.1415927, %v7630
        %v7887 = vsub.f32 -3.1415927, %v7631
        %v7888 = vsub.f32 -3.1415927, %v7632
        %v7889 = vsub.f32 -3.1415927, %v7633
        %v7890 = vsub.f32 -3.1415927, %v7634
        %v7891 = vsub.f32 -3.1415927, %v7635
        %v7892 = vsub.f32 -3.1415927, %v7636
        %v7893 = vsub.f32 -3.1415927, %v7637
        %v7894 = vsub.f32 -3.1415927, %v7638
        %v7895 = vsub.f32 -3.1415927, %v7639
        %v7896 = vsub.f32 -3.1415927, %v7640
        %v7897 = vsel %vm7769, %v7833, %v7577
        %v7898 = vsel %vm7770, %v7834, %v7578
        %v7899 = vsel %vm7771, %v7835, %v7579
        %v7900 = vsel %vm7772, %v7836, %v7580
        %v7901 = vsel %vm7773, %v7837, %v7581
        %v7902 = vsel %vm7774, %v7838, %v7582
        %v7903 = vsel %vm7775, %v7839, %v7583
        %v7904 = vsel %vm7776, %v7840, %v7584
        %v7905 = vsel %vm7777, %v7841, %v7585
        %v7906 = vsel %vm7778, %v7842, %v7586
        %v7907 = vsel %vm7779, %v7843, %v7587
        %v7908 = vsel %vm7780, %v7844, %v7588
        %v7909 = vsel %vm7781, %v7845, %v7589
        %v7910 = vsel %vm7782, %v7846, %v7590
        %v7911 = vsel %vm7783, %v7847, %v7591
        %v7912 = vsel %vm7784, %v7848, %v7592
        %v7913 = vsel %vm7785, %v7849, %v7593
        %v7914 = vsel %vm7786, %v7850, %v7594
        %v7915 = vsel %vm7787, %v7851, %v7595
        %v7916 = vsel %vm7788, %v7852, %v7596
        %v7917 = vsel %vm7789, %v7853, %v7597
        %v7918 = vsel %vm7790, %v7854, %v7598
        %v7919 = vsel %vm7791, %v7855, %v7599
        %v7920 = vsel %vm7792, %v7856, %v7600
        %v7921 = vsel %vm7793, %v7857, %v7601
        %v7922 = vsel %vm7794, %v7858, %v7602
        %v7923 = vsel %vm7795, %v7859, %v7603
        %v7924 = vsel %vm7796, %v7860, %v7604
        %v7925 = vsel %vm7797, %v7861, %v7605
        %v7926 = vsel %vm7798, %v7862, %v7606
        %v7927 = vsel %vm7799, %v7863, %v7607
        %v7928 = vsel %vm7800, %v7864, %v7608
        %v7929 = vsel %vm7801, %v7865, %v7609
        %v7930 = vsel %vm7802, %v7866, %v7610
        %v7931 = vsel %vm7803, %v7867, %v7611
        %v7932 = vsel %vm7804, %v7868, %v7612
        %v7933 = vsel %vm7805, %v7869, %v7613
        %v7934 = vsel %vm7806, %v7870, %v7614
        %v7935 = vsel %vm7807, %v7871, %v7615
        %v7936 = vsel %vm7808, %v7872, %v7616
        %v7937 = vsel %vm7809, %v7873, %v7617
        %v7938 = vsel %vm7810, %v7874, %v7618
        %v7939 = vsel %vm7811, %v7875, %v7619
        %v7940 = vsel %vm7812, %v7876, %v7620
        %v7941 = vsel %vm7813, %v7877, %v7621
        %v7942 = vsel %vm7814, %v7878, %v7622
        %v7943 = vsel %vm7815, %v7879, %v7623
        %v7944 = vsel %vm7816, %v7880, %v7624
        %v7945 = vsel %vm7817, %v7881, %v7625
        %v7946 = vsel %vm7818, %v7882, %v7626
        %v7947 = vsel %vm7819, %v7883, %v7627
        %v7948 = vsel %vm7820, %v7884, %v7628
        %v7949 = vsel %vm7821, %v7885, %v7629
        %v7950 = vsel %vm7822, %v7886, %v7630
        %v7951 = vsel %vm7823, %v7887, %v7631
        %v7952 = vsel %vm7824, %v7888, %v7632
        %v7953 = vsel %vm7825, %v7889, %v7633
        %v7954 = vsel %vm7826, %v7890, %v7634
        %v7955 = vsel %vm7827, %v7891, %v7635
        %v7956 = vsel %vm7828, %v7892, %v7636
        %v7957 = vsel %vm7829, %v7893, %v7637
        %v7958 = vsel %vm7830, %v7894, %v7638
        %v7959 = vsel %vm7831, %v7895, %v7639
        %v7960 = vsel %vm7832, %v7896, %v7640
        %v7961 = vsel %vm7641, %v7705, %v7897
        %v7962 = vsel %vm7642, %v7706, %v7898
        %v7963 = vsel %vm7643, %v7707, %v7899
        %v7964 = vsel %vm7644, %v7708, %v7900
        %v7965 = vsel %vm7645, %v7709, %v7901
        %v7966 = vsel %vm7646, %v7710, %v7902
        %v7967 = vsel %vm7647, %v7711, %v7903
        %v7968 = vsel %vm7648, %v7712, %v7904
        %v7969 = vsel %vm7649, %v7713, %v7905
        %v7970 = vsel %vm7650, %v7714, %v7906
        %v7971 = vsel %vm7651, %v7715, %v7907
        %v7972 = vsel %vm7652, %v7716, %v7908
        %v7973 = vsel %vm7653, %v7717, %v7909
        %v7974 = vsel %vm7654, %v7718, %v7910
        %v7975 = vsel %vm7655, %v7719, %v7911
        %v7976 = vsel %vm7656, %v7720, %v7912
        %v7977 = vsel %vm7657, %v7721, %v7913
        %v7978 = vsel %vm7658, %v7722, %v7914
        %v7979 = vsel %vm7659, %v7723, %v7915
        %v7980 = vsel %vm7660, %v7724, %v7916
        %v7981 = vsel %vm7661, %v7725, %v7917
        %v7982 = vsel %vm7662, %v7726, %v7918
        %v7983 = vsel %vm7663, %v7727, %v7919
        %v7984 = vsel %vm7664, %v7728, %v7920
        %v7985 = vsel %vm7665, %v7729, %v7921
        %v7986 = vsel %vm7666, %v7730, %v7922
        %v7987 = vsel %vm7667, %v7731, %v7923
        %v7988 = vsel %vm7668, %v7732, %v7924
        %v7989 = vsel %vm7669, %v7733, %v7925
        %v7990 = vsel %vm7670, %v7734, %v7926
        %v7991 = vsel %vm7671, %v7735, %v7927
        %v7992 = vsel %vm7672, %v7736, %v7928
        %v7993 = vsel %vm7673, %v7737, %v7929
        %v7994 = vsel %vm7674, %v7738, %v7930
        %v7995 = vsel %vm7675, %v7739, %v7931
        %v7996 = vsel %vm7676, %v7740, %v7932
        %v7997 = vsel %vm7677, %v7741, %v7933
        %v7998 = vsel %vm7678, %v7742, %v7934
        %v7999 = vsel %vm7679, %v7743, %v7935
        %v8000 = vsel %vm7680, %v7744, %v7936
        %v8001 = vsel %vm7681, %v7745, %v7937
        %v8002 = vsel %vm7682, %v7746, %v7938
        %v8003 = vsel %vm7683, %v7747, %v7939
        %v8004 = vsel %vm7684, %v7748, %v7940
        %v8005 = vsel %vm7685, %v7749, %v7941
        %v8006 = vsel %vm7686, %v7750, %v7942
        %v8007 = vsel %vm7687, %v7751, %v7943
        %v8008 = vsel %vm7688, %v7752, %v7944
        %v8009 = vsel %vm7689, %v7753, %v7945
        %v8010 = vsel %vm7690, %v7754, %v7946
        %v8011 = vsel %vm7691, %v7755, %v7947
        %v8012 = vsel %vm7692, %v7756, %v7948
        %v8013 = vsel %vm7693, %v7757, %v7949
        %v8014 = vsel %vm7694, %v7758, %v7950
        %v8015 = vsel %vm7695, %v7759, %v7951
        %v8016 = vsel %vm7696, %v7760, %v7952
        %v8017 = vsel %vm7697, %v7761, %v7953
        %v8018 = vsel %vm7698, %v7762, %v7954
        %v8019 = vsel %vm7699, %v7763, %v7955
        %v8020 = vsel %vm7700, %v7764, %v7956
        %v8021 = vsel %vm7701, %v7765, %v7957
        %v8022 = vsel %vm7702, %v7766, %v7958
        %v8023 = vsel %vm7703, %v7767, %v7959
        %v8024 = vsel %vm7704, %v7768, %v7960
        %v8025 = vmul.f32 %v7961, %v7961
        %v8026 = vmul.f32 %v7962, %v7962
        %v8027 = vmul.f32 %v7963, %v7963
        %v8028 = vmul.f32 %v7964, %v7964
        %v8029 = vmul.f32 %v7965, %v7965
        %v8030 = vmul.f32 %v7966, %v7966
        %v8031 = vmul.f32 %v7967, %v7967
        %v8032 = vmul.f32 %v7968, %v7968
        %v8033 = vmul.f32 %v7969, %v7969
        %v8034 = vmul.f32 %v7970, %v7970
        %v8035 = vmul.f32 %v7971, %v7971
        %v8036 = vmul.f32 %v7972, %v7972
        %v8037 = vmul.f32 %v7973, %v7973
        %v8038 = vmul.f32 %v7974, %v7974
        %v8039 = vmul.f32 %v7975, %v7975
        %v8040 = vmul.f32 %v7976, %v7976
        %v8041 = vmul.f32 %v7977, %v7977
        %v8042 = vmul.f32 %v7978, %v7978
        %v8043 = vmul.f32 %v7979, %v7979
        %v8044 = vmul.f32 %v7980, %v7980
        %v8045 = vmul.f32 %v7981, %v7981
        %v8046 = vmul.f32 %v7982, %v7982
        %v8047 = vmul.f32 %v7983, %v7983
        %v8048 = vmul.f32 %v7984, %v7984
        %v8049 = vmul.f32 %v7985, %v7985
        %v8050 = vmul.f32 %v7986, %v7986
        %v8051 = vmul.f32 %v7987, %v7987
        %v8052 = vmul.f32 %v7988, %v7988
        %v8053 = vmul.f32 %v7989, %v7989
        %v8054 = vmul.f32 %v7990, %v7990
        %v8055 = vmul.f32 %v7991, %v7991
        %v8056 = vmul.f32 %v7992, %v7992
        %v8057 = vmul.f32 %v7993, %v7993
        %v8058 = vmul.f32 %v7994, %v7994
        %v8059 = vmul.f32 %v7995, %v7995
        %v8060 = vmul.f32 %v7996, %v7996
        %v8061 = vmul.f32 %v7997, %v7997
        %v8062 = vmul.f32 %v7998, %v7998
        %v8063 = vmul.f32 %v7999, %v7999
        %v8064 = vmul.f32 %v8000, %v8000
        %v8065 = vmul.f32 %v8001, %v8001
        %v8066 = vmul.f32 %v8002, %v8002
        %v8067 = vmul.f32 %v8003, %v8003
        %v8068 = vmul.f32 %v8004, %v8004
        %v8069 = vmul.f32 %v8005, %v8005
        %v8070 = vmul.f32 %v8006, %v8006
        %v8071 = vmul.f32 %v8007, %v8007
        %v8072 = vmul.f32 %v8008, %v8008
        %v8073 = vmul.f32 %v8009, %v8009
        %v8074 = vmul.f32 %v8010, %v8010
        %v8075 = vmul.f32 %v8011, %v8011
        %v8076 = vmul.f32 %v8012, %v8012
        %v8077 = vmul.f32 %v8013, %v8013
        %v8078 = vmul.f32 %v8014, %v8014
        %v8079 = vmul.f32 %v8015, %v8015
        %v8080 = vmul.f32 %v8016, %v8016
        %v8081 = vmul.f32 %v8017, %v8017
        %v8082 = vmul.f32 %v8018, %v8018
        %v8083 = vmul.f32 %v8019, %v8019
        %v8084 = vmul.f32 %v8020, %v8020
        %v8085 = vmul.f32 %v8021, %v8021
        %v8086 = vmul.f32 %v8022, %v8022
        %v8087 = vmul.f32 %v8023, %v8023
        %v8088 = vmul.f32 %v8024, %v8024
        %v8089 = vmul.f32 %v8025, -0.00019515296
        %v8090 = vmul.f32 %v8026, -0.00019515296
        %v8091 = vmul.f32 %v8027, -0.00019515296
        %v8092 = vmul.f32 %v8028, -0.00019515296
        %v8093 = vmul.f32 %v8029, -0.00019515296
        %v8094 = vmul.f32 %v8030, -0.00019515296
        %v8095 = vmul.f32 %v8031, -0.00019515296
        %v8096 = vmul.f32 %v8032, -0.00019515296
        %v8097 = vmul.f32 %v8033, -0.00019515296
        %v8098 = vmul.f32 %v8034, -0.00019515296
        %v8099 = vmul.f32 %v8035, -0.00019515296
        %v8100 = vmul.f32 %v8036, -0.00019515296
        %v8101 = vmul.f32 %v8037, -0.00019515296
        %v8102 = vmul.f32 %v8038, -0.00019515296
        %v8103 = vmul.f32 %v8039, -0.00019515296
        %v8104 = vmul.f32 %v8040, -0.00019515296
        %v8105 = vmul.f32 %v8041, -0.00019515296
        %v8106 = vmul.f32 %v8042, -0.00019515296
        %v8107 = vmul.f32 %v8043, -0.00019515296
        %v8108 = vmul.f32 %v8044, -0.00019515296
        %v8109 = vmul.f32 %v8045, -0.00019515296
        %v8110 = vmul.f32 %v8046, -0.00019515296
        %v8111 = vmul.f32 %v8047, -0.00019515296
        %v8112 = vmul.f32 %v8048, -0.00019515296
        %v8113 = vmul.f32 %v8049, -0.00019515296
        %v8114 = vmul.f32 %v8050, -0.00019515296
        %v8115 = vmul.f32 %v8051, -0.00019515296
        %v8116 = vmul.f32 %v8052, -0.00019515296
        %v8117 = vmul.f32 %v8053, -0.00019515296
        %v8118 = vmul.f32 %v8054, -0.00019515296
        %v8119 = vmul.f32 %v8055, -0.00019515296
        %v8120 = vmul.f32 %v8056, -0.00019515296
        %v8121 = vmul.f32 %v8057, -0.00019515296
        %v8122 = vmul.f32 %v8058, -0.00019515296
        %v8123 = vmul.f32 %v8059, -0.00019515296
        %v8124 = vmul.f32 %v8060, -0.00019515296
        %v8125 = vmul.f32 %v8061, -0.00019515296
        %v8126 = vmul.f32 %v8062, -0.00019515296
        %v8127 = vmul.f32 %v8063, -0.00019515296
        %v8128 = vmul.f32 %v8064, -0.00019515296
        %v8129 = vmul.f32 %v8065, -0.00019515296
        %v8130 = vmul.f32 %v8066, -0.00019515296
        %v8131 = vmul.f32 %v8067, -0.00019515296
        %v8132 = vmul.f32 %v8068, -0.00019515296
        %v8133 = vmul.f32 %v8069, -0.00019515296
        %v8134 = vmul.f32 %v8070, -0.00019515296
        %v8135 = vmul.f32 %v8071, -0.00019515296
        %v8136 = vmul.f32 %v8072, -0.00019515296
        %v8137 = vmul.f32 %v8073, -0.00019515296
        %v8138 = vmul.f32 %v8074, -0.00019515296
        %v8139 = vmul.f32 %v8075, -0.00019515296
        %v8140 = vmul.f32 %v8076, -0.00019515296
        %v8141 = vmul.f32 %v8077, -0.00019515296
        %v8142 = vmul.f32 %v8078, -0.00019515296
        %v8143 = vmul.f32 %v8079, -0.00019515296
        %v8144 = vmul.f32 %v8080, -0.00019515296
        %v8145 = vmul.f32 %v8081, -0.00019515296
        %v8146 = vmul.f32 %v8082, -0.00019515296
        %v8147 = vmul.f32 %v8083, -0.00019515296
        %v8148 = vmul.f32 %v8084, -0.00019515296
        %v8149 = vmul.f32 %v8085, -0.00019515296
        %v8150 = vmul.f32 %v8086, -0.00019515296
        %v8151 = vmul.f32 %v8087, -0.00019515296
        %v8152 = vmul.f32 %v8088, -0.00019515296
        %v8153 = vadd.f32 %v8089, 0.008332161
        %v8154 = vadd.f32 %v8090, 0.008332161
        %v8155 = vadd.f32 %v8091, 0.008332161
        %v8156 = vadd.f32 %v8092, 0.008332161
        %v8157 = vadd.f32 %v8093, 0.008332161
        %v8158 = vadd.f32 %v8094, 0.008332161
        %v8159 = vadd.f32 %v8095, 0.008332161
        %v8160 = vadd.f32 %v8096, 0.008332161
        %v8161 = vadd.f32 %v8097, 0.008332161
        %v8162 = vadd.f32 %v8098, 0.008332161
        %v8163 = vadd.f32 %v8099, 0.008332161
        %v8164 = vadd.f32 %v8100, 0.008332161
        %v8165 = vadd.f32 %v8101, 0.008332161
        %v8166 = vadd.f32 %v8102, 0.008332161
        %v8167 = vadd.f32 %v8103, 0.008332161
        %v8168 = vadd.f32 %v8104, 0.008332161
        %v8169 = vadd.f32 %v8105, 0.008332161
        %v8170 = vadd.f32 %v8106, 0.008332161
        %v8171 = vadd.f32 %v8107, 0.008332161
        %v8172 = vadd.f32 %v8108, 0.008332161
        %v8173 = vadd.f32 %v8109, 0.008332161
        %v8174 = vadd.f32 %v8110, 0.008332161
        %v8175 = vadd.f32 %v8111, 0.008332161
        %v8176 = vadd.f32 %v8112, 0.008332161
        %v8177 = vadd.f32 %v8113, 0.008332161
        %v8178 = vadd.f32 %v8114, 0.008332161
        %v8179 = vadd.f32 %v8115, 0.008332161
        %v8180 = vadd.f32 %v8116, 0.008332161
        %v8181 = vadd.f32 %v8117, 0.008332161
        %v8182 = vadd.f32 %v8118, 0.008332161
        %v8183 = vadd.f32 %v8119, 0.008332161
        %v8184 = vadd.f32 %v8120, 0.008332161
        %v8185 = vadd.f32 %v8121, 0.008332161
        %v8186 = vadd.f32 %v8122, 0.008332161
        %v8187 = vadd.f32 %v8123, 0.008332161
        %v8188 = vadd.f32 %v8124, 0.008332161
        %v8189 = vadd.f32 %v8125, 0.008332161
        %v8190 = vadd.f32 %v8126, 0.008332161
        %v8191 = vadd.f32 %v8127, 0.008332161
        %v8192 = vadd.f32 %v8128, 0.008332161
        %v8193 = vadd.f32 %v8129, 0.008332161
        %v8194 = vadd.f32 %v8130, 0.008332161
        %v8195 = vadd.f32 %v8131, 0.008332161
        %v8196 = vadd.f32 %v8132, 0.008332161
        %v8197 = vadd.f32 %v8133, 0.008332161
        %v8198 = vadd.f32 %v8134, 0.008332161
        %v8199 = vadd.f32 %v8135, 0.008332161
        %v8200 = vadd.f32 %v8136, 0.008332161
        %v8201 = vadd.f32 %v8137, 0.008332161
        %v8202 = vadd.f32 %v8138, 0.008332161
        %v8203 = vadd.f32 %v8139, 0.008332161
        %v8204 = vadd.f32 %v8140, 0.008332161
        %v8205 = vadd.f32 %v8141, 0.008332161
        %v8206 = vadd.f32 %v8142, 0.008332161
        %v8207 = vadd.f32 %v8143, 0.008332161
        %v8208 = vadd.f32 %v8144, 0.008332161
        %v8209 = vadd.f32 %v8145, 0.008332161
        %v8210 = vadd.f32 %v8146, 0.008332161
        %v8211 = vadd.f32 %v8147, 0.008332161
        %v8212 = vadd.f32 %v8148, 0.008332161
        %v8213 = vadd.f32 %v8149, 0.008332161
        %v8214 = vadd.f32 %v8150, 0.008332161
        %v8215 = vadd.f32 %v8151, 0.008332161
        %v8216 = vadd.f32 %v8152, 0.008332161
        %v8217 = vmul.f32 %v8025, %v8153
        %v8218 = vmul.f32 %v8026, %v8154
        %v8219 = vmul.f32 %v8027, %v8155
        %v8220 = vmul.f32 %v8028, %v8156
        %v8221 = vmul.f32 %v8029, %v8157
        %v8222 = vmul.f32 %v8030, %v8158
        %v8223 = vmul.f32 %v8031, %v8159
        %v8224 = vmul.f32 %v8032, %v8160
        %v8225 = vmul.f32 %v8033, %v8161
        %v8226 = vmul.f32 %v8034, %v8162
        %v8227 = vmul.f32 %v8035, %v8163
        %v8228 = vmul.f32 %v8036, %v8164
        %v8229 = vmul.f32 %v8037, %v8165
        %v8230 = vmul.f32 %v8038, %v8166
        %v8231 = vmul.f32 %v8039, %v8167
        %v8232 = vmul.f32 %v8040, %v8168
        %v8233 = vmul.f32 %v8041, %v8169
        %v8234 = vmul.f32 %v8042, %v8170
        %v8235 = vmul.f32 %v8043, %v8171
        %v8236 = vmul.f32 %v8044, %v8172
        %v8237 = vmul.f32 %v8045, %v8173
        %v8238 = vmul.f32 %v8046, %v8174
        %v8239 = vmul.f32 %v8047, %v8175
        %v8240 = vmul.f32 %v8048, %v8176
        %v8241 = vmul.f32 %v8049, %v8177
        %v8242 = vmul.f32 %v8050, %v8178
        %v8243 = vmul.f32 %v8051, %v8179
        %v8244 = vmul.f32 %v8052, %v8180
        %v8245 = vmul.f32 %v8053, %v8181
        %v8246 = vmul.f32 %v8054, %v8182
        %v8247 = vmul.f32 %v8055, %v8183
        %v8248 = vmul.f32 %v8056, %v8184
        %v8249 = vmul.f32 %v8057, %v8185
        %v8250 = vmul.f32 %v8058, %v8186
        %v8251 = vmul.f32 %v8059, %v8187
        %v8252 = vmul.f32 %v8060, %v8188
        %v8253 = vmul.f32 %v8061, %v8189
        %v8254 = vmul.f32 %v8062, %v8190
        %v8255 = vmul.f32 %v8063, %v8191
        %v8256 = vmul.f32 %v8064, %v8192
        %v8257 = vmul.f32 %v8065, %v8193
        %v8258 = vmul.f32 %v8066, %v8194
        %v8259 = vmul.f32 %v8067, %v8195
        %v8260 = vmul.f32 %v8068, %v8196
        %v8261 = vmul.f32 %v8069, %v8197
        %v8262 = vmul.f32 %v8070, %v8198
        %v8263 = vmul.f32 %v8071, %v8199
        %v8264 = vmul.f32 %v8072, %v8200
        %v8265 = vmul.f32 %v8073, %v8201
        %v8266 = vmul.f32 %v8074, %v8202
        %v8267 = vmul.f32 %v8075, %v8203
        %v8268 = vmul.f32 %v8076, %v8204
        %v8269 = vmul.f32 %v8077, %v8205
        %v8270 = vmul.f32 %v8078, %v8206
        %v8271 = vmul.f32 %v8079, %v8207
        %v8272 = vmul.f32 %v8080, %v8208
        %v8273 = vmul.f32 %v8081, %v8209
        %v8274 = vmul.f32 %v8082, %v8210
        %v8275 = vmul.f32 %v8083, %v8211
        %v8276 = vmul.f32 %v8084, %v8212
        %v8277 = vmul.f32 %v8085, %v8213
        %v8278 = vmul.f32 %v8086, %v8214
        %v8279 = vmul.f32 %v8087, %v8215
        %v8280 = vmul.f32 %v8088, %v8216
        %v8281 = vadd.f32 %v8217, -0.16666655
        %v8282 = vadd.f32 %v8218, -0.16666655
        %v8283 = vadd.f32 %v8219, -0.16666655
        %v8284 = vadd.f32 %v8220, -0.16666655
        %v8285 = vadd.f32 %v8221, -0.16666655
        %v8286 = vadd.f32 %v8222, -0.16666655
        %v8287 = vadd.f32 %v8223, -0.16666655
        %v8288 = vadd.f32 %v8224, -0.16666655
        %v8289 = vadd.f32 %v8225, -0.16666655
        %v8290 = vadd.f32 %v8226, -0.16666655
        %v8291 = vadd.f32 %v8227, -0.16666655
        %v8292 = vadd.f32 %v8228, -0.16666655
        %v8293 = vadd.f32 %v8229, -0.16666655
        %v8294 = vadd.f32 %v8230, -0.16666655
        %v8295 = vadd.f32 %v8231, -0.16666655
        %v8296 = vadd.f32 %v8232, -0.16666655
        %v8297 = vadd.f32 %v8233, -0.16666655
        %v8298 = vadd.f32 %v8234, -0.16666655
        %v8299 = vadd.f32 %v8235, -0.16666655
        %v8300 = vadd.f32 %v8236, -0.16666655
        %v8301 = vadd.f32 %v8237, -0.16666655
        %v8302 = vadd.f32 %v8238, -0.16666655
        %v8303 = vadd.f32 %v8239, -0.16666655
        %v8304 = vadd.f32 %v8240, -0.16666655
        %v8305 = vadd.f32 %v8241, -0.16666655
        %v8306 = vadd.f32 %v8242, -0.16666655
        %v8307 = vadd.f32 %v8243, -0.16666655
        %v8308 = vadd.f32 %v8244, -0.16666655
        %v8309 = vadd.f32 %v8245, -0.16666655
        %v8310 = vadd.f32 %v8246, -0.16666655
        %v8311 = vadd.f32 %v8247, -0.16666655
        %v8312 = vadd.f32 %v8248, -0.16666655
        %v8313 = vadd.f32 %v8249, -0.16666655
        %v8314 = vadd.f32 %v8250, -0.16666655
        %v8315 = vadd.f32 %v8251, -0.16666655
        %v8316 = vadd.f32 %v8252, -0.16666655
        %v8317 = vadd.f32 %v8253, -0.16666655
        %v8318 = vadd.f32 %v8254, -0.16666655
        %v8319 = vadd.f32 %v8255, -0.16666655
        %v8320 = vadd.f32 %v8256, -0.16666655
        %v8321 = vadd.f32 %v8257, -0.16666655
        %v8322 = vadd.f32 %v8258, -0.16666655
        %v8323 = vadd.f32 %v8259, -0.16666655
        %v8324 = vadd.f32 %v8260, -0.16666655
        %v8325 = vadd.f32 %v8261, -0.16666655
        %v8326 = vadd.f32 %v8262, -0.16666655
        %v8327 = vadd.f32 %v8263, -0.16666655
        %v8328 = vadd.f32 %v8264, -0.16666655
        %v8329 = vadd.f32 %v8265, -0.16666655
        %v8330 = vadd.f32 %v8266, -0.16666655
        %v8331 = vadd.f32 %v8267, -0.16666655
        %v8332 = vadd.f32 %v8268, -0.16666655
        %v8333 = vadd.f32 %v8269, -0.16666655
        %v8334 = vadd.f32 %v8270, -0.16666655
        %v8335 = vadd.f32 %v8271, -0.16666655
        %v8336 = vadd.f32 %v8272, -0.16666655
        %v8337 = vadd.f32 %v8273, -0.16666655
        %v8338 = vadd.f32 %v8274, -0.16666655
        %v8339 = vadd.f32 %v8275, -0.16666655
        %v8340 = vadd.f32 %v8276, -0.16666655
        %v8341 = vadd.f32 %v8277, -0.16666655
        %v8342 = vadd.f32 %v8278, -0.16666655
        %v8343 = vadd.f32 %v8279, -0.16666655
        %v8344 = vadd.f32 %v8280, -0.16666655
        %v8345 = vmul.f32 %v8025, %v8281
        %v8346 = vmul.f32 %v8026, %v8282
        %v8347 = vmul.f32 %v8027, %v8283
        %v8348 = vmul.f32 %v8028, %v8284
        %v8349 = vmul.f32 %v8029, %v8285
        %v8350 = vmul.f32 %v8030, %v8286
        %v8351 = vmul.f32 %v8031, %v8287
        %v8352 = vmul.f32 %v8032, %v8288
        %v8353 = vmul.f32 %v8033, %v8289
        %v8354 = vmul.f32 %v8034, %v8290
        %v8355 = vmul.f32 %v8035, %v8291
        %v8356 = vmul.f32 %v8036, %v8292
        %v8357 = vmul.f32 %v8037, %v8293
        %v8358 = vmul.f32 %v8038, %v8294
        %v8359 = vmul.f32 %v8039, %v8295
        %v8360 = vmul.f32 %v8040, %v8296
        %v8361 = vmul.f32 %v8041, %v8297
        %v8362 = vmul.f32 %v8042, %v8298
        %v8363 = vmul.f32 %v8043, %v8299
        %v8364 = vmul.f32 %v8044, %v8300
        %v8365 = vmul.f32 %v8045, %v8301
        %v8366 = vmul.f32 %v8046, %v8302
        %v8367 = vmul.f32 %v8047, %v8303
        %v8368 = vmul.f32 %v8048, %v8304
        %v8369 = vmul.f32 %v8049, %v8305
        %v8370 = vmul.f32 %v8050, %v8306
        %v8371 = vmul.f32 %v8051, %v8307
        %v8372 = vmul.f32 %v8052, %v8308
        %v8373 = vmul.f32 %v8053, %v8309
        %v8374 = vmul.f32 %v8054, %v8310
        %v8375 = vmul.f32 %v8055, %v8311
        %v8376 = vmul.f32 %v8056, %v8312
        %v8377 = vmul.f32 %v8057, %v8313
        %v8378 = vmul.f32 %v8058, %v8314
        %v8379 = vmul.f32 %v8059, %v8315
        %v8380 = vmul.f32 %v8060, %v8316
        %v8381 = vmul.f32 %v8061, %v8317
        %v8382 = vmul.f32 %v8062, %v8318
        %v8383 = vmul.f32 %v8063, %v8319
        %v8384 = vmul.f32 %v8064, %v8320
        %v8385 = vmul.f32 %v8065, %v8321
        %v8386 = vmul.f32 %v8066, %v8322
        %v8387 = vmul.f32 %v8067, %v8323
        %v8388 = vmul.f32 %v8068, %v8324
        %v8389 = vmul.f32 %v8069, %v8325
        %v8390 = vmul.f32 %v8070, %v8326
        %v8391 = vmul.f32 %v8071, %v8327
        %v8392 = vmul.f32 %v8072, %v8328
        %v8393 = vmul.f32 %v8073, %v8329
        %v8394 = vmul.f32 %v8074, %v8330
        %v8395 = vmul.f32 %v8075, %v8331
        %v8396 = vmul.f32 %v8076, %v8332
        %v8397 = vmul.f32 %v8077, %v8333
        %v8398 = vmul.f32 %v8078, %v8334
        %v8399 = vmul.f32 %v8079, %v8335
        %v8400 = vmul.f32 %v8080, %v8336
        %v8401 = vmul.f32 %v8081, %v8337
        %v8402 = vmul.f32 %v8082, %v8338
        %v8403 = vmul.f32 %v8083, %v8339
        %v8404 = vmul.f32 %v8084, %v8340
        %v8405 = vmul.f32 %v8085, %v8341
        %v8406 = vmul.f32 %v8086, %v8342
        %v8407 = vmul.f32 %v8087, %v8343
        %v8408 = vmul.f32 %v8088, %v8344
        %v8409 = vadd.f32 %v8345, 1.0
        %v8410 = vadd.f32 %v8346, 1.0
        %v8411 = vadd.f32 %v8347, 1.0
        %v8412 = vadd.f32 %v8348, 1.0
        %v8413 = vadd.f32 %v8349, 1.0
        %v8414 = vadd.f32 %v8350, 1.0
        %v8415 = vadd.f32 %v8351, 1.0
        %v8416 = vadd.f32 %v8352, 1.0
        %v8417 = vadd.f32 %v8353, 1.0
        %v8418 = vadd.f32 %v8354, 1.0
        %v8419 = vadd.f32 %v8355, 1.0
        %v8420 = vadd.f32 %v8356, 1.0
        %v8421 = vadd.f32 %v8357, 1.0
        %v8422 = vadd.f32 %v8358, 1.0
        %v8423 = vadd.f32 %v8359, 1.0
        %v8424 = vadd.f32 %v8360, 1.0
        %v8425 = vadd.f32 %v8361, 1.0
        %v8426 = vadd.f32 %v8362, 1.0
        %v8427 = vadd.f32 %v8363, 1.0
        %v8428 = vadd.f32 %v8364, 1.0
        %v8429 = vadd.f32 %v8365, 1.0
        %v8430 = vadd.f32 %v8366, 1.0
        %v8431 = vadd.f32 %v8367, 1.0
        %v8432 = vadd.f32 %v8368, 1.0
        %v8433 = vadd.f32 %v8369, 1.0
        %v8434 = vadd.f32 %v8370, 1.0
        %v8435 = vadd.f32 %v8371, 1.0
        %v8436 = vadd.f32 %v8372, 1.0
        %v8437 = vadd.f32 %v8373, 1.0
        %v8438 = vadd.f32 %v8374, 1.0
        %v8439 = vadd.f32 %v8375, 1.0
        %v8440 = vadd.f32 %v8376, 1.0
        %v8441 = vadd.f32 %v8377, 1.0
        %v8442 = vadd.f32 %v8378, 1.0
        %v8443 = vadd.f32 %v8379, 1.0
        %v8444 = vadd.f32 %v8380, 1.0
        %v8445 = vadd.f32 %v8381, 1.0
        %v8446 = vadd.f32 %v8382, 1.0
        %v8447 = vadd.f32 %v8383, 1.0
        %v8448 = vadd.f32 %v8384, 1.0
        %v8449 = vadd.f32 %v8385, 1.0
        %v8450 = vadd.f32 %v8386, 1.0
        %v8451 = vadd.f32 %v8387, 1.0
        %v8452 = vadd.f32 %v8388, 1.0
        %v8453 = vadd.f32 %v8389, 1.0
        %v8454 = vadd.f32 %v8390, 1.0
        %v8455 = vadd.f32 %v8391, 1.0
        %v8456 = vadd.f32 %v8392, 1.0
        %v8457 = vadd.f32 %v8393, 1.0
        %v8458 = vadd.f32 %v8394, 1.0
        %v8459 = vadd.f32 %v8395, 1.0
        %v8460 = vadd.f32 %v8396, 1.0
        %v8461 = vadd.f32 %v8397, 1.0
        %v8462 = vadd.f32 %v8398, 1.0
        %v8463 = vadd.f32 %v8399, 1.0
        %v8464 = vadd.f32 %v8400, 1.0
        %v8465 = vadd.f32 %v8401, 1.0
        %v8466 = vadd.f32 %v8402, 1.0
        %v8467 = vadd.f32 %v8403, 1.0
        %v8468 = vadd.f32 %v8404, 1.0
        %v8469 = vadd.f32 %v8405, 1.0
        %v8470 = vadd.f32 %v8406, 1.0
        %v8471 = vadd.f32 %v8407, 1.0
        %v8472 = vadd.f32 %v8408, 1.0
        %v8473 = vmul.f32 %v7961, %v8409
        %v8474 = vmul.f32 %v7962, %v8410
        %v8475 = vmul.f32 %v7963, %v8411
        %v8476 = vmul.f32 %v7964, %v8412
        %v8477 = vmul.f32 %v7965, %v8413
        %v8478 = vmul.f32 %v7966, %v8414
        %v8479 = vmul.f32 %v7967, %v8415
        %v8480 = vmul.f32 %v7968, %v8416
        %v8481 = vmul.f32 %v7969, %v8417
        %v8482 = vmul.f32 %v7970, %v8418
        %v8483 = vmul.f32 %v7971, %v8419
        %v8484 = vmul.f32 %v7972, %v8420
        %v8485 = vmul.f32 %v7973, %v8421
        %v8486 = vmul.f32 %v7974, %v8422
        %v8487 = vmul.f32 %v7975, %v8423
        %v8488 = vmul.f32 %v7976, %v8424
        %v8489 = vmul.f32 %v7977, %v8425
        %v8490 = vmul.f32 %v7978, %v8426
        %v8491 = vmul.f32 %v7979, %v8427
        %v8492 = vmul.f32 %v7980, %v8428
        %v8493 = vmul.f32 %v7981, %v8429
        %v8494 = vmul.f32 %v7982, %v8430
        %v8495 = vmul.f32 %v7983, %v8431
        %v8496 = vmul.f32 %v7984, %v8432
        %v8497 = vmul.f32 %v7985, %v8433
        %v8498 = vmul.f32 %v7986, %v8434
        %v8499 = vmul.f32 %v7987, %v8435
        %v8500 = vmul.f32 %v7988, %v8436
        %v8501 = vmul.f32 %v7989, %v8437
        %v8502 = vmul.f32 %v7990, %v8438
        %v8503 = vmul.f32 %v7991, %v8439
        %v8504 = vmul.f32 %v7992, %v8440
        %v8505 = vmul.f32 %v7993, %v8441
        %v8506 = vmul.f32 %v7994, %v8442
        %v8507 = vmul.f32 %v7995, %v8443
        %v8508 = vmul.f32 %v7996, %v8444
        %v8509 = vmul.f32 %v7997, %v8445
        %v8510 = vmul.f32 %v7998, %v8446
        %v8511 = vmul.f32 %v7999, %v8447
        %v8512 = vmul.f32 %v8000, %v8448
        %v8513 = vmul.f32 %v8001, %v8449
        %v8514 = vmul.f32 %v8002, %v8450
        %v8515 = vmul.f32 %v8003, %v8451
        %v8516 = vmul.f32 %v8004, %v8452
        %v8517 = vmul.f32 %v8005, %v8453
        %v8518 = vmul.f32 %v8006, %v8454
        %v8519 = vmul.f32 %v8007, %v8455
        %v8520 = vmul.f32 %v8008, %v8456
        %v8521 = vmul.f32 %v8009, %v8457
        %v8522 = vmul.f32 %v8010, %v8458
        %v8523 = vmul.f32 %v8011, %v8459
        %v8524 = vmul.f32 %v8012, %v8460
        %v8525 = vmul.f32 %v8013, %v8461
        %v8526 = vmul.f32 %v8014, %v8462
        %v8527 = vmul.f32 %v8015, %v8463
        %v8528 = vmul.f32 %v8016, %v8464
        %v8529 = vmul.f32 %v8017, %v8465
        %v8530 = vmul.f32 %v8018, %v8466
        %v8531 = vmul.f32 %v8019, %v8467
        %v8532 = vmul.f32 %v8020, %v8468
        %v8533 = vmul.f32 %v8021, %v8469
        %v8534 = vmul.f32 %v8022, %v8470
        %v8535 = vmul.f32 %v8023, %v8471
        %v8536 = vmul.f32 %v8024, %v8472
        %s8537 = scalar_lea.vmem %s3, 256
        %v8538 = vld [vmem:[%s8537] sm:$0xf]
        %v8539 = vld [vmem:[%s8537 + $0x4] sm:$0xf]
        %v8540 = vld [vmem:[%s8537 + $0x8] sm:$0xf]
        %v8541 = vld [vmem:[%s8537 + $0xc] sm:$0xf]
        %v8542 = vld [vmem:[%s8537 + $0x10] sm:$0xf]
        %v8543 = vld [vmem:[%s8537 + $0x14] sm:$0xf]
        %v8544 = vld [vmem:[%s8537 + $0x18] sm:$0xf]
        %v8545 = vld [vmem:[%s8537 + $0x1c] sm:$0xf]
        %v8546 = vld [vmem:[%s8537 + $0x20] sm:$0xf]
        %v8547 = vld [vmem:[%s8537 + $0x24] sm:$0xf]
        %v8548 = vld [vmem:[%s8537 + $0x28] sm:$0xf]
        %v8549 = vld [vmem:[%s8537 + $0x2c] sm:$0xf]
        %v8550 = vld [vmem:[%s8537 + $0x30] sm:$0xf]
        %v8551 = vld [vmem:[%s8537 + $0x34] sm:$0xf]
        %v8552 = vld [vmem:[%s8537 + $0x38] sm:$0xf]
        %v8553 = vld [vmem:[%s8537 + $0x3c] sm:$0xf]
        %v8554 = vpack.c.bf16 %v8477, %v8473
        %v8555 = vpack.c.bf16 %v8478, %v8474
        %v8556 = vpack.c.bf16 %v8479, %v8475
        %v8557 = vpack.c.bf16 %v8480, %v8476
        %v8558 = vpack.c.bf16 %v8485, %v8481
        %v8559 = vpack.c.bf16 %v8486, %v8482
        %v8560 = vpack.c.bf16 %v8487, %v8483
        %v8561 = vpack.c.bf16 %v8488, %v8484
        %v8562 = vpack.c.bf16 %v8493, %v8489
        %v8563 = vpack.c.bf16 %v8494, %v8490
        %v8564 = vpack.c.bf16 %v8495, %v8491
        %v8565 = vpack.c.bf16 %v8496, %v8492
        %v8566 = vpack.c.bf16 %v8501, %v8497
        %v8567 = vpack.c.bf16 %v8502, %v8498
        %v8568 = vpack.c.bf16 %v8503, %v8499
        %v8569 = vpack.c.bf16 %v8504, %v8500
        %v8570 = vpack.c.bf16 %v8509, %v8505
        %v8571 = vpack.c.bf16 %v8510, %v8506
        %v8572 = vpack.c.bf16 %v8511, %v8507
        %v8573 = vpack.c.bf16 %v8512, %v8508
        %v8574 = vpack.c.bf16 %v8517, %v8513
        %v8575 = vpack.c.bf16 %v8518, %v8514
        %v8576 = vpack.c.bf16 %v8519, %v8515
        %v8577 = vpack.c.bf16 %v8520, %v8516
        %v8578 = vpack.c.bf16 %v8525, %v8521
        %v8579 = vpack.c.bf16 %v8526, %v8522
        %v8580 = vpack.c.bf16 %v8527, %v8523
        %v8581 = vpack.c.bf16 %v8528, %v8524
        %v8582 = vpack.c.bf16 %v8533, %v8529
        %v8583 = vpack.c.bf16 %v8534, %v8530
        %v8584 = vpack.c.bf16 %v8535, %v8531
        %v8585 = vpack.c.bf16 %v8536, %v8532
        %s8586 = scalar_lea.vmem %s4, 512
        %v8587 = vld [vmem:[%s8586] sm:$0xff]
        %v8588 = vld [vmem:[%s8586 + $0x8] sm:$0xff]
        %v8589 = vld [vmem:[%s8586 + $0x10] sm:$0xff]
        %v8590 = vld [vmem:[%s8586 + $0x18] sm:$0xff]
        %v8591 = vld [vmem:[%s8586 + $0x20] sm:$0xff]
        %v8592 = vld [vmem:[%s8586 + $0x28] sm:$0xff]
        %v8593 = vld [vmem:[%s8586 + $0x30] sm:$0xff]
        %v8594 = vld [vmem:[%s8586 + $0x38] sm:$0xff]
        %v8595 = vld [vmem:[%s8586 + $0x40] sm:$0xff]
        %v8596 = vld [vmem:[%s8586 + $0x48] sm:$0xff]
        %v8597 = vld [vmem:[%s8586 + $0x50] sm:$0xff]
        %v8598 = vld [vmem:[%s8586 + $0x58] sm:$0xff]
        %v8599 = vld [vmem:[%s8586 + $0x60] sm:$0xff]
        %v8600 = vld [vmem:[%s8586 + $0x68] sm:$0xff]
        %v8601 = vld [vmem:[%s8586 + $0x70] sm:$0xff]
        %v8602 = vld [vmem:[%s8586 + $0x78] sm:$0xff]
        %8604 = vset.pattern.permute.xlu0 0
        %8605 = vperm.xlu0 %8604, %v8587
        %v8606 = vpop.permute.xlu0 %8605
        %8609 = vset.pattern.permute.xlu0 0
        %8610 = vperm.xlu0 %8609, %v8588
        %v8611 = vpop.permute.xlu0 %8610
        %8614 = vset.pattern.permute.xlu0 0
        %8615 = vperm.xlu0 %8614, %v8589
        %v8616 = vpop.permute.xlu0 %8615
        %8619 = vset.pattern.permute.xlu0 0
        %8620 = vperm.xlu0 %8619, %v8590
        %v8621 = vpop.permute.xlu0 %8620
        %8624 = vset.pattern.permute.xlu0 0
        %8625 = vperm.xlu0 %8624, %v8591
        %v8626 = vpop.permute.xlu0 %8625
        %8629 = vset.pattern.permute.xlu0 0
        %8630 = vperm.xlu0 %8629, %v8592
        %v8631 = vpop.permute.xlu0 %8630
        %8634 = vset.pattern.permute.xlu0 0
        %8635 = vperm.xlu0 %8634, %v8593
        %v8636 = vpop.permute.xlu0 %8635
        %8639 = vset.pattern.permute.xlu0 0
        %8640 = vperm.xlu0 %8639, %v8594
        %v8641 = vpop.permute.xlu0 %8640
        %8644 = vset.pattern.permute.xlu0 0
        %8645 = vperm.xlu0 %8644, %v8595
        %v8646 = vpop.permute.xlu0 %8645
        %8649 = vset.pattern.permute.xlu0 0
        %8650 = vperm.xlu0 %8649, %v8596
        %v8651 = vpop.permute.xlu0 %8650
        %8654 = vset.pattern.permute.xlu0 0
        %8655 = vperm.xlu0 %8654, %v8597
        %v8656 = vpop.permute.xlu0 %8655
        %8659 = vset.pattern.permute.xlu0 0
        %8660 = vperm.xlu0 %8659, %v8598
        %v8661 = vpop.permute.xlu0 %8660
        %8664 = vset.pattern.permute.xlu0 0
        %8665 = vperm.xlu0 %8664, %v8599
        %v8666 = vpop.permute.xlu0 %8665
        %8669 = vset.pattern.permute.xlu0 0
        %8670 = vperm.xlu0 %8669, %v8600
        %v8671 = vpop.permute.xlu0 %8670
        %8674 = vset.pattern.permute.xlu0 0
        %8675 = vperm.xlu0 %8674, %v8601
        %v8676 = vpop.permute.xlu0 %8675
        %8679 = vset.pattern.permute.xlu0 0
        %8680 = vperm.xlu0 %8679, %v8602
        %v8681 = vpop.permute.xlu0 %8680
        %v8699 = vunpack.c.l.b16 %v8538
        %v8700 = vunpack.c.l.b16 %v8539
        %v8701 = vunpack.c.l.b16 %v8540
        %v8702 = vunpack.c.l.b16 %v8541
        %v8703 = vunpack.c.l.b16 %v8542
        %v8704 = vunpack.c.l.b16 %v8543
        %v8705 = vunpack.c.l.b16 %v8544
        %v8706 = vunpack.c.l.b16 %v8545
        %v8707 = vunpack.c.l.b16 %v8546
        %v8708 = vunpack.c.l.b16 %v8547
        %v8709 = vunpack.c.l.b16 %v8548
        %v8710 = vunpack.c.l.b16 %v8549
        %v8711 = vunpack.c.l.b16 %v8550
        %v8712 = vunpack.c.l.b16 %v8551
        %v8713 = vunpack.c.l.b16 %v8552
        %v8714 = vunpack.c.l.b16 %v8553
        %v8715 = vpack.c.b16 %v8700, %v8699
        %v8716 = vpack.c.b16 %v8702, %v8701
        %v8717 = vpack.c.b16 %v8704, %v8703
        %v8718 = vpack.c.b16 %v8706, %v8705
        %v8719 = vpack.c.b16 %v8708, %v8707
        %v8720 = vpack.c.b16 %v8710, %v8709
        %v8721 = vpack.c.b16 %v8712, %v8711
        %v8722 = vpack.c.b16 %v8714, %v8713
        %8731 = vmatprep.subr.bf16.mxu0 %v8583
        %8732 = vmatpush1.bf16.msra.mxu0 %v8582
        %8733 = vmatprep.subr.bf16.mxu0 %v8579
        %8734 = vmatpush1.bf16.msra.mxu0 %v8578
        %8735 = vmatprep.subr.bf16.mxu0 %v8575
        %8736 = vmatpush1.bf16.msra.mxu0 %v8574
        %8737 = vmatprep.subr.bf16.mxu0 %v8571
        %8738 = vmatpush1.bf16.msra.mxu0 %v8570
        %8739 = vmatprep.subr.bf16.mxu0 %v8567
        %8740 = vmatpush1.bf16.msra.mxu0 %v8566
        %8741 = vmatprep.subr.bf16.mxu0 %v8563
        %8742 = vmatpush1.bf16.msra.mxu0 %v8562
        %8743 = vmatprep.subr.bf16.mxu0 %v8559
        %8744 = vmatpush1.bf16.msra.mxu0 %v8558
        %8745 = vmatprep.subr.bf16.mxu0 %v8555
        %8746 = vmatpush1.bf16.msra.mxu0 %v8554
        %8747 = vmatprep.subr.bf16.mxu0 0
        %8748 = vmatpush2.bf16.msra.mxu0 0
        %8749 = vmatprep.subr.bf16.mxu0 0
        %8750 = vmatpush2.bf16.msra.mxu0 0
        %8751 = vmatprep.subr.bf16.mxu0 0
        %8752 = vmatpush2.bf16.msra.mxu0 0
        %8753 = vmatprep.subr.bf16.mxu0 0
        %8754 = vmatpush2.bf16.msra.mxu0 0
        %8755 = vmatprep.subr.bf16.mxu0 0
        %8756 = vmatpush2.bf16.msra.mxu0 0
        %8757 = vmatprep.subr.bf16.mxu0 0
        %8758 = vmatpush2.bf16.msra.mxu0 0
        %8759 = vmatprep.subr.bf16.mxu0 0
        %8760 = vmatpush2.bf16.msra.mxu0 0
        %8761 = vmatprep.subr.bf16.mxu0 0
        %8762 = vmatpush2.bf16.msra.mxu0 0
        %8763 = vmatprep.mubr.bf16.mxu0 0
        %8764 = vmatmul.mubr.bf16.gmra.mxu0 %v8715
        %v8765 = vpop.f32.mrf.mxu0
        %v8766 = vadd.f32 %v8606, %v8765
        %v8767 = vpop.f32.mrf.mxu0
        %v8768 = vadd.f32 %v8606, %v8767
        %v8769 = vpop.f32.mrf.mxu0
        %v8770 = vadd.f32 %v8611, %v8769
        %v8771 = vpop.f32.mrf.mxu0
        %v8772 = vadd.f32 %v8611, %v8771
        %8773 = vmatprep.mubr.bf16.mxu0 0
        %8774 = vmatmul.mubr.bf16.gmra.mxu0 %v8716
        %v8775 = vpop.f32.mrf.mxu0
        %v8776 = vadd.f32 %v8616, %v8775
        %v8777 = vpop.f32.mrf.mxu0
        %v8778 = vadd.f32 %v8616, %v8777
        %v8779 = vpop.f32.mrf.mxu0
        %v8780 = vadd.f32 %v8621, %v8779
        %v8781 = vpop.f32.mrf.mxu0
        %v8782 = vadd.f32 %v8621, %v8781
        %8783 = vmatprep.mubr.bf16.mxu0 0
        %8784 = vmatmul.mubr.bf16.gmra.mxu0 %v8717
        %v8785 = vpop.f32.mrf.mxu0
        %v8786 = vadd.f32 %v8626, %v8785
        %v8787 = vpop.f32.mrf.mxu0
        %v8788 = vadd.f32 %v8626, %v8787
        %v8789 = vpop.f32.mrf.mxu0
        %v8790 = vadd.f32 %v8631, %v8789
        %v8791 = vpop.f32.mrf.mxu0
        %v8792 = vadd.f32 %v8631, %v8791
        %8793 = vmatprep.mubr.bf16.mxu0 0
        %8794 = vmatmul.mubr.bf16.gmra.mxu0 %v8718
        %v8795 = vpop.f32.mrf.mxu0
        %v8796 = vadd.f32 %v8636, %v8795
        %v8797 = vpop.f32.mrf.mxu0
        %v8798 = vadd.f32 %v8636, %v8797
        %v8799 = vpop.f32.mrf.mxu0
        %v8800 = vadd.f32 %v8641, %v8799
        %v8801 = vpop.f32.mrf.mxu0
        %v8802 = vadd.f32 %v8641, %v8801
        %8803 = vmatprep.mubr.bf16.mxu0 0
        %8804 = vmatmul.mubr.bf16.gmra.mxu0 %v8719
        %v8805 = vpop.f32.mrf.mxu0
        %v8806 = vadd.f32 %v8646, %v8805
        %v8807 = vpop.f32.mrf.mxu0
        %v8808 = vadd.f32 %v8646, %v8807
        %v8809 = vpop.f32.mrf.mxu0
        %v8810 = vadd.f32 %v8651, %v8809
        %v8811 = vpop.f32.mrf.mxu0
        %v8812 = vadd.f32 %v8651, %v8811
        %8813 = vmatprep.mubr.bf16.mxu0 0
        %8814 = vmatmul.mubr.bf16.gmra.mxu0 %v8720
        %v8815 = vpop.f32.mrf.mxu0
        %v8816 = vadd.f32 %v8656, %v8815
        %v8817 = vpop.f32.mrf.mxu0
        %v8818 = vadd.f32 %v8656, %v8817
        %v8819 = vpop.f32.mrf.mxu0
        %v8820 = vadd.f32 %v8661, %v8819
        %v8821 = vpop.f32.mrf.mxu0
        %v8822 = vadd.f32 %v8661, %v8821
        %8823 = vmatprep.mubr.bf16.mxu0 0
        %8824 = vmatmul.mubr.bf16.gmra.mxu0 %v8721
        %v8825 = vpop.f32.mrf.mxu0
        %v8826 = vadd.f32 %v8666, %v8825
        %v8827 = vpop.f32.mrf.mxu0
        %v8828 = vadd.f32 %v8666, %v8827
        %v8829 = vpop.f32.mrf.mxu0
        %v8830 = vadd.f32 %v8671, %v8829
        %v8831 = vpop.f32.mrf.mxu0
        %v8832 = vadd.f32 %v8671, %v8831
        %8833 = vmatprep.mubr.bf16.mxu0 0
        %8834 = vmatmul.mubr.bf16.gmra.mxu0 %v8722
        %v8835 = vpop.f32.mrf.mxu0
        %v8836 = vadd.f32 %v8676, %v8835
        %v8837 = vpop.f32.mrf.mxu0
        %v8838 = vadd.f32 %v8676, %v8837
        %v8839 = vpop.f32.mrf.mxu0
        %v8840 = vadd.f32 %v8681, %v8839
        %v8841 = vpop.f32.mrf.mxu0
        %v8842 = vadd.f32 %v8681, %v8841
        %8843 = vdwg.mxu0
        %8844 = vmatprep.subr.bf16.mxu0 %v8585
        %8845 = vmatpush1.bf16.msra.mxu0 %v8584
        %8846 = vmatprep.subr.bf16.mxu0 %v8581
        %8847 = vmatpush1.bf16.msra.mxu0 %v8580
        %8848 = vmatprep.subr.bf16.mxu0 %v8577
        %8849 = vmatpush1.bf16.msra.mxu0 %v8576
        %8850 = vmatprep.subr.bf16.mxu0 %v8573
        %8851 = vmatpush1.bf16.msra.mxu0 %v8572
        %8852 = vmatprep.subr.bf16.mxu0 %v8569
        %8853 = vmatpush1.bf16.msra.mxu0 %v8568
        %8854 = vmatprep.subr.bf16.mxu0 %v8565
        %8855 = vmatpush1.bf16.msra.mxu0 %v8564
        %8856 = vmatprep.subr.bf16.mxu0 %v8561
        %8857 = vmatpush1.bf16.msra.mxu0 %v8560
        %8858 = vmatprep.subr.bf16.mxu0 %v8557
        %8859 = vmatpush1.bf16.msra.mxu0 %v8556
        %8860 = vmatprep.subr.bf16.mxu0 0
        %8861 = vmatpush2.bf16.msra.mxu0 0
        %8862 = vmatprep.subr.bf16.mxu0 0
        %8863 = vmatpush2.bf16.msra.mxu0 0
        %8864 = vmatprep.subr.bf16.mxu0 0
        %8865 = vmatpush2.bf16.msra.mxu0 0
        %8866 = vmatprep.subr.bf16.mxu0 0
        %8867 = vmatpush2.bf16.msra.mxu0 0
        %8868 = vmatprep.subr.bf16.mxu0 0
        %8869 = vmatpush2.bf16.msra.mxu0 0
        %8870 = vmatprep.subr.bf16.mxu0 0
        %8871 = vmatpush2.bf16.msra.mxu0 0
        %8872 = vmatprep.subr.bf16.mxu0 0
        %8873 = vmatpush2.bf16.msra.mxu0 0
        %8874 = vmatprep.subr.bf16.mxu0 0
        %8875 = vmatpush2.bf16.msra.mxu0 0
        %8876 = vmatprep.mubr.bf16.mxu0 0
        %8877 = vmatmul.mubr.bf16.gmra.mxu0 %v8715
        %v8878 = vpop.f32.mrf.mxu0
        %v8879 = vadd.f32 %v8606, %v8878
        %v8880 = vpop.f32.mrf.mxu0
        %v8881 = vadd.f32 %v8606, %v8880
        %v8882 = vpop.f32.mrf.mxu0
        %v8883 = vadd.f32 %v8611, %v8882
        %v8884 = vpop.f32.mrf.mxu0
        %v8885 = vadd.f32 %v8611, %v8884
        %8886 = vmatprep.mubr.bf16.mxu0 0
        %8887 = vmatmul.mubr.bf16.gmra.mxu0 %v8716
        %v8888 = vpop.f32.mrf.mxu0
        %v8889 = vadd.f32 %v8616, %v8888
        %v8890 = vpop.f32.mrf.mxu0
        %v8891 = vadd.f32 %v8616, %v8890
        %v8892 = vpop.f32.mrf.mxu0
        %v8893 = vadd.f32 %v8621, %v8892
        %v8894 = vpop.f32.mrf.mxu0
        %v8895 = vadd.f32 %v8621, %v8894
        %8896 = vmatprep.mubr.bf16.mxu0 0
        %8897 = vmatmul.mubr.bf16.gmra.mxu0 %v8717
        %v8898 = vpop.f32.mrf.mxu0
        %v8899 = vadd.f32 %v8626, %v8898
        %v8900 = vpop.f32.mrf.mxu0
        %v8901 = vadd.f32 %v8626, %v8900
        %v8902 = vpop.f32.mrf.mxu0
        %v8903 = vadd.f32 %v8631, %v8902
        %v8904 = vpop.f32.mrf.mxu0
        %v8905 = vadd.f32 %v8631, %v8904
        %8906 = vmatprep.mubr.bf16.mxu0 0
        %8907 = vmatmul.mubr.bf16.gmra.mxu0 %v8718
        %v8908 = vpop.f32.mrf.mxu0
        %v8909 = vadd.f32 %v8636, %v8908
        %v8910 = vpop.f32.mrf.mxu0
        %v8911 = vadd.f32 %v8636, %v8910
        %v8912 = vpop.f32.mrf.mxu0
        %v8913 = vadd.f32 %v8641, %v8912
        %v8914 = vpop.f32.mrf.mxu0
        %v8915 = vadd.f32 %v8641, %v8914
        %8916 = vmatprep.mubr.bf16.mxu0 0
        %8917 = vmatmul.mubr.bf16.gmra.mxu0 %v8719
        %v8918 = vpop.f32.mrf.mxu0
        %v8919 = vadd.f32 %v8646, %v8918
        %v8920 = vpop.f32.mrf.mxu0
        %v8921 = vadd.f32 %v8646, %v8920
        %v8922 = vpop.f32.mrf.mxu0
        %v8923 = vadd.f32 %v8651, %v8922
        %v8924 = vpop.f32.mrf.mxu0
        %v8925 = vadd.f32 %v8651, %v8924
        %8926 = vmatprep.mubr.bf16.mxu0 0
        %8927 = vmatmul.mubr.bf16.gmra.mxu0 %v8720
        %v8928 = vpop.f32.mrf.mxu0
        %v8929 = vadd.f32 %v8656, %v8928
        %v8930 = vpop.f32.mrf.mxu0
        %v8931 = vadd.f32 %v8656, %v8930
        %v8932 = vpop.f32.mrf.mxu0
        %v8933 = vadd.f32 %v8661, %v8932
        %v8934 = vpop.f32.mrf.mxu0
        %v8935 = vadd.f32 %v8661, %v8934
        %8936 = vmatprep.mubr.bf16.mxu0 0
        %8937 = vmatmul.mubr.bf16.gmra.mxu0 %v8721
        %v8938 = vpop.f32.mrf.mxu0
        %v8939 = vadd.f32 %v8666, %v8938
        %v8940 = vpop.f32.mrf.mxu0
        %v8941 = vadd.f32 %v8666, %v8940
        %v8942 = vpop.f32.mrf.mxu0
        %v8943 = vadd.f32 %v8671, %v8942
        %v8944 = vpop.f32.mrf.mxu0
        %v8945 = vadd.f32 %v8671, %v8944
        %8946 = vmatprep.mubr.bf16.mxu0 0
        %8947 = vmatmul.mubr.bf16.gmra.mxu0 %v8722
        %v8948 = vpop.f32.mrf.mxu0
        %v8949 = vadd.f32 %v8676, %v8948
        %v8950 = vpop.f32.mrf.mxu0
        %v8951 = vadd.f32 %v8676, %v8950
        %v8952 = vpop.f32.mrf.mxu0
        %v8953 = vadd.f32 %v8681, %v8952
        %v8954 = vpop.f32.mrf.mxu0
        %v8955 = vadd.f32 %v8681, %v8954
        %8956 = vdwg.mxu0
        %v8957 = vmul.f32 %v8766, 0.15915494
        %v8958 = vmul.f32 %v8768, 0.15915494
        %v8959 = vmul.f32 %v8879, 0.15915494
        %v8960 = vmul.f32 %v8881, 0.15915494
        %v8961 = vmul.f32 %v8770, 0.15915494
        %v8962 = vmul.f32 %v8772, 0.15915494
        %v8963 = vmul.f32 %v8883, 0.15915494
        %v8964 = vmul.f32 %v8885, 0.15915494
        %v8965 = vmul.f32 %v8776, 0.15915494
        %v8966 = vmul.f32 %v8778, 0.15915494
        %v8967 = vmul.f32 %v8889, 0.15915494
        %v8968 = vmul.f32 %v8891, 0.15915494
        %v8969 = vmul.f32 %v8780, 0.15915494
        %v8970 = vmul.f32 %v8782, 0.15915494
        %v8971 = vmul.f32 %v8893, 0.15915494
        %v8972 = vmul.f32 %v8895, 0.15915494
        %v8973 = vmul.f32 %v8786, 0.15915494
        %v8974 = vmul.f32 %v8788, 0.15915494
        %v8975 = vmul.f32 %v8899, 0.15915494
        %v8976 = vmul.f32 %v8901, 0.15915494
        %v8977 = vmul.f32 %v8790, 0.15915494
        %v8978 = vmul.f32 %v8792, 0.15915494
        %v8979 = vmul.f32 %v8903, 0.15915494
        %v8980 = vmul.f32 %v8905, 0.15915494
        %v8981 = vmul.f32 %v8796, 0.15915494
        %v8982 = vmul.f32 %v8798, 0.15915494
        %v8983 = vmul.f32 %v8909, 0.15915494
        %v8984 = vmul.f32 %v8911, 0.15915494
        %v8985 = vmul.f32 %v8800, 0.15915494
        %v8986 = vmul.f32 %v8802, 0.15915494
        %v8987 = vmul.f32 %v8913, 0.15915494
        %v8988 = vmul.f32 %v8915, 0.15915494
        %v8989 = vmul.f32 %v8806, 0.15915494
        %v8990 = vmul.f32 %v8808, 0.15915494
        %v8991 = vmul.f32 %v8919, 0.15915494
        %v8992 = vmul.f32 %v8921, 0.15915494
        %v8993 = vmul.f32 %v8810, 0.15915494
        %v8994 = vmul.f32 %v8812, 0.15915494
        %v8995 = vmul.f32 %v8923, 0.15915494
        %v8996 = vmul.f32 %v8925, 0.15915494
        %v8997 = vmul.f32 %v8816, 0.15915494
        %v8998 = vmul.f32 %v8818, 0.15915494
        %v8999 = vmul.f32 %v8929, 0.15915494
        %v9000 = vmul.f32 %v8931, 0.15915494
        %v9001 = vmul.f32 %v8820, 0.15915494
        %v9002 = vmul.f32 %v8822, 0.15915494
        %v9003 = vmul.f32 %v8933, 0.15915494
        %v9004 = vmul.f32 %v8935, 0.15915494
        %v9005 = vmul.f32 %v8826, 0.15915494
        %v9006 = vmul.f32 %v8828, 0.15915494
        %v9007 = vmul.f32 %v8939, 0.15915494
        %v9008 = vmul.f32 %v8941, 0.15915494
        %v9009 = vmul.f32 %v8830, 0.15915494
        %v9010 = vmul.f32 %v8832, 0.15915494
        %v9011 = vmul.f32 %v8943, 0.15915494
        %v9012 = vmul.f32 %v8945, 0.15915494
        %v9013 = vmul.f32 %v8836, 0.15915494
        %v9014 = vmul.f32 %v8838, 0.15915494
        %v9015 = vmul.f32 %v8949, 0.15915494
        %v9016 = vmul.f32 %v8951, 0.15915494
        %v9017 = vmul.f32 %v8840, 0.15915494
        %v9018 = vmul.f32 %v8842, 0.15915494
        %v9019 = vmul.f32 %v8953, 0.15915494
        %v9020 = vmul.f32 %v8955, 0.15915494
        %v9021 = vadd.f32 %v8957, 0.5
        %v9022 = vadd.f32 %v8958, 0.5
        %v9023 = vadd.f32 %v8959, 0.5
        %v9024 = vadd.f32 %v8960, 0.5
        %v9025 = vadd.f32 %v8961, 0.5
        %v9026 = vadd.f32 %v8962, 0.5
        %v9027 = vadd.f32 %v8963, 0.5
        %v9028 = vadd.f32 %v8964, 0.5
        %v9029 = vadd.f32 %v8965, 0.5
        %v9030 = vadd.f32 %v8966, 0.5
        %v9031 = vadd.f32 %v8967, 0.5
        %v9032 = vadd.f32 %v8968, 0.5
        %v9033 = vadd.f32 %v8969, 0.5
        %v9034 = vadd.f32 %v8970, 0.5
        %v9035 = vadd.f32 %v8971, 0.5
        %v9036 = vadd.f32 %v8972, 0.5
        %v9037 = vadd.f32 %v8973, 0.5
        %v9038 = vadd.f32 %v8974, 0.5
        %v9039 = vadd.f32 %v8975, 0.5
        %v9040 = vadd.f32 %v8976, 0.5
        %v9041 = vadd.f32 %v8977, 0.5
        %v9042 = vadd.f32 %v8978, 0.5
        %v9043 = vadd.f32 %v8979, 0.5
        %v9044 = vadd.f32 %v8980, 0.5
        %v9045 = vadd.f32 %v8981, 0.5
        %v9046 = vadd.f32 %v8982, 0.5
        %v9047 = vadd.f32 %v8983, 0.5
        %v9048 = vadd.f32 %v8984, 0.5
        %v9049 = vadd.f32 %v8985, 0.5
        %v9050 = vadd.f32 %v8986, 0.5
        %v9051 = vadd.f32 %v8987, 0.5
        %v9052 = vadd.f32 %v8988, 0.5
        %v9053 = vadd.f32 %v8989, 0.5
        %v9054 = vadd.f32 %v8990, 0.5
        %v9055 = vadd.f32 %v8991, 0.5
        %v9056 = vadd.f32 %v8992, 0.5
        %v9057 = vadd.f32 %v8993, 0.5
        %v9058 = vadd.f32 %v8994, 0.5
        %v9059 = vadd.f32 %v8995, 0.5
        %v9060 = vadd.f32 %v8996, 0.5
        %v9061 = vadd.f32 %v8997, 0.5
        %v9062 = vadd.f32 %v8998, 0.5
        %v9063 = vadd.f32 %v8999, 0.5
        %v9064 = vadd.f32 %v9000, 0.5
        %v9065 = vadd.f32 %v9001, 0.5
        %v9066 = vadd.f32 %v9002, 0.5
        %v9067 = vadd.f32 %v9003, 0.5
        %v9068 = vadd.f32 %v9004, 0.5
        %v9069 = vadd.f32 %v9005, 0.5
        %v9070 = vadd.f32 %v9006, 0.5
        %v9071 = vadd.f32 %v9007, 0.5
        %v9072 = vadd.f32 %v9008, 0.5
        %v9073 = vadd.f32 %v9009, 0.5
        %v9074 = vadd.f32 %v9010, 0.5
        %v9075 = vadd.f32 %v9011, 0.5
        %v9076 = vadd.f32 %v9012, 0.5
        %v9077 = vadd.f32 %v9013, 0.5
        %v9078 = vadd.f32 %v9014, 0.5
        %v9079 = vadd.f32 %v9015, 0.5
        %v9080 = vadd.f32 %v9016, 0.5
        %v9081 = vadd.f32 %v9017, 0.5
        %v9082 = vadd.f32 %v9018, 0.5
        %v9083 = vadd.f32 %v9019, 0.5
        %v9084 = vadd.f32 %v9020, 0.5
        %v9085 = vfloor.f32 %v9021
        %v9086 = vfloor.f32 %v9022
        %v9087 = vfloor.f32 %v9023
        %v9088 = vfloor.f32 %v9024
        %v9089 = vfloor.f32 %v9025
        %v9090 = vfloor.f32 %v9026
        %v9091 = vfloor.f32 %v9027
        %v9092 = vfloor.f32 %v9028
        %v9093 = vfloor.f32 %v9029
        %v9094 = vfloor.f32 %v9030
        %v9095 = vfloor.f32 %v9031
        %v9096 = vfloor.f32 %v9032
        %v9097 = vfloor.f32 %v9033
        %v9098 = vfloor.f32 %v9034
        %v9099 = vfloor.f32 %v9035
        %v9100 = vfloor.f32 %v9036
        %v9101 = vfloor.f32 %v9037
        %v9102 = vfloor.f32 %v9038
        %v9103 = vfloor.f32 %v9039
        %v9104 = vfloor.f32 %v9040
        %v9105 = vfloor.f32 %v9041
        %v9106 = vfloor.f32 %v9042
        %v9107 = vfloor.f32 %v9043
        %v9108 = vfloor.f32 %v9044
        %v9109 = vfloor.f32 %v9045
        %v9110 = vfloor.f32 %v9046
        %v9111 = vfloor.f32 %v9047
        %v9112 = vfloor.f32 %v9048
        %v9113 = vfloor.f32 %v9049
        %v9114 = vfloor.f32 %v9050
        %v9115 = vfloor.f32 %v9051
        %v9116 = vfloor.f32 %v9052
        %v9117 = vfloor.f32 %v9053
        %v9118 = vfloor.f32 %v9054
        %v9119 = vfloor.f32 %v9055
        %v9120 = vfloor.f32 %v9056
        %v9121 = vfloor.f32 %v9057
        %v9122 = vfloor.f32 %v9058
        %v9123 = vfloor.f32 %v9059
        %v9124 = vfloor.f32 %v9060
        %v9125 = vfloor.f32 %v9061
        %v9126 = vfloor.f32 %v9062
        %v9127 = vfloor.f32 %v9063
        %v9128 = vfloor.f32 %v9064
        %v9129 = vfloor.f32 %v9065
        %v9130 = vfloor.f32 %v9066
        %v9131 = vfloor.f32 %v9067
        %v9132 = vfloor.f32 %v9068
        %v9133 = vfloor.f32 %v9069
        %v9134 = vfloor.f32 %v9070
        %v9135 = vfloor.f32 %v9071
        %v9136 = vfloor.f32 %v9072
        %v9137 = vfloor.f32 %v9073
        %v9138 = vfloor.f32 %v9074
        %v9139 = vfloor.f32 %v9075
        %v9140 = vfloor.f32 %v9076
        %v9141 = vfloor.f32 %v9077
        %v9142 = vfloor.f32 %v9078
        %v9143 = vfloor.f32 %v9079
        %v9144 = vfloor.f32 %v9080
        %v9145 = vfloor.f32 %v9081
        %v9146 = vfloor.f32 %v9082
        %v9147 = vfloor.f32 %v9083
        %v9148 = vfloor.f32 %v9084
        %v9149 = vmul.f32 %v9085, 6.2831855
        %v9150 = vmul.f32 %v9086, 6.2831855
        %v9151 = vmul.f32 %v9087, 6.2831855
        %v9152 = vmul.f32 %v9088, 6.2831855
        %v9153 = vmul.f32 %v9089, 6.2831855
        %v9154 = vmul.f32 %v9090, 6.2831855
        %v9155 = vmul.f32 %v9091, 6.2831855
        %v9156 = vmul.f32 %v9092, 6.2831855
        %v9157 = vmul.f32 %v9093, 6.2831855
        %v9158 = vmul.f32 %v9094, 6.2831855
        %v9159 = vmul.f32 %v9095, 6.2831855
        %v9160 = vmul.f32 %v9096, 6.2831855
        %v9161 = vmul.f32 %v9097, 6.2831855
        %v9162 = vmul.f32 %v9098, 6.2831855
        %v9163 = vmul.f32 %v9099, 6.2831855
        %v9164 = vmul.f32 %v9100, 6.2831855
        %v9165 = vmul.f32 %v9101, 6.2831855
        %v9166 = vmul.f32 %v9102, 6.2831855
        %v9167 = vmul.f32 %v9103, 6.2831855
        %v9168 = vmul.f32 %v9104, 6.2831855
        %v9169 = vmul.f32 %v9105, 6.2831855
        %v9170 = vmul.f32 %v9106, 6.2831855
        %v9171 = vmul.f32 %v9107, 6.2831855
        %v9172 = vmul.f32 %v9108, 6.2831855
        %v9173 = vmul.f32 %v9109, 6.2831855
        %v9174 = vmul.f32 %v9110, 6.2831855
        %v9175 = vmul.f32 %v9111, 6.2831855
        %v9176 = vmul.f32 %v9112, 6.2831855
        %v9177 = vmul.f32 %v9113, 6.2831855
        %v9178 = vmul.f32 %v9114, 6.2831855
        %v9179 = vmul.f32 %v9115, 6.2831855
        %v9180 = vmul.f32 %v9116, 6.2831855
        %v9181 = vmul.f32 %v9117, 6.2831855
        %v9182 = vmul.f32 %v9118, 6.2831855
        %v9183 = vmul.f32 %v9119, 6.2831855
        %v9184 = vmul.f32 %v9120, 6.2831855
        %v9185 = vmul.f32 %v9121, 6.2831855
        %v9186 = vmul.f32 %v9122, 6.2831855
        %v9187 = vmul.f32 %v9123, 6.2831855
        %v9188 = vmul.f32 %v9124, 6.2831855
        %v9189 = vmul.f32 %v9125, 6.2831855
        %v9190 = vmul.f32 %v9126, 6.2831855
        %v9191 = vmul.f32 %v9127, 6.2831855
        %v9192 = vmul.f32 %v9128, 6.2831855
        %v9193 = vmul.f32 %v9129, 6.2831855
        %v9194 = vmul.f32 %v9130, 6.2831855
        %v9195 = vmul.f32 %v9131, 6.2831855
        %v9196 = vmul.f32 %v9132, 6.2831855
        %v9197 = vmul.f32 %v9133, 6.2831855
        %v9198 = vmul.f32 %v9134, 6.2831855
        %v9199 = vmul.f32 %v9135, 6.2831855
        %v9200 = vmul.f32 %v9136, 6.2831855
        %v9201 = vmul.f32 %v9137, 6.2831855
        %v9202 = vmul.f32 %v9138, 6.2831855
        %v9203 = vmul.f32 %v9139, 6.2831855
        %v9204 = vmul.f32 %v9140, 6.2831855
        %v9205 = vmul.f32 %v9141, 6.2831855
        %v9206 = vmul.f32 %v9142, 6.2831855
        %v9207 = vmul.f32 %v9143, 6.2831855
        %v9208 = vmul.f32 %v9144, 6.2831855
        %v9209 = vmul.f32 %v9145, 6.2831855
        %v9210 = vmul.f32 %v9146, 6.2831855
        %v9211 = vmul.f32 %v9147, 6.2831855
        %v9212 = vmul.f32 %v9148, 6.2831855
        %v9213 = vsub.f32 %v8766, %v9149
        %v9214 = vsub.f32 %v8768, %v9150
        %v9215 = vsub.f32 %v8879, %v9151
        %v9216 = vsub.f32 %v8881, %v9152
        %v9217 = vsub.f32 %v8770, %v9153
        %v9218 = vsub.f32 %v8772, %v9154
        %v9219 = vsub.f32 %v8883, %v9155
        %v9220 = vsub.f32 %v8885, %v9156
        %v9221 = vsub.f32 %v8776, %v9157
        %v9222 = vsub.f32 %v8778, %v9158
        %v9223 = vsub.f32 %v8889, %v9159
        %v9224 = vsub.f32 %v8891, %v9160
        %v9225 = vsub.f32 %v8780, %v9161
        %v9226 = vsub.f32 %v8782, %v9162
        %v9227 = vsub.f32 %v8893, %v9163
        %v9228 = vsub.f32 %v8895, %v9164
        %v9229 = vsub.f32 %v8786, %v9165
        %v9230 = vsub.f32 %v8788, %v9166
        %v9231 = vsub.f32 %v8899, %v9167
        %v9232 = vsub.f32 %v8901, %v9168
        %v9233 = vsub.f32 %v8790, %v9169
        %v9234 = vsub.f32 %v8792, %v9170
        %v9235 = vsub.f32 %v8903, %v9171
        %v9236 = vsub.f32 %v8905, %v9172
        %v9237 = vsub.f32 %v8796, %v9173
        %v9238 = vsub.f32 %v8798, %v9174
        %v9239 = vsub.f32 %v8909, %v9175
        %v9240 = vsub.f32 %v8911, %v9176
        %v9241 = vsub.f32 %v8800, %v9177
        %v9242 = vsub.f32 %v8802, %v9178
        %v9243 = vsub.f32 %v8913, %v9179
        %v9244 = vsub.f32 %v8915, %v9180
        %v9245 = vsub.f32 %v8806, %v9181
        %v9246 = vsub.f32 %v8808, %v9182
        %v9247 = vsub.f32 %v8919, %v9183
        %v9248 = vsub.f32 %v8921, %v9184
        %v9249 = vsub.f32 %v8810, %v9185
        %v9250 = vsub.f32 %v8812, %v9186
        %v9251 = vsub.f32 %v8923, %v9187
        %v9252 = vsub.f32 %v8925, %v9188
        %v9253 = vsub.f32 %v8816, %v9189
        %v9254 = vsub.f32 %v8818, %v9190
        %v9255 = vsub.f32 %v8929, %v9191
        %v9256 = vsub.f32 %v8931, %v9192
        %v9257 = vsub.f32 %v8820, %v9193
        %v9258 = vsub.f32 %v8822, %v9194
        %v9259 = vsub.f32 %v8933, %v9195
        %v9260 = vsub.f32 %v8935, %v9196
        %v9261 = vsub.f32 %v8826, %v9197
        %v9262 = vsub.f32 %v8828, %v9198
        %v9263 = vsub.f32 %v8939, %v9199
        %v9264 = vsub.f32 %v8941, %v9200
        %v9265 = vsub.f32 %v8830, %v9201
        %v9266 = vsub.f32 %v8832, %v9202
        %v9267 = vsub.f32 %v8943, %v9203
        %v9268 = vsub.f32 %v8945, %v9204
        %v9269 = vsub.f32 %v8836, %v9205
        %v9270 = vsub.f32 %v8838, %v9206
        %v9271 = vsub.f32 %v8949, %v9207
        %v9272 = vsub.f32 %v8951, %v9208
        %v9273 = vsub.f32 %v8840, %v9209
        %v9274 = vsub.f32 %v8842, %v9210
        %v9275 = vsub.f32 %v8953, %v9211
        %v9276 = vsub.f32 %v8955, %v9212
        %vm9277 = vcmp.gt.f32.partialorder %v9213, 1.5707964
        %vm9278 = vcmp.gt.f32.partialorder %v9214, 1.5707964
        %vm9279 = vcmp.gt.f32.partialorder %v9215, 1.5707964
        %vm9280 = vcmp.gt.f32.partialorder %v9216, 1.5707964
        %vm9281 = vcmp.gt.f32.partialorder %v9217, 1.5707964
        %vm9282 = vcmp.gt.f32.partialorder %v9218, 1.5707964
        %vm9283 = vcmp.gt.f32.partialorder %v9219, 1.5707964
        %vm9284 = vcmp.gt.f32.partialorder %v9220, 1.5707964
        %vm9285 = vcmp.gt.f32.partialorder %v9221, 1.5707964
        %vm9286 = vcmp.gt.f32.partialorder %v9222, 1.5707964
        %vm9287 = vcmp.gt.f32.partialorder %v9223, 1.5707964
        %vm9288 = vcmp.gt.f32.partialorder %v9224, 1.5707964
        %vm9289 = vcmp.gt.f32.partialorder %v9225, 1.5707964
        %vm9290 = vcmp.gt.f32.partialorder %v9226, 1.5707964
        %vm9291 = vcmp.gt.f32.partialorder %v9227, 1.5707964
        %vm9292 = vcmp.gt.f32.partialorder %v9228, 1.5707964
        %vm9293 = vcmp.gt.f32.partialorder %v9229, 1.5707964
        %vm9294 = vcmp.gt.f32.partialorder %v9230, 1.5707964
        %vm9295 = vcmp.gt.f32.partialorder %v9231, 1.5707964
        %vm9296 = vcmp.gt.f32.partialorder %v9232, 1.5707964
        %vm9297 = vcmp.gt.f32.partialorder %v9233, 1.5707964
        %vm9298 = vcmp.gt.f32.partialorder %v9234, 1.5707964
        %vm9299 = vcmp.gt.f32.partialorder %v9235, 1.5707964
        %vm9300 = vcmp.gt.f32.partialorder %v9236, 1.5707964
        %vm9301 = vcmp.gt.f32.partialorder %v9237, 1.5707964
        %vm9302 = vcmp.gt.f32.partialorder %v9238, 1.5707964
        %vm9303 = vcmp.gt.f32.partialorder %v9239, 1.5707964
        %vm9304 = vcmp.gt.f32.partialorder %v9240, 1.5707964
        %vm9305 = vcmp.gt.f32.partialorder %v9241, 1.5707964
        %vm9306 = vcmp.gt.f32.partialorder %v9242, 1.5707964
        %vm9307 = vcmp.gt.f32.partialorder %v9243, 1.5707964
        %vm9308 = vcmp.gt.f32.partialorder %v9244, 1.5707964
        %vm9309 = vcmp.gt.f32.partialorder %v9245, 1.5707964
        %vm9310 = vcmp.gt.f32.partialorder %v9246, 1.5707964
        %vm9311 = vcmp.gt.f32.partialorder %v9247, 1.5707964
        %vm9312 = vcmp.gt.f32.partialorder %v9248, 1.5707964
        %vm9313 = vcmp.gt.f32.partialorder %v9249, 1.5707964
        %vm9314 = vcmp.gt.f32.partialorder %v9250, 1.5707964
        %vm9315 = vcmp.gt.f32.partialorder %v9251, 1.5707964
        %vm9316 = vcmp.gt.f32.partialorder %v9252, 1.5707964
        %vm9317 = vcmp.gt.f32.partialorder %v9253, 1.5707964
        %vm9318 = vcmp.gt.f32.partialorder %v9254, 1.5707964
        %vm9319 = vcmp.gt.f32.partialorder %v9255, 1.5707964
        %vm9320 = vcmp.gt.f32.partialorder %v9256, 1.5707964
        %vm9321 = vcmp.gt.f32.partialorder %v9257, 1.5707964
        %vm9322 = vcmp.gt.f32.partialorder %v9258, 1.5707964
        %vm9323 = vcmp.gt.f32.partialorder %v9259, 1.5707964
        %vm9324 = vcmp.gt.f32.partialorder %v9260, 1.5707964
        %vm9325 = vcmp.gt.f32.partialorder %v9261, 1.5707964
        %vm9326 = vcmp.gt.f32.partialorder %v9262, 1.5707964
        %vm9327 = vcmp.gt.f32.partialorder %v9263, 1.5707964
        %vm9328 = vcmp.gt.f32.partialorder %v9264, 1.5707964
        %vm9329 = vcmp.gt.f32.partialorder %v9265, 1.5707964
        %vm9330 = vcmp.gt.f32.partialorder %v9266, 1.5707964
        %vm9331 = vcmp.gt.f32.partialorder %v9267, 1.5707964
        %vm9332 = vcmp.gt.f32.partialorder %v9268, 1.5707964
        %vm9333 = vcmp.gt.f32.partialorder %v9269, 1.5707964
        %vm9334 = vcmp.gt.f32.partialorder %v9270, 1.5707964
        %vm9335 = vcmp.gt.f32.partialorder %v9271, 1.5707964
        %vm9336 = vcmp.gt.f32.partialorder %v9272, 1.5707964
        %vm9337 = vcmp.gt.f32.partialorder %v9273, 1.5707964
        %vm9338 = vcmp.gt.f32.partialorder %v9274, 1.5707964
        %vm9339 = vcmp.gt.f32.partialorder %v9275, 1.5707964
        %vm9340 = vcmp.gt.f32.partialorder %v9276, 1.5707964
        %v9341 = vsub.f32 3.1415927, %v9213
        %v9342 = vsub.f32 3.1415927, %v9214
        %v9343 = vsub.f32 3.1415927, %v9215
        %v9344 = vsub.f32 3.1415927, %v9216
        %v9345 = vsub.f32 3.1415927, %v9217
        %v9346 = vsub.f32 3.1415927, %v9218
        %v9347 = vsub.f32 3.1415927, %v9219
        %v9348 = vsub.f32 3.1415927, %v9220
        %v9349 = vsub.f32 3.1415927, %v9221
        %v9350 = vsub.f32 3.1415927, %v9222
        %v9351 = vsub.f32 3.1415927, %v9223
        %v9352 = vsub.f32 3.1415927, %v9224
        %v9353 = vsub.f32 3.1415927, %v9225
        %v9354 = vsub.f32 3.1415927, %v9226
        %v9355 = vsub.f32 3.1415927, %v9227
        %v9356 = vsub.f32 3.1415927, %v9228
        %v9357 = vsub.f32 3.1415927, %v9229
        %v9358 = vsub.f32 3.1415927, %v9230
        %v9359 = vsub.f32 3.1415927, %v9231
        %v9360 = vsub.f32 3.1415927, %v9232
        %v9361 = vsub.f32 3.1415927, %v9233
        %v9362 = vsub.f32 3.1415927, %v9234
        %v9363 = vsub.f32 3.1415927, %v9235
        %v9364 = vsub.f32 3.1415927, %v9236
        %v9365 = vsub.f32 3.1415927, %v9237
        %v9366 = vsub.f32 3.1415927, %v9238
        %v9367 = vsub.f32 3.1415927, %v9239
        %v9368 = vsub.f32 3.1415927, %v9240
        %v9369 = vsub.f32 3.1415927, %v9241
        %v9370 = vsub.f32 3.1415927, %v9242
        %v9371 = vsub.f32 3.1415927, %v9243
        %v9372 = vsub.f32 3.1415927, %v9244
        %v9373 = vsub.f32 3.1415927, %v9245
        %v9374 = vsub.f32 3.1415927, %v9246
        %v9375 = vsub.f32 3.1415927, %v9247
        %v9376 = vsub.f32 3.1415927, %v9248
        %v9377 = vsub.f32 3.1415927, %v9249
        %v9378 = vsub.f32 3.1415927, %v9250
        %v9379 = vsub.f32 3.1415927, %v9251
        %v9380 = vsub.f32 3.1415927, %v9252
        %v9381 = vsub.f32 3.1415927, %v9253
        %v9382 = vsub.f32 3.1415927, %v9254
        %v9383 = vsub.f32 3.1415927, %v9255
        %v9384 = vsub.f32 3.1415927, %v9256
        %v9385 = vsub.f32 3.1415927, %v9257
        %v9386 = vsub.f32 3.1415927, %v9258
        %v9387 = vsub.f32 3.1415927, %v9259
        %v9388 = vsub.f32 3.1415927, %v9260
        %v9389 = vsub.f32 3.1415927, %v9261
        %v9390 = vsub.f32 3.1415927, %v9262
        %v9391 = vsub.f32 3.1415927, %v9263
        %v9392 = vsub.f32 3.1415927, %v9264
        %v9393 = vsub.f32 3.1415927, %v9265
        %v9394 = vsub.f32 3.1415927, %v9266
        %v9395 = vsub.f32 3.1415927, %v9267
        %v9396 = vsub.f32 3.1415927, %v9268
        %v9397 = vsub.f32 3.1415927, %v9269
        %v9398 = vsub.f32 3.1415927, %v9270
        %v9399 = vsub.f32 3.1415927, %v9271
        %v9400 = vsub.f32 3.1415927, %v9272
        %v9401 = vsub.f32 3.1415927, %v9273
        %v9402 = vsub.f32 3.1415927, %v9274
        %v9403 = vsub.f32 3.1415927, %v9275
        %v9404 = vsub.f32 3.1415927, %v9276
        %vm9405 = vcmp.lt.f32.partialorder %v9213, -1.5707964
        %vm9406 = vcmp.lt.f32.partialorder %v9214, -1.5707964
        %vm9407 = vcmp.lt.f32.partialorder %v9215, -1.5707964
        %vm9408 = vcmp.lt.f32.partialorder %v9216, -1.5707964
        %vm9409 = vcmp.lt.f32.partialorder %v9217, -1.5707964
        %vm9410 = vcmp.lt.f32.partialorder %v9218, -1.5707964
        %vm9411 = vcmp.lt.f32.partialorder %v9219, -1.5707964
        %vm9412 = vcmp.lt.f32.partialorder %v9220, -1.5707964
        %vm9413 = vcmp.lt.f32.partialorder %v9221, -1.5707964
        %vm9414 = vcmp.lt.f32.partialorder %v9222, -1.5707964
        %vm9415 = vcmp.lt.f32.partialorder %v9223, -1.5707964
        %vm9416 = vcmp.lt.f32.partialorder %v9224, -1.5707964
        %vm9417 = vcmp.lt.f32.partialorder %v9225, -1.5707964
        %vm9418 = vcmp.lt.f32.partialorder %v9226, -1.5707964
        %vm9419 = vcmp.lt.f32.partialorder %v9227, -1.5707964
        %vm9420 = vcmp.lt.f32.partialorder %v9228, -1.5707964
        %vm9421 = vcmp.lt.f32.partialorder %v9229, -1.5707964
        %vm9422 = vcmp.lt.f32.partialorder %v9230, -1.5707964
        %vm9423 = vcmp.lt.f32.partialorder %v9231, -1.5707964
        %vm9424 = vcmp.lt.f32.partialorder %v9232, -1.5707964
        %vm9425 = vcmp.lt.f32.partialorder %v9233, -1.5707964
        %vm9426 = vcmp.lt.f32.partialorder %v9234, -1.5707964
        %vm9427 = vcmp.lt.f32.partialorder %v9235, -1.5707964
        %vm9428 = vcmp.lt.f32.partialorder %v9236, -1.5707964
        %vm9429 = vcmp.lt.f32.partialorder %v9237, -1.5707964
        %vm9430 = vcmp.lt.f32.partialorder %v9238, -1.5707964
        %vm9431 = vcmp.lt.f32.partialorder %v9239, -1.5707964
        %vm9432 = vcmp.lt.f32.partialorder %v9240, -1.5707964
        %vm9433 = vcmp.lt.f32.partialorder %v9241, -1.5707964
        %vm9434 = vcmp.lt.f32.partialorder %v9242, -1.5707964
        %vm9435 = vcmp.lt.f32.partialorder %v9243, -1.5707964
        %vm9436 = vcmp.lt.f32.partialorder %v9244, -1.5707964
        %vm9437 = vcmp.lt.f32.partialorder %v9245, -1.5707964
        %vm9438 = vcmp.lt.f32.partialorder %v9246, -1.5707964
        %vm9439 = vcmp.lt.f32.partialorder %v9247, -1.5707964
        %vm9440 = vcmp.lt.f32.partialorder %v9248, -1.5707964
        %vm9441 = vcmp.lt.f32.partialorder %v9249, -1.5707964
        %vm9442 = vcmp.lt.f32.partialorder %v9250, -1.5707964
        %vm9443 = vcmp.lt.f32.partialorder %v9251, -1.5707964
        %vm9444 = vcmp.lt.f32.partialorder %v9252, -1.5707964
        %vm9445 = vcmp.lt.f32.partialorder %v9253, -1.5707964
        %vm9446 = vcmp.lt.f32.partialorder %v9254, -1.5707964
        %vm9447 = vcmp.lt.f32.partialorder %v9255, -1.5707964
        %vm9448 = vcmp.lt.f32.partialorder %v9256, -1.5707964
        %vm9449 = vcmp.lt.f32.partialorder %v9257, -1.5707964
        %vm9450 = vcmp.lt.f32.partialorder %v9258, -1.5707964
        %vm9451 = vcmp.lt.f32.partialorder %v9259, -1.5707964
        %vm9452 = vcmp.lt.f32.partialorder %v9260, -1.5707964
        %vm9453 = vcmp.lt.f32.partialorder %v9261, -1.5707964
        %vm9454 = vcmp.lt.f32.partialorder %v9262, -1.5707964
        %vm9455 = vcmp.lt.f32.partialorder %v9263, -1.5707964
        %vm9456 = vcmp.lt.f32.partialorder %v9264, -1.5707964
        %vm9457 = vcmp.lt.f32.partialorder %v9265, -1.5707964
        %vm9458 = vcmp.lt.f32.partialorder %v9266, -1.5707964
        %vm9459 = vcmp.lt.f32.partialorder %v9267, -1.5707964
        %vm9460 = vcmp.lt.f32.partialorder %v9268, -1.5707964
        %vm9461 = vcmp.lt.f32.partialorder %v9269, -1.5707964
        %vm9462 = vcmp.lt.f32.partialorder %v9270, -1.5707964
        %vm9463 = vcmp.lt.f32.partialorder %v9271, -1.5707964
        %vm9464 = vcmp.lt.f32.partialorder %v9272, -1.5707964
        %vm9465 = vcmp.lt.f32.partialorder %v9273, -1.5707964
        %vm9466 = vcmp.lt.f32.partialorder %v9274, -1.5707964
        %vm9467 = vcmp.lt.f32.partialorder %v9275, -1.5707964
        %vm9468 = vcmp.lt.f32.partialorder %v9276, -1.5707964
        %v9469 = vsub.f32 -3.1415927, %v9213
        %v9470 = vsub.f32 -3.1415927, %v9214
        %v9471 = vsub.f32 -3.1415927, %v9215
        %v9472 = vsub.f32 -3.1415927, %v9216
        %v9473 = vsub.f32 -3.1415927, %v9217
        %v9474 = vsub.f32 -3.1415927, %v9218
        %v9475 = vsub.f32 -3.1415927, %v9219
        %v9476 = vsub.f32 -3.1415927, %v9220
        %v9477 = vsub.f32 -3.1415927, %v9221
        %v9478 = vsub.f32 -3.1415927, %v9222
        %v9479 = vsub.f32 -3.1415927, %v9223
        %v9480 = vsub.f32 -3.1415927, %v9224
        %v9481 = vsub.f32 -3.1415927, %v9225
        %v9482 = vsub.f32 -3.1415927, %v9226
        %v9483 = vsub.f32 -3.1415927, %v9227
        %v9484 = vsub.f32 -3.1415927, %v9228
        %v9485 = vsub.f32 -3.1415927, %v9229
        %v9486 = vsub.f32 -3.1415927, %v9230
        %v9487 = vsub.f32 -3.1415927, %v9231
        %v9488 = vsub.f32 -3.1415927, %v9232
        %v9489 = vsub.f32 -3.1415927, %v9233
        %v9490 = vsub.f32 -3.1415927, %v9234
        %v9491 = vsub.f32 -3.1415927, %v9235
        %v9492 = vsub.f32 -3.1415927, %v9236
        %v9493 = vsub.f32 -3.1415927, %v9237
        %v9494 = vsub.f32 -3.1415927, %v9238
        %v9495 = vsub.f32 -3.1415927, %v9239
        %v9496 = vsub.f32 -3.1415927, %v9240
        %v9497 = vsub.f32 -3.1415927, %v9241
        %v9498 = vsub.f32 -3.1415927, %v9242
        %v9499 = vsub.f32 -3.1415927, %v9243
        %v9500 = vsub.f32 -3.1415927, %v9244
        %v9501 = vsub.f32 -3.1415927, %v9245
        %v9502 = vsub.f32 -3.1415927, %v9246
        %v9503 = vsub.f32 -3.1415927, %v9247
        %v9504 = vsub.f32 -3.1415927, %v9248
        %v9505 = vsub.f32 -3.1415927, %v9249
        %v9506 = vsub.f32 -3.1415927, %v9250
        %v9507 = vsub.f32 -3.1415927, %v9251
        %v9508 = vsub.f32 -3.1415927, %v9252
        %v9509 = vsub.f32 -3.1415927, %v9253
        %v9510 = vsub.f32 -3.1415927, %v9254
        %v9511 = vsub.f32 -3.1415927, %v9255
        %v9512 = vsub.f32 -3.1415927, %v9256
        %v9513 = vsub.f32 -3.1415927, %v9257
        %v9514 = vsub.f32 -3.1415927, %v9258
        %v9515 = vsub.f32 -3.1415927, %v9259
        %v9516 = vsub.f32 -3.1415927, %v9260
        %v9517 = vsub.f32 -3.1415927, %v9261
        %v9518 = vsub.f32 -3.1415927, %v9262
        %v9519 = vsub.f32 -3.1415927, %v9263
        %v9520 = vsub.f32 -3.1415927, %v9264
        %v9521 = vsub.f32 -3.1415927, %v9265
        %v9522 = vsub.f32 -3.1415927, %v9266
        %v9523 = vsub.f32 -3.1415927, %v9267
        %v9524 = vsub.f32 -3.1415927, %v9268
        %v9525 = vsub.f32 -3.1415927, %v9269
        %v9526 = vsub.f32 -3.1415927, %v9270
        %v9527 = vsub.f32 -3.1415927, %v9271
        %v9528 = vsub.f32 -3.1415927, %v9272
        %v9529 = vsub.f32 -3.1415927, %v9273
        %v9530 = vsub.f32 -3.1415927, %v9274
        %v9531 = vsub.f32 -3.1415927, %v9275
        %v9532 = vsub.f32 -3.1415927, %v9276
        %v9533 = vsel %vm9405, %v9469, %v9213
        %v9534 = vsel %vm9406, %v9470, %v9214
        %v9535 = vsel %vm9407, %v9471, %v9215
        %v9536 = vsel %vm9408, %v9472, %v9216
        %v9537 = vsel %vm9409, %v9473, %v9217
        %v9538 = vsel %vm9410, %v9474, %v9218
        %v9539 = vsel %vm9411, %v9475, %v9219
        %v9540 = vsel %vm9412, %v9476, %v9220
        %v9541 = vsel %vm9413, %v9477, %v9221
        %v9542 = vsel %vm9414, %v9478, %v9222
        %v9543 = vsel %vm9415, %v9479, %v9223
        %v9544 = vsel %vm9416, %v9480, %v9224
        %v9545 = vsel %vm9417, %v9481, %v9225
        %v9546 = vsel %vm9418, %v9482, %v9226
        %v9547 = vsel %vm9419, %v9483, %v9227
        %v9548 = vsel %vm9420, %v9484, %v9228
        %v9549 = vsel %vm9421, %v9485, %v9229
        %v9550 = vsel %vm9422, %v9486, %v9230
        %v9551 = vsel %vm9423, %v9487, %v9231
        %v9552 = vsel %vm9424, %v9488, %v9232
        %v9553 = vsel %vm9425, %v9489, %v9233
        %v9554 = vsel %vm9426, %v9490, %v9234
        %v9555 = vsel %vm9427, %v9491, %v9235
        %v9556 = vsel %vm9428, %v9492, %v9236
        %v9557 = vsel %vm9429, %v9493, %v9237
        %v9558 = vsel %vm9430, %v9494, %v9238
        %v9559 = vsel %vm9431, %v9495, %v9239
        %v9560 = vsel %vm9432, %v9496, %v9240
        %v9561 = vsel %vm9433, %v9497, %v9241
        %v9562 = vsel %vm9434, %v9498, %v9242
        %v9563 = vsel %vm9435, %v9499, %v9243
        %v9564 = vsel %vm9436, %v9500, %v9244
        %v9565 = vsel %vm9437, %v9501, %v9245
        %v9566 = vsel %vm9438, %v9502, %v9246
        %v9567 = vsel %vm9439, %v9503, %v9247
        %v9568 = vsel %vm9440, %v9504, %v9248
        %v9569 = vsel %vm9441, %v9505, %v9249
        %v9570 = vsel %vm9442, %v9506, %v9250
        %v9571 = vsel %vm9443, %v9507, %v9251
        %v9572 = vsel %vm9444, %v9508, %v9252
        %v9573 = vsel %vm9445, %v9509, %v9253
        %v9574 = vsel %vm9446, %v9510, %v9254
        %v9575 = vsel %vm9447, %v9511, %v9255
        %v9576 = vsel %vm9448, %v9512, %v9256
        %v9577 = vsel %vm9449, %v9513, %v9257
        %v9578 = vsel %vm9450, %v9514, %v9258
        %v9579 = vsel %vm9451, %v9515, %v9259
        %v9580 = vsel %vm9452, %v9516, %v9260
        %v9581 = vsel %vm9453, %v9517, %v9261
        %v9582 = vsel %vm9454, %v9518, %v9262
        %v9583 = vsel %vm9455, %v9519, %v9263
        %v9584 = vsel %vm9456, %v9520, %v9264
        %v9585 = vsel %vm9457, %v9521, %v9265
        %v9586 = vsel %vm9458, %v9522, %v9266
        %v9587 = vsel %vm9459, %v9523, %v9267
        %v9588 = vsel %vm9460, %v9524, %v9268
        %v9589 = vsel %vm9461, %v9525, %v9269
        %v9590 = vsel %vm9462, %v9526, %v9270
        %v9591 = vsel %vm9463, %v9527, %v9271
        %v9592 = vsel %vm9464, %v9528, %v9272
        %v9593 = vsel %vm9465, %v9529, %v9273
        %v9594 = vsel %vm9466, %v9530, %v9274
        %v9595 = vsel %vm9467, %v9531, %v9275
        %v9596 = vsel %vm9468, %v9532, %v9276
        %v9597 = vsel %vm9277, %v9341, %v9533
        %v9598 = vsel %vm9278, %v9342, %v9534
        %v9599 = vsel %vm9279, %v9343, %v9535
        %v9600 = vsel %vm9280, %v9344, %v9536
        %v9601 = vsel %vm9281, %v9345, %v9537
        %v9602 = vsel %vm9282, %v9346, %v9538
        %v9603 = vsel %vm9283, %v9347, %v9539
        %v9604 = vsel %vm9284, %v9348, %v9540
        %v9605 = vsel %vm9285, %v9349, %v9541
        %v9606 = vsel %vm9286, %v9350, %v9542
        %v9607 = vsel %vm9287, %v9351, %v9543
        %v9608 = vsel %vm9288, %v9352, %v9544
        %v9609 = vsel %vm9289, %v9353, %v9545
        %v9610 = vsel %vm9290, %v9354, %v9546
        %v9611 = vsel %vm9291, %v9355, %v9547
        %v9612 = vsel %vm9292, %v9356, %v9548
        %v9613 = vsel %vm9293, %v9357, %v9549
        %v9614 = vsel %vm9294, %v9358, %v9550
        %v9615 = vsel %vm9295, %v9359, %v9551
        %v9616 = vsel %vm9296, %v9360, %v9552
        %v9617 = vsel %vm9297, %v9361, %v9553
        %v9618 = vsel %vm9298, %v9362, %v9554
        %v9619 = vsel %vm9299, %v9363, %v9555
        %v9620 = vsel %vm9300, %v9364, %v9556
        %v9621 = vsel %vm9301, %v9365, %v9557
        %v9622 = vsel %vm9302, %v9366, %v9558
        %v9623 = vsel %vm9303, %v9367, %v9559
        %v9624 = vsel %vm9304, %v9368, %v9560
        %v9625 = vsel %vm9305, %v9369, %v9561
        %v9626 = vsel %vm9306, %v9370, %v9562
        %v9627 = vsel %vm9307, %v9371, %v9563
        %v9628 = vsel %vm9308, %v9372, %v9564
        %v9629 = vsel %vm9309, %v9373, %v9565
        %v9630 = vsel %vm9310, %v9374, %v9566
        %v9631 = vsel %vm9311, %v9375, %v9567
        %v9632 = vsel %vm9312, %v9376, %v9568
        %v9633 = vsel %vm9313, %v9377, %v9569
        %v9634 = vsel %vm9314, %v9378, %v9570
        %v9635 = vsel %vm9315, %v9379, %v9571
        %v9636 = vsel %vm9316, %v9380, %v9572
        %v9637 = vsel %vm9317, %v9381, %v9573
        %v9638 = vsel %vm9318, %v9382, %v9574
        %v9639 = vsel %vm9319, %v9383, %v9575
        %v9640 = vsel %vm9320, %v9384, %v9576
        %v9641 = vsel %vm9321, %v9385, %v9577
        %v9642 = vsel %vm9322, %v9386, %v9578
        %v9643 = vsel %vm9323, %v9387, %v9579
        %v9644 = vsel %vm9324, %v9388, %v9580
        %v9645 = vsel %vm9325, %v9389, %v9581
        %v9646 = vsel %vm9326, %v9390, %v9582
        %v9647 = vsel %vm9327, %v9391, %v9583
        %v9648 = vsel %vm9328, %v9392, %v9584
        %v9649 = vsel %vm9329, %v9393, %v9585
        %v9650 = vsel %vm9330, %v9394, %v9586
        %v9651 = vsel %vm9331, %v9395, %v9587
        %v9652 = vsel %vm9332, %v9396, %v9588
        %v9653 = vsel %vm9333, %v9397, %v9589
        %v9654 = vsel %vm9334, %v9398, %v9590
        %v9655 = vsel %vm9335, %v9399, %v9591
        %v9656 = vsel %vm9336, %v9400, %v9592
        %v9657 = vsel %vm9337, %v9401, %v9593
        %v9658 = vsel %vm9338, %v9402, %v9594
        %v9659 = vsel %vm9339, %v9403, %v9595
        %v9660 = vsel %vm9340, %v9404, %v9596
        %v9661 = vmul.f32 %v9597, %v9597
        %v9662 = vmul.f32 %v9598, %v9598
        %v9663 = vmul.f32 %v9599, %v9599
        %v9664 = vmul.f32 %v9600, %v9600
        %v9665 = vmul.f32 %v9601, %v9601
        %v9666 = vmul.f32 %v9602, %v9602
        %v9667 = vmul.f32 %v9603, %v9603
        %v9668 = vmul.f32 %v9604, %v9604
        %v9669 = vmul.f32 %v9605, %v9605
        %v9670 = vmul.f32 %v9606, %v9606
        %v9671 = vmul.f32 %v9607, %v9607
        %v9672 = vmul.f32 %v9608, %v9608
        %v9673 = vmul.f32 %v9609, %v9609
        %v9674 = vmul.f32 %v9610, %v9610
        %v9675 = vmul.f32 %v9611, %v9611
        %v9676 = vmul.f32 %v9612, %v9612
        %v9677 = vmul.f32 %v9613, %v9613
        %v9678 = vmul.f32 %v9614, %v9614
        %v9679 = vmul.f32 %v9615, %v9615
        %v9680 = vmul.f32 %v9616, %v9616
        %v9681 = vmul.f32 %v9617, %v9617
        %v9682 = vmul.f32 %v9618, %v9618
        %v9683 = vmul.f32 %v9619, %v9619
        %v9684 = vmul.f32 %v9620, %v9620
        %v9685 = vmul.f32 %v9621, %v9621
        %v9686 = vmul.f32 %v9622, %v9622
        %v9687 = vmul.f32 %v9623, %v9623
        %v9688 = vmul.f32 %v9624, %v9624
        %v9689 = vmul.f32 %v9625, %v9625
        %v9690 = vmul.f32 %v9626, %v9626
        %v9691 = vmul.f32 %v9627, %v9627
        %v9692 = vmul.f32 %v9628, %v9628
        %v9693 = vmul.f32 %v9629, %v9629
        %v9694 = vmul.f32 %v9630, %v9630
        %v9695 = vmul.f32 %v9631, %v9631
        %v9696 = vmul.f32 %v9632, %v9632
        %v9697 = vmul.f32 %v9633, %v9633
        %v9698 = vmul.f32 %v9634, %v9634
        %v9699 = vmul.f32 %v9635, %v9635
        %v9700 = vmul.f32 %v9636, %v9636
        %v9701 = vmul.f32 %v9637, %v9637
        %v9702 = vmul.f32 %v9638, %v9638
        %v9703 = vmul.f32 %v9639, %v9639
        %v9704 = vmul.f32 %v9640, %v9640
        %v9705 = vmul.f32 %v9641, %v9641
        %v9706 = vmul.f32 %v9642, %v9642
        %v9707 = vmul.f32 %v9643, %v9643
        %v9708 = vmul.f32 %v9644, %v9644
        %v9709 = vmul.f32 %v9645, %v9645
        %v9710 = vmul.f32 %v9646, %v9646
        %v9711 = vmul.f32 %v9647, %v9647
        %v9712 = vmul.f32 %v9648, %v9648
        %v9713 = vmul.f32 %v9649, %v9649
        %v9714 = vmul.f32 %v9650, %v9650
        %v9715 = vmul.f32 %v9651, %v9651
        %v9716 = vmul.f32 %v9652, %v9652
        %v9717 = vmul.f32 %v9653, %v9653
        %v9718 = vmul.f32 %v9654, %v9654
        %v9719 = vmul.f32 %v9655, %v9655
        %v9720 = vmul.f32 %v9656, %v9656
        %v9721 = vmul.f32 %v9657, %v9657
        %v9722 = vmul.f32 %v9658, %v9658
        %v9723 = vmul.f32 %v9659, %v9659
        %v9724 = vmul.f32 %v9660, %v9660
        %v9725 = vmul.f32 %v9661, -0.00019515296
        %v9726 = vmul.f32 %v9662, -0.00019515296
        %v9727 = vmul.f32 %v9663, -0.00019515296
        %v9728 = vmul.f32 %v9664, -0.00019515296
        %v9729 = vmul.f32 %v9665, -0.00019515296
        %v9730 = vmul.f32 %v9666, -0.00019515296
        %v9731 = vmul.f32 %v9667, -0.00019515296
        %v9732 = vmul.f32 %v9668, -0.00019515296
        %v9733 = vmul.f32 %v9669, -0.00019515296
        %v9734 = vmul.f32 %v9670, -0.00019515296
        %v9735 = vmul.f32 %v9671, -0.00019515296
        %v9736 = vmul.f32 %v9672, -0.00019515296
        %v9737 = vmul.f32 %v9673, -0.00019515296
        %v9738 = vmul.f32 %v9674, -0.00019515296
        %v9739 = vmul.f32 %v9675, -0.00019515296
        %v9740 = vmul.f32 %v9676, -0.00019515296
        %v9741 = vmul.f32 %v9677, -0.00019515296
        %v9742 = vmul.f32 %v9678, -0.00019515296
        %v9743 = vmul.f32 %v9679, -0.00019515296
        %v9744 = vmul.f32 %v9680, -0.00019515296
        %v9745 = vmul.f32 %v9681, -0.00019515296
        %v9746 = vmul.f32 %v9682, -0.00019515296
        %v9747 = vmul.f32 %v9683, -0.00019515296
        %v9748 = vmul.f32 %v9684, -0.00019515296
        %v9749 = vmul.f32 %v9685, -0.00019515296
        %v9750 = vmul.f32 %v9686, -0.00019515296
        %v9751 = vmul.f32 %v9687, -0.00019515296
        %v9752 = vmul.f32 %v9688, -0.00019515296
        %v9753 = vmul.f32 %v9689, -0.00019515296
        %v9754 = vmul.f32 %v9690, -0.00019515296
        %v9755 = vmul.f32 %v9691, -0.00019515296
        %v9756 = vmul.f32 %v9692, -0.00019515296
        %v9757 = vmul.f32 %v9693, -0.00019515296
        %v9758 = vmul.f32 %v9694, -0.00019515296
        %v9759 = vmul.f32 %v9695, -0.00019515296
        %v9760 = vmul.f32 %v9696, -0.00019515296
        %v9761 = vmul.f32 %v9697, -0.00019515296
        %v9762 = vmul.f32 %v9698, -0.00019515296
        %v9763 = vmul.f32 %v9699, -0.00019515296
        %v9764 = vmul.f32 %v9700, -0.00019515296
        %v9765 = vmul.f32 %v9701, -0.00019515296
        %v9766 = vmul.f32 %v9702, -0.00019515296
        %v9767 = vmul.f32 %v9703, -0.00019515296
        %v9768 = vmul.f32 %v9704, -0.00019515296
        %v9769 = vmul.f32 %v9705, -0.00019515296
        %v9770 = vmul.f32 %v9706, -0.00019515296
        %v9771 = vmul.f32 %v9707, -0.00019515296
        %v9772 = vmul.f32 %v9708, -0.00019515296
        %v9773 = vmul.f32 %v9709, -0.00019515296
        %v9774 = vmul.f32 %v9710, -0.00019515296
        %v9775 = vmul.f32 %v9711, -0.00019515296
        %v9776 = vmul.f32 %v9712, -0.00019515296
        %v9777 = vmul.f32 %v9713, -0.00019515296
        %v9778 = vmul.f32 %v9714, -0.00019515296
        %v9779 = vmul.f32 %v9715, -0.00019515296
        %v9780 = vmul.f32 %v9716, -0.00019515296
        %v9781 = vmul.f32 %v9717, -0.00019515296
        %v9782 = vmul.f32 %v9718, -0.00019515296
        %v9783 = vmul.f32 %v9719, -0.00019515296
        %v9784 = vmul.f32 %v9720, -0.00019515296
        %v9785 = vmul.f32 %v9721, -0.00019515296
        %v9786 = vmul.f32 %v9722, -0.00019515296
        %v9787 = vmul.f32 %v9723, -0.00019515296
        %v9788 = vmul.f32 %v9724, -0.00019515296
        %v9789 = vadd.f32 %v9725, 0.008332161
        %v9790 = vadd.f32 %v9726, 0.008332161
        %v9791 = vadd.f32 %v9727, 0.008332161
        %v9792 = vadd.f32 %v9728, 0.008332161
        %v9793 = vadd.f32 %v9729, 0.008332161
        %v9794 = vadd.f32 %v9730, 0.008332161
        %v9795 = vadd.f32 %v9731, 0.008332161
        %v9796 = vadd.f32 %v9732, 0.008332161
        %v9797 = vadd.f32 %v9733, 0.008332161
        %v9798 = vadd.f32 %v9734, 0.008332161
        %v9799 = vadd.f32 %v9735, 0.008332161
        %v9800 = vadd.f32 %v9736, 0.008332161
        %v9801 = vadd.f32 %v9737, 0.008332161
        %v9802 = vadd.f32 %v9738, 0.008332161
        %v9803 = vadd.f32 %v9739, 0.008332161
        %v9804 = vadd.f32 %v9740, 0.008332161
        %v9805 = vadd.f32 %v9741, 0.008332161
        %v9806 = vadd.f32 %v9742, 0.008332161
        %v9807 = vadd.f32 %v9743, 0.008332161
        %v9808 = vadd.f32 %v9744, 0.008332161
        %v9809 = vadd.f32 %v9745, 0.008332161
        %v9810 = vadd.f32 %v9746, 0.008332161
        %v9811 = vadd.f32 %v9747, 0.008332161
        %v9812 = vadd.f32 %v9748, 0.008332161
        %v9813 = vadd.f32 %v9749, 0.008332161
        %v9814 = vadd.f32 %v9750, 0.008332161
        %v9815 = vadd.f32 %v9751, 0.008332161
        %v9816 = vadd.f32 %v9752, 0.008332161
        %v9817 = vadd.f32 %v9753, 0.008332161
        %v9818 = vadd.f32 %v9754, 0.008332161
        %v9819 = vadd.f32 %v9755, 0.008332161
        %v9820 = vadd.f32 %v9756, 0.008332161
        %v9821 = vadd.f32 %v9757, 0.008332161
        %v9822 = vadd.f32 %v9758, 0.008332161
        %v9823 = vadd.f32 %v9759, 0.008332161
        %v9824 = vadd.f32 %v9760, 0.008332161
        %v9825 = vadd.f32 %v9761, 0.008332161
        %v9826 = vadd.f32 %v9762, 0.008332161
        %v9827 = vadd.f32 %v9763, 0.008332161
        %v9828 = vadd.f32 %v9764, 0.008332161
        %v9829 = vadd.f32 %v9765, 0.008332161
        %v9830 = vadd.f32 %v9766, 0.008332161
        %v9831 = vadd.f32 %v9767, 0.008332161
        %v9832 = vadd.f32 %v9768, 0.008332161
        %v9833 = vadd.f32 %v9769, 0.008332161
        %v9834 = vadd.f32 %v9770, 0.008332161
        %v9835 = vadd.f32 %v9771, 0.008332161
        %v9836 = vadd.f32 %v9772, 0.008332161
        %v9837 = vadd.f32 %v9773, 0.008332161
        %v9838 = vadd.f32 %v9774, 0.008332161
        %v9839 = vadd.f32 %v9775, 0.008332161
        %v9840 = vadd.f32 %v9776, 0.008332161
        %v9841 = vadd.f32 %v9777, 0.008332161
        %v9842 = vadd.f32 %v9778, 0.008332161
        %v9843 = vadd.f32 %v9779, 0.008332161
        %v9844 = vadd.f32 %v9780, 0.008332161
        %v9845 = vadd.f32 %v9781, 0.008332161
        %v9846 = vadd.f32 %v9782, 0.008332161
        %v9847 = vadd.f32 %v9783, 0.008332161
        %v9848 = vadd.f32 %v9784, 0.008332161
        %v9849 = vadd.f32 %v9785, 0.008332161
        %v9850 = vadd.f32 %v9786, 0.008332161
        %v9851 = vadd.f32 %v9787, 0.008332161
        %v9852 = vadd.f32 %v9788, 0.008332161
        %v9853 = vmul.f32 %v9661, %v9789
        %v9854 = vmul.f32 %v9662, %v9790
        %v9855 = vmul.f32 %v9663, %v9791
        %v9856 = vmul.f32 %v9664, %v9792
        %v9857 = vmul.f32 %v9665, %v9793
        %v9858 = vmul.f32 %v9666, %v9794
        %v9859 = vmul.f32 %v9667, %v9795
        %v9860 = vmul.f32 %v9668, %v9796
        %v9861 = vmul.f32 %v9669, %v9797
        %v9862 = vmul.f32 %v9670, %v9798
        %v9863 = vmul.f32 %v9671, %v9799
        %v9864 = vmul.f32 %v9672, %v9800
        %v9865 = vmul.f32 %v9673, %v9801
        %v9866 = vmul.f32 %v9674, %v9802
        %v9867 = vmul.f32 %v9675, %v9803
        %v9868 = vmul.f32 %v9676, %v9804
        %v9869 = vmul.f32 %v9677, %v9805
        %v9870 = vmul.f32 %v9678, %v9806
        %v9871 = vmul.f32 %v9679, %v9807
        %v9872 = vmul.f32 %v9680, %v9808
        %v9873 = vmul.f32 %v9681, %v9809
        %v9874 = vmul.f32 %v9682, %v9810
        %v9875 = vmul.f32 %v9683, %v9811
        %v9876 = vmul.f32 %v9684, %v9812
        %v9877 = vmul.f32 %v9685, %v9813
        %v9878 = vmul.f32 %v9686, %v9814
        %v9879 = vmul.f32 %v9687, %v9815
        %v9880 = vmul.f32 %v9688, %v9816
        %v9881 = vmul.f32 %v9689, %v9817
        %v9882 = vmul.f32 %v9690, %v9818
        %v9883 = vmul.f32 %v9691, %v9819
        %v9884 = vmul.f32 %v9692, %v9820
        %v9885 = vmul.f32 %v9693, %v9821
        %v9886 = vmul.f32 %v9694, %v9822
        %v9887 = vmul.f32 %v9695, %v9823
        %v9888 = vmul.f32 %v9696, %v9824
        %v9889 = vmul.f32 %v9697, %v9825
        %v9890 = vmul.f32 %v9698, %v9826
        %v9891 = vmul.f32 %v9699, %v9827
        %v9892 = vmul.f32 %v9700, %v9828
        %v9893 = vmul.f32 %v9701, %v9829
        %v9894 = vmul.f32 %v9702, %v9830
        %v9895 = vmul.f32 %v9703, %v9831
        %v9896 = vmul.f32 %v9704, %v9832
        %v9897 = vmul.f32 %v9705, %v9833
        %v9898 = vmul.f32 %v9706, %v9834
        %v9899 = vmul.f32 %v9707, %v9835
        %v9900 = vmul.f32 %v9708, %v9836
        %v9901 = vmul.f32 %v9709, %v9837
        %v9902 = vmul.f32 %v9710, %v9838
        %v9903 = vmul.f32 %v9711, %v9839
        %v9904 = vmul.f32 %v9712, %v9840
        %v9905 = vmul.f32 %v9713, %v9841
        %v9906 = vmul.f32 %v9714, %v9842
        %v9907 = vmul.f32 %v9715, %v9843
        %v9908 = vmul.f32 %v9716, %v9844
        %v9909 = vmul.f32 %v9717, %v9845
        %v9910 = vmul.f32 %v9718, %v9846
        %v9911 = vmul.f32 %v9719, %v9847
        %v9912 = vmul.f32 %v9720, %v9848
        %v9913 = vmul.f32 %v9721, %v9849
        %v9914 = vmul.f32 %v9722, %v9850
        %v9915 = vmul.f32 %v9723, %v9851
        %v9916 = vmul.f32 %v9724, %v9852
        %v9917 = vadd.f32 %v9853, -0.16666655
        %v9918 = vadd.f32 %v9854, -0.16666655
        %v9919 = vadd.f32 %v9855, -0.16666655
        %v9920 = vadd.f32 %v9856, -0.16666655
        %v9921 = vadd.f32 %v9857, -0.16666655
        %v9922 = vadd.f32 %v9858, -0.16666655
        %v9923 = vadd.f32 %v9859, -0.16666655
        %v9924 = vadd.f32 %v9860, -0.16666655
        %v9925 = vadd.f32 %v9861, -0.16666655
        %v9926 = vadd.f32 %v9862, -0.16666655
        %v9927 = vadd.f32 %v9863, -0.16666655
        %v9928 = vadd.f32 %v9864, -0.16666655
        %v9929 = vadd.f32 %v9865, -0.16666655
        %v9930 = vadd.f32 %v9866, -0.16666655
        %v9931 = vadd.f32 %v9867, -0.16666655
        %v9932 = vadd.f32 %v9868, -0.16666655
        %v9933 = vadd.f32 %v9869, -0.16666655
        %v9934 = vadd.f32 %v9870, -0.16666655
        %v9935 = vadd.f32 %v9871, -0.16666655
        %v9936 = vadd.f32 %v9872, -0.16666655
        %v9937 = vadd.f32 %v9873, -0.16666655
        %v9938 = vadd.f32 %v9874, -0.16666655
        %v9939 = vadd.f32 %v9875, -0.16666655
        %v9940 = vadd.f32 %v9876, -0.16666655
        %v9941 = vadd.f32 %v9877, -0.16666655
        %v9942 = vadd.f32 %v9878, -0.16666655
        %v9943 = vadd.f32 %v9879, -0.16666655
        %v9944 = vadd.f32 %v9880, -0.16666655
        %v9945 = vadd.f32 %v9881, -0.16666655
        %v9946 = vadd.f32 %v9882, -0.16666655
        %v9947 = vadd.f32 %v9883, -0.16666655
        %v9948 = vadd.f32 %v9884, -0.16666655
        %v9949 = vadd.f32 %v9885, -0.16666655
        %v9950 = vadd.f32 %v9886, -0.16666655
        %v9951 = vadd.f32 %v9887, -0.16666655
        %v9952 = vadd.f32 %v9888, -0.16666655
        %v9953 = vadd.f32 %v9889, -0.16666655
        %v9954 = vadd.f32 %v9890, -0.16666655
        %v9955 = vadd.f32 %v9891, -0.16666655
        %v9956 = vadd.f32 %v9892, -0.16666655
        %v9957 = vadd.f32 %v9893, -0.16666655
        %v9958 = vadd.f32 %v9894, -0.16666655
        %v9959 = vadd.f32 %v9895, -0.16666655
        %v9960 = vadd.f32 %v9896, -0.16666655
        %v9961 = vadd.f32 %v9897, -0.16666655
        %v9962 = vadd.f32 %v9898, -0.16666655
        %v9963 = vadd.f32 %v9899, -0.16666655
        %v9964 = vadd.f32 %v9900, -0.16666655
        %v9965 = vadd.f32 %v9901, -0.16666655
        %v9966 = vadd.f32 %v9902, -0.16666655
        %v9967 = vadd.f32 %v9903, -0.16666655
        %v9968 = vadd.f32 %v9904, -0.16666655
        %v9969 = vadd.f32 %v9905, -0.16666655
        %v9970 = vadd.f32 %v9906, -0.16666655
        %v9971 = vadd.f32 %v9907, -0.16666655
        %v9972 = vadd.f32 %v9908, -0.16666655
        %v9973 = vadd.f32 %v9909, -0.16666655
        %v9974 = vadd.f32 %v9910, -0.16666655
        %v9975 = vadd.f32 %v9911, -0.16666655
        %v9976 = vadd.f32 %v9912, -0.16666655
        %v9977 = vadd.f32 %v9913, -0.16666655
        %v9978 = vadd.f32 %v9914, -0.16666655
        %v9979 = vadd.f32 %v9915, -0.16666655
        %v9980 = vadd.f32 %v9916, -0.16666655
        %v9981 = vmul.f32 %v9661, %v9917
        %v9982 = vmul.f32 %v9662, %v9918
        %v9983 = vmul.f32 %v9663, %v9919
        %v9984 = vmul.f32 %v9664, %v9920
        %v9985 = vmul.f32 %v9665, %v9921
        %v9986 = vmul.f32 %v9666, %v9922
        %v9987 = vmul.f32 %v9667, %v9923
        %v9988 = vmul.f32 %v9668, %v9924
        %v9989 = vmul.f32 %v9669, %v9925
        %v9990 = vmul.f32 %v9670, %v9926
        %v9991 = vmul.f32 %v9671, %v9927
        %v9992 = vmul.f32 %v9672, %v9928
        %v9993 = vmul.f32 %v9673, %v9929
        %v9994 = vmul.f32 %v9674, %v9930
        %v9995 = vmul.f32 %v9675, %v9931
        %v9996 = vmul.f32 %v9676, %v9932
        %v9997 = vmul.f32 %v9677, %v9933
        %v9998 = vmul.f32 %v9678, %v9934
        %v9999 = vmul.f32 %v9679, %v9935
        %v10000 = vmul.f32 %v9680, %v9936
        %v10001 = vmul.f32 %v9681, %v9937
        %v10002 = vmul.f32 %v9682, %v9938
        %v10003 = vmul.f32 %v9683, %v9939
        %v10004 = vmul.f32 %v9684, %v9940
        %v10005 = vmul.f32 %v9685, %v9941
        %v10006 = vmul.f32 %v9686, %v9942
        %v10007 = vmul.f32 %v9687, %v9943
        %v10008 = vmul.f32 %v9688, %v9944
        %v10009 = vmul.f32 %v9689, %v9945
        %v10010 = vmul.f32 %v9690, %v9946
        %v10011 = vmul.f32 %v9691, %v9947
        %v10012 = vmul.f32 %v9692, %v9948
        %v10013 = vmul.f32 %v9693, %v9949
        %v10014 = vmul.f32 %v9694, %v9950
        %v10015 = vmul.f32 %v9695, %v9951
        %v10016 = vmul.f32 %v9696, %v9952
        %v10017 = vmul.f32 %v9697, %v9953
        %v10018 = vmul.f32 %v9698, %v9954
        %v10019 = vmul.f32 %v9699, %v9955
        %v10020 = vmul.f32 %v9700, %v9956
        %v10021 = vmul.f32 %v9701, %v9957
        %v10022 = vmul.f32 %v9702, %v9958
        %v10023 = vmul.f32 %v9703, %v9959
        %v10024 = vmul.f32 %v9704, %v9960
        %v10025 = vmul.f32 %v9705, %v9961
        %v10026 = vmul.f32 %v9706, %v9962
        %v10027 = vmul.f32 %v9707, %v9963
        %v10028 = vmul.f32 %v9708, %v9964
        %v10029 = vmul.f32 %v9709, %v9965
        %v10030 = vmul.f32 %v9710, %v9966
        %v10031 = vmul.f32 %v9711, %v9967
        %v10032 = vmul.f32 %v9712, %v9968
        %v10033 = vmul.f32 %v9713, %v9969
        %v10034 = vmul.f32 %v9714, %v9970
        %v10035 = vmul.f32 %v9715, %v9971
        %v10036 = vmul.f32 %v9716, %v9972
        %v10037 = vmul.f32 %v9717, %v9973
        %v10038 = vmul.f32 %v9718, %v9974
        %v10039 = vmul.f32 %v9719, %v9975
        %v10040 = vmul.f32 %v9720, %v9976
        %v10041 = vmul.f32 %v9721, %v9977
        %v10042 = vmul.f32 %v9722, %v9978
        %v10043 = vmul.f32 %v9723, %v9979
        %v10044 = vmul.f32 %v9724, %v9980
        %v10045 = vadd.f32 %v9981, 1.0
        %v10046 = vadd.f32 %v9982, 1.0
        %v10047 = vadd.f32 %v9983, 1.0
        %v10048 = vadd.f32 %v9984, 1.0
        %v10049 = vadd.f32 %v9985, 1.0
        %v10050 = vadd.f32 %v9986, 1.0
        %v10051 = vadd.f32 %v9987, 1.0
        %v10052 = vadd.f32 %v9988, 1.0
        %v10053 = vadd.f32 %v9989, 1.0
        %v10054 = vadd.f32 %v9990, 1.0
        %v10055 = vadd.f32 %v9991, 1.0
        %v10056 = vadd.f32 %v9992, 1.0
        %v10057 = vadd.f32 %v9993, 1.0
        %v10058 = vadd.f32 %v9994, 1.0
        %v10059 = vadd.f32 %v9995, 1.0
        %v10060 = vadd.f32 %v9996, 1.0
        %v10061 = vadd.f32 %v9997, 1.0
        %v10062 = vadd.f32 %v9998, 1.0
        %v10063 = vadd.f32 %v9999, 1.0
        %v10064 = vadd.f32 %v10000, 1.0
        %v10065 = vadd.f32 %v10001, 1.0
        %v10066 = vadd.f32 %v10002, 1.0
        %v10067 = vadd.f32 %v10003, 1.0
        %v10068 = vadd.f32 %v10004, 1.0
        %v10069 = vadd.f32 %v10005, 1.0
        %v10070 = vadd.f32 %v10006, 1.0
        %v10071 = vadd.f32 %v10007, 1.0
        %v10072 = vadd.f32 %v10008, 1.0
        %v10073 = vadd.f32 %v10009, 1.0
        %v10074 = vadd.f32 %v10010, 1.0
        %v10075 = vadd.f32 %v10011, 1.0
        %v10076 = vadd.f32 %v10012, 1.0
        %v10077 = vadd.f32 %v10013, 1.0
        %v10078 = vadd.f32 %v10014, 1.0
        %v10079 = vadd.f32 %v10015, 1.0
        %v10080 = vadd.f32 %v10016, 1.0
        %v10081 = vadd.f32 %v10017, 1.0
        %v10082 = vadd.f32 %v10018, 1.0
        %v10083 = vadd.f32 %v10019, 1.0
        %v10084 = vadd.f32 %v10020, 1.0
        %v10085 = vadd.f32 %v10021, 1.0
        %v10086 = vadd.f32 %v10022, 1.0
        %v10087 = vadd.f32 %v10023, 1.0
        %v10088 = vadd.f32 %v10024, 1.0
        %v10089 = vadd.f32 %v10025, 1.0
        %v10090 = vadd.f32 %v10026, 1.0
        %v10091 = vadd.f32 %v10027, 1.0
        %v10092 = vadd.f32 %v10028, 1.0
        %v10093 = vadd.f32 %v10029, 1.0
        %v10094 = vadd.f32 %v10030, 1.0
        %v10095 = vadd.f32 %v10031, 1.0
        %v10096 = vadd.f32 %v10032, 1.0
        %v10097 = vadd.f32 %v10033, 1.0
        %v10098 = vadd.f32 %v10034, 1.0
        %v10099 = vadd.f32 %v10035, 1.0
        %v10100 = vadd.f32 %v10036, 1.0
        %v10101 = vadd.f32 %v10037, 1.0
        %v10102 = vadd.f32 %v10038, 1.0
        %v10103 = vadd.f32 %v10039, 1.0
        %v10104 = vadd.f32 %v10040, 1.0
        %v10105 = vadd.f32 %v10041, 1.0
        %v10106 = vadd.f32 %v10042, 1.0
        %v10107 = vadd.f32 %v10043, 1.0
        %v10108 = vadd.f32 %v10044, 1.0
        %v10109 = vmul.f32 %v9597, %v10045
        %v10110 = vmul.f32 %v9598, %v10046
        %v10111 = vmul.f32 %v9599, %v10047
        %v10112 = vmul.f32 %v9600, %v10048
        %v10113 = vmul.f32 %v9601, %v10049
        %v10114 = vmul.f32 %v9602, %v10050
        %v10115 = vmul.f32 %v9603, %v10051
        %v10116 = vmul.f32 %v9604, %v10052
        %v10117 = vmul.f32 %v9605, %v10053
        %v10118 = vmul.f32 %v9606, %v10054
        %v10119 = vmul.f32 %v9607, %v10055
        %v10120 = vmul.f32 %v9608, %v10056
        %v10121 = vmul.f32 %v9609, %v10057
        %v10122 = vmul.f32 %v9610, %v10058
        %v10123 = vmul.f32 %v9611, %v10059
        %v10124 = vmul.f32 %v9612, %v10060
        %v10125 = vmul.f32 %v9613, %v10061
        %v10126 = vmul.f32 %v9614, %v10062
        %v10127 = vmul.f32 %v9615, %v10063
        %v10128 = vmul.f32 %v9616, %v10064
        %v10129 = vmul.f32 %v9617, %v10065
        %v10130 = vmul.f32 %v9618, %v10066
        %v10131 = vmul.f32 %v9619, %v10067
        %v10132 = vmul.f32 %v9620, %v10068
        %v10133 = vmul.f32 %v9621, %v10069
        %v10134 = vmul.f32 %v9622, %v10070
        %v10135 = vmul.f32 %v9623, %v10071
        %v10136 = vmul.f32 %v9624, %v10072
        %v10137 = vmul.f32 %v9625, %v10073
        %v10138 = vmul.f32 %v9626, %v10074
        %v10139 = vmul.f32 %v9627, %v10075
        %v10140 = vmul.f32 %v9628, %v10076
        %v10141 = vmul.f32 %v9629, %v10077
        %v10142 = vmul.f32 %v9630, %v10078
        %v10143 = vmul.f32 %v9631, %v10079
        %v10144 = vmul.f32 %v9632, %v10080
        %v10145 = vmul.f32 %v9633, %v10081
        %v10146 = vmul.f32 %v9634, %v10082
        %v10147 = vmul.f32 %v9635, %v10083
        %v10148 = vmul.f32 %v9636, %v10084
        %v10149 = vmul.f32 %v9637, %v10085
        %v10150 = vmul.f32 %v9638, %v10086
        %v10151 = vmul.f32 %v9639, %v10087
        %v10152 = vmul.f32 %v9640, %v10088
        %v10153 = vmul.f32 %v9641, %v10089
        %v10154 = vmul.f32 %v9642, %v10090
        %v10155 = vmul.f32 %v9643, %v10091
        %v10156 = vmul.f32 %v9644, %v10092
        %v10157 = vmul.f32 %v9645, %v10093
        %v10158 = vmul.f32 %v9646, %v10094
        %v10159 = vmul.f32 %v9647, %v10095
        %v10160 = vmul.f32 %v9648, %v10096
        %v10161 = vmul.f32 %v9649, %v10097
        %v10162 = vmul.f32 %v9650, %v10098
        %v10163 = vmul.f32 %v9651, %v10099
        %v10164 = vmul.f32 %v9652, %v10100
        %v10165 = vmul.f32 %v9653, %v10101
        %v10166 = vmul.f32 %v9654, %v10102
        %v10167 = vmul.f32 %v9655, %v10103
        %v10168 = vmul.f32 %v9656, %v10104
        %v10169 = vmul.f32 %v9657, %v10105
        %v10170 = vmul.f32 %v9658, %v10106
        %v10171 = vmul.f32 %v9659, %v10107
        %v10172 = vmul.f32 %v9660, %v10108
        %v10173 = vld [vmem:[%s5] sm:$0x7]
        %v10174 = vld [vmem:[%s6] sm:$0x7]
        %10176 = vset.pattern.permute.xlu0 0
        %10177 = vperm.xlu0 %10176, %v10174
        %v10178 = vpop.permute.xlu0 %10177
        %10180 = vmatprep.subr.mxu0 %v10170
        %10181 = vmatpush1.msra.mxu0 %v10169
        %10182 = vmatprep.subr.mxu0 %v10166
        %10183 = vmatpush1.msra.mxu0 %v10165
        %10184 = vmatprep.subr.mxu0 %v10162
        %10185 = vmatpush1.msra.mxu0 %v10161
        %10186 = vmatprep.subr.mxu0 %v10158
        %10187 = vmatpush1.msra.mxu0 %v10157
        %10188 = vmatprep.subr.mxu0 %v10154
        %10189 = vmatpush1.msra.mxu0 %v10153
        %10190 = vmatprep.subr.mxu0 %v10150
        %10191 = vmatpush1.msra.mxu0 %v10149
        %10192 = vmatprep.subr.mxu0 %v10146
        %10193 = vmatpush1.msra.mxu0 %v10145
        %10194 = vmatprep.subr.mxu0 %v10142
        %10195 = vmatpush1.msra.mxu0 %v10141
        %10196 = vmatprep.subr.mxu0 %v10138
        %10197 = vmatpush1.msra.mxu0 %v10137
        %10198 = vmatprep.subr.mxu0 %v10134
        %10199 = vmatpush1.msra.mxu0 %v10133
        %10200 = vmatprep.subr.mxu0 %v10130
        %10201 = vmatpush1.msra.mxu0 %v10129
        %10202 = vmatprep.subr.mxu0 %v10126
        %10203 = vmatpush1.msra.mxu0 %v10125
        %10204 = vmatprep.subr.mxu0 %v10122
        %10205 = vmatpush1.msra.mxu0 %v10121
        %10206 = vmatprep.subr.mxu0 %v10118
        %10207 = vmatpush1.msra.mxu0 %v10117
        %10208 = vmatprep.subr.mxu0 %v10114
        %10209 = vmatpush1.msra.mxu0 %v10113
        %10210 = vmatprep.subr.mxu0 %v10110
        %10211 = vmatpush1.msra.mxu0 %v10109
        %10212 = vmatprep.subr.mxu0 0.0
        %10213 = vmatpush2.msra.mxu0 0.0
        %10214 = vmatprep.subr.mxu0 0.0
        %10215 = vmatpush2.msra.mxu0 0.0
        %10216 = vmatprep.subr.mxu0 0.0
        %10217 = vmatpush2.msra.mxu0 0.0
        %10218 = vmatprep.subr.mxu0 0.0
        %10219 = vmatpush2.msra.mxu0 0.0
        %10220 = vmatprep.subr.mxu0 0.0
        %10221 = vmatpush2.msra.mxu0 0.0
        %10222 = vmatprep.subr.mxu0 0.0
        %10223 = vmatpush2.msra.mxu0 0.0
        %10224 = vmatprep.subr.mxu0 0.0
        %10225 = vmatpush2.msra.mxu0 0.0
        %10226 = vmatprep.subr.mxu0 0.0
        %10227 = vmatpush2.msra.mxu0 0.0
        %10228 = vmatprep.subr.mxu0 0.0
        %10229 = vmatpush2.msra.mxu0 0.0
        %10230 = vmatprep.subr.mxu0 0.0
        %10231 = vmatpush2.msra.mxu0 0.0
        %10232 = vmatprep.subr.mxu0 0.0
        %10233 = vmatpush2.msra.mxu0 0.0
        %10234 = vmatprep.subr.mxu0 0.0
        %10235 = vmatpush2.msra.mxu0 0.0
        %10236 = vmatprep.subr.mxu0 0.0
        %10237 = vmatpush2.msra.mxu0 0.0
        %10238 = vmatprep.subr.mxu0 0.0
        %10239 = vmatpush2.msra.mxu0 0.0
        %10240 = vmatprep.subr.mxu0 0.0
        %10241 = vmatpush2.msra.mxu0 0.0
        %10242 = vmatprep.subr.mxu0 0.0
        %10243 = vmatpush2.msra.mxu0 0.0
        %10244 = vmatprep.mubr.f32.mxu0 0.0
        %10245 = vmatmul.mubr.f32.gmra.mxu0 %v10173
        %v10246 = vpop.f32.mrf.mxu0
        %v10247 = vadd.f32 %v10178, %v10246
        %v10248 = vpop.f32.mrf.mxu0
        %v10249 = vadd.f32 %v10178, %v10248
        %10250 = vdwg.mxu0
        %10251 = vmatprep.subr.mxu0 %v10172
        %10252 = vmatpush1.msra.mxu0 %v10171
        %10253 = vmatprep.subr.mxu0 %v10168
        %10254 = vmatpush1.msra.mxu0 %v10167
        %10255 = vmatprep.subr.mxu0 %v10164
        %10256 = vmatpush1.msra.mxu0 %v10163
        %10257 = vmatprep.subr.mxu0 %v10160
        %10258 = vmatpush1.msra.mxu0 %v10159
        %10259 = vmatprep.subr.mxu0 %v10156
        %10260 = vmatpush1.msra.mxu0 %v10155
        %10261 = vmatprep.subr.mxu0 %v10152
        %10262 = vmatpush1.msra.mxu0 %v10151
        %10263 = vmatprep.subr.mxu0 %v10148
        %10264 = vmatpush1.msra.mxu0 %v10147
        %10265 = vmatprep.subr.mxu0 %v10144
        %10266 = vmatpush1.msra.mxu0 %v10143
        %10267 = vmatprep.subr.mxu0 %v10140
        %10268 = vmatpush1.msra.mxu0 %v10139
        %10269 = vmatprep.subr.mxu0 %v10136
        %10270 = vmatpush1.msra.mxu0 %v10135
        %10271 = vmatprep.subr.mxu0 %v10132
        %10272 = vmatpush1.msra.mxu0 %v10131
        %10273 = vmatprep.subr.mxu0 %v10128
        %10274 = vmatpush1.msra.mxu0 %v10127
        %10275 = vmatprep.subr.mxu0 %v10124
        %10276 = vmatpush1.msra.mxu0 %v10123
        %10277 = vmatprep.subr.mxu0 %v10120
        %10278 = vmatpush1.msra.mxu0 %v10119
        %10279 = vmatprep.subr.mxu0 %v10116
        %10280 = vmatpush1.msra.mxu0 %v10115
        %10281 = vmatprep.subr.mxu0 %v10112
        %10282 = vmatpush1.msra.mxu0 %v10111
        %10283 = vmatprep.subr.mxu0 0.0
        %10284 = vmatpush2.msra.mxu0 0.0
        %10285 = vmatprep.subr.mxu0 0.0
        %10286 = vmatpush2.msra.mxu0 0.0
        %10287 = vmatprep.subr.mxu0 0.0
        %10288 = vmatpush2.msra.mxu0 0.0
        %10289 = vmatprep.subr.mxu0 0.0
        %10290 = vmatpush2.msra.mxu0 0.0
        %10291 = vmatprep.subr.mxu0 0.0
        %10292 = vmatpush2.msra.mxu0 0.0
        %10293 = vmatprep.subr.mxu0 0.0
        %10294 = vmatpush2.msra.mxu0 0.0
        %10295 = vmatprep.subr.mxu0 0.0
        %10296 = vmatpush2.msra.mxu0 0.0
        %10297 = vmatprep.subr.mxu0 0.0
        %10298 = vmatpush2.msra.mxu0 0.0
        %10299 = vmatprep.subr.mxu0 0.0
        %10300 = vmatpush2.msra.mxu0 0.0
        %10301 = vmatprep.subr.mxu0 0.0
        %10302 = vmatpush2.msra.mxu0 0.0
        %10303 = vmatprep.subr.mxu0 0.0
        %10304 = vmatpush2.msra.mxu0 0.0
        %10305 = vmatprep.subr.mxu0 0.0
        %10306 = vmatpush2.msra.mxu0 0.0
        %10307 = vmatprep.subr.mxu0 0.0
        %10308 = vmatpush2.msra.mxu0 0.0
        %10309 = vmatprep.subr.mxu0 0.0
        %10310 = vmatpush2.msra.mxu0 0.0
        %10311 = vmatprep.subr.mxu0 0.0
        %10312 = vmatpush2.msra.mxu0 0.0
        %10313 = vmatprep.subr.mxu0 0.0
        %10314 = vmatpush2.msra.mxu0 0.0
        %10315 = vmatprep.mubr.f32.mxu0 0.0
        %10316 = vmatmul.mubr.f32.gmra.mxu0 %v10173
        %v10317 = vpop.f32.mrf.mxu0
        %v10318 = vadd.f32 %v10178, %v10317
        %v10319 = vpop.f32.mrf.mxu0
        %v10320 = vadd.f32 %v10178, %v10319
        %10321 = vdwg.mxu0
        %v10326 = vcombine.low %v10247, %v10249
        %v10327 = vcombine.low %v10318, %v10320
        %10330 = vst [vmem:[%s272] sm:$0x77] %v10326
        %10331 = vst [vmem:[%s272 + $0x8] sm:$0x77] %v10327
        %s10332 = sand.u32 %s181, 1
        %s10333 = scalar_lea.sflag [#allocation3], %s10332
        %s10334 = sand.u32 %s181, 1
        %s10335 = smul.addr %s10334, 16
        %s10336 = scalar_lea.vmem [#allocation2], %s10335
        // Predicated region
        $region49: #{tpu_custom_call.1} parent=47 // pred_check
          %p10337 = pneg %p191
        $region50: #{tpu_custom_call.1} parent=47 // pred_check_branch
          %10339 = sbr.rel (%p10337) target = $region52
        $region51: #{tpu_custom_call.1} parent=47 // pred_region
          %s10340 = smul.u32 4, %s21
          %s10342 = ssub.s32 256, 256
          %10343 = vsyncadd %s10333, %s10342
          %s10344 = smul.addr %s10340, 64
          %s10345 = scalar_lea.hbm %s7, %s10344
          %s10347 = sshll.u32 %s10336, 4
          %s10348 = int_to_ptr.vmem [resolvable:$true] %s10347
          %10350 = dma.vmem_to_hbm [thread:$0]  %s10348, 256, %s10345, %s10333
        $region52: #{tpu_custom_call.1} parent=47 // pred_fallthru
          _
      $region48: #{tpu_custom_call.1} parent=5 // pred_fallthru
        _
      %p10351 = scmp.le.s32.totalorder 2, %s16
      // Predicated region
      $region53: #{tpu_custom_call.1} parent=5 // pred_check
        %p10352 = pneg %p10351
      $region54: #{tpu_custom_call.1} parent=5 // pred_check_branch
        %10354 = sbr.rel (%p10352) target = $region56
      $region55: #{tpu_custom_call.1} parent=5 // pred_region
        %s10355 = ssub.s32 %s16, 2
        // Predicated region
        $region57: #{tpu_custom_call.1} parent=55 // pred_check
          %p10356 = pneg %p197
        $region58: #{tpu_custom_call.1} parent=55 // pred_check_branch
          %10358 = sbr.rel (%p10356) target = $region60
        $region59: #{tpu_custom_call.1} parent=55 // pred_region
          %s10359 = sand.u32 %s182, 1
          %s10360 = scalar_lea.sflag [#allocation3], %s10359
          %s10361 = sand.u32 %s182, 1
          %s10362 = smul.addr %s10361, 16
          %s10363 = scalar_lea.vmem [#allocation2], %s10362
          %10364 = dma.done %s10360, 256
        $region60: #{tpu_custom_call.1} parent=55 // pred_fallthru
          _
      $region56: #{tpu_custom_call.1} parent=5 // pred_fallthru
        _
    $region6: #{tpu_custom_call.1} parent=1 // loop_footer
      %s20 = sadd.s32 1, %s16
    $region7: #{tpu_custom_call.1} parent=1 // loop_footer_branch
      %15 = sbr.rel target = $region3
    $region8: #{tpu_custom_call.1} parent=1 // loop_exit
      _
    %10365 = vsyncpa [#allocation3], 1
    %s10366 = scalar_lea.sflag [#allocation3], 1
    %10367 = vsyncpa %s10366, 1

</llo_original>
